<compile_context>
chip_gen: v7x
topology: tpu7x:2x2x1
jax: 0.10.0
libtpu: 0.0.40
codegen_flags: <defaults>
</compile_context>

<pallas_src>
import jax
import jax.numpy as jnp
from jax import lax
from jax.experimental import pallas as pl
from jax.experimental.pallas import tpu as pltpu

BN_EPS = 1e-3


def _round_up(x, m):
    return (x + m - 1) // m * m


def _parallel_params():
    return pltpu.CompilerParams(dimension_semantics=("parallel",))


def _cost(flops, bytes_accessed):
    return pl.CostEstimate(flops=int(flops), transcendentals=0,
                           bytes_accessed=int(bytes_accessed))


def _colsum(v):
    """(A, B, C) -> (1, C): sum over the first two axes."""
    return jnp.sum(jnp.sum(v, axis=0), axis=0, keepdims=True)


# ----------------------------------------------------------------------------
# Kernel 1: 1x1 conv (dbl1) + partial BN statistics (raw output stored bf16).
# ----------------------------------------------------------------------------
def _conv1x1_kernel(x_ref, w_ref, y_ref, st_ref):
    # x_ref: (1, M, Cin) bf16   w_ref: (Cin, Cout) bf16
    # y_ref: (1, M, Cout) bf16  st_ref: (1, 2, Cout) f32 partial [sum, sumsq]
    y = jnp.dot(x_ref[0], w_ref[...], preferred_element_type=jnp.float32)
    y_ref[0] = y.astype(jnp.bfloat16)
    st_ref[0, 0:1, :] = jnp.sum(y, axis=0, keepdims=True)
    st_ref[0, 1:2, :] = jnp.sum(y * y, axis=0, keepdims=True)


def _conv1x1_call(x2d, w_bf16):
    n, m, cin = x2d.shape
    cout = w_bf16.shape[-1]
    return pl.pallas_call(
        _conv1x1_kernel,
        out_shape=(jax.ShapeDtypeStruct((n, m, cout), jnp.bfloat16),
                   jax.ShapeDtypeStruct((n, 2, cout), jnp.float32)),
        grid=(n,),
        in_specs=[
            pl.BlockSpec((1, m, cin), lambda i: (i, 0, 0)),
            pl.BlockSpec((cin, cout), lambda i: (0, 0)),
        ],
        out_specs=(
            pl.BlockSpec((1, m, cout), lambda i: (i, 0, 0)),
            pl.BlockSpec((1, 2, cout), lambda i: (i, 0, 0)),
        ),
        compiler_params=_parallel_params(),
        cost_estimate=_cost(
            2 * n * m * cin * cout,
            2 * (n * m * cin + cin * cout + n * m * cout) + 4 * n * 2 * cout),
    )(x2d, w_bf16)


# ----------------------------------------------------------------------------
# Kernel 2: 3x3 stride-1 pad-1 conv (dbl2), fused with the previous layer's
# BN+ReLU on its input.  Per-kh width-im2col LHS (K = 3*Cin) in VMEM, bf16
# padded-activation scratch (borders only re-zeroed), padded-width bf16 output.
# ----------------------------------------------------------------------------
def _make_conv3x3_s1p1_kernel(h, w, wp, cin, cout):
    def kernel(y_in_ref, s_ref, b_ref, w_ref, y_ref, st_ref, xpad_ref, l_ref):
        # y_in_ref: (1, H, W, Cin) bf16 (raw previous conv output)
        # s/b_ref : (1, Cin) f32 folded BN scale/shift of the previous layer
        # w_ref   : (3, 3*Cin, Cout) bf16
        # y_ref   : (1, H, Wp, Cout) bf16   st_ref: (1, 2, Cout) f32
        # xpad_ref: VMEM (H+2, Wp+2, Cin) bf16   l_ref: VMEM (H, Wp, 3*Cin) bf16
        scale = s_ref[...].reshape(1, 1, cin)
        shift = b_ref[...].reshape(1, 1, cin)
        act = jnp.maximum(y_in_ref[0].astype(jnp.float32) * scale + shift, 0.0)

        # Zero only the padding border strips (cheap, megacore/parallel-safe).
        zrow = jnp.zeros((1, wp + 2, cin), jnp.bfloat16)
        xpad_ref[0:1, :, :] = zrow
        xpad_ref[h + 1:h + 2, :, :] = zrow
        xpad_ref[:, 0:1, :] = jnp.zeros((h + 2, 1, cin), jnp.bfloat16)
        xpad_ref[:, w + 1:wp + 2, :] = jnp.zeros((h + 2, wp + 1 - w, cin),
                                                 jnp.bfloat16)
        xpad_ref[1:h + 1, 1:w + 1, :] = act.astype(jnp.bfloat16)

        acc = None
        for kh in range(3):
            # Width-only im2col: (H, Wp, 3*Cin), built once per kh in VMEM.
            l_ref[:, :, 0:cin] = xpad_ref[kh:kh + h, 0:wp, :]
            l_ref[:, :, cin:2 * cin] = xpad_ref[kh:kh + h, 1:wp + 1, :]
            l_ref[:, :, 2 * cin:3 * cin] = xpad_ref[kh:kh + h, 2:wp + 2, :]
            d = jnp.dot(l_ref[...].reshape(h * wp, 3 * cin), w_ref[kh],
                        preferred_element_type=jnp.float32)
            acc = d if acc is None else acc + d

        val = acc.reshape(h, wp, cout)
        y_ref[0] = val.astype(jnp.bfloat16)
        vv = val[:, :w, :]                       # stats over the valid width only
        st_ref[0, 0:1, :] = _colsum(vv)
        st_ref[0, 1:2, :] = _colsum(vv * vv)
    return kernel


def _conv3x3_s1p1_call(y_in, scale_in, shift_in, w3k):
    n, h, w, cin = y_in.shape
    cout = w3k.shape[-1]
    wp = _round_up(w, 8)
    kernel = _make_conv3x3_s1p1_kernel(h, w, wp, cin, cout)
    flops = 2 * n * h * wp * (3 * cin) * cout * 3
    byt = 2 * (n * h * w * cin + 3 * 3 * cin * cout + n * h * wp * cout) \
        + 4 * n * 2 * cout
    return pl.pallas_call(
        kernel,
        out_shape=(jax.ShapeDtypeStruct((n, h, wp, cout), jnp.bfloat16),
                   jax.ShapeDtypeStruct((n, 2, cout), jnp.float32)),
        grid=(n,),
        in_specs=[
            pl.BlockSpec((1, h, w, cin), lambda i: (i, 0, 0, 0)),
            pl.BlockSpec((1, cin), lambda i: (0, 0)),
            pl.BlockSpec((1, cin), lambda i: (0, 0)),
            pl.BlockSpec((3, 3 * cin, cout), lambda i: (0, 0, 0)),
        ],
        out_specs=(
            pl.BlockSpec((1, h, wp, cout), lambda i: (i, 0, 0, 0)),
            pl.BlockSpec((1, 2, cout), lambda i: (i, 0, 0)),
        ),
        scratch_shapes=[pltpu.VMEM((h + 2, wp + 2, cin), jnp.bfloat16),
                        pltpu.VMEM((h, wp, 3 * cin), jnp.bfloat16)],
        compiler_params=_parallel_params(),
        cost_estimate=_cost(flops, byt),
    )(y_in, scale_in, shift_in, w3k)


# ----------------------------------------------------------------------------
# Kernels 3/4: 3x3 stride-2 conv from a column-paired input (N, H, W/2, 2C)
# (+ optional fused input BN+ReLU, + optional fused 3x3/s2 max-pool).
# The even/odd row split is done with leading-dim slices/reshapes in VMEM; the
# kw taps are folded into a per-kh K=3C matmul via a VMEM im2col scratch.
# ----------------------------------------------------------------------------
def _make_conv3x3_s2_kernel(apply_bn_in, emit_pool, oh, ow, wh, cpk, cout):
    # cpk = channels per original column (the paired block's lane dim is 2*cpk)
    def kernel(*refs):
        x_ref = refs[0]                     # (1, 2*oh+2, wh, 2*cpk) bf16
        idx = 1
        if apply_bn_in:
            s_ref, b_ref = refs[1], refs[2]  # (1, 2*cpk) f32 (per-channel, tiled x2)
            idx = 3
        w_ref = refs[idx]                   # (3, 3*cpk, cout) bf16
        y_ref = refs[idx + 1]               # (1, oh, wh, cout) bf16
        st_ref = refs[idx + 2]              # (1, 2, cout) f32
        pool_ref = refs[idx + 3] if emit_pool else None   # (1, oh, ow, cpk) bf16
        l_ref = refs[-1]                    # VMEM (oh, wh, 3*cpk) bf16

        xb = x_ref[0]
        if apply_bn_in:
            scale = s_ref[...].reshape(1, 1, 2 * cpk)
            shift = b_ref[...].reshape(1, 1, 2 * cpk)
            xb = jnp.maximum(xb.astype(jnp.float32) * scale + shift,
                             0.0).astype(jnp.bfloat16)

        # Even/odd output-row selection: leading-dim slices + free reshapes.
        ra = xb[0:2 * oh].reshape(oh, 2, wh, 2 * cpk)
        rb = xb[2:2 * oh + 2].reshape(oh, 2, wh, 2 * cpk)
        rows = (ra[:, 0], ra[:, 1], rb[:, 0])   # input rows 2i, 2i+1, 2i+2

        acc = None
        pooled = None
        for kh in range(3):
            t = rows[kh]                                   # (oh, wh, 2*cpk)
            # Width-im2col in VMEM: lanes = [col 2j | col 2j+1 | col 2j+2].
            l_ref[:, :, 0:2 * cpk] = t
            l_ref[:, 0:wh - 1, 2 * cpk:3 * cpk] = t[:, 1:wh, 0:cpk]
            l_ref[:, wh - 1:wh, 2 * cpk:3 * cpk] = t[:, 0:1, 0:cpk]  # dead column
            d = jnp.dot(l_ref[...].reshape(oh * wh, 3 * cpk), w_ref[kh],
                        preferred_element_type=jnp.float32)
            acc = d if acc is None else acc + d
            if emit_pool:
                pa = t[:, 0:ow, 0:cpk]
                pb = t[:, 0:ow, cpk:2 * cpk]
                pc = t[:, 1:ow + 1, 0:cpk]
                pk = jnp.maximum(jnp.maximum(pa, pb), pc)
                pooled = pk if pooled is None else jnp.maximum(pooled, pk)

        val = acc.reshape(oh, wh, cout)
        y_ref[0] = val.astype(jnp.bfloat16)      # padded-width, lane-dense store
        vv = val[:, :ow, :]                      # stats over valid columns only
        st_ref[0, 0:1, :] = _colsum(vv)
        st_ref[0, 1:2, :] = _colsum(vv * vv)
        if emit_pool:
            pool_ref[0] = pooled
    return kernel


def _conv3x3_s2_call(xpair, valid_w, w3k, scale_in=None, shift_in=None,
                     emit_pool=False):
    n, hn, wh, c2 = xpair.shape
    cpk = c2 // 2
    cout = w3k.shape[-1]
    oh = (hn - 3) // 2 + 1
    ow = (valid_w - 3) // 2 + 1
    apply_bn = scale_in is not None
    kernel = _make_conv3x3_s2_kernel(apply_bn, emit_pool, oh, ow, wh, cpk, cout)

    args = [xpair]
    in_specs = [pl.BlockSpec((1, hn, wh, c2), lambda i: (i, 0, 0, 0))]
    if apply_bn:
        args += [scale_in, shift_in]
        in_specs += [pl.BlockSpec((1, c2), lambda i: (0, 0)),
                     pl.BlockSpec((1, c2), lambda i: (0, 0))]
    args.append(w3k)
    in_specs.append(pl.BlockSpec((3, 3 * cpk, cout), lambda i: (0, 0, 0)))

    out_shape = [jax.ShapeDtypeStruct((n, oh, wh, cout), jnp.bfloat16),
                 jax.ShapeDtypeStruct((n, 2, cout), jnp.float32)]
    out_specs = [pl.BlockSpec((1, oh, wh, cout), lambda i: (i, 0, 0, 0)),
                 pl.BlockSpec((1, 2, cout), lambda i: (i, 0, 0))]
    if emit_pool:
        out_shape.append(jax.ShapeDtypeStruct((n, oh, ow, cpk), jnp.bfloat16))
        out_specs.append(pl.BlockSpec((1, oh, ow, cpk), lambda i: (i, 0, 0, 0)))

    flops = 2 * n * oh * wh * (3 * cpk) * cout * 3
    byt = (2 * (n * hn * wh * c2 + 3 * 3 * cpk * cout + n * oh * wh * cout)
           + 4 * n * 2 * cout + (2 * n * oh * ow * cpk if emit_pool else 0))

    return pl.pallas_call(
        kernel,
        out_shape=tuple(out_shape),
        grid=(n,),
        in_specs=in_specs,
        out_specs=tuple(out_specs),
        scratch_shapes=[pltpu.VMEM((oh, wh, 3 * cpk), jnp.bfloat16)],
        compiler_params=_parallel_params(),
        cost_estimate=_cost(flops, byt),
    )(*args)


# ----------------------------------------------------------------------------
# Kernel 5: finalize — BN+ReLU for the two stride-2 convs, crop padded widths /
# padded channels, and write all three branches into one lane-dense concat slab.
# ----------------------------------------------------------------------------
def _make_finalize_kernel(ow, c3, cd, cp):
    def kernel(y3_ref, yd_ref, pool_ref, s3_ref, b3_ref, sd_ref, bd_ref, out_ref):
        s3 = s3_ref[...].reshape(1, 1, c3)
        b3 = b3_ref[...].reshape(1, 1, c3)
        sd = sd_ref[...].reshape(1, 1, cd)
        bd = bd_ref[...].reshape(1, 1, cd)
        y3 = y3_ref[0][:, 0:ow, :].astype(jnp.float32)
        yd = yd_ref[0][:, 0:ow, 0:cd].astype(jnp.float32)
        out_ref[0, :, :, 0:c3] = jnp.maximum(y3 * s3 + b3, 0.0)
        out_ref[0, :, :, c3:c3 + cd] = jnp.maximum(yd * sd + bd, 0.0)
        out_ref[0, :, :, c3 + cd:c3 + cd + cp] = pool_ref[0].astype(jnp.float32)
    return kernel


def _finalize_call(y3, yd, pooled, s3, b3, sd, bd):
    n, oh, wh3, c3 = y3.shape
    whd, cdp = yd.shape[2], yd.shape[3]
    cd = sd.shape[-1]                       # valid dbl channels (96)
    n2, _, ow, cp = pooled.shape
    ctot = c3 + cd + cp
    kernel = _make_finalize_kernel(ow, c3, cd, cp)
    byt = (2 * (n * oh * wh3 * c3 + n * oh * whd * cdp + n * oh * ow * cp)
           + 4 * n * oh * ow * ctot)
    return pl.pallas_call(
        kernel,
        out_shape=jax.ShapeDtypeStruct((n, oh, ow, ctot), jnp.float32),
        grid=(n,),
        in_specs=[
            pl.BlockSpec((1, oh, wh3, c3), lambda i: (i, 0, 0, 0)),
            pl.BlockSpec((1, oh, whd, cdp), lambda i: (i, 0, 0, 0)),
            pl.BlockSpec((1, oh, ow, cp), lambda i: (i, 0, 0, 0)),
            pl.BlockSpec((1, c3), lambda i: (0, 0)),
            pl.BlockSpec((1, c3), lambda i: (0, 0)),
            pl.BlockSpec((1, cd), lambda i: (0, 0)),
            pl.BlockSpec((1, cd), lambda i: (0, 0)),
        ],
        out_specs=pl.BlockSpec((1, oh, ow, ctot), lambda i: (i, 0, 0, 0)),
        compiler_params=_parallel_params(),
        cost_estimate=_cost(4 * n * oh * ow * (c3 + cd), byt),
    )(y3, yd, pooled, s3, b3, sd, bd)


# ----------------------------------------------------------------------------
# JAX glue: weight prep, BN statistics folding, branch plumbing.
# ----------------------------------------------------------------------------
def _bn_fold(stats, gamma, beta, m_total):
    """Fold grid-partial (sum, sumsq) into BN(train) scale/shift (biased var)."""
    s = jnp.sum(stats.astype(jnp.float32), axis=0)        # (2, C)
    mean = s[0] / m_total
    var = jnp.maximum(s[1] / m_total - mean * mean, 0.0)   # one-pass, clamped
    scale = gamma * lax.rsqrt(var + BN_EPS)
    shift = beta - mean * scale
    return scale.reshape(1, -1), shift.reshape(1, -1)


def inception_b_forward(x_nchw, params):
    # NCHW -> NHWC; bf16 once at the boundary (fused with the transpose by XLA).
    x = jnp.transpose(x_nchw, (0, 2, 3, 1)).astype(jnp.bfloat16)
    n, h, w, cin = x.shape
    assert h % 2 == 0 and w % 2 == 0, \
        "TODO(synk): odd spatial sizes need a 1-px pad before the paired reshape"
    oh = (h - 3) // 2 + 1
    ow = (w - 3) // 2 + 1

    w3, g3, b3 = params["branch3x3"]
    w1, g1, b1 = params["dbl1"]
    w2, g2, b2 = params["dbl2"]
    wd, gd, bd = params["dbl3"]

    c1 = w1.shape[0]                         # 64
    c2v = w2.shape[0]                        # 96 (valid)
    cdv = wd.shape[0]                        # 96 (valid)
    c2p = _round_up(c2v, 128)                # 128: lane-dense intermediate
    cdp = _round_up(cdv, 128)

    # Weight prep: (Cout, Cin, KH, KW) -> (KH, KW*Cin, Cout) bf16 (per-kh K=3*Cin).
    w1t = jnp.transpose(w1, (2, 3, 1, 0))[0, 0].astype(jnp.bfloat16)         # (Cin, 64)
    w3t = jnp.transpose(w3, (2, 3, 1, 0)).reshape(3, 3 * cin, 384).astype(jnp.bfloat16)
    w2t = jnp.transpose(w2, (2, 3, 1, 0))                                     # (3,3,64,96)
    w2t = jnp.pad(w2t, ((0, 0), (0, 0), (0, 0), (0, c2p - c2v)))
    w2t = w2t.reshape(3, 3 * c1, c2p).astype(jnp.bfloat16)
    wdt = jnp.transpose(wd, (2, 3, 1, 0))                                     # (3,3,96,96)
    wdt = jnp.pad(wdt, ((0, 0), (0, 0), (0, c2p - c2v), (0, cdp - cdv)))
    wdt = wdt.reshape(3, 3 * c2p, cdp).astype(jnp.bfloat16)

    g2p = jnp.pad(g2, (0, c2p - c2v))
    b2p = jnp.pad(b2, (0, c2p - c2v))
    gdp = jnp.pad(gd, (0, cdp - cdv))
    bdp = jnp.pad(bd, (0, cdp - cdv))

    # ---- branch3x3dbl chain: 1x1 -> 3x3 p1 -> 3x3 s2 (BN fused downstream) ----
    y1, st1 = _conv1x1_call(x.reshape(n, h * w, cin), w1t)
    sc1, sh1 = _bn_fold(st1, g1, b1, n * h * w)

    y2, st2 = _conv3x3_s1p1_call(y1.reshape(n, h, w, c1), sc1, sh1, w2t)
    sc2, sh2 = _bn_fold(st2, g2p, b2p, n * h * w)

    wp = y2.shape[2]
    y2pair = y2.reshape(n, h, wp // 2, 2 * c2p)          # free row-major reshape
    sc2t = jnp.concatenate([sc2, sc2], axis=-1)          # tile BN params for pairs
    sh2t = jnp.concatenate([sh2, sh2], axis=-1)
    yd, std = _conv3x3_s2_call(y2pair, w, wdt, scale_in=sc2t, shift_in=sh2t)
    scd, shd = _bn_fold(std, gdp, bdp, n * oh * ow)

    # ---- branch3x3 conv fused with branch_pool (shares the VMEM tiles) --------
    xpair = x.reshape(n, h, w // 2, 2 * cin)             # free row-major reshape
    y3, st3, pooled = _conv3x3_s2_call(xpair, w, w3t, emit_pool=True)
    sc3, sh3 = _bn_fold(st3, g3, b3, n * oh * ow)

    # ---- finalize: BN+ReLU of the stride-2 convs + lane-dense concat slab -----
    out = _finalize_call(y3, yd, pooled, sc3, sh3, scd[:, :cdv], shd[:, :cdv])
    return jnp.transpose(out, (0, 3, 1, 2))              # NHWC -> NCHW


# ----------------------------------------------------------------------------
# Deterministic parameter initialization (shapes from InceptionB.__init__).
# ----------------------------------------------------------------------------
def init_params(key, in_channels):
    specs = {
        "branch3x3": (384, in_channels, 3, 3),
        "dbl1": (64, in_channels, 1, 1),
        "dbl2": (96, 64, 3, 3),
        "dbl3": (96, 96, 3, 3),
    }
    params = {}
    for name, (cout, cinp, kh, kw) in specs.items():
        key, kw_, kg_, kb_ = jax.random.split(key, 4)
        wgt = 0.05 * jax.random.normal(kw_, (cout, cinp, kh, kw), jnp.float32)
        gamma = 1.0 + 0.1 * jax.random.normal(kg_, (cout,), jnp.float32)
        beta = 0.1 * jax.random.normal(kb_, (cout,), jnp.float32)
        params[name] = (wgt, gamma, beta)
    return params


if __name__ == "__main__":
    key = jax.random.PRNGKey(0)
    k_x, k_p = jax.random.split(key)

    N, C_in, H, W = 2, 4, 16, 16
    x = jax.random.normal(k_x, (N, C_in, H, W), jnp.float32)
    params = init_params(k_p, C_in)

    fwd = jax.jit(inception_b_forward)
    out = jax.block_until_ready(fwd(x, params))

    expected = (N, 384 + 96 + C_in, (H - 3) // 2 + 1, (W - 3) // 2 + 1)
    assert out.shape == expected, (out.shape, expected)
    assert bool(jnp.all(jnp.isfinite(out)))
    print("KERNEL_OK")
</pallas_src>

<mosaic_0001>
module attributes {stable_mosaic.version = 11 : i64} {
  func.func @_conv1x1_kernel(%arg0: i32, %arg1: memref<1x256x4xbf16, #tpu.memory_space<vmem>>, %arg2: memref<4x64xbf16, #tpu.memory_space<vmem>>, %arg3: memref<1x256x64xbf16, #tpu.memory_space<vmem>>, %arg4: memref<1x2x64xf32, #tpu.memory_space<vmem>>) attributes {dimension_semantics = [#tpu.dimension_semantics<parallel>], iteration_bounds = array<i64: 2>, scalar_prefetch = 0 : i64, scratch_operands = 0 : i64, tpu.core_type = #tpu.core_type<tc>, window_params = [{transform_indices = @transform_0, window_bounds = array<i64: 1, 256, 4>}, {pipeline_mode = #tpu.pipeline_mode<synchronous>, transform_indices = @transform_1, window_bounds = array<i64: 4, 64>}, {transform_indices = @transform_2, window_bounds = array<i64: 1, 256, 64>}, {transform_indices = @transform_3, window_bounds = array<i64: 1, 2, 64>}]} {
    %c0 = arith.constant 0 : index
    %c0_0 = arith.constant 0 : index
    %c0_1 = arith.constant 0 : index
    %0 = vector.load %arg1[%c0, %c0_0, %c0_1] : memref<1x256x4xbf16, #tpu.memory_space<vmem>>, vector<1x256x4xbf16>
    %1 = vector.shape_cast %0 : vector<1x256x4xbf16> to vector<256x4xbf16>
    %c0_2 = arith.constant 0 : index
    %c0_3 = arith.constant 0 : index
    %2 = vector.load %arg2[%c0_2, %c0_3] : memref<4x64xbf16, #tpu.memory_space<vmem>>, vector<4x64xbf16>
    %cst = arith.constant dense<0.000000e+00> : vector<256x64xf32>
    %3 = tpu.matmul %1, %2, %cst {dimension_numbers = #tpu.dot_dimension_numbers<[1], [0], [0], [1], [0, 0, 1, 1], [], []>} : vector<256x4xbf16>, vector<4x64xbf16>, vector<256x64xf32> -> vector<256x64xf32>
    %4 = arith.truncf %3 : vector<256x64xf32> to vector<256x64xbf16>
    %c0_4 = arith.constant 0 : index
    %c0_5 = arith.constant 0 : index
    %c0_6 = arith.constant 0 : index
    %5 = vector.load %arg3[%c0_4, %c0_5, %c0_6] : memref<1x256x64xbf16, #tpu.memory_space<vmem>>, vector<1x256x64xbf16>
    %6 = vector.shape_cast %5 : vector<1x256x64xbf16> to vector<256x64xbf16>
    %7 = vector.shape_cast %4 : vector<256x64xbf16> to vector<1x256x64xbf16>
    tpu.vector_store %arg3[%c0_4, %c0_5, %c0_6], %7 {strides = array<i32>} : memref<1x256x64xbf16, #tpu.memory_space<vmem>>, vector<1x256x64xbf16>,
    %cst_7 = arith.constant dense<0.000000e+00> : vector<64xf32>
    %8 = vector.multi_reduction <add>, %3, %cst_7 [0] : vector<256x64xf32> to vector<64xf32>
    %9 = vector.shape_cast %8 : vector<64xf32> to vector<1x64xf32>
    %c0_8 = arith.constant 0 : index
    %c0_9 = arith.constant 0 : index
    %c0_10 = arith.constant 0 : index
    %10 = vector.load %arg4[%c0_8, %c0_9, %c0_10] : memref<1x2x64xf32, #tpu.memory_space<vmem>>, vector<1x1x64xf32>
    %11 = vector.shape_cast %10 : vector<1x1x64xf32> to vector<1x64xf32>
    %12 = vector.shape_cast %9 : vector<1x64xf32> to vector<1x1x64xf32>
    tpu.vector_store %arg4[%c0_8, %c0_9, %c0_10], %12 {strides = array<i32>} : memref<1x2x64xf32, #tpu.memory_space<vmem>>, vector<1x1x64xf32>,
    %13 = arith.mulf %3, %3 : vector<256x64xf32>
    %cst_11 = arith.constant dense<0.000000e+00> : vector<64xf32>
    %14 = vector.multi_reduction <add>, %13, %cst_11 [0] : vector<256x64xf32> to vector<64xf32>
    %15 = vector.shape_cast %14 : vector<64xf32> to vector<1x64xf32>
    %c0_12 = arith.constant 0 : index
    %c1 = arith.constant 1 : index
    %c0_13 = arith.constant 0 : index
    %16 = vector.load %arg4[%c0_12, %c1, %c0_13] : memref<1x2x64xf32, #tpu.memory_space<vmem>>, vector<1x1x64xf32>
    %17 = vector.shape_cast %16 : vector<1x1x64xf32> to vector<1x64xf32>
    %18 = vector.shape_cast %15 : vector<1x64xf32> to vector<1x1x64xf32>
    tpu.vector_store %arg4[%c0_12, %c1, %c0_13], %18 {strides = array<i32>} : memref<1x2x64xf32, #tpu.memory_space<vmem>>, vector<1x1x64xf32>,
    return
  }
  func.func @transform_0(%arg0: i32) -> (i32, i32, i32) {
    %c0_i32 = arith.constant 0 : i32
    %c0_i32_0 = arith.constant 0 : i32
    %c0_i32_1 = arith.constant 0 : i32
    return %arg0, %c0_i32, %c0_i32_0 : i32, i32, i32
  }
  func.func @transform_1(%arg0: i32) -> (i32, i32) {
    %c0_i32 = arith.constant 0 : i32
    %c0_i32_0 = arith.constant 0 : i32
    %c0_i32_1 = arith.constant 0 : i32
    return %c0_i32, %c0_i32_0 : i32, i32
  }
  func.func @transform_2(%arg0: i32) -> (i32, i32, i32) {
    %c0_i32 = arith.constant 0 : i32
    %c0_i32_0 = arith.constant 0 : i32
    %c0_i32_1 = arith.constant 0 : i32
    return %arg0, %c0_i32, %c0_i32_0 : i32, i32, i32
  }
  func.func @transform_3(%arg0: i32) -> (i32, i32, i32) {
    %c0_i32 = arith.constant 0 : i32
    %c0_i32_0 = arith.constant 0 : i32
    %c0_i32_1 = arith.constant 0 : i32
    return %arg0, %c0_i32, %c0_i32_0 : i32, i32, i32
  }
}

module attributes {stable_mosaic.version = 11 : i64} {
  func.func @kernel(%arg0: i32, %arg1: memref<1x16x16x64xbf16, #tpu.memory_space<vmem>>, %arg2: memref<1x64xf32, #tpu.memory_space<vmem>>, %arg3: memref<1x64xf32, #tpu.memory_space<vmem>>, %arg4: memref<3x192x128xbf16, #tpu.memory_space<vmem>>, %arg5: memref<1x16x16x128xbf16, #tpu.memory_space<vmem>>, %arg6: memref<1x2x128xf32, #tpu.memory_space<vmem>>, %arg7: memref<18x18x64xbf16, #tpu.memory_space<vmem>>, %arg8: memref<16x16x192xbf16, #tpu.memory_space<vmem>>) attributes {dimension_semantics = [#tpu.dimension_semantics<parallel>], iteration_bounds = array<i64: 2>, scalar_prefetch = 0 : i64, scratch_operands = 2 : i64, tpu.core_type = #tpu.core_type<tc>, window_params = [{transform_indices = @transform_0, window_bounds = array<i64: 1, 16, 16, 64>}, {pipeline_mode = #tpu.pipeline_mode<synchronous>, transform_indices = @transform_1, window_bounds = array<i64: 1, 64>}, {pipeline_mode = #tpu.pipeline_mode<synchronous>, transform_indices = @transform_2, window_bounds = array<i64: 1, 64>}, {pipeline_mode = #tpu.pipeline_mode<synchronous>, transform_indices = @transform_3, window_bounds = array<i64: 3, 192, 128>}, {transform_indices = @transform_4, window_bounds = array<i64: 1, 16, 16, 128>}, {transform_indices = @transform_5, window_bounds = array<i64: 1, 2, 128>}]} {
    %c0 = arith.constant 0 : index
    %c0_0 = arith.constant 0 : index
    %0 = vector.load %arg2[%c0, %c0_0] : memref<1x64xf32, #tpu.memory_space<vmem>>, vector<1x64xf32>
    %1 = vector.shape_cast %0 : vector<1x64xf32> to vector<1x1x64xf32>
    %c0_1 = arith.constant 0 : index
    %c0_2 = arith.constant 0 : index
    %2 = vector.load %arg3[%c0_1, %c0_2] : memref<1x64xf32, #tpu.memory_space<vmem>>, vector<1x64xf32>
    %3 = vector.shape_cast %2 : vector<1x64xf32> to vector<1x1x64xf32>
    %c0_3 = arith.constant 0 : index
    %c0_4 = arith.constant 0 : index
    %c0_5 = arith.constant 0 : index
    %c0_6 = arith.constant 0 : index
    %4 = vector.load %arg1[%c0_3, %c0_4, %c0_5, %c0_6] : memref<1x16x16x64xbf16, #tpu.memory_space<vmem>>, vector<1x16x16x64xbf16>
    %5 = vector.shape_cast %4 : vector<1x16x16x64xbf16> to vector<16x16x64xbf16>
    %6 = arith.extf %5 : vector<16x16x64xbf16> to vector<16x16x64xf32>
    %7 = vector.broadcast %1 : vector<1x1x64xf32> to vector<16x16x64xf32>
    %8 = arith.mulf %6, %7 : vector<16x16x64xf32>
    %9 = vector.broadcast %3 : vector<1x1x64xf32> to vector<16x16x64xf32>
    %10 = arith.addf %8, %9 : vector<16x16x64xf32>
    %cst = arith.constant 0.000000e+00 : f32
    %11 = vector.broadcast %cst : f32 to vector<16x16x64xf32>
    %12 = arith.maximumf %10, %11 : vector<16x16x64xf32>
    %cst_7 = arith.constant 0.000000e+00 : bf16
    %13 = vector.broadcast %cst_7 : bf16 to vector<1x18x64xbf16>
    %c0_8 = arith.constant 0 : index
    %c0_9 = arith.constant 0 : index
    %c0_10 = arith.constant 0 : index
    %14 = vector.load %arg7[%c0_8, %c0_9, %c0_10] : memref<18x18x64xbf16, #tpu.memory_space<vmem>>, vector<1x18x64xbf16>
    tpu.vector_store %arg7[%c0_8, %c0_9, %c0_10], %13 {strides = array<i32>} : memref<18x18x64xbf16, #tpu.memory_space<vmem>>, vector<1x18x64xbf16>,
    %c17 = arith.constant 17 : index
    %c0_11 = arith.constant 0 : index
    %c0_12 = arith.constant 0 : index
    %15 = vector.load %arg7[%c17, %c0_11, %c0_12] : memref<18x18x64xbf16, #tpu.memory_space<vmem>>, vector<1x18x64xbf16>
    tpu.vector_store %arg7[%c17, %c0_11, %c0_12], %13 {strides = array<i32>} : memref<18x18x64xbf16, #tpu.memory_space<vmem>>, vector<1x18x64xbf16>,
    %cst_13 = arith.constant 0.000000e+00 : bf16
    %16 = vector.broadcast %cst_13 : bf16 to vector<18x1x64xbf16>
    %c0_14 = arith.constant 0 : index
    %c0_15 = arith.constant 0 : index
    %c0_16 = arith.constant 0 : index
    %17 = vector.load %arg7[%c0_14, %c0_15, %c0_16] : memref<18x18x64xbf16, #tpu.memory_space<vmem>>, vector<18x1x64xbf16>
    tpu.vector_store %arg7[%c0_14, %c0_15, %c0_16], %16 {strides = array<i32>} : memref<18x18x64xbf16, #tpu.memory_space<vmem>>, vector<18x1x64xbf16>,
    %cst_17 = arith.constant 0.000000e+00 : bf16
    %18 = vector.broadcast %cst_17 : bf16 to vector<18x1x64xbf16>
    %c0_18 = arith.constant 0 : index
    %c17_19 = arith.constant 17 : index
    %c0_20 = arith.constant 0 : index
    %19 = vector.load %arg7[%c0_18, %c17_19, %c0_20] : memref<18x18x64xbf16, #tpu.memory_space<vmem>>, vector<18x1x64xbf16>
    tpu.vector_store %arg7[%c0_18, %c17_19, %c0_20], %18 {strides = array<i32>} : memref<18x18x64xbf16, #tpu.memory_space<vmem>>, vector<18x1x64xbf16>,
    %20 = arith.truncf %12 : vector<16x16x64xf32> to vector<16x16x64xbf16>
    %c1 = arith.constant 1 : index
    %c1_21 = arith.constant 1 : index
    %c0_22 = arith.constant 0 : index
    %21 = vector.load %arg7[%c1, %c1_21, %c0_22] : memref<18x18x64xbf16, #tpu.memory_space<vmem>>, vector<16x16x64xbf16>
    tpu.vector_store %arg7[%c1, %c1_21, %c0_22], %20 {strides = array<i32>} : memref<18x18x64xbf16, #tpu.memory_space<vmem>>, vector<16x16x64xbf16>,
    %c0_23 = arith.constant 0 : index
    %c0_24 = arith.constant 0 : index
    %c0_25 = arith.constant 0 : index
    %22 = vector.load %arg7[%c0_23, %c0_24, %c0_25] : memref<18x18x64xbf16, #tpu.memory_space<vmem>>, vector<16x16x64xbf16>
    %c0_26 = arith.constant 0 : index
    %c0_27 = arith.constant 0 : index
    %c0_28 = arith.constant 0 : index
    %23 = vector.load %arg8[%c0_26, %c0_27, %c0_28] : memref<16x16x192xbf16, #tpu.memory_space<vmem>>, vector<16x16x64xbf16>
    tpu.vector_store %arg8[%c0_26, %c0_27, %c0_28], %22 {strides = array<i32>} : memref<16x16x192xbf16, #tpu.memory_space<vmem>>, vector<16x16x64xbf16>,
    %c0_29 = arith.constant 0 : index
    %c1_30 = arith.constant 1 : index
    %c0_31 = arith.constant 0 : index
    %24 = vector.load %arg7[%c0_29, %c1_30, %c0_31] : memref<18x18x64xbf16, #tpu.memory_space<vmem>>, vector<16x16x64xbf16>
    %c0_32 = arith.constant 0 : index
    %c0_33 = arith.constant 0 : index
    %c64 = arith.constant 64 : index
    %25 = vector.load %arg8[%c0_32, %c0_33, %c64] : memref<16x16x192xbf16, #tpu.memory_space<vmem>>, vector<16x16x64xbf16>
    tpu.vector_store %arg8[%c0_32, %c0_33, %c64], %24 {strides = array<i32>} : memref<16x16x192xbf16, #tpu.memory_space<vmem>>, vector<16x16x64xbf16>,
    %c0_34 = arith.constant 0 : index
    %c2 = arith.constant 2 : index
    %c0_35 = arith.constant 0 : index
    %26 = vector.load %arg7[%c0_34, %c2, %c0_35] : memref<18x18x64xbf16, #tpu.memory_space<vmem>>, vector<16x16x64xbf16>
    %c0_36 = arith.constant 0 : index
    %c0_37 = arith.constant 0 : index
    %c128 = arith.constant 128 : index
    %27 = vector.load %arg8[%c0_36, %c0_37, %c128] : memref<16x16x192xbf16, #tpu.memory_space<vmem>>, vector<16x16x64xbf16>
    tpu.vector_store %arg8[%c0_36, %c0_37, %c128], %26 {strides = array<i32>} : memref<16x16x192xbf16, #tpu.memory_space<vmem>>, vector<16x16x64xbf16>,
    %c0_38 = arith.constant 0 : index
    %c0_39 = arith.constant 0 : index
    %c0_40 = arith.constant 0 : index
    %28 = vector.load %arg8[%c0_38, %c0_39, %c0_40] : memref<16x16x192xbf16, #tpu.memory_space<vmem>>, vector<16x16x192xbf16>
    %29 = vector.shape_cast %28 : vector<16x16x192xbf16> to vector<256x192xbf16>
    %c0_41 = arith.constant 0 : index
    %c0_42 = arith.constant 0 : index
    %c0_43 = arith.constant 0 : index
    %30 = vector.load %arg4[%c0_41, %c0_42, %c0_43] : memref<3x192x128xbf16, #tpu.memory_space<vmem>>, vector<1x192x128xbf16>
    %31 = vector.shape_cast %30 : vector<1x192x128xbf16> to vector<192x128xbf16>
    %cst_44 = arith.constant dense<0.000000e+00> : vector<256x128xf32>
    %32 = tpu.matmul %29, %31, %cst_44 {dimension_numbers = #tpu.dot_dimension_numbers<[1], [0], [0], [1], [0, 0, 1, 1], [], []>} : vector<256x192xbf16>, vector<192x128xbf16>, vector<256x128xf32> -> vector<256x128xf32>
    %c1_45 = arith.constant 1 : index
    %c0_46 = arith.constant 0 : index
    %c0_47 = arith.constant 0 : index
    %33 = vector.load %arg7[%c1_45, %c0_46, %c0_47] : memref<18x18x64xbf16, #tpu.memory_space<vmem>>, vector<16x16x64xbf16>
    %c0_48 = arith.constant 0 : index
    %c0_49 = arith.constant 0 : index
    %c0_50 = arith.constant 0 : index
    %34 = vector.load %arg8[%c0_48, %c0_49, %c0_50] : memref<16x16x192xbf16, #tpu.memory_space<vmem>>, vector<16x16x64xbf16>
    tpu.vector_store %arg8[%c0_48, %c0_49, %c0_50], %33 {strides = array<i32>} : memref<16x16x192xbf16, #tpu.memory_space<vmem>>, vector<16x16x64xbf16>,
    %c1_51 = arith.constant 1 : index
    %c1_52 = arith.constant 1 : index
    %c0_53 = arith.constant 0 : index
    %35 = vector.load %arg7[%c1_51, %c1_52, %c0_53] : memref<18x18x64xbf16, #tpu.memory_space<vmem>>, vector<16x16x64xbf16>
    %c0_54 = arith.constant 0 : index
    %c0_55 = arith.constant 0 : index
    %c64_56 = arith.constant 64 : index
    %36 = vector.load %arg8[%c0_54, %c0_55, %c64_56] : memref<16x16x192xbf16, #tpu.memory_space<vmem>>, vector<16x16x64xbf16>
    tpu.vector_store %arg8[%c0_54, %c0_55, %c64_56], %35 {strides = array<i32>} : memref<16x16x192xbf16, #tpu.memory_space<vmem>>, vector<16x16x64xbf16>,
    %c1_57 = arith.constant 1 : index
    %c2_58 = arith.constant 2 : index
    %c0_59 = arith.constant 0 : index
    %37 = vector.load %arg7[%c1_57, %c2_58, %c0_59] : memref<18x18x64xbf16, #tpu.memory_space<vmem>>, vector<16x16x64xbf16>
    %c0_60 = arith.constant 0 : index
    %c0_61 = arith.constant 0 : index
    %c128_62 = arith.constant 128 : index
    %38 = vector.load %arg8[%c0_60, %c0_61, %c128_62] : memref<16x16x192xbf16, #tpu.memory_space<vmem>>, vector<16x16x64xbf16>
    tpu.vector_store %arg8[%c0_60, %c0_61, %c128_62], %37 {strides = array<i32>} : memref<16x16x192xbf16, #tpu.memory_space<vmem>>, vector<16x16x64xbf16>,
    %c0_63 = arith.constant 0 : index
    %c0_64 = arith.constant 0 : index
    %c0_65 = arith.constant 0 : index
    %39 = vector.load %arg8[%c0_63, %c0_64, %c0_65] : memref<16x16x192xbf16, #tpu.memory_space<vmem>>, vector<16x16x192xbf16>
    %40 = vector.shape_cast %39 : vector<16x16x192xbf16> to vector<256x192xbf16>
    %c1_66 = arith.constant 1 : index
    %c0_67 = arith.constant 0 : index
    %c0_68 = arith.constant 0 : index
    %41 = vector.load %arg4[%c1_66, %c0_67, %c0_68] : memref<3x192x128xbf16, #tpu.memory_space<vmem>>, vector<1x192x128xbf16>
    %42 = vector.shape_cast %41 : vector<1x192x128xbf16> to vector<192x128xbf16>
    %cst_69 = arith.constant dense<0.000000e+00> : vector<256x128xf32>
    %43 = tpu.matmul %40, %42, %cst_69 {dimension_numbers = #tpu.dot_dimension_numbers<[1], [0], [0], [1], [0, 0, 1, 1], [], []>} : vector<256x192xbf16>, vector<192x128xbf16>, vector<256x128xf32> -> vector<256x128xf32>
    %44 = arith.addf %32, %43 : vector<256x128xf32>
    %c2_70 = arith.constant 2 : index
    %c0_71 = arith.constant 0 : index
    %c0_72 = arith.constant 0 : index
    %45 = vector.load %arg7[%c2_70, %c0_71, %c0_72] : memref<18x18x64xbf16, #tpu.memory_space<vmem>>, vector<16x16x64xbf16>
    %c0_73 = arith.constant 0 : index
    %c0_74 = arith.constant 0 : index
    %c0_75 = arith.constant 0 : index
    %46 = vector.load %arg8[%c0_73, %c0_74, %c0_75] : memref<16x16x192xbf16, #tpu.memory_space<vmem>>, vector<16x16x64xbf16>
    tpu.vector_store %arg8[%c0_73, %c0_74, %c0_75], %45 {strides = array<i32>} : memref<16x16x192xbf16, #tpu.memory_space<vmem>>, vector<16x16x64xbf16>,
    %c2_76 = arith.constant 2 : index
    %c1_77 = arith.constant 1 : index
    %c0_78 = arith.constant 0 : index
    %47 = vector.load %arg7[%c2_76, %c1_77, %c0_78] : memref<18x18x64xbf16, #tpu.memory_space<vmem>>, vector<16x16x64xbf16>
    %c0_79 = arith.constant 0 : index
    %c0_80 = arith.constant 0 : index
    %c64_81 = arith.constant 64 : index
    %48 = vector.load %arg8[%c0_79, %c0_80, %c64_81] : memref<16x16x192xbf16, #tpu.memory_space<vmem>>, vector<16x16x64xbf16>
    tpu.vector_store %arg8[%c0_79, %c0_80, %c64_81], %47 {strides = array<i32>} : memref<16x16x192xbf16, #tpu.memory_space<vmem>>, vector<16x16x64xbf16>,
    %c2_82 = arith.constant 2 : index
    %c2_83 = arith.constant 2 : index
    %c0_84 = arith.constant 0 : index
    %49 = vector.load %arg7[%c2_82, %c2_83, %c0_84] : memref<18x18x64xbf16, #tpu.memory_space<vmem>>, vector<16x16x64xbf16>
    %c0_85 = arith.constant 0 : index
    %c0_86 = arith.constant 0 : index
    %c128_87 = arith.constant 128 : index
    %50 = vector.load %arg8[%c0_85, %c0_86, %c128_87] : memref<16x16x192xbf16, #tpu.memory_space<vmem>>, vector<16x16x64xbf16>
    tpu.vector_store %arg8[%c0_85, %c0_86, %c128_87], %49 {strides = array<i32>} : memref<16x16x192xbf16, #tpu.memory_space<vmem>>, vector<16x16x64xbf16>,
    %c0_88 = arith.constant 0 : index
    %c0_89 = arith.constant 0 : index
    %c0_90 = arith.constant 0 : index
    %51 = vector.load %arg8[%c0_88, %c0_89, %c0_90] : memref<16x16x192xbf16, #tpu.memory_space<vmem>>, vector<16x16x192xbf16>
    %52 = vector.shape_cast %51 : vector<16x16x192xbf16> to vector<256x192xbf16>
    %c2_91 = arith.constant 2 : index
    %c0_92 = arith.constant 0 : index
    %c0_93 = arith.constant 0 : index
    %53 = vector.load %arg4[%c2_91, %c0_92, %c0_93] : memref<3x192x128xbf16, #tpu.memory_space<vmem>>, vector<1x192x128xbf16>
    %54 = vector.shape_cast %53 : vector<1x192x128xbf16> to vector<192x128xbf16>
    %cst_94 = arith.constant dense<0.000000e+00> : vector<256x128xf32>
    %55 = tpu.matmul %52, %54, %cst_94 {dimension_numbers = #tpu.dot_dimension_numbers<[1], [0], [0], [1], [0, 0, 1, 1], [], []>} : vector<256x192xbf16>, vector<192x128xbf16>, vector<256x128xf32> -> vector<256x128xf32>
    %56 = arith.addf %44, %55 : vector<256x128xf32>
    %57 = vector.shape_cast %56 : vector<256x128xf32> to vector<16x16x128xf32>
    %58 = arith.truncf %57 : vector<16x16x128xf32> to vector<16x16x128xbf16>
    %c0_95 = arith.constant 0 : index
    %c0_96 = arith.constant 0 : index
    %c0_97 = arith.constant 0 : index
    %c0_98 = arith.constant 0 : index
    %59 = vector.load %arg5[%c0_95, %c0_96, %c0_97, %c0_98] : memref<1x16x16x128xbf16, #tpu.memory_space<vmem>>, vector<1x16x16x128xbf16>
    %60 = vector.shape_cast %59 : vector<1x16x16x128xbf16> to vector<16x16x128xbf16>
    %61 = vector.shape_cast %58 : vector<16x16x128xbf16> to vector<1x16x16x128xbf16>
    tpu.vector_store %arg5[%c0_95, %c0_96, %c0_97, %c0_98], %61 {strides = array<i32>} : memref<1x16x16x128xbf16, #tpu.memory_space<vmem>>, vector<1x16x16x128xbf16>,
    %cst_99 = arith.constant dense<0.000000e+00> : vector<16x128xf32>
    %62 = vector.multi_reduction <add>, %57, %cst_99 [0] : vector<16x16x128xf32> to vector<16x128xf32>
    %cst_100 = arith.constant dense<0.000000e+00> : vector<128xf32>
    %63 = vector.multi_reduction <add>, %62, %cst_100 [0] : vector<16x128xf32> to vector<128xf32>
    %64 = vector.shape_cast %63 : vector<128xf32> to vector<1x128xf32>
    %c0_101 = arith.constant 0 : index
    %c0_102 = arith.constant 0 : index
    %c0_103 = arith.constant 0 : index
    %65 = vector.load %arg6[%c0_101, %c0_102, %c0_103] : memref<1x2x128xf32, #tpu.memory_space<vmem>>, vector<1x1x128xf32>
    %66 = vector.shape_cast %65 : vector<1x1x128xf32> to vector<1x128xf32>
    %67 = vector.shape_cast %64 : vector<1x128xf32> to vector<1x1x128xf32>
    tpu.vector_store %arg6[%c0_101, %c0_102, %c0_103], %67 {strides = array<i32>} : memref<1x2x128xf32, #tpu.memory_space<vmem>>, vector<1x1x128xf32>,
    %68 = arith.mulf %57, %57 : vector<16x16x128xf32>
    %cst_104 = arith.constant dense<0.000000e+00> : vector<16x128xf32>
    %69 = vector.multi_reduction <add>, %68, %cst_104 [0] : vector<16x16x128xf32> to vector<16x128xf32>
    %cst_105 = arith.constant dense<0.000000e+00> : vector<128xf32>
    %70 = vector.multi_reduction <add>, %69, %cst_105 [0] : vector<16x128xf32> to vector<128xf32>
    %71 = vector.shape_cast %70 : vector<128xf32> to vector<1x128xf32>
    %c0_106 = arith.constant 0 : index
    %c1_107 = arith.constant 1 : index
    %c0_108 = arith.constant 0 : index
    %72 = vector.load %arg6[%c0_106, %c1_107, %c0_108] : memref<1x2x128xf32, #tpu.memory_space<vmem>>, vector<1x1x128xf32>
    %73 = vector.shape_cast %72 : vector<1x1x128xf32> to vector<1x128xf32>
    %74 = vector.shape_cast %71 : vector<1x128xf32> to vector<1x1x128xf32>
    tpu.vector_store %arg6[%c0_106, %c1_107, %c0_108], %74 {strides = array<i32>} : memref<1x2x128xf32, #tpu.memory_space<vmem>>, vector<1x1x128xf32>,
    return
  }
  func.func @transform_0(%arg0: i32) -> (i32, i32, i32, i32) {
    %c0_i32 = arith.constant 0 : i32
    %c0_i32_0 = arith.constant 0 : i32
    %c0_i32_1 = arith.constant 0 : i32
    %c0_i32_2 = arith.constant 0 : i32
    return %arg0, %c0_i32, %c0_i32_0, %c0_i32_1 : i32, i32, i32, i32
  }
  func.func @transform_1(%arg0: i32) -> (i32, i32) {
    %c0_i32 = arith.constant 0 : i32
    %c0_i32_0 = arith.constant 0 : i32
    %c0_i32_1 = arith.constant 0 : i32
    return %c0_i32, %c0_i32_0 : i32, i32
  }
  func.func @transform_2(%arg0: i32) -> (i32, i32) {
    %c0_i32 = arith.constant 0 : i32
    %c0_i32_0 = arith.constant 0 : i32
    %c0_i32_1 = arith.constant 0 : i32
    return %c0_i32, %c0_i32_0 : i32, i32
  }
  func.func @transform_3(%arg0: i32) -> (i32, i32, i32) {
    %c0_i32 = arith.constant 0 : i32
    %c0_i32_0 = arith.constant 0 : i32
    %c0_i32_1 = arith.constant 0 : i32
    %c0_i32_2 = arith.constant 0 : i32
    return %c0_i32, %c0_i32_0, %c0_i32_1 : i32, i32, i32
  }
  func.func @transform_4(%arg0: i32) -> (i32, i32, i32, i32) {
    %c0_i32 = arith.constant 0 : i32
    %c0_i32_0 = arith.constant 0 : i32
    %c0_i32_1 = arith.constant 0 : i32
    %c0_i32_2 = arith.constant 0 : i32
    return %arg0, %c0_i32, %c0_i32_0, %c0_i32_1 : i32, i32, i32, i32
  }
  func.func @transform_5(%arg0: i32) -> (i32, i32, i32) {
    %c0_i32 = arith.constant 0 : i32
    %c0_i32_0 = arith.constant 0 : i32
    %c0_i32_1 = arith.constant 0 : i32
    return %arg0, %c0_i32, %c0_i32_0 : i32, i32, i32
  }
}

module attributes {stable_mosaic.version = 11 : i64} {
  func.func @kernel(%arg0: i32, %arg1: memref<1x16x8x256xbf16, #tpu.memory_space<vmem>>, %arg2: memref<1x256xf32, #tpu.memory_space<vmem>>, %arg3: memref<1x256xf32, #tpu.memory_space<vmem>>, %arg4: memref<3x384x128xbf16, #tpu.memory_space<vmem>>, %arg5: memref<1x7x8x128xbf16, #tpu.memory_space<vmem>>, %arg6: memref<1x2x128xf32, #tpu.memory_space<vmem>>, %arg7: memref<7x8x384xbf16, #tpu.memory_space<vmem>>) attributes {dimension_semantics = [#tpu.dimension_semantics<parallel>], iteration_bounds = array<i64: 2>, scalar_prefetch = 0 : i64, scratch_operands = 1 : i64, tpu.core_type = #tpu.core_type<tc>, window_params = [{transform_indices = @transform_0, window_bounds = array<i64: 1, 16, 8, 256>}, {pipeline_mode = #tpu.pipeline_mode<synchronous>, transform_indices = @transform_1, window_bounds = array<i64: 1, 256>}, {pipeline_mode = #tpu.pipeline_mode<synchronous>, transform_indices = @transform_2, window_bounds = array<i64: 1, 256>}, {pipeline_mode = #tpu.pipeline_mode<synchronous>, transform_indices = @transform_3, window_bounds = array<i64: 3, 384, 128>}, {transform_indices = @transform_4, window_bounds = array<i64: 1, 7, 8, 128>}, {transform_indices = @transform_5, window_bounds = array<i64: 1, 2, 128>}]} {
    %c0 = arith.constant 0 : index
    %c0_0 = arith.constant 0 : index
    %c0_1 = arith.constant 0 : index
    %c0_2 = arith.constant 0 : index
    %0 = vector.load %arg1[%c0, %c0_0, %c0_1, %c0_2] : memref<1x16x8x256xbf16, #tpu.memory_space<vmem>>, vector<1x16x8x256xbf16>
    %1 = vector.shape_cast %0 : vector<1x16x8x256xbf16> to vector<16x8x256xbf16>
    %c0_3 = arith.constant 0 : index
    %c0_4 = arith.constant 0 : index
    %2 = vector.load %arg2[%c0_3, %c0_4] : memref<1x256xf32, #tpu.memory_space<vmem>>, vector<1x256xf32>
    %3 = vector.shape_cast %2 : vector<1x256xf32> to vector<1x1x256xf32>
    %c0_5 = arith.constant 0 : index
    %c0_6 = arith.constant 0 : index
    %4 = vector.load %arg3[%c0_5, %c0_6] : memref<1x256xf32, #tpu.memory_space<vmem>>, vector<1x256xf32>
    %5 = vector.shape_cast %4 : vector<1x256xf32> to vector<1x1x256xf32>
    %6 = arith.extf %1 : vector<16x8x256xbf16> to vector<16x8x256xf32>
    %7 = vector.broadcast %3 : vector<1x1x256xf32> to vector<16x8x256xf32>
    %8 = arith.mulf %6, %7 : vector<16x8x256xf32>
    %9 = vector.broadcast %5 : vector<1x1x256xf32> to vector<16x8x256xf32>
    %10 = arith.addf %8, %9 : vector<16x8x256xf32>
    %cst = arith.constant 0.000000e+00 : f32
    %11 = vector.broadcast %cst : f32 to vector<16x8x256xf32>
    %12 = arith.maximumf %10, %11 : vector<16x8x256xf32>
    %13 = arith.truncf %12 : vector<16x8x256xf32> to vector<16x8x256xbf16>
    %14 = vector.extract_strided_slice %13 {offsets = [0, 0, 0], sizes = [14, 8, 256], strides = [1, 1, 1]} : vector<16x8x256xbf16> to vector<14x8x256xbf16>
    %15 = vector.shape_cast %14 : vector<14x8x256xbf16> to vector<7x2x8x256xbf16>
    %16 = vector.extract_strided_slice %13 {offsets = [2, 0, 0], sizes = [14, 8, 256], strides = [1, 1, 1]} : vector<16x8x256xbf16> to vector<14x8x256xbf16>
    %17 = vector.shape_cast %16 : vector<14x8x256xbf16> to vector<7x2x8x256xbf16>
    %18 = vector.extract_strided_slice %15 {offsets = [0, 0, 0, 0], sizes = [7, 1, 8, 256], strides = [1, 1, 1, 1]} : vector<7x2x8x256xbf16> to vector<7x1x8x256xbf16>
    %19 = vector.shape_cast %18 : vector<7x1x8x256xbf16> to vector<7x8x256xbf16>
    %20 = vector.extract_strided_slice %15 {offsets = [0, 1, 0, 0], sizes = [7, 1, 8, 256], strides = [1, 1, 1, 1]} : vector<7x2x8x256xbf16> to vector<7x1x8x256xbf16>
    %21 = vector.shape_cast %20 : vector<7x1x8x256xbf16> to vector<7x8x256xbf16>
    %22 = vector.extract_strided_slice %17 {offsets = [0, 0, 0, 0], sizes = [7, 1, 8, 256], strides = [1, 1, 1, 1]} : vector<7x2x8x256xbf16> to vector<7x1x8x256xbf16>
    %23 = vector.shape_cast %22 : vector<7x1x8x256xbf16> to vector<7x8x256xbf16>
    %c0_7 = arith.constant 0 : index
    %c0_8 = arith.constant 0 : index
    %c0_9 = arith.constant 0 : index
    %24 = vector.load %arg7[%c0_7, %c0_8, %c0_9] : memref<7x8x384xbf16, #tpu.memory_space<vmem>>, vector<7x8x256xbf16>
    tpu.vector_store %arg7[%c0_7, %c0_8, %c0_9], %19 {strides = array<i32>} : memref<7x8x384xbf16, #tpu.memory_space<vmem>>, vector<7x8x256xbf16>,
    %25 = vector.extract_strided_slice %19 {offsets = [0, 1, 0], sizes = [7, 7, 128], strides = [1, 1, 1]} : vector<7x8x256xbf16> to vector<7x7x128xbf16>
    %c0_10 = arith.constant 0 : index
    %c0_11 = arith.constant 0 : index
    %c256 = arith.constant 256 : index
    %26 = vector.load %arg7[%c0_10, %c0_11, %c256] : memref<7x8x384xbf16, #tpu.memory_space<vmem>>, vector<7x7x128xbf16>
    tpu.vector_store %arg7[%c0_10, %c0_11, %c256], %25 {strides = array<i32>} : memref<7x8x384xbf16, #tpu.memory_space<vmem>>, vector<7x7x128xbf16>,
    %27 = vector.extract_strided_slice %19 {offsets = [0, 0, 0], sizes = [7, 1, 128], strides = [1, 1, 1]} : vector<7x8x256xbf16> to vector<7x1x128xbf16>
    %c0_12 = arith.constant 0 : index
    %c7 = arith.constant 7 : index
    %c256_13 = arith.constant 256 : index
    %28 = vector.load %arg7[%c0_12, %c7, %c256_13] : memref<7x8x384xbf16, #tpu.memory_space<vmem>>, vector<7x1x128xbf16>
    tpu.vector_store %arg7[%c0_12, %c7, %c256_13], %27 {strides = array<i32>} : memref<7x8x384xbf16, #tpu.memory_space<vmem>>, vector<7x1x128xbf16>,
    %c0_14 = arith.constant 0 : index
    %c0_15 = arith.constant 0 : index
    %c0_16 = arith.constant 0 : index
    %29 = vector.load %arg7[%c0_14, %c0_15, %c0_16] : memref<7x8x384xbf16, #tpu.memory_space<vmem>>, vector<7x8x384xbf16>
    %30 = vector.shape_cast %29 : vector<7x8x384xbf16> to vector<56x384xbf16>
    %c0_17 = arith.constant 0 : index
    %c0_18 = arith.constant 0 : index
    %c0_19 = arith.constant 0 : index
    %31 = vector.load %arg4[%c0_17, %c0_18, %c0_19] : memref<3x384x128xbf16, #tpu.memory_space<vmem>>, vector<1x384x128xbf16>
    %32 = vector.shape_cast %31 : vector<1x384x128xbf16> to vector<384x128xbf16>
    %cst_20 = arith.constant dense<0.000000e+00> : vector<56x128xf32>
    %33 = tpu.matmul %30, %32, %cst_20 {dimension_numbers = #tpu.dot_dimension_numbers<[1], [0], [0], [1], [0, 0, 1, 1], [], []>} : vector<56x384xbf16>, vector<384x128xbf16>, vector<56x128xf32> -> vector<56x128xf32>
    %c0_21 = arith.constant 0 : index
    %c0_22 = arith.constant 0 : index
    %c0_23 = arith.constant 0 : index
    %34 = vector.load %arg7[%c0_21, %c0_22, %c0_23] : memref<7x8x384xbf16, #tpu.memory_space<vmem>>, vector<7x8x256xbf16>
    tpu.vector_store %arg7[%c0_21, %c0_22, %c0_23], %21 {strides = array<i32>} : memref<7x8x384xbf16, #tpu.memory_space<vmem>>, vector<7x8x256xbf16>,
    %35 = vector.extract_strided_slice %21 {offsets = [0, 1, 0], sizes = [7, 7, 128], strides = [1, 1, 1]} : vector<7x8x256xbf16> to vector<7x7x128xbf16>
    %c0_24 = arith.constant 0 : index
    %c0_25 = arith.constant 0 : index
    %c256_26 = arith.constant 256 : index
    %36 = vector.load %arg7[%c0_24, %c0_25, %c256_26] : memref<7x8x384xbf16, #tpu.memory_space<vmem>>, vector<7x7x128xbf16>
    tpu.vector_store %arg7[%c0_24, %c0_25, %c256_26], %35 {strides = array<i32>} : memref<7x8x384xbf16, #tpu.memory_space<vmem>>, vector<7x7x128xbf16>,
    %37 = vector.extract_strided_slice %21 {offsets = [0, 0, 0], sizes = [7, 1, 128], strides = [1, 1, 1]} : vector<7x8x256xbf16> to vector<7x1x128xbf16>
    %c0_27 = arith.constant 0 : index
    %c7_28 = arith.constant 7 : index
    %c256_29 = arith.constant 256 : index
    %38 = vector.load %arg7[%c0_27, %c7_28, %c256_29] : memref<7x8x384xbf16, #tpu.memory_space<vmem>>, vector<7x1x128xbf16>
    tpu.vector_store %arg7[%c0_27, %c7_28, %c256_29], %37 {strides = array<i32>} : memref<7x8x384xbf16, #tpu.memory_space<vmem>>, vector<7x1x128xbf16>,
    %c0_30 = arith.constant 0 : index
    %c0_31 = arith.constant 0 : index
    %c0_32 = arith.constant 0 : index
    %39 = vector.load %arg7[%c0_30, %c0_31, %c0_32] : memref<7x8x384xbf16, #tpu.memory_space<vmem>>, vector<7x8x384xbf16>
    %40 = vector.shape_cast %39 : vector<7x8x384xbf16> to vector<56x384xbf16>
    %c1 = arith.constant 1 : index
    %c0_33 = arith.constant 0 : index
    %c0_34 = arith.constant 0 : index
    %41 = vector.load %arg4[%c1, %c0_33, %c0_34] : memref<3x384x128xbf16, #tpu.memory_space<vmem>>, vector<1x384x128xbf16>
    %42 = vector.shape_cast %41 : vector<1x384x128xbf16> to vector<384x128xbf16>
    %cst_35 = arith.constant dense<0.000000e+00> : vector<56x128xf32>
    %43 = tpu.matmul %40, %42, %cst_35 {dimension_numbers = #tpu.dot_dimension_numbers<[1], [0], [0], [1], [0, 0, 1, 1], [], []>} : vector<56x384xbf16>, vector<384x128xbf16>, vector<56x128xf32> -> vector<56x128xf32>
    %44 = arith.addf %33, %43 : vector<56x128xf32>
    %c0_36 = arith.constant 0 : index
    %c0_37 = arith.constant 0 : index
    %c0_38 = arith.constant 0 : index
    %45 = vector.load %arg7[%c0_36, %c0_37, %c0_38] : memref<7x8x384xbf16, #tpu.memory_space<vmem>>, vector<7x8x256xbf16>
    tpu.vector_store %arg7[%c0_36, %c0_37, %c0_38], %23 {strides = array<i32>} : memref<7x8x384xbf16, #tpu.memory_space<vmem>>, vector<7x8x256xbf16>,
    %46 = vector.extract_strided_slice %23 {offsets = [0, 1, 0], sizes = [7, 7, 128], strides = [1, 1, 1]} : vector<7x8x256xbf16> to vector<7x7x128xbf16>
    %c0_39 = arith.constant 0 : index
    %c0_40 = arith.constant 0 : index
    %c256_41 = arith.constant 256 : index
    %47 = vector.load %arg7[%c0_39, %c0_40, %c256_41] : memref<7x8x384xbf16, #tpu.memory_space<vmem>>, vector<7x7x128xbf16>
    tpu.vector_store %arg7[%c0_39, %c0_40, %c256_41], %46 {strides = array<i32>} : memref<7x8x384xbf16, #tpu.memory_space<vmem>>, vector<7x7x128xbf16>,
    %48 = vector.extract_strided_slice %23 {offsets = [0, 0, 0], sizes = [7, 1, 128], strides = [1, 1, 1]} : vector<7x8x256xbf16> to vector<7x1x128xbf16>
    %c0_42 = arith.constant 0 : index
    %c7_43 = arith.constant 7 : index
    %c256_44 = arith.constant 256 : index
    %49 = vector.load %arg7[%c0_42, %c7_43, %c256_44] : memref<7x8x384xbf16, #tpu.memory_space<vmem>>, vector<7x1x128xbf16>
    tpu.vector_store %arg7[%c0_42, %c7_43, %c256_44], %48 {strides = array<i32>} : memref<7x8x384xbf16, #tpu.memory_space<vmem>>, vector<7x1x128xbf16>,
    %c0_45 = arith.constant 0 : index
    %c0_46 = arith.constant 0 : index
    %c0_47 = arith.constant 0 : index
    %50 = vector.load %arg7[%c0_45, %c0_46, %c0_47] : memref<7x8x384xbf16, #tpu.memory_space<vmem>>, vector<7x8x384xbf16>
    %51 = vector.shape_cast %50 : vector<7x8x384xbf16> to vector<56x384xbf16>
    %c2 = arith.constant 2 : index
    %c0_48 = arith.constant 0 : index
    %c0_49 = arith.constant 0 : index
    %52 = vector.load %arg4[%c2, %c0_48, %c0_49] : memref<3x384x128xbf16, #tpu.memory_space<vmem>>, vector<1x384x128xbf16>
    %53 = vector.shape_cast %52 : vector<1x384x128xbf16> to vector<384x128xbf16>
    %cst_50 = arith.constant dense<0.000000e+00> : vector<56x128xf32>
    %54 = tpu.matmul %51, %53, %cst_50 {dimension_numbers = #tpu.dot_dimension_numbers<[1], [0], [0], [1], [0, 0, 1, 1], [], []>} : vector<56x384xbf16>, vector<384x128xbf16>, vector<56x128xf32> -> vector<56x128xf32>
    %55 = arith.addf %44, %54 : vector<56x128xf32>
    %56 = vector.shape_cast %55 : vector<56x128xf32> to vector<7x8x128xf32>
    %57 = arith.truncf %56 : vector<7x8x128xf32> to vector<7x8x128xbf16>
    %c0_51 = arith.constant 0 : index
    %c0_52 = arith.constant 0 : index
    %c0_53 = arith.constant 0 : index
    %c0_54 = arith.constant 0 : index
    %58 = vector.load %arg5[%c0_51, %c0_52, %c0_53, %c0_54] : memref<1x7x8x128xbf16, #tpu.memory_space<vmem>>, vector<1x7x8x128xbf16>
    %59 = vector.shape_cast %58 : vector<1x7x8x128xbf16> to vector<7x8x128xbf16>
    %60 = vector.shape_cast %57 : vector<7x8x128xbf16> to vector<1x7x8x128xbf16>
    tpu.vector_store %arg5[%c0_51, %c0_52, %c0_53, %c0_54], %60 {strides = array<i32>} : memref<1x7x8x128xbf16, #tpu.memory_space<vmem>>, vector<1x7x8x128xbf16>,
    %61 = vector.extract_strided_slice %56 {offsets = [0, 0, 0], sizes = [7, 7, 128], strides = [1, 1, 1]} : vector<7x8x128xf32> to vector<7x7x128xf32>
    %cst_55 = arith.constant dense<0.000000e+00> : vector<7x128xf32>
    %62 = vector.multi_reduction <add>, %61, %cst_55 [0] : vector<7x7x128xf32> to vector<7x128xf32>
    %cst_56 = arith.constant dense<0.000000e+00> : vector<128xf32>
    %63 = vector.multi_reduction <add>, %62, %cst_56 [0] : vector<7x128xf32> to vector<128xf32>
    %64 = vector.shape_cast %63 : vector<128xf32> to vector<1x128xf32>
    %c0_57 = arith.constant 0 : index
    %c0_58 = arith.constant 0 : index
    %c0_59 = arith.constant 0 : index
    %65 = vector.load %arg6[%c0_57, %c0_58, %c0_59] : memref<1x2x128xf32, #tpu.memory_space<vmem>>, vector<1x1x128xf32>
    %66 = vector.shape_cast %65 : vector<1x1x128xf32> to vector<1x128xf32>
    %67 = vector.shape_cast %64 : vector<1x128xf32> to vector<1x1x128xf32>
    tpu.vector_store %arg6[%c0_57, %c0_58, %c0_59], %67 {strides = array<i32>} : memref<1x2x128xf32, #tpu.memory_space<vmem>>, vector<1x1x128xf32>,
    %68 = arith.mulf %61, %61 : vector<7x7x128xf32>
    %cst_60 = arith.constant dense<0.000000e+00> : vector<7x128xf32>
    %69 = vector.multi_reduction <add>, %68, %cst_60 [0] : vector<7x7x128xf32> to vector<7x128xf32>
    %cst_61 = arith.constant dense<0.000000e+00> : vector<128xf32>
    %70 = vector.multi_reduction <add>, %69, %cst_61 [0] : vector<7x128xf32> to vector<128xf32>
    %71 = vector.shape_cast %70 : vector<128xf32> to vector<1x128xf32>
    %c0_62 = arith.constant 0 : index
    %c1_63 = arith.constant 1 : index
    %c0_64 = arith.constant 0 : index
    %72 = vector.load %arg6[%c0_62, %c1_63, %c0_64] : memref<1x2x128xf32, #tpu.memory_space<vmem>>, vector<1x1x128xf32>
    %73 = vector.shape_cast %72 : vector<1x1x128xf32> to vector<1x128xf32>
    %74 = vector.shape_cast %71 : vector<1x128xf32> to vector<1x1x128xf32>
    tpu.vector_store %arg6[%c0_62, %c1_63, %c0_64], %74 {strides = array<i32>} : memref<1x2x128xf32, #tpu.memory_space<vmem>>, vector<1x1x128xf32>,
    return
  }
  func.func @transform_0(%arg0: i32) -> (i32, i32, i32, i32) {
    %c0_i32 = arith.constant 0 : i32
    %c0_i32_0 = arith.constant 0 : i32
    %c0_i32_1 = arith.constant 0 : i32
    %c0_i32_2 = arith.constant 0 : i32
    return %arg0, %c0_i32, %c0_i32_0, %c0_i32_1 : i32, i32, i32, i32
  }
  func.func @transform_1(%arg0: i32) -> (i32, i32) {
    %c0_i32 = arith.constant 0 : i32
    %c0_i32_0 = arith.constant 0 : i32
    %c0_i32_1 = arith.constant 0 : i32
    return %c0_i32, %c0_i32_0 : i32, i32
  }
  func.func @transform_2(%arg0: i32) -> (i32, i32) {
    %c0_i32 = arith.constant 0 : i32
    %c0_i32_0 = arith.constant 0 : i32
    %c0_i32_1 = arith.constant 0 : i32
    return %c0_i32, %c0_i32_0 : i32, i32
  }
  func.func @transform_3(%arg0: i32) -> (i32, i32, i32) {
    %c0_i32 = arith.constant 0 : i32
    %c0_i32_0 = arith.constant 0 : i32
    %c0_i32_1 = arith.constant 0 : i32
    %c0_i32_2 = arith.constant 0 : i32
    return %c0_i32, %c0_i32_0, %c0_i32_1 : i32, i32, i32
  }
  func.func @transform_4(%arg0: i32) -> (i32, i32, i32, i32) {
    %c0_i32 = arith.constant 0 : i32
    %c0_i32_0 = arith.constant 0 : i32
    %c0_i32_1 = arith.constant 0 : i32
    %c0_i32_2 = arith.constant 0 : i32
    return %arg0, %c0_i32, %c0_i32_0, %c0_i32_1 : i32, i32, i32, i32
  }
  func.func @transform_5(%arg0: i32) -> (i32, i32, i32) {
    %c0_i32 = arith.constant 0 : i32
    %c0_i32_0 = arith.constant 0 : i32
    %c0_i32_1 = arith.constant 0 : i32
    return %arg0, %c0_i32, %c0_i32_0 : i32, i32, i32
  }
}

module attributes {stable_mosaic.version = 11 : i64} {
  func.func @kernel(%arg0: i32, %arg1: memref<1x16x8x8xbf16, #tpu.memory_space<vmem>>, %arg2: memref<3x12x384xbf16, #tpu.memory_space<vmem>>, %arg3: memref<1x7x8x384xbf16, #tpu.memory_space<vmem>>, %arg4: memref<1x2x384xf32, #tpu.memory_space<vmem>>, %arg5: memref<1x7x7x4xbf16, #tpu.memory_space<vmem>>, %arg6: memref<7x8x12xbf16, #tpu.memory_space<vmem>>) attributes {dimension_semantics = [#tpu.dimension_semantics<parallel>], iteration_bounds = array<i64: 2>, scalar_prefetch = 0 : i64, scratch_operands = 1 : i64, tpu.core_type = #tpu.core_type<tc>, window_params = [{transform_indices = @transform_0, window_bounds = array<i64: 1, 16, 8, 8>}, {pipeline_mode = #tpu.pipeline_mode<synchronous>, transform_indices = @transform_1, window_bounds = array<i64: 3, 12, 384>}, {transform_indices = @transform_2, window_bounds = array<i64: 1, 7, 8, 384>}, {transform_indices = @transform_3, window_bounds = array<i64: 1, 2, 384>}, {transform_indices = @transform_4, window_bounds = array<i64: 1, 7, 7, 4>}]} {
    %c0 = arith.constant 0 : index
    %c0_0 = arith.constant 0 : index
    %c0_1 = arith.constant 0 : index
    %c0_2 = arith.constant 0 : index
    %0 = vector.load %arg1[%c0, %c0_0, %c0_1, %c0_2] : memref<1x16x8x8xbf16, #tpu.memory_space<vmem>>, vector<1x16x8x8xbf16>
    %1 = vector.shape_cast %0 : vector<1x16x8x8xbf16> to vector<16x8x8xbf16>
    %2 = vector.extract_strided_slice %1 {offsets = [0, 0, 0], sizes = [14, 8, 8], strides = [1, 1, 1]} : vector<16x8x8xbf16> to vector<14x8x8xbf16>
    %3 = vector.shape_cast %2 : vector<14x8x8xbf16> to vector<7x2x8x8xbf16>
    %4 = vector.extract_strided_slice %1 {offsets = [2, 0, 0], sizes = [14, 8, 8], strides = [1, 1, 1]} : vector<16x8x8xbf16> to vector<14x8x8xbf16>
    %5 = vector.shape_cast %4 : vector<14x8x8xbf16> to vector<7x2x8x8xbf16>
    %6 = vector.extract_strided_slice %3 {offsets = [0, 0, 0, 0], sizes = [7, 1, 8, 8], strides = [1, 1, 1, 1]} : vector<7x2x8x8xbf16> to vector<7x1x8x8xbf16>
    %7 = vector.shape_cast %6 : vector<7x1x8x8xbf16> to vector<7x8x8xbf16>
    %8 = vector.extract_strided_slice %3 {offsets = [0, 1, 0, 0], sizes = [7, 1, 8, 8], strides = [1, 1, 1, 1]} : vector<7x2x8x8xbf16> to vector<7x1x8x8xbf16>
    %9 = vector.shape_cast %8 : vector<7x1x8x8xbf16> to vector<7x8x8xbf16>
    %10 = vector.extract_strided_slice %5 {offsets = [0, 0, 0, 0], sizes = [7, 1, 8, 8], strides = [1, 1, 1, 1]} : vector<7x2x8x8xbf16> to vector<7x1x8x8xbf16>
    %11 = vector.shape_cast %10 : vector<7x1x8x8xbf16> to vector<7x8x8xbf16>
    %c0_3 = arith.constant 0 : index
    %c0_4 = arith.constant 0 : index
    %c0_5 = arith.constant 0 : index
    %12 = vector.load %arg6[%c0_3, %c0_4, %c0_5] : memref<7x8x12xbf16, #tpu.memory_space<vmem>>, vector<7x8x8xbf16>
    tpu.vector_store %arg6[%c0_3, %c0_4, %c0_5], %7 {strides = array<i32>} : memref<7x8x12xbf16, #tpu.memory_space<vmem>>, vector<7x8x8xbf16>,
    %13 = vector.extract_strided_slice %7 {offsets = [0, 1, 0], sizes = [7, 7, 4], strides = [1, 1, 1]} : vector<7x8x8xbf16> to vector<7x7x4xbf16>
    %c0_6 = arith.constant 0 : index
    %c0_7 = arith.constant 0 : index
    %c8 = arith.constant 8 : index
    %14 = vector.load %arg6[%c0_6, %c0_7, %c8] : memref<7x8x12xbf16, #tpu.memory_space<vmem>>, vector<7x7x4xbf16>
    tpu.vector_store %arg6[%c0_6, %c0_7, %c8], %13 {strides = array<i32>} : memref<7x8x12xbf16, #tpu.memory_space<vmem>>, vector<7x7x4xbf16>,
    %15 = vector.extract_strided_slice %7 {offsets = [0, 0, 0], sizes = [7, 1, 4], strides = [1, 1, 1]} : vector<7x8x8xbf16> to vector<7x1x4xbf16>
    %c0_8 = arith.constant 0 : index
    %c7 = arith.constant 7 : index
    %c8_9 = arith.constant 8 : index
    %16 = vector.load %arg6[%c0_8, %c7, %c8_9] : memref<7x8x12xbf16, #tpu.memory_space<vmem>>, vector<7x1x4xbf16>
    tpu.vector_store %arg6[%c0_8, %c7, %c8_9], %15 {strides = array<i32>} : memref<7x8x12xbf16, #tpu.memory_space<vmem>>, vector<7x1x4xbf16>,
    %c0_10 = arith.constant 0 : index
    %c0_11 = arith.constant 0 : index
    %c0_12 = arith.constant 0 : index
    %17 = vector.load %arg6[%c0_10, %c0_11, %c0_12] : memref<7x8x12xbf16, #tpu.memory_space<vmem>>, vector<7x8x12xbf16>
    %18 = vector.shape_cast %17 : vector<7x8x12xbf16> to vector<56x12xbf16>
    %c0_13 = arith.constant 0 : index
    %c0_14 = arith.constant 0 : index
    %c0_15 = arith.constant 0 : index
    %19 = vector.load %arg2[%c0_13, %c0_14, %c0_15] : memref<3x12x384xbf16, #tpu.memory_space<vmem>>, vector<1x12x384xbf16>
    %20 = vector.shape_cast %19 : vector<1x12x384xbf16> to vector<12x384xbf16>
    %cst = arith.constant dense<0.000000e+00> : vector<56x384xf32>
    %21 = tpu.matmul %18, %20, %cst {dimension_numbers = #tpu.dot_dimension_numbers<[1], [0], [0], [1], [0, 0, 1, 1], [], []>} : vector<56x12xbf16>, vector<12x384xbf16>, vector<56x384xf32> -> vector<56x384xf32>
    %22 = vector.extract_strided_slice %7 {offsets = [0, 0, 0], sizes = [7, 7, 4], strides = [1, 1, 1]} : vector<7x8x8xbf16> to vector<7x7x4xbf16>
    %23 = vector.extract_strided_slice %7 {offsets = [0, 0, 4], sizes = [7, 7, 4], strides = [1, 1, 1]} : vector<7x8x8xbf16> to vector<7x7x4xbf16>
    %24 = vector.extract_strided_slice %7 {offsets = [0, 1, 0], sizes = [7, 7, 4], strides = [1, 1, 1]} : vector<7x8x8xbf16> to vector<7x7x4xbf16>
    %25 = arith.maximumf %22, %23 : vector<7x7x4xbf16>
    %26 = arith.maximumf %25, %24 : vector<7x7x4xbf16>
    %c0_16 = arith.constant 0 : index
    %c0_17 = arith.constant 0 : index
    %c0_18 = arith.constant 0 : index
    %27 = vector.load %arg6[%c0_16, %c0_17, %c0_18] : memref<7x8x12xbf16, #tpu.memory_space<vmem>>, vector<7x8x8xbf16>
    tpu.vector_store %arg6[%c0_16, %c0_17, %c0_18], %9 {strides = array<i32>} : memref<7x8x12xbf16, #tpu.memory_space<vmem>>, vector<7x8x8xbf16>,
    %28 = vector.extract_strided_slice %9 {offsets = [0, 1, 0], sizes = [7, 7, 4], strides = [1, 1, 1]} : vector<7x8x8xbf16> to vector<7x7x4xbf16>
    %c0_19 = arith.constant 0 : index
    %c0_20 = arith.constant 0 : index
    %c8_21 = arith.constant 8 : index
    %29 = vector.load %arg6[%c0_19, %c0_20, %c8_21] : memref<7x8x12xbf16, #tpu.memory_space<vmem>>, vector<7x7x4xbf16>
    tpu.vector_store %arg6[%c0_19, %c0_20, %c8_21], %28 {strides = array<i32>} : memref<7x8x12xbf16, #tpu.memory_space<vmem>>, vector<7x7x4xbf16>,
    %30 = vector.extract_strided_slice %9 {offsets = [0, 0, 0], sizes = [7, 1, 4], strides = [1, 1, 1]} : vector<7x8x8xbf16> to vector<7x1x4xbf16>
    %c0_22 = arith.constant 0 : index
    %c7_23 = arith.constant 7 : index
    %c8_24 = arith.constant 8 : index
    %31 = vector.load %arg6[%c0_22, %c7_23, %c8_24] : memref<7x8x12xbf16, #tpu.memory_space<vmem>>, vector<7x1x4xbf16>
    tpu.vector_store %arg6[%c0_22, %c7_23, %c8_24], %30 {strides = array<i32>} : memref<7x8x12xbf16, #tpu.memory_space<vmem>>, vector<7x1x4xbf16>,
    %c0_25 = arith.constant 0 : index
    %c0_26 = arith.constant 0 : index
    %c0_27 = arith.constant 0 : index
    %32 = vector.load %arg6[%c0_25, %c0_26, %c0_27] : memref<7x8x12xbf16, #tpu.memory_space<vmem>>, vector<7x8x12xbf16>
    %33 = vector.shape_cast %32 : vector<7x8x12xbf16> to vector<56x12xbf16>
    %c1 = arith.constant 1 : index
    %c0_28 = arith.constant 0 : index
    %c0_29 = arith.constant 0 : index
    %34 = vector.load %arg2[%c1, %c0_28, %c0_29] : memref<3x12x384xbf16, #tpu.memory_space<vmem>>, vector<1x12x384xbf16>
    %35 = vector.shape_cast %34 : vector<1x12x384xbf16> to vector<12x384xbf16>
    %cst_30 = arith.constant dense<0.000000e+00> : vector<56x384xf32>
    %36 = tpu.matmul %33, %35, %cst_30 {dimension_numbers = #tpu.dot_dimension_numbers<[1], [0], [0], [1], [0, 0, 1, 1], [], []>} : vector<56x12xbf16>, vector<12x384xbf16>, vector<56x384xf32> -> vector<56x384xf32>
    %37 = arith.addf %21, %36 : vector<56x384xf32>
    %38 = vector.extract_strided_slice %9 {offsets = [0, 0, 0], sizes = [7, 7, 4], strides = [1, 1, 1]} : vector<7x8x8xbf16> to vector<7x7x4xbf16>
    %39 = vector.extract_strided_slice %9 {offsets = [0, 0, 4], sizes = [7, 7, 4], strides = [1, 1, 1]} : vector<7x8x8xbf16> to vector<7x7x4xbf16>
    %40 = vector.extract_strided_slice %9 {offsets = [0, 1, 0], sizes = [7, 7, 4], strides = [1, 1, 1]} : vector<7x8x8xbf16> to vector<7x7x4xbf16>
    %41 = arith.maximumf %38, %39 : vector<7x7x4xbf16>
    %42 = arith.maximumf %41, %40 : vector<7x7x4xbf16>
    %43 = arith.maximumf %26, %42 : vector<7x7x4xbf16>
    %c0_31 = arith.constant 0 : index
    %c0_32 = arith.constant 0 : index
    %c0_33 = arith.constant 0 : index
    %44 = vector.load %arg6[%c0_31, %c0_32, %c0_33] : memref<7x8x12xbf16, #tpu.memory_space<vmem>>, vector<7x8x8xbf16>
    tpu.vector_store %arg6[%c0_31, %c0_32, %c0_33], %11 {strides = array<i32>} : memref<7x8x12xbf16, #tpu.memory_space<vmem>>, vector<7x8x8xbf16>,
    %45 = vector.extract_strided_slice %11 {offsets = [0, 1, 0], sizes = [7, 7, 4], strides = [1, 1, 1]} : vector<7x8x8xbf16> to vector<7x7x4xbf16>
    %c0_34 = arith.constant 0 : index
    %c0_35 = arith.constant 0 : index
    %c8_36 = arith.constant 8 : index
    %46 = vector.load %arg6[%c0_34, %c0_35, %c8_36] : memref<7x8x12xbf16, #tpu.memory_space<vmem>>, vector<7x7x4xbf16>
    tpu.vector_store %arg6[%c0_34, %c0_35, %c8_36], %45 {strides = array<i32>} : memref<7x8x12xbf16, #tpu.memory_space<vmem>>, vector<7x7x4xbf16>,
    %47 = vector.extract_strided_slice %11 {offsets = [0, 0, 0], sizes = [7, 1, 4], strides = [1, 1, 1]} : vector<7x8x8xbf16> to vector<7x1x4xbf16>
    %c0_37 = arith.constant 0 : index
    %c7_38 = arith.constant 7 : index
    %c8_39 = arith.constant 8 : index
    %48 = vector.load %arg6[%c0_37, %c7_38, %c8_39] : memref<7x8x12xbf16, #tpu.memory_space<vmem>>, vector<7x1x4xbf16>
    tpu.vector_store %arg6[%c0_37, %c7_38, %c8_39], %47 {strides = array<i32>} : memref<7x8x12xbf16, #tpu.memory_space<vmem>>, vector<7x1x4xbf16>,
    %c0_40 = arith.constant 0 : index
    %c0_41 = arith.constant 0 : index
    %c0_42 = arith.constant 0 : index
    %49 = vector.load %arg6[%c0_40, %c0_41, %c0_42] : memref<7x8x12xbf16, #tpu.memory_space<vmem>>, vector<7x8x12xbf16>
    %50 = vector.shape_cast %49 : vector<7x8x12xbf16> to vector<56x12xbf16>
    %c2 = arith.constant 2 : index
    %c0_43 = arith.constant 0 : index
    %c0_44 = arith.constant 0 : index
    %51 = vector.load %arg2[%c2, %c0_43, %c0_44] : memref<3x12x384xbf16, #tpu.memory_space<vmem>>, vector<1x12x384xbf16>
    %52 = vector.shape_cast %51 : vector<1x12x384xbf16> to vector<12x384xbf16>
    %cst_45 = arith.constant dense<0.000000e+00> : vector<56x384xf32>
    %53 = tpu.matmul %50, %52, %cst_45 {dimension_numbers = #tpu.dot_dimension_numbers<[1], [0], [0], [1], [0, 0, 1, 1], [], []>} : vector<56x12xbf16>, vector<12x384xbf16>, vector<56x384xf32> -> vector<56x384xf32>
    %54 = arith.addf %37, %53 : vector<56x384xf32>
    %55 = vector.extract_strided_slice %11 {offsets = [0, 0, 0], sizes = [7, 7, 4], strides = [1, 1, 1]} : vector<7x8x8xbf16> to vector<7x7x4xbf16>
    %56 = vector.extract_strided_slice %11 {offsets = [0, 0, 4], sizes = [7, 7, 4], strides = [1, 1, 1]} : vector<7x8x8xbf16> to vector<7x7x4xbf16>
    %57 = vector.extract_strided_slice %11 {offsets = [0, 1, 0], sizes = [7, 7, 4], strides = [1, 1, 1]} : vector<7x8x8xbf16> to vector<7x7x4xbf16>
    %58 = arith.maximumf %55, %56 : vector<7x7x4xbf16>
    %59 = arith.maximumf %58, %57 : vector<7x7x4xbf16>
    %60 = arith.maximumf %43, %59 : vector<7x7x4xbf16>
    %61 = vector.shape_cast %54 : vector<56x384xf32> to vector<7x8x384xf32>
    %62 = arith.truncf %61 : vector<7x8x384xf32> to vector<7x8x384xbf16>
    %c0_46 = arith.constant 0 : index
    %c0_47 = arith.constant 0 : index
    %c0_48 = arith.constant 0 : index
    %c0_49 = arith.constant 0 : index
    %63 = vector.load %arg3[%c0_46, %c0_47, %c0_48, %c0_49] : memref<1x7x8x384xbf16, #tpu.memory_space<vmem>>, vector<1x7x8x384xbf16>
    %64 = vector.shape_cast %63 : vector<1x7x8x384xbf16> to vector<7x8x384xbf16>
    %65 = vector.shape_cast %62 : vector<7x8x384xbf16> to vector<1x7x8x384xbf16>
    tpu.vector_store %arg3[%c0_46, %c0_47, %c0_48, %c0_49], %65 {strides = array<i32>} : memref<1x7x8x384xbf16, #tpu.memory_space<vmem>>, vector<1x7x8x384xbf16>,
    %66 = vector.extract_strided_slice %61 {offsets = [0, 0, 0], sizes = [7, 7, 384], strides = [1, 1, 1]} : vector<7x8x384xf32> to vector<7x7x384xf32>
    %cst_50 = arith.constant dense<0.000000e+00> : vector<7x384xf32>
    %67 = vector.multi_reduction <add>, %66, %cst_50 [0] : vector<7x7x384xf32> to vector<7x384xf32>
    %cst_51 = arith.constant dense<0.000000e+00> : vector<384xf32>
    %68 = vector.multi_reduction <add>, %67, %cst_51 [0] : vector<7x384xf32> to vector<384xf32>
    %69 = vector.shape_cast %68 : vector<384xf32> to vector<1x384xf32>
    %c0_52 = arith.constant 0 : index
    %c0_53 = arith.constant 0 : index
    %c0_54 = arith.constant 0 : index
    %70 = vector.load %arg4[%c0_52, %c0_53, %c0_54] : memref<1x2x384xf32, #tpu.memory_space<vmem>>, vector<1x1x384xf32>
    %71 = vector.shape_cast %70 : vector<1x1x384xf32> to vector<1x384xf32>
    %72 = vector.shape_cast %69 : vector<1x384xf32> to vector<1x1x384xf32>
    tpu.vector_store %arg4[%c0_52, %c0_53, %c0_54], %72 {strides = array<i32>} : memref<1x2x384xf32, #tpu.memory_space<vmem>>, vector<1x1x384xf32>,
    %73 = arith.mulf %66, %66 : vector<7x7x384xf32>
    %cst_55 = arith.constant dense<0.000000e+00> : vector<7x384xf32>
    %74 = vector.multi_reduction <add>, %73, %cst_55 [0] : vector<7x7x384xf32> to vector<7x384xf32>
    %cst_56 = arith.constant dense<0.000000e+00> : vector<384xf32>
    %75 = vector.multi_reduction <add>, %74, %cst_56 [0] : vector<7x384xf32> to vector<384xf32>
    %76 = vector.shape_cast %75 : vector<384xf32> to vector<1x384xf32>
    %c0_57 = arith.constant 0 : index
    %c1_58 = arith.constant 1 : index
    %c0_59 = arith.constant 0 : index
    %77 = vector.load %arg4[%c0_57, %c1_58, %c0_59] : memref<1x2x384xf32, #tpu.memory_space<vmem>>, vector<1x1x384xf32>
    %78 = vector.shape_cast %77 : vector<1x1x384xf32> to vector<1x384xf32>
    %79 = vector.shape_cast %76 : vector<1x384xf32> to vector<1x1x384xf32>
    tpu.vector_store %arg4[%c0_57, %c1_58, %c0_59], %79 {strides = array<i32>} : memref<1x2x384xf32, #tpu.memory_space<vmem>>, vector<1x1x384xf32>,
    %c0_60 = arith.constant 0 : index
    %c0_61 = arith.constant 0 : index
    %c0_62 = arith.constant 0 : index
    %c0_63 = arith.constant 0 : index
    %80 = vector.load %arg5[%c0_60, %c0_61, %c0_62, %c0_63] : memref<1x7x7x4xbf16, #tpu.memory_space<vmem>>, vector<1x7x7x4xbf16>
    %81 = vector.shape_cast %80 : vector<1x7x7x4xbf16> to vector<7x7x4xbf16>
    %82 = vector.shape_cast %60 : vector<7x7x4xbf16> to vector<1x7x7x4xbf16>
    tpu.vector_store %arg5[%c0_60, %c0_61, %c0_62, %c0_63], %82 {strides = array<i32>} : memref<1x7x7x4xbf16, #tpu.memory_space<vmem>>, vector<1x7x7x4xbf16>,
    return
  }
  func.func @transform_0(%arg0: i32) -> (i32, i32, i32, i32) {
    %c0_i32 = arith.constant 0 : i32
    %c0_i32_0 = arith.constant 0 : i32
    %c0_i32_1 = arith.constant 0 : i32
    %c0_i32_2 = arith.constant 0 : i32
    return %arg0, %c0_i32, %c0_i32_0, %c0_i32_1 : i32, i32, i32, i32
  }
  func.func @transform_1(%arg0: i32) -> (i32, i32, i32) {
    %c0_i32 = arith.constant 0 : i32
    %c0_i32_0 = arith.constant 0 : i32
    %c0_i32_1 = arith.constant 0 : i32
    %c0_i32_2 = arith.constant 0 : i32
    return %c0_i32, %c0_i32_0, %c0_i32_1 : i32, i32, i32
  }
  func.func @transform_2(%arg0: i32) -> (i32, i32, i32, i32) {
    %c0_i32 = arith.constant 0 : i32
    %c0_i32_0 = arith.constant 0 : i32
    %c0_i32_1 = arith.constant 0 : i32
    %c0_i32_2 = arith.constant 0 : i32
    return %arg0, %c0_i32, %c0_i32_0, %c0_i32_1 : i32, i32, i32, i32
  }
  func.func @transform_3(%arg0: i32) -> (i32, i32, i32) {
    %c0_i32 = arith.constant 0 : i32
    %c0_i32_0 = arith.constant 0 : i32
    %c0_i32_1 = arith.constant 0 : i32
    return %arg0, %c0_i32, %c0_i32_0 : i32, i32, i32
  }
  func.func @transform_4(%arg0: i32) -> (i32, i32, i32, i32) {
    %c0_i32 = arith.constant 0 : i32
    %c0_i32_0 = arith.constant 0 : i32
    %c0_i32_1 = arith.constant 0 : i32
    %c0_i32_2 = arith.constant 0 : i32
    return %arg0, %c0_i32, %c0_i32_0, %c0_i32_1 : i32, i32, i32, i32
  }
}

module attributes {stable_mosaic.version = 11 : i64} {
  func.func @kernel(%arg0: i32, %arg1: memref<1x7x8x384xbf16, #tpu.memory_space<vmem>>, %arg2: memref<1x7x8x128xbf16, #tpu.memory_space<vmem>>, %arg3: memref<1x7x7x4xbf16, #tpu.memory_space<vmem>>, %arg4: memref<1x384xf32, #tpu.memory_space<vmem>>, %arg5: memref<1x384xf32, #tpu.memory_space<vmem>>, %arg6: memref<1x96xf32, #tpu.memory_space<vmem>>, %arg7: memref<1x96xf32, #tpu.memory_space<vmem>>, %arg8: memref<1x7x7x484xf32, #tpu.memory_space<vmem>>) attributes {dimension_semantics = [#tpu.dimension_semantics<parallel>], iteration_bounds = array<i64: 2>, scalar_prefetch = 0 : i64, scratch_operands = 0 : i64, tpu.core_type = #tpu.core_type<tc>, window_params = [{transform_indices = @transform_0, window_bounds = array<i64: 1, 7, 8, 384>}, {transform_indices = @transform_1, window_bounds = array<i64: 1, 7, 8, 128>}, {transform_indices = @transform_2, window_bounds = array<i64: 1, 7, 7, 4>}, {pipeline_mode = #tpu.pipeline_mode<synchronous>, transform_indices = @transform_3, window_bounds = array<i64: 1, 384>}, {pipeline_mode = #tpu.pipeline_mode<synchronous>, transform_indices = @transform_4, window_bounds = array<i64: 1, 384>}, {pipeline_mode = #tpu.pipeline_mode<synchronous>, transform_indices = @transform_5, window_bounds = array<i64: 1, 96>}, {pipeline_mode = #tpu.pipeline_mode<synchronous>, transform_indices = @transform_6, window_bounds = array<i64: 1, 96>}, {transform_indices = @transform_7, window_bounds = array<i64: 1, 7, 7, 484>}]} {
    %c0 = arith.constant 0 : index
    %c0_0 = arith.constant 0 : index
    %0 = vector.load %arg4[%c0, %c0_0] : memref<1x384xf32, #tpu.memory_space<vmem>>, vector<1x384xf32>
    %1 = vector.shape_cast %0 : vector<1x384xf32> to vector<1x1x384xf32>
    %c0_1 = arith.constant 0 : index
    %c0_2 = arith.constant 0 : index
    %2 = vector.load %arg5[%c0_1, %c0_2] : memref<1x384xf32, #tpu.memory_space<vmem>>, vector<1x384xf32>
    %3 = vector.shape_cast %2 : vector<1x384xf32> to vector<1x1x384xf32>
    %c0_3 = arith.constant 0 : index
    %c0_4 = arith.constant 0 : index
    %4 = vector.load %arg6[%c0_3, %c0_4] : memref<1x96xf32, #tpu.memory_space<vmem>>, vector<1x96xf32>
    %5 = vector.shape_cast %4 : vector<1x96xf32> to vector<1x1x96xf32>
    %c0_5 = arith.constant 0 : index
    %c0_6 = arith.constant 0 : index
    %6 = vector.load %arg7[%c0_5, %c0_6] : memref<1x96xf32, #tpu.memory_space<vmem>>, vector<1x96xf32>
    %7 = vector.shape_cast %6 : vector<1x96xf32> to vector<1x1x96xf32>
    %c0_7 = arith.constant 0 : index
    %c0_8 = arith.constant 0 : index
    %c0_9 = arith.constant 0 : index
    %c0_10 = arith.constant 0 : index
    %8 = vector.load %arg1[%c0_7, %c0_8, %c0_9, %c0_10] : memref<1x7x8x384xbf16, #tpu.memory_space<vmem>>, vector<1x7x8x384xbf16>
    %9 = vector.shape_cast %8 : vector<1x7x8x384xbf16> to vector<7x8x384xbf16>
    %10 = vector.extract_strided_slice %9 {offsets = [0, 0, 0], sizes = [7, 7, 384], strides = [1, 1, 1]} : vector<7x8x384xbf16> to vector<7x7x384xbf16>
    %11 = arith.extf %10 : vector<7x7x384xbf16> to vector<7x7x384xf32>
    %c0_11 = arith.constant 0 : index
    %c0_12 = arith.constant 0 : index
    %c0_13 = arith.constant 0 : index
    %c0_14 = arith.constant 0 : index
    %12 = vector.load %arg2[%c0_11, %c0_12, %c0_13, %c0_14] : memref<1x7x8x128xbf16, #tpu.memory_space<vmem>>, vector<1x7x8x128xbf16>
    %13 = vector.shape_cast %12 : vector<1x7x8x128xbf16> to vector<7x8x128xbf16>
    %14 = vector.extract_strided_slice %13 {offsets = [0, 0, 0], sizes = [7, 7, 96], strides = [1, 1, 1]} : vector<7x8x128xbf16> to vector<7x7x96xbf16>
    %15 = arith.extf %14 : vector<7x7x96xbf16> to vector<7x7x96xf32>
    %16 = vector.broadcast %1 : vector<1x1x384xf32> to vector<7x7x384xf32>
    %17 = arith.mulf %11, %16 : vector<7x7x384xf32>
    %18 = vector.broadcast %3 : vector<1x1x384xf32> to vector<7x7x384xf32>
    %19 = arith.addf %17, %18 : vector<7x7x384xf32>
    %cst = arith.constant 0.000000e+00 : f32
    %20 = vector.broadcast %cst : f32 to vector<7x7x384xf32>
    %21 = arith.maximumf %19, %20 : vector<7x7x384xf32>
    %c0_15 = arith.constant 0 : index
    %c0_16 = arith.constant 0 : index
    %c0_17 = arith.constant 0 : index
    %c0_18 = arith.constant 0 : index
    %22 = vector.load %arg8[%c0_15, %c0_16, %c0_17, %c0_18] : memref<1x7x7x484xf32, #tpu.memory_space<vmem>>, vector<1x7x7x384xf32>
    %23 = vector.shape_cast %22 : vector<1x7x7x384xf32> to vector<7x7x384xf32>
    %24 = vector.shape_cast %21 : vector<7x7x384xf32> to vector<1x7x7x384xf32>
    tpu.vector_store %arg8[%c0_15, %c0_16, %c0_17, %c0_18], %24 {strides = array<i32>} : memref<1x7x7x484xf32, #tpu.memory_space<vmem>>, vector<1x7x7x384xf32>,
    %25 = vector.broadcast %5 : vector<1x1x96xf32> to vector<7x7x96xf32>
    %26 = arith.mulf %15, %25 : vector<7x7x96xf32>
    %27 = vector.broadcast %7 : vector<1x1x96xf32> to vector<7x7x96xf32>
    %28 = arith.addf %26, %27 : vector<7x7x96xf32>
    %cst_19 = arith.constant 0.000000e+00 : f32
    %29 = vector.broadcast %cst_19 : f32 to vector<7x7x96xf32>
    %30 = arith.maximumf %28, %29 : vector<7x7x96xf32>
    %c0_20 = arith.constant 0 : index
    %c0_21 = arith.constant 0 : index
    %c0_22 = arith.constant 0 : index
    %c384 = arith.constant 384 : index
    %31 = vector.load %arg8[%c0_20, %c0_21, %c0_22, %c384] : memref<1x7x7x484xf32, #tpu.memory_space<vmem>>, vector<1x7x7x96xf32>
    %32 = vector.shape_cast %31 : vector<1x7x7x96xf32> to vector<7x7x96xf32>
    %33 = vector.shape_cast %30 : vector<7x7x96xf32> to vector<1x7x7x96xf32>
    tpu.vector_store %arg8[%c0_20, %c0_21, %c0_22, %c384], %33 {strides = array<i32>} : memref<1x7x7x484xf32, #tpu.memory_space<vmem>>, vector<1x7x7x96xf32>,
    %c0_23 = arith.constant 0 : index
    %c0_24 = arith.constant 0 : index
    %c0_25 = arith.constant 0 : index
    %c0_26 = arith.constant 0 : index
    %34 = vector.load %arg3[%c0_23, %c0_24, %c0_25, %c0_26] : memref<1x7x7x4xbf16, #tpu.memory_space<vmem>>, vector<1x7x7x4xbf16>
    %35 = vector.shape_cast %34 : vector<1x7x7x4xbf16> to vector<7x7x4xbf16>
    %36 = arith.extf %35 : vector<7x7x4xbf16> to vector<7x7x4xf32>
    %c0_27 = arith.constant 0 : index
    %c0_28 = arith.constant 0 : index
    %c0_29 = arith.constant 0 : index
    %c480 = arith.constant 480 : index
    %37 = vector.load %arg8[%c0_27, %c0_28, %c0_29, %c480] : memref<1x7x7x484xf32, #tpu.memory_space<vmem>>, vector<1x7x7x4xf32>
    %38 = vector.shape_cast %37 : vector<1x7x7x4xf32> to vector<7x7x4xf32>
    %39 = vector.shape_cast %36 : vector<7x7x4xf32> to vector<1x7x7x4xf32>
    tpu.vector_store %arg8[%c0_27, %c0_28, %c0_29, %c480], %39 {strides = array<i32>} : memref<1x7x7x484xf32, #tpu.memory_space<vmem>>, vector<1x7x7x4xf32>,
    return
  }
  func.func @transform_0(%arg0: i32) -> (i32, i32, i32, i32) {
    %c0_i32 = arith.constant 0 : i32
    %c0_i32_0 = arith.constant 0 : i32
    %c0_i32_1 = arith.constant 0 : i32
    %c0_i32_2 = arith.constant 0 : i32
    return %arg0, %c0_i32, %c0_i32_0, %c0_i32_1 : i32, i32, i32, i32
  }
  func.func @transform_1(%arg0: i32) -> (i32, i32, i32, i32) {
    %c0_i32 = arith.constant 0 : i32
    %c0_i32_0 = arith.constant 0 : i32
    %c0_i32_1 = arith.constant 0 : i32
    %c0_i32_2 = arith.constant 0 : i32
    return %arg0, %c0_i32, %c0_i32_0, %c0_i32_1 : i32, i32, i32, i32
  }
  func.func @transform_2(%arg0: i32) -> (i32, i32, i32, i32) {
    %c0_i32 = arith.constant 0 : i32
    %c0_i32_0 = arith.constant 0 : i32
    %c0_i32_1 = arith.constant 0 : i32
    %c0_i32_2 = arith.constant 0 : i32
    return %arg0, %c0_i32, %c0_i32_0, %c0_i32_1 : i32, i32, i32, i32
  }
  func.func @transform_3(%arg0: i32) -> (i32, i32) {
    %c0_i32 = arith.constant 0 : i32
    %c0_i32_0 = arith.constant 0 : i32
    %c0_i32_1 = arith.constant 0 : i32
    return %c0_i32, %c0_i32_0 : i32, i32
  }
  func.func @transform_4(%arg0: i32) -> (i32, i32) {
    %c0_i32 = arith.constant 0 : i32
    %c0_i32_0 = arith.constant 0 : i32
    %c0_i32_1 = arith.constant 0 : i32
    return %c0_i32, %c0_i32_0 : i32, i32
  }
  func.func @transform_5(%arg0: i32) -> (i32, i32) {
    %c0_i32 = arith.constant 0 : i32
    %c0_i32_0 = arith.constant 0 : i32
    %c0_i32_1 = arith.constant 0 : i32
    return %c0_i32, %c0_i32_0 : i32, i32
  }
  func.func @transform_6(%arg0: i32) -> (i32, i32) {
    %c0_i32 = arith.constant 0 : i32
    %c0_i32_0 = arith.constant 0 : i32
    %c0_i32_1 = arith.constant 0 : i32
    return %c0_i32, %c0_i32_0 : i32, i32
  }
  func.func @transform_7(%arg0: i32) -> (i32, i32, i32, i32) {
    %c0_i32 = arith.constant 0 : i32
    %c0_i32_0 = arith.constant 0 : i32
    %c0_i32_1 = arith.constant 0 : i32
    %c0_i32_2 = arith.constant 0 : i32
    return %arg0, %c0_i32, %c0_i32_0, %c0_i32_1 : i32, i32, i32, i32
  }
}

</mosaic_0001>

<llo_original>
// kernel: inception_b_forward.5
$region0: #{inception_b_forward.5}
  #allocation0 [shape = 'u32[]', space=smem, size = 0x4, offset = 0x4, fixed_abs, tag = 'smem constant byte address 0x4 - core index']
  #allocation1 [shape = 'u32[144,128]{1,0:T(1,128)}', space=vmem, size = 0x12000, scoped, tag = 'internal scratch']
  %s0 = inlined_call_operand.vmem [shape: bf16[2,256,4], index: 0, kind: input, shape index: {}]
  %s1 = inlined_call_operand.vmem [shape: bf16[4,64], index: 1, kind: input, shape index: {}]
  %s2 = inlined_call_operand.vmem [shape: bf16[2,256,64], index: 2, kind: output, shape index: {0}]
  %s3 = inlined_call_operand.vmem [shape: f32[2,2,64], index: 3, kind: output, shape index: {1}]
  %4 = xla_tuple %s2, %s3
  %s5 = sld [smem:[#allocation0]]
  $region49: #{inception_b_forward.5} parent=0
    _
  %s7 = ssub.s32 1, %s5
  %s8 = scalar_select 0, %s7, %s5
  loop: start=0, step=1, limit=4
  $region2: #{inception_b_forward.5} parent=0 // loop_pre_header
    _
  $region3: #{inception_b_forward.5} parent=0 // loop_header
    %s10 = sphi 0, %s14
    %p11 = scmp.ge.s32.totalorder %s10, 4
    %s20 = sphi 0, %s22
    %s23 = sphi 0, %s20
    %s24 = sphi 0, %s23
    %s40 = sphi 0, %s24
    %s44 = sphi 0, %s44
    %s46 = sphi 0, %s44
    %s47 = sphi 0, %s46
    %s61 = sphi 0, %s47
    %s67 = sphi 0, %s69
    %s70 = sphi 0, %s67
    %s71 = sphi 0, %s70
    %s87 = sphi 0, %s71
    %s93 = sphi 0, %s95
    %s96 = sphi 0, %s93
    %s97 = sphi 0, %s96
    %s113 = sphi 0, %s97
  $region4: #{inception_b_forward.5} parent=0 // loop_header_branch
    %13 = sbr.rel (%p11) target = $region8
  $region5: #{inception_b_forward.5} parent=0 // loop_body
    %s15 = ssub.s32 %s10, 1
    %s16 = ssub.s32 %s10, 2
    %s17 = sadd.s32 %s10, 1
    %s18 = ssub.s32 %s10, %s17
    %p19 = scmp.eq.s32.totalorder %s18, 0
    %s21 = sadd.s32 %s20, 1
    %s22 = scalar_select %p19, %s20, %s21
    %p25 = pneg %p19
    %p26 = scmp.eq.s32.totalorder %s10, 1
    %p27 = por %p25, %p26
    %p28 = scmp.ne.s32.totalorder %s20, %s23
    %p29 = scmp.eq.s32.totalorder %s10, 0
    %p30 = por %p28, %p29
    %p31 = scmp.ne.s32.totalorder %s20, %s23
    %p32 = scmp.eq.s32.totalorder %s15, 1
    %p33 = por %p31, %p32
    %p34 = scmp.ne.s32.totalorder %s23, %s24
    %p35 = scmp.eq.s32.totalorder %s15, 0
    %p36 = por %p34, %p35
    %p37 = scmp.ne.s32.totalorder %s23, %s24
    %p38 = scmp.eq.s32.totalorder %s16, 1
    %p39 = por %p37, %p38
    %p41 = scmp.ne.s32.totalorder %s24, %s40
    %p42 = scmp.eq.s32.totalorder %s16, 0
    %p43 = por %p41, %p42
    %s45 = sadd.s32 %s44, 1
    %p48 = scmp.eq.s32.totalorder %s10, 1
    %p49 = scmp.ne.s32.totalorder %s44, %s46
    %p50 = scmp.eq.s32.totalorder %s10, 0
    %p51 = por %p49, %p50
    %p52 = scmp.ne.s32.totalorder %s44, %s46
    %p53 = scmp.eq.s32.totalorder %s15, 1
    %p54 = por %p52, %p53
    %p55 = scmp.ne.s32.totalorder %s46, %s47
    %p56 = scmp.eq.s32.totalorder %s15, 0
    %p57 = por %p55, %p56
    %p58 = scmp.ne.s32.totalorder %s46, %s47
    %p59 = scmp.eq.s32.totalorder %s16, 1
    %p60 = por %p58, %p59
    %p62 = scmp.ne.s32.totalorder %s47, %s61
    %p63 = scmp.eq.s32.totalorder %s16, 0
    %p64 = por %p62, %p63
    %s65 = ssub.s32 %s10, %s17
    %p66 = scmp.eq.s32.totalorder %s65, 0
    %s68 = sadd.s32 %s67, 1
    %s69 = scalar_select %p66, %s67, %s68
    %p72 = pneg %p66
    %p73 = scmp.eq.s32.totalorder %s10, 1
    %p74 = por %p72, %p73
    %p75 = scmp.ne.s32.totalorder %s67, %s70
    %p76 = scmp.eq.s32.totalorder %s10, 0
    %p77 = por %p75, %p76
    %p78 = scmp.ne.s32.totalorder %s67, %s70
    %p79 = scmp.eq.s32.totalorder %s15, 1
    %p80 = por %p78, %p79
    %p81 = scmp.ne.s32.totalorder %s70, %s71
    %p82 = scmp.eq.s32.totalorder %s15, 0
    %p83 = por %p81, %p82
    %p84 = scmp.ne.s32.totalorder %s70, %s71
    %p85 = scmp.eq.s32.totalorder %s16, 1
    %p86 = por %p84, %p85
    %p88 = scmp.ne.s32.totalorder %s71, %s87
    %p89 = scmp.eq.s32.totalorder %s16, 0
    %p90 = por %p88, %p89
    %s91 = ssub.s32 %s10, %s17
    %p92 = scmp.eq.s32.totalorder %s91, 0
    %s94 = sadd.s32 %s93, 1
    %s95 = scalar_select %p92, %s93, %s94
    %p98 = pneg %p92
    %p99 = scmp.eq.s32.totalorder %s10, 1
    %p100 = por %p98, %p99
    %p101 = scmp.ne.s32.totalorder %s93, %s96
    %p102 = scmp.eq.s32.totalorder %s10, 0
    %p103 = por %p101, %p102
    %p104 = scmp.ne.s32.totalorder %s93, %s96
    %p105 = scmp.eq.s32.totalorder %s15, 1
    %p106 = por %p104, %p105
    %p107 = scmp.ne.s32.totalorder %s96, %s97
    %p108 = scmp.eq.s32.totalorder %s15, 0
    %p109 = por %p107, %p108
    %p110 = scmp.ne.s32.totalorder %s96, %s97
    %p111 = scmp.eq.s32.totalorder %s16, 1
    %p112 = por %p110, %p111
    %p114 = scmp.ne.s32.totalorder %s97, %s113
    %p115 = scmp.eq.s32.totalorder %s16, 0
    %p116 = por %p114, %p115
    %p117 = scmp.le.s32.totalorder 1, %s10
    %p118 = scmp.lt.s32.totalorder %s10, 3
    %p119 = pnand %p117, %p118
    %p120 = pneg %p119
    // Predicated region
    $region9: #{inception_b_forward.5} parent=5 // pred_check
      _
    $region10: #{inception_b_forward.5} parent=5 // pred_check_branch
      %122 = sbr.rel (%p119) target = $region12
    $region11: #{inception_b_forward.5} parent=5 // pred_region
      %s123 = ssub.s32 %s10, 1
      // Predicated region
      $region13: #{inception_b_forward.5} parent=11 // pred_check
        %p124 = pneg %p57
      $region14: #{inception_b_forward.5} parent=11 // pred_check_branch
        %126 = sbr.rel (%p124) target = $region16
      $region15: #{inception_b_forward.5} parent=11 // pred_region
        _
      $region16: #{inception_b_forward.5} parent=11 // pred_fallthru
        _
    $region12: #{inception_b_forward.5} parent=5 // pred_fallthru
      _
    %p127 = scmp.lt.s32.totalorder %s10, 2
    // Predicated region
    $region17: #{inception_b_forward.5} parent=5 // pred_check
      %p128 = pneg %p127
    $region18: #{inception_b_forward.5} parent=5 // pred_check_branch
      %130 = sbr.rel (%p128) target = $region20
    $region19: #{inception_b_forward.5} parent=5 // pred_region
      // Predicated region
      $region21: #{inception_b_forward.5} parent=19 // pred_check
        %p131 = pneg %p30
      $region22: #{inception_b_forward.5} parent=19 // pred_check_branch
        %133 = sbr.rel (%p131) target = $region24
      $region23: #{inception_b_forward.5} parent=19 // pred_region
        %p134 = scmp.lt.s32.totalorder %s10, 1
        %s135 = scalar_select %p134, %s10, 1
        %s136 = smul.addr %s135, 32
        %s137 = smul.addr %s136, 4
        %s138 = scalar_lea.vmem %s0, %s137
      $region24: #{inception_b_forward.5} parent=19 // pred_fallthru
        _
    $region20: #{inception_b_forward.5} parent=5 // pred_fallthru
      _
    %p139 = scmp.le.s32.totalorder 1, %s10
    %p140 = scmp.lt.s32.totalorder %s10, 3
    %p141 = pnand %p139, %p140
    %p142 = pneg %p141
    // Predicated region
    $region25: #{inception_b_forward.5} parent=5 // pred_check
      _
    $region26: #{inception_b_forward.5} parent=5 // pred_check_branch
      %144 = sbr.rel (%p141) target = $region28
    $region27: #{inception_b_forward.5} parent=5 // pred_region
      %s145 = ssub.s32 %s10, 1
      %p146 = scmp.lt.s32.totalorder %s15, 1
      %s147 = scalar_select %p146, %s15, 1
      %s148 = smul.addr %s147, 32
      %s149 = smul.addr %s148, 4
      %s150 = scalar_lea.vmem %s0, %s149
      %p151 = pneg %p36
      %p152 = pneg %p33
      %p153 = pneg %p57
      %p154 = pneg %p54
      %p155 = pneg %p83
      %p156 = pneg %p80
      %p157 = scmp.lt.s32.totalorder %s15, 1
      %s158 = scalar_select %p157, %s15, 1
      %s159 = smul.addr %s158, 32
      %s160 = smul.addr %s159, 4
      %s161 = scalar_lea.vmem %s2, %s160
      %p162 = pneg %p109
      %p163 = pneg %p106
      %p164 = scmp.lt.s32.totalorder %s15, 1
      %s165 = scalar_select %p164, %s15, 1
      %s166 = smul.addr %s165, 2
      %s167 = scalar_lea.vmem %s3, %s166
      %p168 = scmp.lt.s32.totalorder %s15, 1
      %s169 = scalar_select %p168, %s15, 1
      %s170 = smul.addr %s169, 32
      %s171 = smul.addr %s170, 4
      %s172 = scalar_lea.vmem %s0, %s171
      %p173 = scmp.lt.s32.totalorder %s15, 1
      %s174 = scalar_select %p173, %s15, 1
      %s175 = smul.addr %s174, 32
      %s176 = smul.addr %s175, 4
      %s177 = scalar_lea.vmem %s2, %s176
      %p178 = scmp.lt.s32.totalorder %s15, 1
      %s179 = scalar_select %p178, %s15, 1
      %s180 = smul.addr %s179, 2
      %s181 = scalar_lea.vmem %s3, %s180
      %v183 = vld [vmem:[%s172] sm:$0xf]
      %v184 = vld [vmem:[%s172 + $0x4] sm:$0xf]
      %v185 = vld [vmem:[%s172 + $0x8] sm:$0xf]
      %v186 = vld [vmem:[%s172 + $0xc] sm:$0xf]
      %v187 = vld [vmem:[%s172 + $0x10] sm:$0xf]
      %v188 = vld [vmem:[%s172 + $0x14] sm:$0xf]
      %v189 = vld [vmem:[%s172 + $0x18] sm:$0xf]
      %v190 = vld [vmem:[%s172 + $0x1c] sm:$0xf]
      %v191 = vld [vmem:[%s172 + $0x20] sm:$0xf]
      %v192 = vld [vmem:[%s172 + $0x24] sm:$0xf]
      %v193 = vld [vmem:[%s172 + $0x28] sm:$0xf]
      %v194 = vld [vmem:[%s172 + $0x2c] sm:$0xf]
      %v195 = vld [vmem:[%s172 + $0x30] sm:$0xf]
      %v196 = vld [vmem:[%s172 + $0x34] sm:$0xf]
      %v197 = vld [vmem:[%s172 + $0x38] sm:$0xf]
      %v198 = vld [vmem:[%s172 + $0x3c] sm:$0xf]
      %v199 = vld [vmem:[%s172 + $0x40] sm:$0xf]
      %v200 = vld [vmem:[%s172 + $0x44] sm:$0xf]
      %v201 = vld [vmem:[%s172 + $0x48] sm:$0xf]
      %v202 = vld [vmem:[%s172 + $0x4c] sm:$0xf]
      %v203 = vld [vmem:[%s172 + $0x50] sm:$0xf]
      %v204 = vld [vmem:[%s172 + $0x54] sm:$0xf]
      %v205 = vld [vmem:[%s172 + $0x58] sm:$0xf]
      %v206 = vld [vmem:[%s172 + $0x5c] sm:$0xf]
      %v207 = vld [vmem:[%s172 + $0x60] sm:$0xf]
      %v208 = vld [vmem:[%s172 + $0x64] sm:$0xf]
      %v209 = vld [vmem:[%s172 + $0x68] sm:$0xf]
      %v210 = vld [vmem:[%s172 + $0x6c] sm:$0xf]
      %v211 = vld [vmem:[%s172 + $0x70] sm:$0xf]
      %v212 = vld [vmem:[%s172 + $0x74] sm:$0xf]
      %v213 = vld [vmem:[%s172 + $0x78] sm:$0xf]
      %v214 = vld [vmem:[%s172 + $0x7c] sm:$0xf]
      %v215 = vld [vmem:[%s1] sm:$0x3]
      %v248 = vunpack.c.l.b16 %v183
      %v249 = vunpack.c.l.b16 %v184
      %v250 = vunpack.c.l.b16 %v185
      %v251 = vunpack.c.l.b16 %v186
      %v252 = vunpack.c.l.b16 %v187
      %v253 = vunpack.c.l.b16 %v188
      %v254 = vunpack.c.l.b16 %v189
      %v255 = vunpack.c.l.b16 %v190
      %v256 = vunpack.c.l.b16 %v191
      %v257 = vunpack.c.l.b16 %v192
      %v258 = vunpack.c.l.b16 %v193
      %v259 = vunpack.c.l.b16 %v194
      %v260 = vunpack.c.l.b16 %v195
      %v261 = vunpack.c.l.b16 %v196
      %v262 = vunpack.c.l.b16 %v197
      %v263 = vunpack.c.l.b16 %v198
      %v264 = vunpack.c.l.b16 %v199
      %v265 = vunpack.c.l.b16 %v200
      %v266 = vunpack.c.l.b16 %v201
      %v267 = vunpack.c.l.b16 %v202
      %v268 = vunpack.c.l.b16 %v203
      %v269 = vunpack.c.l.b16 %v204
      %v270 = vunpack.c.l.b16 %v205
      %v271 = vunpack.c.l.b16 %v206
      %v272 = vunpack.c.l.b16 %v207
      %v273 = vunpack.c.l.b16 %v208
      %v274 = vunpack.c.l.b16 %v209
      %v275 = vunpack.c.l.b16 %v210
      %v276 = vunpack.c.l.b16 %v211
      %v277 = vunpack.c.l.b16 %v212
      %v278 = vunpack.c.l.b16 %v213
      %v279 = vunpack.c.l.b16 %v214
      %v280 = vpack.c.b16 %v249, %v248
      %v281 = vpack.c.b16 %v251, %v250
      %v282 = vpack.c.b16 %v253, %v252
      %v283 = vpack.c.b16 %v255, %v254
      %v284 = vpack.c.b16 %v257, %v256
      %v285 = vpack.c.b16 %v259, %v258
      %v286 = vpack.c.b16 %v261, %v260
      %v287 = vpack.c.b16 %v263, %v262
      %v288 = vpack.c.b16 %v265, %v264
      %v289 = vpack.c.b16 %v267, %v266
      %v290 = vpack.c.b16 %v269, %v268
      %v291 = vpack.c.b16 %v271, %v270
      %v292 = vpack.c.b16 %v273, %v272
      %v293 = vpack.c.b16 %v275, %v274
      %v294 = vpack.c.b16 %v277, %v276
      %v295 = vpack.c.b16 %v279, %v278
      %vm296 = vcmask 31744
      %v298 = vsel %vm296, %v280, 0
      %v301 = vsel %vm296, %v281, 0
      %v304 = vsel %vm296, %v282, 0
      %v307 = vsel %vm296, %v283, 0
      %v310 = vsel %vm296, %v284, 0
      %v313 = vsel %vm296, %v285, 0
      %v316 = vsel %vm296, %v286, 0
      %v319 = vsel %vm296, %v287, 0
      %v322 = vsel %vm296, %v288, 0
      %v325 = vsel %vm296, %v289, 0
      %v328 = vsel %vm296, %v290, 0
      %v331 = vsel %vm296, %v291, 0
      %v334 = vsel %vm296, %v292, 0
      %v337 = vsel %vm296, %v293, 0
      %v340 = vsel %vm296, %v294, 0
      %v343 = vsel %vm296, %v295, 0
      %vm345 = vcmask 1041408
      %v347 = vsel %vm345, %v215, 0
      %349 = vmatprep.subr.bf16.mxu0 0
      %350 = vmatpush1.bf16.msra.mxu0 %v347
      %351 = vmatprep.subr.bf16.mxu0 0
      %352 = vmatpush1.bf16.msra.mxu0 0
      %353 = vmatprep.subr.bf16.mxu0 0
      %354 = vmatpush1.bf16.msra.mxu0 0
      %355 = vmatprep.subr.bf16.mxu0 0
      %356 = vmatpush1.bf16.msra.mxu0 0
      %357 = vmatprep.subr.bf16.mxu0 0
      %358 = vmatpush1.bf16.msra.mxu0 0
      %359 = vmatprep.subr.bf16.mxu0 0
      %360 = vmatpush1.bf16.msra.mxu0 0
      %361 = vmatprep.subr.bf16.mxu0 0
      %362 = vmatpush1.bf16.msra.mxu0 0
      %363 = vmatprep.subr.bf16.mxu0 0
      %364 = vmatpush1.bf16.msra.mxu0 0
      %365 = vmatprep.subr.bf16.mxu0 0
      %366 = vmatpush1.bf16.msra.mxu0 0
      %367 = vmatprep.subr.bf16.mxu0 0
      %368 = vmatpush1.bf16.msra.mxu0 0
      %369 = vmatprep.subr.bf16.mxu0 0
      %370 = vmatpush1.bf16.msra.mxu0 0
      %371 = vmatprep.subr.bf16.mxu0 0
      %372 = vmatpush1.bf16.msra.mxu0 0
      %373 = vmatprep.subr.bf16.mxu0 0
      %374 = vmatpush1.bf16.msra.mxu0 0
      %375 = vmatprep.subr.bf16.mxu0 0
      %376 = vmatpush1.bf16.msra.mxu0 0
      %377 = vmatprep.subr.bf16.mxu0 0
      %378 = vmatpush1.bf16.msra.mxu0 0
      %379 = vmatprep.subr.bf16.mxu0 0
      %380 = vmatpush1.bf16.msra.mxu0 0
      %381 = vmatprep.mubr.bf16.mxu0 0
      %382 = vmatmul.mubr.bf16.gmra.mrb[0].mxu0 %v298
      %v383 = vpop.f32.mrb[0].mxu0
      %v384 = vadd.f32 0.0, %v383
      %v385 = vpop.f32.mrb[0].mxu0
      %v386 = vpop.f32.mrb[0].mxu0
      %v387 = vadd.f32 0.0, %v386
      %v388 = vpop.f32.mrb[0].mxu0
      %389 = vmatprep.mubr.bf16.mxu0 0
      %390 = vmatmul.mubr.bf16.gmra.mrb[0].mxu0 %v301
      %v391 = vpop.f32.mrb[0].mxu0
      %v392 = vadd.f32 0.0, %v391
      %v393 = vpop.f32.mrb[0].mxu0
      %v394 = vpop.f32.mrb[0].mxu0
      %v395 = vadd.f32 0.0, %v394
      %v396 = vpop.f32.mrb[0].mxu0
      %397 = vmatprep.mubr.bf16.mxu0 0
      %398 = vmatmul.mubr.bf16.gmra.mrb[0].mxu0 %v304
      %v399 = vpop.f32.mrb[0].mxu0
      %v400 = vadd.f32 0.0, %v399
      %v401 = vpop.f32.mrb[0].mxu0
      %v402 = vpop.f32.mrb[0].mxu0
      %v403 = vadd.f32 0.0, %v402
      %v404 = vpop.f32.mrb[0].mxu0
      %405 = vmatprep.mubr.bf16.mxu0 0
      %406 = vmatmul.mubr.bf16.gmra.mrb[0].mxu0 %v307
      %v407 = vpop.f32.mrb[0].mxu0
      %v408 = vadd.f32 0.0, %v407
      %v409 = vpop.f32.mrb[0].mxu0
      %v410 = vpop.f32.mrb[0].mxu0
      %v411 = vadd.f32 0.0, %v410
      %v412 = vpop.f32.mrb[0].mxu0
      %413 = vmatprep.mubr.bf16.mxu0 0
      %414 = vmatmul.mubr.bf16.gmra.mrb[0].mxu0 %v310
      %v415 = vpop.f32.mrb[0].mxu0
      %v416 = vadd.f32 0.0, %v415
      %v417 = vpop.f32.mrb[0].mxu0
      %v418 = vpop.f32.mrb[0].mxu0
      %v419 = vadd.f32 0.0, %v418
      %v420 = vpop.f32.mrb[0].mxu0
      %421 = vmatprep.mubr.bf16.mxu0 0
      %422 = vmatmul.mubr.bf16.gmra.mrb[0].mxu0 %v313
      %v423 = vpop.f32.mrb[0].mxu0
      %v424 = vadd.f32 0.0, %v423
      %v425 = vpop.f32.mrb[0].mxu0
      %v426 = vpop.f32.mrb[0].mxu0
      %v427 = vadd.f32 0.0, %v426
      %v428 = vpop.f32.mrb[0].mxu0
      %429 = vmatprep.mubr.bf16.mxu0 0
      %430 = vmatmul.mubr.bf16.gmra.mrb[0].mxu0 %v316
      %v431 = vpop.f32.mrb[0].mxu0
      %v432 = vadd.f32 0.0, %v431
      %v433 = vpop.f32.mrb[0].mxu0
      %v434 = vpop.f32.mrb[0].mxu0
      %v435 = vadd.f32 0.0, %v434
      %v436 = vpop.f32.mrb[0].mxu0
      %437 = vmatprep.mubr.bf16.mxu0 0
      %438 = vmatmul.mubr.bf16.gmra.mrb[0].mxu0 %v319
      %v439 = vpop.f32.mrb[0].mxu0
      %v440 = vadd.f32 0.0, %v439
      %v441 = vpop.f32.mrb[0].mxu0
      %v442 = vpop.f32.mrb[0].mxu0
      %v443 = vadd.f32 0.0, %v442
      %v444 = vpop.f32.mrb[0].mxu0
      %445 = vmatprep.mubr.bf16.mxu0 0
      %446 = vmatmul.mubr.bf16.gmra.mrb[0].mxu0 %v322
      %v447 = vpop.f32.mrb[0].mxu0
      %v448 = vadd.f32 0.0, %v447
      %v449 = vpop.f32.mrb[0].mxu0
      %v450 = vpop.f32.mrb[0].mxu0
      %v451 = vadd.f32 0.0, %v450
      %v452 = vpop.f32.mrb[0].mxu0
      %453 = vmatprep.mubr.bf16.mxu0 0
      %454 = vmatmul.mubr.bf16.gmra.mrb[0].mxu0 %v325
      %v455 = vpop.f32.mrb[0].mxu0
      %v456 = vadd.f32 0.0, %v455
      %v457 = vpop.f32.mrb[0].mxu0
      %v458 = vpop.f32.mrb[0].mxu0
      %v459 = vadd.f32 0.0, %v458
      %v460 = vpop.f32.mrb[0].mxu0
      %461 = vmatprep.mubr.bf16.mxu0 0
      %462 = vmatmul.mubr.bf16.gmra.mrb[0].mxu0 %v328
      %v463 = vpop.f32.mrb[0].mxu0
      %v464 = vadd.f32 0.0, %v463
      %v465 = vpop.f32.mrb[0].mxu0
      %v466 = vpop.f32.mrb[0].mxu0
      %v467 = vadd.f32 0.0, %v466
      %v468 = vpop.f32.mrb[0].mxu0
      %469 = vmatprep.mubr.bf16.mxu0 0
      %470 = vmatmul.mubr.bf16.gmra.mrb[0].mxu0 %v331
      %v471 = vpop.f32.mrb[0].mxu0
      %v472 = vadd.f32 0.0, %v471
      %v473 = vpop.f32.mrb[0].mxu0
      %v474 = vpop.f32.mrb[0].mxu0
      %v475 = vadd.f32 0.0, %v474
      %v476 = vpop.f32.mrb[0].mxu0
      %477 = vmatprep.mubr.bf16.mxu0 0
      %478 = vmatmul.mubr.bf16.gmra.mrb[0].mxu0 %v334
      %v479 = vpop.f32.mrb[0].mxu0
      %v480 = vadd.f32 0.0, %v479
      %v481 = vpop.f32.mrb[0].mxu0
      %v482 = vpop.f32.mrb[0].mxu0
      %v483 = vadd.f32 0.0, %v482
      %v484 = vpop.f32.mrb[0].mxu0
      %485 = vmatprep.mubr.bf16.mxu0 0
      %486 = vmatmul.mubr.bf16.gmra.mrb[0].mxu0 %v337
      %v487 = vpop.f32.mrb[0].mxu0
      %v488 = vadd.f32 0.0, %v487
      %v489 = vpop.f32.mrb[0].mxu0
      %v490 = vpop.f32.mrb[0].mxu0
      %v491 = vadd.f32 0.0, %v490
      %v492 = vpop.f32.mrb[0].mxu0
      %493 = vmatprep.mubr.bf16.mxu0 0
      %494 = vmatmul.mubr.bf16.gmra.mrb[0].mxu0 %v340
      %v495 = vpop.f32.mrb[0].mxu0
      %v496 = vadd.f32 0.0, %v495
      %v497 = vpop.f32.mrb[0].mxu0
      %v498 = vpop.f32.mrb[0].mxu0
      %v499 = vadd.f32 0.0, %v498
      %v500 = vpop.f32.mrb[0].mxu0
      %501 = vmatprep.mubr.bf16.mxu0 0
      %502 = vmatmul.mubr.bf16.gmra.mrb[0].mxu0 %v343
      %v503 = vpop.f32.mrb[0].mxu0
      %v504 = vadd.f32 0.0, %v503
      %v505 = vpop.f32.mrb[0].mxu0
      %v506 = vpop.f32.mrb[0].mxu0
      %v507 = vadd.f32 0.0, %v506
      %v508 = vpop.f32.mrb[0].mxu0
      %509 = vdwg.mxu0
      %v510 = vpack.c.bf16 %v387, %v384
      %v511 = vpack.c.bf16 %v395, %v392
      %v512 = vpack.c.bf16 %v403, %v400
      %v513 = vpack.c.bf16 %v411, %v408
      %v514 = vpack.c.bf16 %v419, %v416
      %v515 = vpack.c.bf16 %v427, %v424
      %v516 = vpack.c.bf16 %v435, %v432
      %v517 = vpack.c.bf16 %v443, %v440
      %v518 = vpack.c.bf16 %v451, %v448
      %v519 = vpack.c.bf16 %v459, %v456
      %v520 = vpack.c.bf16 %v467, %v464
      %v521 = vpack.c.bf16 %v475, %v472
      %v522 = vpack.c.bf16 %v483, %v480
      %v523 = vpack.c.bf16 %v491, %v488
      %v524 = vpack.c.bf16 %v499, %v496
      %v525 = vpack.c.bf16 %v507, %v504
      %v542 = vunpack.c.l.b16 %v510
      %v543 = vunpack.c.h.b16 %v510
      %v544 = vunpack.c.l.b16 %v511
      %v545 = vunpack.c.h.b16 %v511
      %v546 = vunpack.c.l.b16 %v512
      %v547 = vunpack.c.h.b16 %v512
      %v548 = vunpack.c.l.b16 %v513
      %v549 = vunpack.c.h.b16 %v513
      %v550 = vunpack.c.l.b16 %v514
      %v551 = vunpack.c.h.b16 %v514
      %v552 = vunpack.c.l.b16 %v515
      %v553 = vunpack.c.h.b16 %v515
      %v554 = vunpack.c.l.b16 %v516
      %v555 = vunpack.c.h.b16 %v516
      %v556 = vunpack.c.l.b16 %v517
      %v557 = vunpack.c.h.b16 %v517
      %v558 = vunpack.c.l.b16 %v518
      %v559 = vunpack.c.h.b16 %v518
      %v560 = vunpack.c.l.b16 %v519
      %v561 = vunpack.c.h.b16 %v519
      %v562 = vunpack.c.l.b16 %v520
      %v563 = vunpack.c.h.b16 %v520
      %v564 = vunpack.c.l.b16 %v521
      %v565 = vunpack.c.h.b16 %v521
      %v566 = vunpack.c.l.b16 %v522
      %v567 = vunpack.c.h.b16 %v522
      %v568 = vunpack.c.l.b16 %v523
      %v569 = vunpack.c.h.b16 %v523
      %v570 = vunpack.c.l.b16 %v524
      %v571 = vunpack.c.h.b16 %v524
      %v572 = vunpack.c.l.b16 %v525
      %v573 = vunpack.c.h.b16 %v525
      %v574 = vpack.c.b16 %v542, %v542
      %v575 = vpack.c.b16 %v543, %v543
      %v576 = vpack.c.b16 %v544, %v544
      %v577 = vpack.c.b16 %v545, %v545
      %v578 = vpack.c.b16 %v546, %v546
      %v579 = vpack.c.b16 %v547, %v547
      %v580 = vpack.c.b16 %v548, %v548
      %v581 = vpack.c.b16 %v549, %v549
      %v582 = vpack.c.b16 %v550, %v550
      %v583 = vpack.c.b16 %v551, %v551
      %v584 = vpack.c.b16 %v552, %v552
      %v585 = vpack.c.b16 %v553, %v553
      %v586 = vpack.c.b16 %v554, %v554
      %v587 = vpack.c.b16 %v555, %v555
      %v588 = vpack.c.b16 %v556, %v556
      %v589 = vpack.c.b16 %v557, %v557
      %v590 = vpack.c.b16 %v558, %v558
      %v591 = vpack.c.b16 %v559, %v559
      %v592 = vpack.c.b16 %v560, %v560
      %v593 = vpack.c.b16 %v561, %v561
      %v594 = vpack.c.b16 %v562, %v562
      %v595 = vpack.c.b16 %v563, %v563
      %v596 = vpack.c.b16 %v564, %v564
      %v597 = vpack.c.b16 %v565, %v565
      %v598 = vpack.c.b16 %v566, %v566
      %v599 = vpack.c.b16 %v567, %v567
      %v600 = vpack.c.b16 %v568, %v568
      %v601 = vpack.c.b16 %v569, %v569
      %v602 = vpack.c.b16 %v570, %v570
      %v603 = vpack.c.b16 %v571, %v571
      %v604 = vpack.c.b16 %v572, %v572
      %v605 = vpack.c.b16 %v573, %v573
      %vm638 = vcmask 519168
      %639 = vst.msk [vmem:[%s177] sm:$0xf] %vm638, %v574
      %640 = vst.msk [vmem:[%s177 + $0x4] sm:$0xf] %vm638, %v575
      %641 = vst.msk [vmem:[%s177 + $0x8] sm:$0xf] %vm638, %v576
      %642 = vst.msk [vmem:[%s177 + $0xc] sm:$0xf] %vm638, %v577
      %643 = vst.msk [vmem:[%s177 + $0x10] sm:$0xf] %vm638, %v578
      %644 = vst.msk [vmem:[%s177 + $0x14] sm:$0xf] %vm638, %v579
      %645 = vst.msk [vmem:[%s177 + $0x18] sm:$0xf] %vm638, %v580
      %646 = vst.msk [vmem:[%s177 + $0x1c] sm:$0xf] %vm638, %v581
      %647 = vst.msk [vmem:[%s177 + $0x20] sm:$0xf] %vm638, %v582
      %648 = vst.msk [vmem:[%s177 + $0x24] sm:$0xf] %vm638, %v583
      %649 = vst.msk [vmem:[%s177 + $0x28] sm:$0xf] %vm638, %v584
      %650 = vst.msk [vmem:[%s177 + $0x2c] sm:$0xf] %vm638, %v585
      %651 = vst.msk [vmem:[%s177 + $0x30] sm:$0xf] %vm638, %v586
      %652 = vst.msk [vmem:[%s177 + $0x34] sm:$0xf] %vm638, %v587
      %653 = vst.msk [vmem:[%s177 + $0x38] sm:$0xf] %vm638, %v588
      %654 = vst.msk [vmem:[%s177 + $0x3c] sm:$0xf] %vm638, %v589
      %655 = vst.msk [vmem:[%s177 + $0x40] sm:$0xf] %vm638, %v590
      %656 = vst.msk [vmem:[%s177 + $0x44] sm:$0xf] %vm638, %v591
      %657 = vst.msk [vmem:[%s177 + $0x48] sm:$0xf] %vm638, %v592
      %658 = vst.msk [vmem:[%s177 + $0x4c] sm:$0xf] %vm638, %v593
      %659 = vst.msk [vmem:[%s177 + $0x50] sm:$0xf] %vm638, %v594
      %660 = vst.msk [vmem:[%s177 + $0x54] sm:$0xf] %vm638, %v595
      %661 = vst.msk [vmem:[%s177 + $0x58] sm:$0xf] %vm638, %v596
      %662 = vst.msk [vmem:[%s177 + $0x5c] sm:$0xf] %vm638, %v597
      %663 = vst.msk [vmem:[%s177 + $0x60] sm:$0xf] %vm638, %v598
      %664 = vst.msk [vmem:[%s177 + $0x64] sm:$0xf] %vm638, %v599
      %665 = vst.msk [vmem:[%s177 + $0x68] sm:$0xf] %vm638, %v600
      %666 = vst.msk [vmem:[%s177 + $0x6c] sm:$0xf] %vm638, %v601
      %667 = vst.msk [vmem:[%s177 + $0x70] sm:$0xf] %vm638, %v602
      %668 = vst.msk [vmem:[%s177 + $0x74] sm:$0xf] %vm638, %v603
      %669 = vst.msk [vmem:[%s177 + $0x78] sm:$0xf] %vm638, %v604
      %670 = vst.msk [vmem:[%s177 + $0x7c] sm:$0xf] %vm638, %v605
      %vm671 = vcmask 523264
      %v672 = vsel %vm671, %v384, 0.0
      %v673 = vsel %vm671, %v387, 0.0
      %v674 = vadd.f32 %v672, %v673
      %v675 = vsel %vm671, %v392, 0.0
      %v676 = vadd.f32 %v674, %v675
      %v677 = vsel %vm671, %v395, 0.0
      %v678 = vadd.f32 %v676, %v677
      %v679 = vsel %vm671, %v400, 0.0
      %v680 = vadd.f32 %v678, %v679
      %v681 = vsel %vm671, %v403, 0.0
      %v682 = vadd.f32 %v680, %v681
      %v683 = vsel %vm671, %v408, 0.0
      %v684 = vadd.f32 %v682, %v683
      %v685 = vsel %vm671, %v411, 0.0
      %v686 = vadd.f32 %v684, %v685
      %v687 = vsel %vm671, %v416, 0.0
      %v688 = vadd.f32 %v686, %v687
      %v689 = vsel %vm671, %v419, 0.0
      %v690 = vadd.f32 %v688, %v689
      %v691 = vsel %vm671, %v424, 0.0
      %v692 = vadd.f32 %v690, %v691
      %v693 = vsel %vm671, %v427, 0.0
      %v694 = vadd.f32 %v692, %v693
      %v695 = vsel %vm671, %v432, 0.0
      %v696 = vadd.f32 %v694, %v695
      %v697 = vsel %vm671, %v435, 0.0
      %v698 = vadd.f32 %v696, %v697
      %v699 = vsel %vm671, %v440, 0.0
      %v700 = vadd.f32 %v698, %v699
      %v701 = vsel %vm671, %v443, 0.0
      %v702 = vadd.f32 %v700, %v701
      %v703 = vsel %vm671, %v448, 0.0
      %v704 = vadd.f32 %v702, %v703
      %v705 = vsel %vm671, %v451, 0.0
      %v706 = vadd.f32 %v704, %v705
      %v707 = vsel %vm671, %v456, 0.0
      %v708 = vadd.f32 %v706, %v707
      %v709 = vsel %vm671, %v459, 0.0
      %v710 = vadd.f32 %v708, %v709
      %v711 = vsel %vm671, %v464, 0.0
      %v712 = vadd.f32 %v710, %v711
      %v713 = vsel %vm671, %v467, 0.0
      %v714 = vadd.f32 %v712, %v713
      %v715 = vsel %vm671, %v472, 0.0
      %v716 = vadd.f32 %v714, %v715
      %v717 = vsel %vm671, %v475, 0.0
      %v718 = vadd.f32 %v716, %v717
      %v719 = vsel %vm671, %v480, 0.0
      %v720 = vadd.f32 %v718, %v719
      %v721 = vsel %vm671, %v483, 0.0
      %v722 = vadd.f32 %v720, %v721
      %v723 = vsel %vm671, %v488, 0.0
      %v724 = vadd.f32 %v722, %v723
      %v725 = vsel %vm671, %v491, 0.0
      %v726 = vadd.f32 %v724, %v725
      %v727 = vsel %vm671, %v496, 0.0
      %v728 = vadd.f32 %v726, %v727
      %v729 = vsel %vm671, %v499, 0.0
      %v730 = vadd.f32 %v728, %v729
      %v731 = vsel %vm671, %v504, 0.0
      %v732 = vadd.f32 %v730, %v731
      %v733 = vsel %vm671, %v507, 0.0
      %v734 = vadd.f32 %v732, %v733
      %v735 = vrot.slane %v734, 4
      %v736 = vadd.f32 %v734, %v735
      %v737 = vrot.slane %v736, 2
      %v738 = vadd.f32 %v736, %v737
      %v739 = vrot.slane %v738, 1
      %v740 = vadd.f32 %v738, %v739
      %vm741 = vcmask 516096
      %742 = vst.msk [vmem:[%s181] sm:$0x1] %vm741, %v740
      %v743 = vmul.f32 %v384, %v384
      %v744 = vmul.f32 %v387, %v387
      %v745 = vmul.f32 %v392, %v392
      %v746 = vmul.f32 %v395, %v395
      %v747 = vmul.f32 %v400, %v400
      %v748 = vmul.f32 %v403, %v403
      %v749 = vmul.f32 %v408, %v408
      %v750 = vmul.f32 %v411, %v411
      %v751 = vmul.f32 %v416, %v416
      %v752 = vmul.f32 %v419, %v419
      %v753 = vmul.f32 %v424, %v424
      %v754 = vmul.f32 %v427, %v427
      %v755 = vmul.f32 %v432, %v432
      %v756 = vmul.f32 %v435, %v435
      %v757 = vmul.f32 %v440, %v440
      %v758 = vmul.f32 %v443, %v443
      %v759 = vmul.f32 %v448, %v448
      %v760 = vmul.f32 %v451, %v451
      %v761 = vmul.f32 %v456, %v456
      %v762 = vmul.f32 %v459, %v459
      %v763 = vmul.f32 %v464, %v464
      %v764 = vmul.f32 %v467, %v467
      %v765 = vmul.f32 %v472, %v472
      %v766 = vmul.f32 %v475, %v475
      %v767 = vmul.f32 %v480, %v480
      %v768 = vmul.f32 %v483, %v483
      %v769 = vmul.f32 %v488, %v488
      %v770 = vmul.f32 %v491, %v491
      %v771 = vmul.f32 %v496, %v496
      %v772 = vmul.f32 %v499, %v499
      %v773 = vmul.f32 %v504, %v504
      %v774 = vmul.f32 %v507, %v507
      %v775 = vsel %vm671, %v743, 0.0
      %v776 = vsel %vm671, %v744, 0.0
      %v777 = vadd.f32 %v775, %v776
      %v778 = vsel %vm671, %v745, 0.0
      %v779 = vadd.f32 %v777, %v778
      %v780 = vsel %vm671, %v746, 0.0
      %v781 = vadd.f32 %v779, %v780
      %v782 = vsel %vm671, %v747, 0.0
      %v783 = vadd.f32 %v781, %v782
      %v784 = vsel %vm671, %v748, 0.0
      %v785 = vadd.f32 %v783, %v784
      %v786 = vsel %vm671, %v749, 0.0
      %v787 = vadd.f32 %v785, %v786
      %v788 = vsel %vm671, %v750, 0.0
      %v789 = vadd.f32 %v787, %v788
      %v790 = vsel %vm671, %v751, 0.0
      %v791 = vadd.f32 %v789, %v790
      %v792 = vsel %vm671, %v752, 0.0
      %v793 = vadd.f32 %v791, %v792
      %v794 = vsel %vm671, %v753, 0.0
      %v795 = vadd.f32 %v793, %v794
      %v796 = vsel %vm671, %v754, 0.0
      %v797 = vadd.f32 %v795, %v796
      %v798 = vsel %vm671, %v755, 0.0
      %v799 = vadd.f32 %v797, %v798
      %v800 = vsel %vm671, %v756, 0.0
      %v801 = vadd.f32 %v799, %v800
      %v802 = vsel %vm671, %v757, 0.0
      %v803 = vadd.f32 %v801, %v802
      %v804 = vsel %vm671, %v758, 0.0
      %v805 = vadd.f32 %v803, %v804
      %v806 = vsel %vm671, %v759, 0.0
      %v807 = vadd.f32 %v805, %v806
      %v808 = vsel %vm671, %v760, 0.0
      %v809 = vadd.f32 %v807, %v808
      %v810 = vsel %vm671, %v761, 0.0
      %v811 = vadd.f32 %v809, %v810
      %v812 = vsel %vm671, %v762, 0.0
      %v813 = vadd.f32 %v811, %v812
      %v814 = vsel %vm671, %v763, 0.0
      %v815 = vadd.f32 %v813, %v814
      %v816 = vsel %vm671, %v764, 0.0
      %v817 = vadd.f32 %v815, %v816
      %v818 = vsel %vm671, %v765, 0.0
      %v819 = vadd.f32 %v817, %v818
      %v820 = vsel %vm671, %v766, 0.0
      %v821 = vadd.f32 %v819, %v820
      %v822 = vsel %vm671, %v767, 0.0
      %v823 = vadd.f32 %v821, %v822
      %v824 = vsel %vm671, %v768, 0.0
      %v825 = vadd.f32 %v823, %v824
      %v826 = vsel %vm671, %v769, 0.0
      %v827 = vadd.f32 %v825, %v826
      %v828 = vsel %vm671, %v770, 0.0
      %v829 = vadd.f32 %v827, %v828
      %v830 = vsel %vm671, %v771, 0.0
      %v831 = vadd.f32 %v829, %v830
      %v832 = vsel %vm671, %v772, 0.0
      %v833 = vadd.f32 %v831, %v832
      %v834 = vsel %vm671, %v773, 0.0
      %v835 = vadd.f32 %v833, %v834
      %v836 = vsel %vm671, %v774, 0.0
      %v837 = vadd.f32 %v835, %v836
      %v838 = vrot.slane %v837, 4
      %v839 = vadd.f32 %v837, %v838
      %v840 = vrot.slane %v839, 2
      %v841 = vadd.f32 %v839, %v840
      %v842 = vrot.slane %v841, 1
      %v843 = vadd.f32 %v841, %v842
      %844 = vst.msk [vmem:[%s181 + $0x1] sm:$0x1] %vm741, %v843
      %p845 = scmp.lt.s32.totalorder %s15, 1
      %s846 = scalar_select %p845, %s15, 1
      %s847 = smul.addr %s846, 32
      %s848 = smul.addr %s847, 4
      %s849 = scalar_lea.vmem %s2, %s848
      %p850 = scmp.lt.s32.totalorder %s15, 1
      %s851 = scalar_select %p850, %s15, 1
      %s852 = smul.addr %s851, 2
      %s853 = scalar_lea.vmem %s3, %s852
      // Predicated region
      $region29: #{inception_b_forward.5} parent=27 // pred_check
        %p854 = pneg %p80
      $region30: #{inception_b_forward.5} parent=27 // pred_check_branch
        %856 = sbr.rel (%p854) target = $region32
      $region31: #{inception_b_forward.5} parent=27 // pred_region
        _
      $region32: #{inception_b_forward.5} parent=27 // pred_fallthru
        _
      // Predicated region
      $region33: #{inception_b_forward.5} parent=27 // pred_check
        %p857 = pneg %p106
      $region34: #{inception_b_forward.5} parent=27 // pred_check_branch
        %859 = sbr.rel (%p857) target = $region36
      $region35: #{inception_b_forward.5} parent=27 // pred_region
        _
      $region36: #{inception_b_forward.5} parent=27 // pred_fallthru
        _
    $region28: #{inception_b_forward.5} parent=5 // pred_fallthru
      _
    %p860 = scmp.le.s32.totalorder 2, %s10
    // Predicated region
    $region37: #{inception_b_forward.5} parent=5 // pred_check
      %p861 = pneg %p860
    $region38: #{inception_b_forward.5} parent=5 // pred_check_branch
      %863 = sbr.rel (%p861) target = $region40
    $region39: #{inception_b_forward.5} parent=5 // pred_region
      %s864 = ssub.s32 %s10, 2
      // Predicated region
      $region41: #{inception_b_forward.5} parent=39 // pred_check
        %p865 = pneg %p86
      $region42: #{inception_b_forward.5} parent=39 // pred_check_branch
        %867 = sbr.rel (%p865) target = $region44
      $region43: #{inception_b_forward.5} parent=39 // pred_region
        %p868 = scmp.lt.s32.totalorder %s16, 1
        %s869 = scalar_select %p868, %s16, 1
        %s870 = smul.addr %s869, 32
        %s871 = smul.addr %s870, 4
        %s872 = scalar_lea.vmem %s2, %s871
      $region44: #{inception_b_forward.5} parent=39 // pred_fallthru
        _
      // Predicated region
      $region45: #{inception_b_forward.5} parent=39 // pred_check
        %p873 = pneg %p112
      $region46: #{inception_b_forward.5} parent=39 // pred_check_branch
        %875 = sbr.rel (%p873) target = $region48
      $region47: #{inception_b_forward.5} parent=39 // pred_region
        %p876 = scmp.lt.s32.totalorder %s16, 1
        %s877 = scalar_select %p876, %s16, 1
        %s878 = smul.addr %s877, 2
        %s879 = scalar_lea.vmem %s3, %s878
      $region48: #{inception_b_forward.5} parent=39 // pred_fallthru
        _
    $region40: #{inception_b_forward.5} parent=5 // pred_fallthru
      _
  $region6: #{inception_b_forward.5} parent=0 // loop_footer
    %s14 = sadd.s32 1, %s10
  $region7: #{inception_b_forward.5} parent=0 // loop_footer_branch
    %9 = sbr.rel target = $region3
  $region8: #{inception_b_forward.5} parent=0 // loop_exit
    _

// kernel: inception_b_forward.9
$region0: #{inception_b_forward.9}
  #allocation0 [shape = 'u32[]', space=smem, size = 0x4, offset = 0x4, fixed_abs, tag = 'smem constant byte address 0x4 - core index']
  #allocation1 [shape = 'u32[144,128]{1,0:T(1,128)}', space=vmem, size = 0x12000, scoped, tag = 'internal scratch']
  %s0 = inlined_call_operand.vmem [shape: bf16[2,7,8,384], index: 0, kind: input, shape index: {}]
  %s1 = inlined_call_operand.vmem [shape: bf16[2,7,8,128], index: 1, kind: input, shape index: {}]
  %s2 = inlined_call_operand.vmem [shape: bf16[2,7,7,4], index: 2, kind: input, shape index: {}]
  %s3 = inlined_call_operand.vmem [shape: f32[1,384], index: 3, kind: input, shape index: {}]
  %s4 = inlined_call_operand.vmem [shape: f32[1,384], index: 4, kind: input, shape index: {}]
  %s5 = inlined_call_operand.vmem [shape: f32[1,96], index: 5, kind: input, shape index: {}]
  %s6 = inlined_call_operand.vmem [shape: f32[1,96], index: 6, kind: input, shape index: {}]
  %s7 = inlined_call_operand.vmem [shape: f32[2,7,7,484], index: 7, kind: output, shape index: {}]
  %s8 = sld [smem:[#allocation0]]
  $region61: #{inception_b_forward.9} parent=0
    _
  %s10 = ssub.s32 1, %s8
  %s11 = scalar_select 0, %s10, %s8
  loop: start=0, step=1, limit=4
  $region2: #{inception_b_forward.9} parent=0 // loop_pre_header
    _
  $region3: #{inception_b_forward.9} parent=0 // loop_header
    %s13 = sphi 0, %s17
    %p14 = scmp.ge.s32.totalorder %s13, 4
    %s23 = sphi 0, %s25
    %s26 = sphi 0, %s23
    %s27 = sphi 0, %s26
    %s43 = sphi 0, %s27
    %s49 = sphi 0, %s51
    %s52 = sphi 0, %s49
    %s53 = sphi 0, %s52
    %s69 = sphi 0, %s53
    %s75 = sphi 0, %s77
    %s78 = sphi 0, %s75
    %s79 = sphi 0, %s78
    %s95 = sphi 0, %s79
    %s99 = sphi 0, %s99
    %s101 = sphi 0, %s99
    %s102 = sphi 0, %s101
    %s116 = sphi 0, %s102
    %s120 = sphi 0, %s120
    %s122 = sphi 0, %s120
    %s123 = sphi 0, %s122
    %s137 = sphi 0, %s123
    %s141 = sphi 0, %s141
    %s143 = sphi 0, %s141
    %s144 = sphi 0, %s143
    %s158 = sphi 0, %s144
    %s162 = sphi 0, %s162
    %s164 = sphi 0, %s162
    %s165 = sphi 0, %s164
    %s179 = sphi 0, %s165
    %s185 = sphi 0, %s187
    %s188 = sphi 0, %s185
    %s189 = sphi 0, %s188
    %s205 = sphi 0, %s189
  $region4: #{inception_b_forward.9} parent=0 // loop_header_branch
    %16 = sbr.rel (%p14) target = $region8
  $region5: #{inception_b_forward.9} parent=0 // loop_body
    %s18 = ssub.s32 %s13, 1
    %s19 = ssub.s32 %s13, 2
    %s20 = sadd.s32 %s13, 1
    %s21 = ssub.s32 %s13, %s20
    %p22 = scmp.eq.s32.totalorder %s21, 0
    %s24 = sadd.s32 %s23, 1
    %s25 = scalar_select %p22, %s23, %s24
    %p28 = pneg %p22
    %p29 = scmp.eq.s32.totalorder %s13, 1
    %p30 = por %p28, %p29
    %p31 = scmp.ne.s32.totalorder %s23, %s26
    %p32 = scmp.eq.s32.totalorder %s13, 0
    %p33 = por %p31, %p32
    %p34 = scmp.ne.s32.totalorder %s23, %s26
    %p35 = scmp.eq.s32.totalorder %s18, 1
    %p36 = por %p34, %p35
    %p37 = scmp.ne.s32.totalorder %s26, %s27
    %p38 = scmp.eq.s32.totalorder %s18, 0
    %p39 = por %p37, %p38
    %p40 = scmp.ne.s32.totalorder %s26, %s27
    %p41 = scmp.eq.s32.totalorder %s19, 1
    %p42 = por %p40, %p41
    %p44 = scmp.ne.s32.totalorder %s27, %s43
    %p45 = scmp.eq.s32.totalorder %s19, 0
    %p46 = por %p44, %p45
    %s47 = ssub.s32 %s13, %s20
    %p48 = scmp.eq.s32.totalorder %s47, 0
    %s50 = sadd.s32 %s49, 1
    %s51 = scalar_select %p48, %s49, %s50
    %p54 = pneg %p48
    %p55 = scmp.eq.s32.totalorder %s13, 1
    %p56 = por %p54, %p55
    %p57 = scmp.ne.s32.totalorder %s49, %s52
    %p58 = scmp.eq.s32.totalorder %s13, 0
    %p59 = por %p57, %p58
    %p60 = scmp.ne.s32.totalorder %s49, %s52
    %p61 = scmp.eq.s32.totalorder %s18, 1
    %p62 = por %p60, %p61
    %p63 = scmp.ne.s32.totalorder %s52, %s53
    %p64 = scmp.eq.s32.totalorder %s18, 0
    %p65 = por %p63, %p64
    %p66 = scmp.ne.s32.totalorder %s52, %s53
    %p67 = scmp.eq.s32.totalorder %s19, 1
    %p68 = por %p66, %p67
    %p70 = scmp.ne.s32.totalorder %s53, %s69
    %p71 = scmp.eq.s32.totalorder %s19, 0
    %p72 = por %p70, %p71
    %s73 = ssub.s32 %s13, %s20
    %p74 = scmp.eq.s32.totalorder %s73, 0
    %s76 = sadd.s32 %s75, 1
    %s77 = scalar_select %p74, %s75, %s76
    %p80 = pneg %p74
    %p81 = scmp.eq.s32.totalorder %s13, 1
    %p82 = por %p80, %p81
    %p83 = scmp.ne.s32.totalorder %s75, %s78
    %p84 = scmp.eq.s32.totalorder %s13, 0
    %p85 = por %p83, %p84
    %p86 = scmp.ne.s32.totalorder %s75, %s78
    %p87 = scmp.eq.s32.totalorder %s18, 1
    %p88 = por %p86, %p87
    %p89 = scmp.ne.s32.totalorder %s78, %s79
    %p90 = scmp.eq.s32.totalorder %s18, 0
    %p91 = por %p89, %p90
    %p92 = scmp.ne.s32.totalorder %s78, %s79
    %p93 = scmp.eq.s32.totalorder %s19, 1
    %p94 = por %p92, %p93
    %p96 = scmp.ne.s32.totalorder %s79, %s95
    %p97 = scmp.eq.s32.totalorder %s19, 0
    %p98 = por %p96, %p97
    %s100 = sadd.s32 %s99, 1
    %p103 = scmp.eq.s32.totalorder %s13, 1
    %p104 = scmp.ne.s32.totalorder %s99, %s101
    %p105 = scmp.eq.s32.totalorder %s13, 0
    %p106 = por %p104, %p105
    %p107 = scmp.ne.s32.totalorder %s99, %s101
    %p108 = scmp.eq.s32.totalorder %s18, 1
    %p109 = por %p107, %p108
    %p110 = scmp.ne.s32.totalorder %s101, %s102
    %p111 = scmp.eq.s32.totalorder %s18, 0
    %p112 = por %p110, %p111
    %p113 = scmp.ne.s32.totalorder %s101, %s102
    %p114 = scmp.eq.s32.totalorder %s19, 1
    %p115 = por %p113, %p114
    %p117 = scmp.ne.s32.totalorder %s102, %s116
    %p118 = scmp.eq.s32.totalorder %s19, 0
    %p119 = por %p117, %p118
    %s121 = sadd.s32 %s120, 1
    %p124 = scmp.eq.s32.totalorder %s13, 1
    %p125 = scmp.ne.s32.totalorder %s120, %s122
    %p126 = scmp.eq.s32.totalorder %s13, 0
    %p127 = por %p125, %p126
    %p128 = scmp.ne.s32.totalorder %s120, %s122
    %p129 = scmp.eq.s32.totalorder %s18, 1
    %p130 = por %p128, %p129
    %p131 = scmp.ne.s32.totalorder %s122, %s123
    %p132 = scmp.eq.s32.totalorder %s18, 0
    %p133 = por %p131, %p132
    %p134 = scmp.ne.s32.totalorder %s122, %s123
    %p135 = scmp.eq.s32.totalorder %s19, 1
    %p136 = por %p134, %p135
    %p138 = scmp.ne.s32.totalorder %s123, %s137
    %p139 = scmp.eq.s32.totalorder %s19, 0
    %p140 = por %p138, %p139
    %s142 = sadd.s32 %s141, 1
    %p145 = scmp.eq.s32.totalorder %s13, 1
    %p146 = scmp.ne.s32.totalorder %s141, %s143
    %p147 = scmp.eq.s32.totalorder %s13, 0
    %p148 = por %p146, %p147
    %p149 = scmp.ne.s32.totalorder %s141, %s143
    %p150 = scmp.eq.s32.totalorder %s18, 1
    %p151 = por %p149, %p150
    %p152 = scmp.ne.s32.totalorder %s143, %s144
    %p153 = scmp.eq.s32.totalorder %s18, 0
    %p154 = por %p152, %p153
    %p155 = scmp.ne.s32.totalorder %s143, %s144
    %p156 = scmp.eq.s32.totalorder %s19, 1
    %p157 = por %p155, %p156
    %p159 = scmp.ne.s32.totalorder %s144, %s158
    %p160 = scmp.eq.s32.totalorder %s19, 0
    %p161 = por %p159, %p160
    %s163 = sadd.s32 %s162, 1
    %p166 = scmp.eq.s32.totalorder %s13, 1
    %p167 = scmp.ne.s32.totalorder %s162, %s164
    %p168 = scmp.eq.s32.totalorder %s13, 0
    %p169 = por %p167, %p168
    %p170 = scmp.ne.s32.totalorder %s162, %s164
    %p171 = scmp.eq.s32.totalorder %s18, 1
    %p172 = por %p170, %p171
    %p173 = scmp.ne.s32.totalorder %s164, %s165
    %p174 = scmp.eq.s32.totalorder %s18, 0
    %p175 = por %p173, %p174
    %p176 = scmp.ne.s32.totalorder %s164, %s165
    %p177 = scmp.eq.s32.totalorder %s19, 1
    %p178 = por %p176, %p177
    %p180 = scmp.ne.s32.totalorder %s165, %s179
    %p181 = scmp.eq.s32.totalorder %s19, 0
    %p182 = por %p180, %p181
    %s183 = ssub.s32 %s13, %s20
    %p184 = scmp.eq.s32.totalorder %s183, 0
    %s186 = sadd.s32 %s185, 1
    %s187 = scalar_select %p184, %s185, %s186
    %p190 = pneg %p184
    %p191 = scmp.eq.s32.totalorder %s13, 1
    %p192 = por %p190, %p191
    %p193 = scmp.ne.s32.totalorder %s185, %s188
    %p194 = scmp.eq.s32.totalorder %s13, 0
    %p195 = por %p193, %p194
    %p196 = scmp.ne.s32.totalorder %s185, %s188
    %p197 = scmp.eq.s32.totalorder %s18, 1
    %p198 = por %p196, %p197
    %p199 = scmp.ne.s32.totalorder %s188, %s189
    %p200 = scmp.eq.s32.totalorder %s18, 0
    %p201 = por %p199, %p200
    %p202 = scmp.ne.s32.totalorder %s188, %s189
    %p203 = scmp.eq.s32.totalorder %s19, 1
    %p204 = por %p202, %p203
    %p206 = scmp.ne.s32.totalorder %s189, %s205
    %p207 = scmp.eq.s32.totalorder %s19, 0
    %p208 = por %p206, %p207
    %p209 = scmp.le.s32.totalorder 1, %s13
    %p210 = scmp.lt.s32.totalorder %s13, 3
    %p211 = pnand %p209, %p210
    %p212 = pneg %p211
    // Predicated region
    $region9: #{inception_b_forward.9} parent=5 // pred_check
      _
    $region10: #{inception_b_forward.9} parent=5 // pred_check_branch
      %214 = sbr.rel (%p211) target = $region12
    $region11: #{inception_b_forward.9} parent=5 // pred_region
      %s215 = ssub.s32 %s13, 1
      // Predicated region
      $region13: #{inception_b_forward.9} parent=11 // pred_check
        %p216 = pneg %p112
      $region14: #{inception_b_forward.9} parent=11 // pred_check_branch
        %218 = sbr.rel (%p216) target = $region16
      $region15: #{inception_b_forward.9} parent=11 // pred_region
        _
      $region16: #{inception_b_forward.9} parent=11 // pred_fallthru
        _
      // Predicated region
      $region17: #{inception_b_forward.9} parent=11 // pred_check
        %p219 = pneg %p133
      $region18: #{inception_b_forward.9} parent=11 // pred_check_branch
        %221 = sbr.rel (%p219) target = $region20
      $region19: #{inception_b_forward.9} parent=11 // pred_region
        _
      $region20: #{inception_b_forward.9} parent=11 // pred_fallthru
        _
      // Predicated region
      $region21: #{inception_b_forward.9} parent=11 // pred_check
        %p222 = pneg %p154
      $region22: #{inception_b_forward.9} parent=11 // pred_check_branch
        %224 = sbr.rel (%p222) target = $region24
      $region23: #{inception_b_forward.9} parent=11 // pred_region
        _
      $region24: #{inception_b_forward.9} parent=11 // pred_fallthru
        _
      // Predicated region
      $region25: #{inception_b_forward.9} parent=11 // pred_check
        %p225 = pneg %p175
      $region26: #{inception_b_forward.9} parent=11 // pred_check_branch
        %227 = sbr.rel (%p225) target = $region28
      $region27: #{inception_b_forward.9} parent=11 // pred_region
        _
      $region28: #{inception_b_forward.9} parent=11 // pred_fallthru
        _
    $region12: #{inception_b_forward.9} parent=5 // pred_fallthru
      _
    %p228 = scmp.lt.s32.totalorder %s13, 2
    // Predicated region
    $region29: #{inception_b_forward.9} parent=5 // pred_check
      %p229 = pneg %p228
    $region30: #{inception_b_forward.9} parent=5 // pred_check_branch
      %231 = sbr.rel (%p229) target = $region32
    $region31: #{inception_b_forward.9} parent=5 // pred_region
      // Predicated region
      $region33: #{inception_b_forward.9} parent=31 // pred_check
        %p232 = pneg %p33
      $region34: #{inception_b_forward.9} parent=31 // pred_check_branch
        %234 = sbr.rel (%p232) target = $region36
      $region35: #{inception_b_forward.9} parent=31 // pred_region
        %p235 = scmp.lt.s32.totalorder %s13, 1
        %s236 = scalar_select %p235, %s13, 1
        %s237 = smul.addr %s236, 21
        %s238 = smul.addr %s237, 4
        %s239 = scalar_lea.vmem %s0, %s238
      $region36: #{inception_b_forward.9} parent=31 // pred_fallthru
        _
      // Predicated region
      $region37: #{inception_b_forward.9} parent=31 // pred_check
        %p240 = pneg %p59
      $region38: #{inception_b_forward.9} parent=31 // pred_check_branch
        %242 = sbr.rel (%p240) target = $region40
      $region39: #{inception_b_forward.9} parent=31 // pred_region
        %p243 = scmp.lt.s32.totalorder %s13, 1
        %s244 = scalar_select %p243, %s13, 1
        %s245 = smul.addr %s244, 7
        %s246 = smul.addr %s245, 4
        %s247 = scalar_lea.vmem %s1, %s246
      $region40: #{inception_b_forward.9} parent=31 // pred_fallthru
        _
      // Predicated region
      $region41: #{inception_b_forward.9} parent=31 // pred_check
        %p248 = pneg %p85
      $region42: #{inception_b_forward.9} parent=31 // pred_check_branch
        %250 = sbr.rel (%p248) target = $region44
      $region43: #{inception_b_forward.9} parent=31 // pred_region
        %p251 = scmp.lt.s32.totalorder %s13, 1
        %s252 = scalar_select %p251, %s13, 1
        %s253 = smul.addr %s252, 7
        %s254 = smul.addr %s253, 4
        %s255 = scalar_lea.vmem %s2, %s254
      $region44: #{inception_b_forward.9} parent=31 // pred_fallthru
        _
    $region32: #{inception_b_forward.9} parent=5 // pred_fallthru
      _
    %p256 = scmp.le.s32.totalorder 1, %s13
    %p257 = scmp.lt.s32.totalorder %s13, 3
    %p258 = pnand %p256, %p257
    %p259 = pneg %p258
    // Predicated region
    $region45: #{inception_b_forward.9} parent=5 // pred_check
      _
    $region46: #{inception_b_forward.9} parent=5 // pred_check_branch
      %261 = sbr.rel (%p258) target = $region48
    $region47: #{inception_b_forward.9} parent=5 // pred_region
      %s262 = ssub.s32 %s13, 1
      %p263 = scmp.lt.s32.totalorder %s18, 1
      %s264 = scalar_select %p263, %s18, 1
      %s265 = smul.addr %s264, 21
      %s266 = smul.addr %s265, 4
      %s267 = scalar_lea.vmem %s0, %s266
      %p268 = pneg %p39
      %p269 = pneg %p36
      %p270 = scmp.lt.s32.totalorder %s18, 1
      %s271 = scalar_select %p270, %s18, 1
      %s272 = smul.addr %s271, 7
      %s273 = smul.addr %s272, 4
      %s274 = scalar_lea.vmem %s1, %s273
      %p275 = pneg %p65
      %p276 = pneg %p62
      %p277 = scmp.lt.s32.totalorder %s18, 1
      %s278 = scalar_select %p277, %s18, 1
      %s279 = smul.addr %s278, 7
      %s280 = smul.addr %s279, 4
      %s281 = scalar_lea.vmem %s2, %s280
      %p282 = pneg %p91
      %p283 = pneg %p88
      %p284 = pneg %p112
      %p285 = pneg %p109
      %p286 = pneg %p133
      %p287 = pneg %p130
      %p288 = pneg %p154
      %p289 = pneg %p151
      %p290 = pneg %p175
      %p291 = pneg %p172
      %p292 = pneg %p201
      %p293 = pneg %p198
      %p294 = scmp.lt.s32.totalorder %s18, 1
      %s295 = scalar_select %p294, %s18, 1
      %s296 = smul.addr %s295, 28
      %s297 = smul.addr %s296, 8
      %s298 = scalar_lea.vmem %s7, %s297
      %p299 = scmp.lt.s32.totalorder %s18, 1
      %s300 = scalar_select %p299, %s18, 1
      %s301 = smul.addr %s300, 21
      %s302 = smul.addr %s301, 4
      %s303 = scalar_lea.vmem %s0, %s302
      %p304 = scmp.lt.s32.totalorder %s18, 1
      %s305 = scalar_select %p304, %s18, 1
      %s306 = smul.addr %s305, 7
      %s307 = smul.addr %s306, 4
      %s308 = scalar_lea.vmem %s1, %s307
      %p309 = scmp.lt.s32.totalorder %s18, 1
      %s310 = scalar_select %p309, %s18, 1
      %s311 = smul.addr %s310, 7
      %s312 = smul.addr %s311, 4
      %s313 = scalar_lea.vmem %s2, %s312
      %p314 = scmp.lt.s32.totalorder %s18, 1
      %s315 = scalar_select %p314, %s18, 1
      %s316 = smul.addr %s315, 28
      %s317 = smul.addr %s316, 8
      %s318 = scalar_lea.vmem %s7, %s317
      %v319 = vld [vmem:[%s3] sm:$0x7]
      %v320 = vld [vmem:[%s4] sm:$0x7]
      %v321 = vld [vmem:[%s5] sm:$0x1]
      %v322 = vld [vmem:[%s6] sm:$0x1]
      %v323 = vld [vmem:[%s303] sm:$0xff]
      %v324 = vld [vmem:[%s303 + $0x8] sm:$0xf]
      %v325 = vld [vmem:[%s303 + $0xc] sm:$0xff]
      %v326 = vld [vmem:[%s303 + $0x14] sm:$0xf]
      %v327 = vld [vmem:[%s303 + $0x18] sm:$0xff]
      %v328 = vld [vmem:[%s303 + $0x20] sm:$0xf]
      %v329 = vld [vmem:[%s303 + $0x24] sm:$0xff]
      %v330 = vld [vmem:[%s303 + $0x2c] sm:$0xf]
      %v331 = vld [vmem:[%s303 + $0x30] sm:$0xff]
      %v332 = vld [vmem:[%s303 + $0x38] sm:$0xf]
      %v333 = vld [vmem:[%s303 + $0x3c] sm:$0xff]
      %v334 = vld [vmem:[%s303 + $0x44] sm:$0xf]
      %v335 = vld [vmem:[%s303 + $0x48] sm:$0xff]
      %v336 = vld [vmem:[%s303 + $0x50] sm:$0xf]
      %v337 = vunpack.c.l.bf16 %v323
      %v338 = vunpack.c.h.bf16 %v323
      %v339 = vunpack.c.l.bf16 %v324
      %v340 = vunpack.c.l.bf16 %v325
      %v341 = vunpack.c.h.bf16 %v325
      %v342 = vunpack.c.l.bf16 %v326
      %v343 = vunpack.c.l.bf16 %v327
      %v344 = vunpack.c.h.bf16 %v327
      %v345 = vunpack.c.l.bf16 %v328
      %v346 = vunpack.c.l.bf16 %v329
      %v347 = vunpack.c.h.bf16 %v329
      %v348 = vunpack.c.l.bf16 %v330
      %v349 = vunpack.c.l.bf16 %v331
      %v350 = vunpack.c.h.bf16 %v331
      %v351 = vunpack.c.l.bf16 %v332
      %v352 = vunpack.c.l.bf16 %v333
      %v353 = vunpack.c.h.bf16 %v333
      %v354 = vunpack.c.l.bf16 %v334
      %v355 = vunpack.c.l.bf16 %v335
      %v356 = vunpack.c.h.bf16 %v335
      %v357 = vunpack.c.l.bf16 %v336
      %v358 = vld [vmem:[%s308] sm:$0xf]
      %v359 = vld [vmem:[%s308 + $0x4] sm:$0xf]
      %v360 = vld [vmem:[%s308 + $0x8] sm:$0xf]
      %v361 = vld [vmem:[%s308 + $0xc] sm:$0xf]
      %v362 = vld [vmem:[%s308 + $0x10] sm:$0xf]
      %v363 = vld [vmem:[%s308 + $0x14] sm:$0xf]
      %v364 = vld [vmem:[%s308 + $0x18] sm:$0xf]
      %v365 = vunpack.c.l.bf16 %v358
      %v366 = vunpack.c.l.bf16 %v359
      %v367 = vunpack.c.l.bf16 %v360
      %v368 = vunpack.c.l.bf16 %v361
      %v369 = vunpack.c.l.bf16 %v362
      %v370 = vunpack.c.l.bf16 %v363
      %v371 = vunpack.c.l.bf16 %v364
      %v373 = vlaneseq
      %v374 = vshrl.u32 %v373, 7
      %v375 = vsub.s32 0, %v374
      %v376 = vrot.slane %v319, %v375
      %v377 = vlaneseq
      %v378 = vshrl.u32 %v377, 7
      %v379 = vsub.s32 1, %v378
      %v380 = vrot.slane %v319, %v379
      %v381 = vlaneseq
      %v382 = vshrl.u32 %v381, 7
      %v383 = vsub.s32 2, %v382
      %v384 = vrot.slane %v319, %v383
      %v388 = vmul.f32 %v337, %v376
      %v389 = vmul.f32 %v338, %v380
      %v390 = vmul.f32 %v339, %v384
      %v391 = vmul.f32 %v340, %v376
      %v392 = vmul.f32 %v341, %v380
      %v393 = vmul.f32 %v342, %v384
      %v394 = vmul.f32 %v343, %v376
      %v395 = vmul.f32 %v344, %v380
      %v396 = vmul.f32 %v345, %v384
      %v397 = vmul.f32 %v346, %v376
      %v398 = vmul.f32 %v347, %v380
      %v399 = vmul.f32 %v348, %v384
      %v400 = vmul.f32 %v349, %v376
      %v401 = vmul.f32 %v350, %v380
      %v402 = vmul.f32 %v351, %v384
      %v403 = vmul.f32 %v352, %v376
      %v404 = vmul.f32 %v353, %v380
      %v405 = vmul.f32 %v354, %v384
      %v406 = vmul.f32 %v355, %v376
      %v407 = vmul.f32 %v356, %v380
      %v408 = vmul.f32 %v357, %v384
      %v410 = vlaneseq
      %v411 = vshrl.u32 %v410, 7
      %v412 = vsub.s32 0, %v411
      %v413 = vrot.slane %v320, %v412
      %v414 = vlaneseq
      %v415 = vshrl.u32 %v414, 7
      %v416 = vsub.s32 1, %v415
      %v417 = vrot.slane %v320, %v416
      %v418 = vlaneseq
      %v419 = vshrl.u32 %v418, 7
      %v420 = vsub.s32 2, %v419
      %v421 = vrot.slane %v320, %v420
      %v425 = vadd.f32 %v388, %v413
      %v426 = vadd.f32 %v389, %v417
      %v427 = vadd.f32 %v390, %v421
      %v428 = vadd.f32 %v391, %v413
      %v429 = vadd.f32 %v392, %v417
      %v430 = vadd.f32 %v393, %v421
      %v431 = vadd.f32 %v394, %v413
      %v432 = vadd.f32 %v395, %v417
      %v433 = vadd.f32 %v396, %v421
      %v434 = vadd.f32 %v397, %v413
      %v435 = vadd.f32 %v398, %v417
      %v436 = vadd.f32 %v399, %v421
      %v437 = vadd.f32 %v400, %v413
      %v438 = vadd.f32 %v401, %v417
      %v439 = vadd.f32 %v402, %v421
      %v440 = vadd.f32 %v403, %v413
      %v441 = vadd.f32 %v404, %v417
      %v442 = vadd.f32 %v405, %v421
      %v443 = vadd.f32 %v406, %v413
      %v444 = vadd.f32 %v407, %v417
      %v445 = vadd.f32 %v408, %v421
      %v446 = vmax.f32 %v425, 0.0
      %v447 = vmax.f32 %v426, 0.0
      %v448 = vmax.f32 %v427, 0.0
      %v449 = vmax.f32 %v428, 0.0
      %v450 = vmax.f32 %v429, 0.0
      %v451 = vmax.f32 %v430, 0.0
      %v452 = vmax.f32 %v431, 0.0
      %v453 = vmax.f32 %v432, 0.0
      %v454 = vmax.f32 %v433, 0.0
      %v455 = vmax.f32 %v434, 0.0
      %v456 = vmax.f32 %v435, 0.0
      %v457 = vmax.f32 %v436, 0.0
      %v458 = vmax.f32 %v437, 0.0
      %v459 = vmax.f32 %v438, 0.0
      %v460 = vmax.f32 %v439, 0.0
      %v461 = vmax.f32 %v440, 0.0
      %v462 = vmax.f32 %v441, 0.0
      %v463 = vmax.f32 %v442, 0.0
      %v464 = vmax.f32 %v443, 0.0
      %v465 = vmax.f32 %v444, 0.0
      %v466 = vmax.f32 %v445, 0.0
      %467 = vst [vmem:[%s318] sm:$0x7f] %v446
      %468 = vst [vmem:[%s318 + $0x8] sm:$0x7f] %v447
      %469 = vst [vmem:[%s318 + $0x10] sm:$0x7f] %v448
      %470 = vst [vmem:[%s318 + $0x20] sm:$0x7f] %v449
      %471 = vst [vmem:[%s318 + $0x28] sm:$0x7f] %v450
      %472 = vst [vmem:[%s318 + $0x30] sm:$0x7f] %v451
      %473 = vst [vmem:[%s318 + $0x40] sm:$0x7f] %v452
      %474 = vst [vmem:[%s318 + $0x48] sm:$0x7f] %v453
      %475 = vst [vmem:[%s318 + $0x50] sm:$0x7f] %v454
      %476 = vst [vmem:[%s318 + $0x60] sm:$0x7f] %v455
      %477 = vst [vmem:[%s318 + $0x68] sm:$0x7f] %v456
      %478 = vst [vmem:[%s318 + $0x70] sm:$0x7f] %v457
      %479 = vst [vmem:[%s318 + $0x80] sm:$0x7f] %v458
      %480 = vst [vmem:[%s318 + $0x88] sm:$0x7f] %v459
      %481 = vst [vmem:[%s318 + $0x90] sm:$0x7f] %v460
      %482 = vst [vmem:[%s318 + $0xa0] sm:$0x7f] %v461
      %483 = vst [vmem:[%s318 + $0xa8] sm:$0x7f] %v462
      %484 = vst [vmem:[%s318 + $0xb0] sm:$0x7f] %v463
      %485 = vst [vmem:[%s318 + $0xc0] sm:$0x7f] %v464
      %486 = vst [vmem:[%s318 + $0xc8] sm:$0x7f] %v465
      %487 = vst [vmem:[%s318 + $0xd0] sm:$0x7f] %v466
      %v489 = vlaneseq
      %v490 = vshrl.u32 %v489, 7
      %v491 = vsub.s32 0, %v490
      %v492 = vrot.slane %v321, %v491
      %v494 = vmul.f32 %v365, %v492
      %v495 = vmul.f32 %v366, %v492
      %v496 = vmul.f32 %v367, %v492
      %v497 = vmul.f32 %v368, %v492
      %v498 = vmul.f32 %v369, %v492
      %v499 = vmul.f32 %v370, %v492
      %v500 = vmul.f32 %v371, %v492
      %v502 = vlaneseq
      %v503 = vshrl.u32 %v502, 7
      %v504 = vsub.s32 0, %v503
      %v505 = vrot.slane %v322, %v504
      %v507 = vadd.f32 %v494, %v505
      %v508 = vadd.f32 %v495, %v505
      %v509 = vadd.f32 %v496, %v505
      %v510 = vadd.f32 %v497, %v505
      %v511 = vadd.f32 %v498, %v505
      %v512 = vadd.f32 %v499, %v505
      %v513 = vadd.f32 %v500, %v505
      %v514 = vmax.f32 %v507, 0.0
      %v515 = vmax.f32 %v508, 0.0
      %v516 = vmax.f32 %v509, 0.0
      %v517 = vmax.f32 %v510, 0.0
      %v518 = vmax.f32 %v511, 0.0
      %v519 = vmax.f32 %v512, 0.0
      %v520 = vmax.f32 %v513, 0.0
      %vm521 = vcmask 784384
      %522 = vst.msk [vmem:[%s318 + $0x18] sm:$0x7f] %vm521, %v514
      %523 = vst.msk [vmem:[%s318 + $0x38] sm:$0x7f] %vm521, %v515
      %524 = vst.msk [vmem:[%s318 + $0x58] sm:$0x7f] %vm521, %v516
      %525 = vst.msk [vmem:[%s318 + $0x78] sm:$0x7f] %vm521, %v517
      %526 = vst.msk [vmem:[%s318 + $0x98] sm:$0x7f] %vm521, %v518
      %527 = vst.msk [vmem:[%s318 + $0xb8] sm:$0x7f] %vm521, %v519
      %528 = vst.msk [vmem:[%s318 + $0xd8] sm:$0x7f] %vm521, %v520
      %v529 = vld [vmem:[%s313] sm:$0xf]
      %v530 = vld [vmem:[%s313 + $0x4] sm:$0xf]
      %v531 = vld [vmem:[%s313 + $0x8] sm:$0xf]
      %v532 = vld [vmem:[%s313 + $0xc] sm:$0xf]
      %v533 = vld [vmem:[%s313 + $0x10] sm:$0xf]
      %v534 = vld [vmem:[%s313 + $0x14] sm:$0xf]
      %v535 = vld [vmem:[%s313 + $0x18] sm:$0xf]
      %v536 = vunpack.c.l.bf16 %v529
      %v537 = vunpack.c.l.bf16 %v530
      %v538 = vunpack.c.l.bf16 %v531
      %v539 = vunpack.c.l.bf16 %v532
      %v540 = vunpack.c.l.bf16 %v533
      %v541 = vunpack.c.l.bf16 %v534
      %v542 = vunpack.c.l.bf16 %v535
      %550 = vrot.lane.b32.xlu0 %v536, 96
      %v551 = vpop.permute.xlu0 %550
      %552 = vrot.lane.b32.xlu0 %v537, 96
      %v553 = vpop.permute.xlu0 %552
      %554 = vrot.lane.b32.xlu0 %v538, 96
      %v555 = vpop.permute.xlu0 %554
      %556 = vrot.lane.b32.xlu0 %v539, 96
      %v557 = vpop.permute.xlu0 %556
      %558 = vrot.lane.b32.xlu0 %v540, 96
      %v559 = vpop.permute.xlu0 %558
      %560 = vrot.lane.b32.xlu0 %v541, 96
      %v561 = vpop.permute.xlu0 %560
      %562 = vrot.lane.b32.xlu0 %v542, 96
      %v563 = vpop.permute.xlu0 %562
      %vm571 = vcmask 817920
      %572 = vst.msk [vmem:[%s318 + $0x18] sm:$0x7f] %vm571, %v551
      %573 = vst.msk [vmem:[%s318 + $0x38] sm:$0x7f] %vm571, %v553
      %574 = vst.msk [vmem:[%s318 + $0x58] sm:$0x7f] %vm571, %v555
      %575 = vst.msk [vmem:[%s318 + $0x78] sm:$0x7f] %vm571, %v557
      %576 = vst.msk [vmem:[%s318 + $0x98] sm:$0x7f] %vm571, %v559
      %577 = vst.msk [vmem:[%s318 + $0xb8] sm:$0x7f] %vm571, %v561
      %578 = vst.msk [vmem:[%s318 + $0xd8] sm:$0x7f] %vm571, %v563
      %p579 = scmp.lt.s32.totalorder %s18, 1
      %s580 = scalar_select %p579, %s18, 1
      %s581 = smul.addr %s580, 28
      %s582 = smul.addr %s581, 8
      %s583 = scalar_lea.vmem %s7, %s582
      // Predicated region
      $region49: #{inception_b_forward.9} parent=47 // pred_check
        %p584 = pneg %p198
      $region50: #{inception_b_forward.9} parent=47 // pred_check_branch
        %586 = sbr.rel (%p584) target = $region52
      $region51: #{inception_b_forward.9} parent=47 // pred_region
        _
      $region52: #{inception_b_forward.9} parent=47 // pred_fallthru
        _
    $region48: #{inception_b_forward.9} parent=5 // pred_fallthru
      _
    %p587 = scmp.le.s32.totalorder 2, %s13
    // Predicated region
    $region53: #{inception_b_forward.9} parent=5 // pred_check
      %p588 = pneg %p587
    $region54: #{inception_b_forward.9} parent=5 // pred_check_branch
      %590 = sbr.rel (%p588) target = $region56
    $region55: #{inception_b_forward.9} parent=5 // pred_region
      %s591 = ssub.s32 %s13, 2
      // Predicated region
      $region57: #{inception_b_forward.9} parent=55 // pred_check
        %p592 = pneg %p204
      $region58: #{inception_b_forward.9} parent=55 // pred_check_branch
        %594 = sbr.rel (%p592) target = $region60
      $region59: #{inception_b_forward.9} parent=55 // pred_region
        %p595 = scmp.lt.s32.totalorder %s19, 1
        %s596 = scalar_select %p595, %s19, 1
        %s597 = smul.addr %s596, 28
        %s598 = smul.addr %s597, 8
        %s599 = scalar_lea.vmem %s7, %s598
      $region60: #{inception_b_forward.9} parent=55 // pred_fallthru
        _
    $region56: #{inception_b_forward.9} parent=5 // pred_fallthru
      _
  $region6: #{inception_b_forward.9} parent=0 // loop_footer
    %s17 = sadd.s32 1, %s13
  $region7: #{inception_b_forward.9} parent=0 // loop_footer_branch
    %12 = sbr.rel target = $region3
  $region8: #{inception_b_forward.9} parent=0 // loop_exit
    _

// kernel: inception_b_forward.7
$region0: #{inception_b_forward.7}
  #allocation0 [shape = 'u32[]', space=smem, size = 0x4, offset = 0x4, fixed_abs, tag = 'smem constant byte address 0x4 - core index']
  #allocation1 [shape = 'u32[144,128]{1,0:T(1,128)}', space=vmem, size = 0x12000, scoped, tag = 'internal scratch']
  #allocation2 [shape = 'bf16[7,8,384]{2,1,0:T(8,128)(2,1)}', space=vmem, size = 0xa800, scoped, tag = 'scratch operand']
  %s0 = inlined_call_operand.vmem [shape: bf16[2,16,8,256], index: 0, kind: input, shape index: {}]
  %s1 = inlined_call_operand.vmem [shape: f32[1,256], index: 1, kind: input, shape index: {}]
  %s2 = inlined_call_operand.vmem [shape: f32[1,256], index: 2, kind: input, shape index: {}]
  %s3 = inlined_call_operand.vmem [shape: bf16[3,384,128], index: 3, kind: input, shape index: {}]
  %s4 = inlined_call_operand.vmem [shape: bf16[2,7,8,128], index: 4, kind: output, shape index: {0}]
  %s5 = inlined_call_operand.vmem [shape: f32[2,2,128], index: 5, kind: output, shape index: {1}]
  %6 = xla_tuple %s4, %s5
  %s7 = sld [smem:[#allocation0]]
  $region57: #{inception_b_forward.7} parent=0
    _
  %s9 = ssub.s32 1, %s7
  %s10 = scalar_select 0, %s9, %s7
  loop: start=0, step=1, limit=4
  $region2: #{inception_b_forward.7} parent=0 // loop_pre_header
    _
  $region3: #{inception_b_forward.7} parent=0 // loop_header
    %s12 = sphi 0, %s16
    %p13 = scmp.ge.s32.totalorder %s12, 4
    %s22 = sphi 0, %s24
    %s25 = sphi 0, %s22
    %s26 = sphi 0, %s25
    %s42 = sphi 0, %s26
    %s46 = sphi 0, %s46
    %s48 = sphi 0, %s46
    %s49 = sphi 0, %s48
    %s63 = sphi 0, %s49
    %s67 = sphi 0, %s67
    %s69 = sphi 0, %s67
    %s70 = sphi 0, %s69
    %s84 = sphi 0, %s70
    %s88 = sphi 0, %s88
    %s90 = sphi 0, %s88
    %s91 = sphi 0, %s90
    %s105 = sphi 0, %s91
    %s111 = sphi 0, %s113
    %s114 = sphi 0, %s111
    %s115 = sphi 0, %s114
    %s131 = sphi 0, %s115
    %s137 = sphi 0, %s139
    %s140 = sphi 0, %s137
    %s141 = sphi 0, %s140
    %s157 = sphi 0, %s141
  $region4: #{inception_b_forward.7} parent=0 // loop_header_branch
    %15 = sbr.rel (%p13) target = $region8
  $region5: #{inception_b_forward.7} parent=0 // loop_body
    %s17 = ssub.s32 %s12, 1
    %s18 = ssub.s32 %s12, 2
    %s19 = sadd.s32 %s12, 1
    %s20 = ssub.s32 %s12, %s19
    %p21 = scmp.eq.s32.totalorder %s20, 0
    %s23 = sadd.s32 %s22, 1
    %s24 = scalar_select %p21, %s22, %s23
    %p27 = pneg %p21
    %p28 = scmp.eq.s32.totalorder %s12, 1
    %p29 = por %p27, %p28
    %p30 = scmp.ne.s32.totalorder %s22, %s25
    %p31 = scmp.eq.s32.totalorder %s12, 0
    %p32 = por %p30, %p31
    %p33 = scmp.ne.s32.totalorder %s22, %s25
    %p34 = scmp.eq.s32.totalorder %s17, 1
    %p35 = por %p33, %p34
    %p36 = scmp.ne.s32.totalorder %s25, %s26
    %p37 = scmp.eq.s32.totalorder %s17, 0
    %p38 = por %p36, %p37
    %p39 = scmp.ne.s32.totalorder %s25, %s26
    %p40 = scmp.eq.s32.totalorder %s18, 1
    %p41 = por %p39, %p40
    %p43 = scmp.ne.s32.totalorder %s26, %s42
    %p44 = scmp.eq.s32.totalorder %s18, 0
    %p45 = por %p43, %p44
    %s47 = sadd.s32 %s46, 1
    %p50 = scmp.eq.s32.totalorder %s12, 1
    %p51 = scmp.ne.s32.totalorder %s46, %s48
    %p52 = scmp.eq.s32.totalorder %s12, 0
    %p53 = por %p51, %p52
    %p54 = scmp.ne.s32.totalorder %s46, %s48
    %p55 = scmp.eq.s32.totalorder %s17, 1
    %p56 = por %p54, %p55
    %p57 = scmp.ne.s32.totalorder %s48, %s49
    %p58 = scmp.eq.s32.totalorder %s17, 0
    %p59 = por %p57, %p58
    %p60 = scmp.ne.s32.totalorder %s48, %s49
    %p61 = scmp.eq.s32.totalorder %s18, 1
    %p62 = por %p60, %p61
    %p64 = scmp.ne.s32.totalorder %s49, %s63
    %p65 = scmp.eq.s32.totalorder %s18, 0
    %p66 = por %p64, %p65
    %s68 = sadd.s32 %s67, 1
    %p71 = scmp.eq.s32.totalorder %s12, 1
    %p72 = scmp.ne.s32.totalorder %s67, %s69
    %p73 = scmp.eq.s32.totalorder %s12, 0
    %p74 = por %p72, %p73
    %p75 = scmp.ne.s32.totalorder %s67, %s69
    %p76 = scmp.eq.s32.totalorder %s17, 1
    %p77 = por %p75, %p76
    %p78 = scmp.ne.s32.totalorder %s69, %s70
    %p79 = scmp.eq.s32.totalorder %s17, 0
    %p80 = por %p78, %p79
    %p81 = scmp.ne.s32.totalorder %s69, %s70
    %p82 = scmp.eq.s32.totalorder %s18, 1
    %p83 = por %p81, %p82
    %p85 = scmp.ne.s32.totalorder %s70, %s84
    %p86 = scmp.eq.s32.totalorder %s18, 0
    %p87 = por %p85, %p86
    %s89 = sadd.s32 %s88, 1
    %p92 = scmp.eq.s32.totalorder %s12, 1
    %p93 = scmp.ne.s32.totalorder %s88, %s90
    %p94 = scmp.eq.s32.totalorder %s12, 0
    %p95 = por %p93, %p94
    %p96 = scmp.ne.s32.totalorder %s88, %s90
    %p97 = scmp.eq.s32.totalorder %s17, 1
    %p98 = por %p96, %p97
    %p99 = scmp.ne.s32.totalorder %s90, %s91
    %p100 = scmp.eq.s32.totalorder %s17, 0
    %p101 = por %p99, %p100
    %p102 = scmp.ne.s32.totalorder %s90, %s91
    %p103 = scmp.eq.s32.totalorder %s18, 1
    %p104 = por %p102, %p103
    %p106 = scmp.ne.s32.totalorder %s91, %s105
    %p107 = scmp.eq.s32.totalorder %s18, 0
    %p108 = por %p106, %p107
    %s109 = ssub.s32 %s12, %s19
    %p110 = scmp.eq.s32.totalorder %s109, 0
    %s112 = sadd.s32 %s111, 1
    %s113 = scalar_select %p110, %s111, %s112
    %p116 = pneg %p110
    %p117 = scmp.eq.s32.totalorder %s12, 1
    %p118 = por %p116, %p117
    %p119 = scmp.ne.s32.totalorder %s111, %s114
    %p120 = scmp.eq.s32.totalorder %s12, 0
    %p121 = por %p119, %p120
    %p122 = scmp.ne.s32.totalorder %s111, %s114
    %p123 = scmp.eq.s32.totalorder %s17, 1
    %p124 = por %p122, %p123
    %p125 = scmp.ne.s32.totalorder %s114, %s115
    %p126 = scmp.eq.s32.totalorder %s17, 0
    %p127 = por %p125, %p126
    %p128 = scmp.ne.s32.totalorder %s114, %s115
    %p129 = scmp.eq.s32.totalorder %s18, 1
    %p130 = por %p128, %p129
    %p132 = scmp.ne.s32.totalorder %s115, %s131
    %p133 = scmp.eq.s32.totalorder %s18, 0
    %p134 = por %p132, %p133
    %s135 = ssub.s32 %s12, %s19
    %p136 = scmp.eq.s32.totalorder %s135, 0
    %s138 = sadd.s32 %s137, 1
    %s139 = scalar_select %p136, %s137, %s138
    %p142 = pneg %p136
    %p143 = scmp.eq.s32.totalorder %s12, 1
    %p144 = por %p142, %p143
    %p145 = scmp.ne.s32.totalorder %s137, %s140
    %p146 = scmp.eq.s32.totalorder %s12, 0
    %p147 = por %p145, %p146
    %p148 = scmp.ne.s32.totalorder %s137, %s140
    %p149 = scmp.eq.s32.totalorder %s17, 1
    %p150 = por %p148, %p149
    %p151 = scmp.ne.s32.totalorder %s140, %s141
    %p152 = scmp.eq.s32.totalorder %s17, 0
    %p153 = por %p151, %p152
    %p154 = scmp.ne.s32.totalorder %s140, %s141
    %p155 = scmp.eq.s32.totalorder %s18, 1
    %p156 = por %p154, %p155
    %p158 = scmp.ne.s32.totalorder %s141, %s157
    %p159 = scmp.eq.s32.totalorder %s18, 0
    %p160 = por %p158, %p159
    %p161 = scmp.le.s32.totalorder 1, %s12
    %p162 = scmp.lt.s32.totalorder %s12, 3
    %p163 = pnand %p161, %p162
    %p164 = pneg %p163
    // Predicated region
    $region9: #{inception_b_forward.7} parent=5 // pred_check
      _
    $region10: #{inception_b_forward.7} parent=5 // pred_check_branch
      %166 = sbr.rel (%p163) target = $region12
    $region11: #{inception_b_forward.7} parent=5 // pred_region
      %s167 = ssub.s32 %s12, 1
      // Predicated region
      $region13: #{inception_b_forward.7} parent=11 // pred_check
        %p168 = pneg %p59
      $region14: #{inception_b_forward.7} parent=11 // pred_check_branch
        %170 = sbr.rel (%p168) target = $region16
      $region15: #{inception_b_forward.7} parent=11 // pred_region
        _
      $region16: #{inception_b_forward.7} parent=11 // pred_fallthru
        _
      // Predicated region
      $region17: #{inception_b_forward.7} parent=11 // pred_check
        %p171 = pneg %p80
      $region18: #{inception_b_forward.7} parent=11 // pred_check_branch
        %173 = sbr.rel (%p171) target = $region20
      $region19: #{inception_b_forward.7} parent=11 // pred_region
        _
      $region20: #{inception_b_forward.7} parent=11 // pred_fallthru
        _
      // Predicated region
      $region21: #{inception_b_forward.7} parent=11 // pred_check
        %p174 = pneg %p101
      $region22: #{inception_b_forward.7} parent=11 // pred_check_branch
        %176 = sbr.rel (%p174) target = $region24
      $region23: #{inception_b_forward.7} parent=11 // pred_region
        _
      $region24: #{inception_b_forward.7} parent=11 // pred_fallthru
        _
    $region12: #{inception_b_forward.7} parent=5 // pred_fallthru
      _
    %p177 = scmp.lt.s32.totalorder %s12, 2
    // Predicated region
    $region25: #{inception_b_forward.7} parent=5 // pred_check
      %p178 = pneg %p177
    $region26: #{inception_b_forward.7} parent=5 // pred_check_branch
      %180 = sbr.rel (%p178) target = $region28
    $region27: #{inception_b_forward.7} parent=5 // pred_region
      // Predicated region
      $region29: #{inception_b_forward.7} parent=27 // pred_check
        %p181 = pneg %p32
      $region30: #{inception_b_forward.7} parent=27 // pred_check_branch
        %183 = sbr.rel (%p181) target = $region32
      $region31: #{inception_b_forward.7} parent=27 // pred_region
        %p184 = scmp.lt.s32.totalorder %s12, 1
        %s185 = scalar_select %p184, %s12, 1
        %s186 = smul.addr %s185, 32
        %s187 = smul.addr %s186, 4
        %s188 = scalar_lea.vmem %s0, %s187
      $region32: #{inception_b_forward.7} parent=27 // pred_fallthru
        _
    $region28: #{inception_b_forward.7} parent=5 // pred_fallthru
      _
    %p189 = scmp.le.s32.totalorder 1, %s12
    %p190 = scmp.lt.s32.totalorder %s12, 3
    %p191 = pnand %p189, %p190
    %p192 = pneg %p191
    // Predicated region
    $region33: #{inception_b_forward.7} parent=5 // pred_check
      _
    $region34: #{inception_b_forward.7} parent=5 // pred_check_branch
      %194 = sbr.rel (%p191) target = $region36
    $region35: #{inception_b_forward.7} parent=5 // pred_region
      %s195 = ssub.s32 %s12, 1
      %p196 = scmp.lt.s32.totalorder %s17, 1
      %s197 = scalar_select %p196, %s17, 1
      %s198 = smul.addr %s197, 32
      %s199 = smul.addr %s198, 4
      %s200 = scalar_lea.vmem %s0, %s199
      %p201 = pneg %p38
      %p202 = pneg %p35
      %p203 = pneg %p59
      %p204 = pneg %p56
      %p205 = pneg %p80
      %p206 = pneg %p77
      %p207 = pneg %p101
      %p208 = pneg %p98
      %p209 = pneg %p127
      %p210 = pneg %p124
      %p211 = scmp.lt.s32.totalorder %s17, 1
      %s212 = scalar_select %p211, %s17, 1
      %s213 = smul.addr %s212, 7
      %s214 = smul.addr %s213, 4
      %s215 = scalar_lea.vmem %s4, %s214
      %p216 = pneg %p153
      %p217 = pneg %p150
      %p218 = scmp.lt.s32.totalorder %s17, 1
      %s219 = scalar_select %p218, %s17, 1
      %s220 = smul.addr %s219, 2
      %s221 = scalar_lea.vmem %s5, %s220
      %p222 = scmp.lt.s32.totalorder %s17, 1
      %s223 = scalar_select %p222, %s17, 1
      %s224 = smul.addr %s223, 32
      %s225 = smul.addr %s224, 4
      %s226 = scalar_lea.vmem %s0, %s225
      %p227 = scmp.lt.s32.totalorder %s17, 1
      %s228 = scalar_select %p227, %s17, 1
      %s229 = smul.addr %s228, 7
      %s230 = smul.addr %s229, 4
      %s231 = scalar_lea.vmem %s4, %s230
      %p232 = scmp.lt.s32.totalorder %s17, 1
      %s233 = scalar_select %p232, %s17, 1
      %s234 = smul.addr %s233, 2
      %s235 = scalar_lea.vmem %s5, %s234
      %v237 = vld [vmem:[%s226] sm:$0xff]
      %v238 = vld [vmem:[%s226 + $0x8] sm:$0xff]
      %v239 = vld [vmem:[%s226 + $0x10] sm:$0xff]
      %v240 = vld [vmem:[%s226 + $0x18] sm:$0xff]
      %v241 = vld [vmem:[%s226 + $0x20] sm:$0xff]
      %v242 = vld [vmem:[%s226 + $0x28] sm:$0xff]
      %v243 = vld [vmem:[%s226 + $0x30] sm:$0xff]
      %v244 = vld [vmem:[%s226 + $0x38] sm:$0xff]
      %v245 = vld [vmem:[%s226 + $0x40] sm:$0xff]
      %v246 = vld [vmem:[%s226 + $0x48] sm:$0xff]
      %v247 = vld [vmem:[%s226 + $0x50] sm:$0xff]
      %v248 = vld [vmem:[%s226 + $0x58] sm:$0xff]
      %v249 = vld [vmem:[%s226 + $0x60] sm:$0xff]
      %v250 = vld [vmem:[%s226 + $0x68] sm:$0xff]
      %v251 = vld [vmem:[%s226 + $0x70] sm:$0xff]
      %v252 = vld [vmem:[%s1] sm:$0x3]
      %v253 = vld [vmem:[%s2] sm:$0x3]
      %v254 = vunpack.c.l.bf16 %v237
      %v255 = vunpack.c.h.bf16 %v237
      %v256 = vunpack.c.l.bf16 %v238
      %v257 = vunpack.c.h.bf16 %v238
      %v258 = vunpack.c.l.bf16 %v239
      %v259 = vunpack.c.h.bf16 %v239
      %v260 = vunpack.c.l.bf16 %v240
      %v261 = vunpack.c.h.bf16 %v240
      %v262 = vunpack.c.l.bf16 %v241
      %v263 = vunpack.c.h.bf16 %v241
      %v264 = vunpack.c.l.bf16 %v242
      %v265 = vunpack.c.h.bf16 %v242
      %v266 = vunpack.c.l.bf16 %v243
      %v267 = vunpack.c.h.bf16 %v243
      %v268 = vunpack.c.l.bf16 %v244
      %v269 = vunpack.c.h.bf16 %v244
      %v270 = vunpack.c.l.bf16 %v245
      %v271 = vunpack.c.h.bf16 %v245
      %v272 = vunpack.c.l.bf16 %v246
      %v273 = vunpack.c.h.bf16 %v246
      %v274 = vunpack.c.l.bf16 %v247
      %v275 = vunpack.c.h.bf16 %v247
      %v276 = vunpack.c.l.bf16 %v248
      %v277 = vunpack.c.h.bf16 %v248
      %v278 = vunpack.c.l.bf16 %v249
      %v279 = vunpack.c.h.bf16 %v249
      %v280 = vunpack.c.l.bf16 %v250
      %v281 = vunpack.c.h.bf16 %v250
      %v282 = vunpack.c.l.bf16 %v251
      %v283 = vunpack.c.h.bf16 %v251
      %v285 = vlaneseq
      %v286 = vshrl.u32 %v285, 7
      %v287 = vsub.s32 0, %v286
      %v288 = vrot.slane %v252, %v287
      %v289 = vlaneseq
      %v290 = vshrl.u32 %v289, 7
      %v291 = vsub.s32 1, %v290
      %v292 = vrot.slane %v252, %v291
      %v295 = vmul.f32 %v254, %v288
      %v296 = vmul.f32 %v255, %v292
      %v297 = vmul.f32 %v256, %v288
      %v298 = vmul.f32 %v257, %v292
      %v299 = vmul.f32 %v258, %v288
      %v300 = vmul.f32 %v259, %v292
      %v301 = vmul.f32 %v260, %v288
      %v302 = vmul.f32 %v261, %v292
      %v303 = vmul.f32 %v262, %v288
      %v304 = vmul.f32 %v263, %v292
      %v305 = vmul.f32 %v264, %v288
      %v306 = vmul.f32 %v265, %v292
      %v307 = vmul.f32 %v266, %v288
      %v308 = vmul.f32 %v267, %v292
      %v309 = vmul.f32 %v268, %v288
      %v310 = vmul.f32 %v269, %v292
      %v311 = vmul.f32 %v270, %v288
      %v312 = vmul.f32 %v271, %v292
      %v313 = vmul.f32 %v272, %v288
      %v314 = vmul.f32 %v273, %v292
      %v315 = vmul.f32 %v274, %v288
      %v316 = vmul.f32 %v275, %v292
      %v317 = vmul.f32 %v276, %v288
      %v318 = vmul.f32 %v277, %v292
      %v319 = vmul.f32 %v278, %v288
      %v320 = vmul.f32 %v279, %v292
      %v321 = vmul.f32 %v280, %v288
      %v322 = vmul.f32 %v281, %v292
      %v323 = vmul.f32 %v282, %v288
      %v324 = vmul.f32 %v283, %v292
      %v326 = vlaneseq
      %v327 = vshrl.u32 %v326, 7
      %v328 = vsub.s32 0, %v327
      %v329 = vrot.slane %v253, %v328
      %v330 = vlaneseq
      %v331 = vshrl.u32 %v330, 7
      %v332 = vsub.s32 1, %v331
      %v333 = vrot.slane %v253, %v332
      %v336 = vadd.f32 %v295, %v329
      %v337 = vadd.f32 %v296, %v333
      %v338 = vadd.f32 %v297, %v329
      %v339 = vadd.f32 %v298, %v333
      %v340 = vadd.f32 %v299, %v329
      %v341 = vadd.f32 %v300, %v333
      %v342 = vadd.f32 %v301, %v329
      %v343 = vadd.f32 %v302, %v333
      %v344 = vadd.f32 %v303, %v329
      %v345 = vadd.f32 %v304, %v333
      %v346 = vadd.f32 %v305, %v329
      %v347 = vadd.f32 %v306, %v333
      %v348 = vadd.f32 %v307, %v329
      %v349 = vadd.f32 %v308, %v333
      %v350 = vadd.f32 %v309, %v329
      %v351 = vadd.f32 %v310, %v333
      %v352 = vadd.f32 %v311, %v329
      %v353 = vadd.f32 %v312, %v333
      %v354 = vadd.f32 %v313, %v329
      %v355 = vadd.f32 %v314, %v333
      %v356 = vadd.f32 %v315, %v329
      %v357 = vadd.f32 %v316, %v333
      %v358 = vadd.f32 %v317, %v329
      %v359 = vadd.f32 %v318, %v333
      %v360 = vadd.f32 %v319, %v329
      %v361 = vadd.f32 %v320, %v333
      %v362 = vadd.f32 %v321, %v329
      %v363 = vadd.f32 %v322, %v333
      %v364 = vadd.f32 %v323, %v329
      %v365 = vadd.f32 %v324, %v333
      %v366 = vmax.f32 %v336, 0.0
      %v367 = vmax.f32 %v337, 0.0
      %v368 = vmax.f32 %v338, 0.0
      %v369 = vmax.f32 %v339, 0.0
      %v370 = vmax.f32 %v340, 0.0
      %v371 = vmax.f32 %v341, 0.0
      %v372 = vmax.f32 %v342, 0.0
      %v373 = vmax.f32 %v343, 0.0
      %v374 = vmax.f32 %v344, 0.0
      %v375 = vmax.f32 %v345, 0.0
      %v376 = vmax.f32 %v346, 0.0
      %v377 = vmax.f32 %v347, 0.0
      %v378 = vmax.f32 %v348, 0.0
      %v379 = vmax.f32 %v349, 0.0
      %v380 = vmax.f32 %v350, 0.0
      %v381 = vmax.f32 %v351, 0.0
      %v382 = vmax.f32 %v352, 0.0
      %v383 = vmax.f32 %v353, 0.0
      %v384 = vmax.f32 %v354, 0.0
      %v385 = vmax.f32 %v355, 0.0
      %v386 = vmax.f32 %v356, 0.0
      %v387 = vmax.f32 %v357, 0.0
      %v388 = vmax.f32 %v358, 0.0
      %v389 = vmax.f32 %v359, 0.0
      %v390 = vmax.f32 %v360, 0.0
      %v391 = vmax.f32 %v361, 0.0
      %v392 = vmax.f32 %v362, 0.0
      %v393 = vmax.f32 %v363, 0.0
      %v394 = vmax.f32 %v364, 0.0
      %v395 = vmax.f32 %v365, 0.0
      %v396 = vpack.c.bf16 %v366, %v366
      %v397 = vpack.c.bf16 %v367, %v367
      %v398 = vpack.c.bf16 %v368, %v368
      %v399 = vpack.c.bf16 %v369, %v369
      %v400 = vpack.c.bf16 %v370, %v370
      %v401 = vpack.c.bf16 %v371, %v371
      %v402 = vpack.c.bf16 %v372, %v372
      %v403 = vpack.c.bf16 %v373, %v373
      %v404 = vpack.c.bf16 %v374, %v374
      %v405 = vpack.c.bf16 %v375, %v375
      %v406 = vpack.c.bf16 %v376, %v376
      %v407 = vpack.c.bf16 %v377, %v377
      %v408 = vpack.c.bf16 %v378, %v378
      %v409 = vpack.c.bf16 %v379, %v379
      %v410 = vpack.c.bf16 %v380, %v380
      %v411 = vpack.c.bf16 %v381, %v381
      %v412 = vpack.c.bf16 %v382, %v382
      %v413 = vpack.c.bf16 %v383, %v383
      %v414 = vpack.c.bf16 %v384, %v384
      %v415 = vpack.c.bf16 %v385, %v385
      %v416 = vpack.c.bf16 %v386, %v386
      %v417 = vpack.c.bf16 %v387, %v387
      %v418 = vpack.c.bf16 %v388, %v388
      %v419 = vpack.c.bf16 %v389, %v389
      %v420 = vpack.c.bf16 %v390, %v390
      %v421 = vpack.c.bf16 %v391, %v391
      %v422 = vpack.c.bf16 %v392, %v392
      %v423 = vpack.c.bf16 %v393, %v393
      %v424 = vpack.c.bf16 %v394, %v394
      %v425 = vpack.c.bf16 %v395, %v395
      %v440 = vunpack.c.l.b16 %v396
      %v441 = vunpack.c.l.b16 %v397
      %v442 = vunpack.c.l.b16 %v400
      %v443 = vunpack.c.l.b16 %v401
      %v444 = vunpack.c.l.b16 %v404
      %v445 = vunpack.c.l.b16 %v405
      %v446 = vunpack.c.l.b16 %v408
      %v447 = vunpack.c.l.b16 %v409
      %v448 = vunpack.c.l.b16 %v412
      %v449 = vunpack.c.l.b16 %v413
      %v450 = vunpack.c.l.b16 %v416
      %v451 = vunpack.c.l.b16 %v417
      %v452 = vunpack.c.l.b16 %v420
      %v453 = vunpack.c.l.b16 %v421
      %v454 = vpack.c.b16 %v441, %v440
      %v455 = vpack.c.b16 %v443, %v442
      %v456 = vpack.c.b16 %v445, %v444
      %v457 = vpack.c.b16 %v447, %v446
      %v458 = vpack.c.b16 %v449, %v448
      %v459 = vpack.c.b16 %v451, %v450
      %v460 = vpack.c.b16 %v453, %v452
      %468 = vst [vmem:[#allocation2] sm:$0xff] %v454
      %469 = vst [vmem:[#allocation2 + $0xc] sm:$0xff] %v455
      %470 = vst [vmem:[#allocation2 + $0x18] sm:$0xff] %v456
      %471 = vst [vmem:[#allocation2 + $0x24] sm:$0xff] %v457
      %472 = vst [vmem:[#allocation2 + $0x30] sm:$0xff] %v458
      %473 = vst [vmem:[#allocation2 + $0x3c] sm:$0xff] %v459
      %474 = vst [vmem:[#allocation2 + $0x48] sm:$0xff] %v460
      %v475 = vpack.c.b16 %v440, %v440
      %v476 = vpack.c.b16 %v442, %v442
      %v477 = vpack.c.b16 %v444, %v444
      %v478 = vpack.c.b16 %v446, %v446
      %v479 = vpack.c.b16 %v448, %v448
      %v480 = vpack.c.b16 %v450, %v450
      %v481 = vpack.c.b16 %v452, %v452
      %v483 = vshrl.u32 %v475, 16
      %v485 = vrot.slane %v483, 4
      %v486 = vshll.u32 %v475, 16
      %v488 = vrot.slane %v486, 5
      %v489 = vor.u32 %v485, %v488
      %v490 = vrot.slane %v489, 4
      %v492 = vshrl.u32 %v476, 16
      %v494 = vrot.slane %v492, 4
      %v495 = vshll.u32 %v476, 16
      %v497 = vrot.slane %v495, 5
      %v498 = vor.u32 %v494, %v497
      %v499 = vrot.slane %v498, 4
      %v501 = vshrl.u32 %v477, 16
      %v503 = vrot.slane %v501, 4
      %v504 = vshll.u32 %v477, 16
      %v506 = vrot.slane %v504, 5
      %v507 = vor.u32 %v503, %v506
      %v508 = vrot.slane %v507, 4
      %v510 = vshrl.u32 %v478, 16
      %v512 = vrot.slane %v510, 4
      %v513 = vshll.u32 %v478, 16
      %v515 = vrot.slane %v513, 5
      %v516 = vor.u32 %v512, %v515
      %v517 = vrot.slane %v516, 4
      %v519 = vshrl.u32 %v479, 16
      %v521 = vrot.slane %v519, 4
      %v522 = vshll.u32 %v479, 16
      %v524 = vrot.slane %v522, 5
      %v525 = vor.u32 %v521, %v524
      %v526 = vrot.slane %v525, 4
      %v528 = vshrl.u32 %v480, 16
      %v530 = vrot.slane %v528, 4
      %v531 = vshll.u32 %v480, 16
      %v533 = vrot.slane %v531, 5
      %v534 = vor.u32 %v530, %v533
      %v535 = vrot.slane %v534, 4
      %v537 = vshrl.u32 %v481, 16
      %v539 = vrot.slane %v537, 4
      %v540 = vshll.u32 %v481, 16
      %v542 = vrot.slane %v540, 5
      %v543 = vor.u32 %v539, %v542
      %v544 = vrot.slane %v543, 4
      %vm552 = vcmask 1043456
      %vm553 = vsmask.f32 3328
      %vm554 = vmand %vm552, %vm553
      %v555 = vld [vmem:[#allocation2 + $0x8] sm:$0xf]
      %v556 = vsel %vm554, %v490, %v555
      %557 = vst [vmem:[#allocation2 + $0x8] sm:$0xf] %v556
      %v558 = vld [vmem:[#allocation2 + $0x14] sm:$0xf]
      %v559 = vsel %vm554, %v499, %v558
      %560 = vst [vmem:[#allocation2 + $0x14] sm:$0xf] %v559
      %v561 = vld [vmem:[#allocation2 + $0x20] sm:$0xf]
      %v562 = vsel %vm554, %v508, %v561
      %563 = vst [vmem:[#allocation2 + $0x20] sm:$0xf] %v562
      %v564 = vld [vmem:[#allocation2 + $0x2c] sm:$0xf]
      %v565 = vsel %vm554, %v517, %v564
      %566 = vst [vmem:[#allocation2 + $0x2c] sm:$0xf] %v565
      %v567 = vld [vmem:[#allocation2 + $0x38] sm:$0xf]
      %v568 = vsel %vm554, %v526, %v567
      %569 = vst [vmem:[#allocation2 + $0x38] sm:$0xf] %v568
      %v570 = vld [vmem:[#allocation2 + $0x44] sm:$0xf]
      %v571 = vsel %vm554, %v535, %v570
      %572 = vst [vmem:[#allocation2 + $0x44] sm:$0xf] %v571
      %v573 = vld [vmem:[#allocation2 + $0x50] sm:$0xf]
      %v574 = vsel %vm554, %v544, %v573
      %575 = vst [vmem:[#allocation2 + $0x50] sm:$0xf] %v574
      %vm583 = vcmask 1043459
      %vm584 = vsmask.f32 7950
      %vm585 = vmand %vm583, %vm584
      %v586 = vld [vmem:[#allocation2 + $0x8] sm:$0x8]
      %v587 = vsel %vm585, %v488, %v586
      %588 = vst [vmem:[#allocation2 + $0x8] sm:$0x8] %v587
      %v589 = vld [vmem:[#allocation2 + $0x14] sm:$0x8]
      %v590 = vsel %vm585, %v497, %v589
      %591 = vst [vmem:[#allocation2 + $0x14] sm:$0x8] %v590
      %v592 = vld [vmem:[#allocation2 + $0x20] sm:$0x8]
      %v593 = vsel %vm585, %v506, %v592
      %594 = vst [vmem:[#allocation2 + $0x20] sm:$0x8] %v593
      %v595 = vld [vmem:[#allocation2 + $0x2c] sm:$0x8]
      %v596 = vsel %vm585, %v515, %v595
      %597 = vst [vmem:[#allocation2 + $0x2c] sm:$0x8] %v596
      %v598 = vld [vmem:[#allocation2 + $0x38] sm:$0x8]
      %v599 = vsel %vm585, %v524, %v598
      %600 = vst [vmem:[#allocation2 + $0x38] sm:$0x8] %v599
      %v601 = vld [vmem:[#allocation2 + $0x44] sm:$0x8]
      %v602 = vsel %vm585, %v533, %v601
      %603 = vst [vmem:[#allocation2 + $0x44] sm:$0x8] %v602
      %v604 = vld [vmem:[#allocation2 + $0x50] sm:$0x8]
      %v605 = vsel %vm585, %v542, %v604
      %606 = vst [vmem:[#allocation2 + $0x50] sm:$0x8] %v605
      %v607 = vld [vmem:[#allocation2] sm:$0xff]
      %v608 = vld [vmem:[#allocation2 + $0x8] sm:$0xf]
      %v609 = vld [vmem:[#allocation2 + $0xc] sm:$0xff]
      %v610 = vld [vmem:[#allocation2 + $0x14] sm:$0xf]
      %v611 = vld [vmem:[#allocation2 + $0x18] sm:$0xff]
      %v612 = vld [vmem:[#allocation2 + $0x20] sm:$0xf]
      %v613 = vld [vmem:[#allocation2 + $0x24] sm:$0xff]
      %v614 = vld [vmem:[#allocation2 + $0x2c] sm:$0xf]
      %v615 = vld [vmem:[#allocation2 + $0x30] sm:$0xff]
      %v616 = vld [vmem:[#allocation2 + $0x38] sm:$0xf]
      %v617 = vld [vmem:[#allocation2 + $0x3c] sm:$0xff]
      %v618 = vld [vmem:[#allocation2 + $0x44] sm:$0xf]
      %v619 = vld [vmem:[#allocation2 + $0x48] sm:$0xff]
      %v620 = vld [vmem:[#allocation2 + $0x50] sm:$0xf]
      %v621 = vld [vmem:[%s3] sm:$0xf]
      %v622 = vld [vmem:[%s3 + $0x4] sm:$0xf]
      %v623 = vld [vmem:[%s3 + $0x8] sm:$0xf]
      %v624 = vld [vmem:[%s3 + $0xc] sm:$0xf]
      %v625 = vld [vmem:[%s3 + $0x10] sm:$0xf]
      %v626 = vld [vmem:[%s3 + $0x14] sm:$0xf]
      %v627 = vld [vmem:[%s3 + $0x18] sm:$0xf]
      %v628 = vld [vmem:[%s3 + $0x1c] sm:$0xf]
      %v629 = vld [vmem:[%s3 + $0x20] sm:$0xf]
      %v630 = vld [vmem:[%s3 + $0x24] sm:$0xf]
      %v631 = vld [vmem:[%s3 + $0x28] sm:$0xf]
      %v632 = vld [vmem:[%s3 + $0x2c] sm:$0xf]
      %v633 = vld [vmem:[%s3 + $0x30] sm:$0xf]
      %v634 = vld [vmem:[%s3 + $0x34] sm:$0xf]
      %v635 = vld [vmem:[%s3 + $0x38] sm:$0xf]
      %v636 = vld [vmem:[%s3 + $0x3c] sm:$0xf]
      %v637 = vld [vmem:[%s3 + $0x40] sm:$0xf]
      %v638 = vld [vmem:[%s3 + $0x44] sm:$0xf]
      %v639 = vld [vmem:[%s3 + $0x48] sm:$0xf]
      %v640 = vld [vmem:[%s3 + $0x4c] sm:$0xf]
      %v641 = vld [vmem:[%s3 + $0x50] sm:$0xf]
      %v642 = vld [vmem:[%s3 + $0x54] sm:$0xf]
      %v643 = vld [vmem:[%s3 + $0x58] sm:$0xf]
      %v644 = vld [vmem:[%s3 + $0x5c] sm:$0xf]
      %v645 = vld [vmem:[%s3 + $0x60] sm:$0xf]
      %v646 = vld [vmem:[%s3 + $0x64] sm:$0xf]
      %v647 = vld [vmem:[%s3 + $0x68] sm:$0xf]
      %v648 = vld [vmem:[%s3 + $0x6c] sm:$0xf]
      %v649 = vld [vmem:[%s3 + $0x70] sm:$0xf]
      %v650 = vld [vmem:[%s3 + $0x74] sm:$0xf]
      %v651 = vld [vmem:[%s3 + $0x78] sm:$0xf]
      %v652 = vld [vmem:[%s3 + $0x7c] sm:$0xf]
      %v653 = vld [vmem:[%s3 + $0x80] sm:$0xf]
      %v654 = vld [vmem:[%s3 + $0x84] sm:$0xf]
      %v655 = vld [vmem:[%s3 + $0x88] sm:$0xf]
      %v656 = vld [vmem:[%s3 + $0x8c] sm:$0xf]
      %v657 = vld [vmem:[%s3 + $0x90] sm:$0xf]
      %v658 = vld [vmem:[%s3 + $0x94] sm:$0xf]
      %v659 = vld [vmem:[%s3 + $0x98] sm:$0xf]
      %v660 = vld [vmem:[%s3 + $0x9c] sm:$0xf]
      %v661 = vld [vmem:[%s3 + $0xa0] sm:$0xf]
      %v662 = vld [vmem:[%s3 + $0xa4] sm:$0xf]
      %v663 = vld [vmem:[%s3 + $0xa8] sm:$0xf]
      %v664 = vld [vmem:[%s3 + $0xac] sm:$0xf]
      %v665 = vld [vmem:[%s3 + $0xb0] sm:$0xf]
      %v666 = vld [vmem:[%s3 + $0xb4] sm:$0xf]
      %v667 = vld [vmem:[%s3 + $0xb8] sm:$0xf]
      %v668 = vld [vmem:[%s3 + $0xbc] sm:$0xf]
      %v683 = vunpack.c.l.b16 %v398
      %v684 = vunpack.c.l.b16 %v399
      %v685 = vunpack.c.l.b16 %v402
      %v686 = vunpack.c.l.b16 %v403
      %v687 = vunpack.c.l.b16 %v406
      %v688 = vunpack.c.l.b16 %v407
      %v689 = vunpack.c.l.b16 %v410
      %v690 = vunpack.c.l.b16 %v411
      %v691 = vunpack.c.l.b16 %v414
      %v692 = vunpack.c.l.b16 %v415
      %v693 = vunpack.c.l.b16 %v418
      %v694 = vunpack.c.l.b16 %v419
      %v695 = vunpack.c.l.b16 %v422
      %v696 = vunpack.c.l.b16 %v423
      %v697 = vpack.c.b16 %v684, %v683
      %v698 = vpack.c.b16 %v686, %v685
      %v699 = vpack.c.b16 %v688, %v687
      %v700 = vpack.c.b16 %v690, %v689
      %v701 = vpack.c.b16 %v692, %v691
      %v702 = vpack.c.b16 %v694, %v693
      %v703 = vpack.c.b16 %v696, %v695
      %711 = vst [vmem:[#allocation2] sm:$0xff] %v697
      %712 = vst [vmem:[#allocation2 + $0xc] sm:$0xff] %v698
      %713 = vst [vmem:[#allocation2 + $0x18] sm:$0xff] %v699
      %714 = vst [vmem:[#allocation2 + $0x24] sm:$0xff] %v700
      %715 = vst [vmem:[#allocation2 + $0x30] sm:$0xff] %v701
      %716 = vst [vmem:[#allocation2 + $0x3c] sm:$0xff] %v702
      %717 = vst [vmem:[#allocation2 + $0x48] sm:$0xff] %v703
      %v718 = vpack.c.b16 %v683, %v683
      %v719 = vpack.c.b16 %v685, %v685
      %v720 = vpack.c.b16 %v687, %v687
      %v721 = vpack.c.b16 %v689, %v689
      %v722 = vpack.c.b16 %v691, %v691
      %v723 = vpack.c.b16 %v693, %v693
      %v724 = vpack.c.b16 %v695, %v695
      %v726 = vshrl.u32 %v718, 16
      %v728 = vrot.slane %v726, 4
      %v729 = vshll.u32 %v718, 16
      %v731 = vrot.slane %v729, 5
      %v732 = vor.u32 %v728, %v731
      %v733 = vrot.slane %v732, 4
      %v735 = vshrl.u32 %v719, 16
      %v737 = vrot.slane %v735, 4
      %v738 = vshll.u32 %v719, 16
      %v740 = vrot.slane %v738, 5
      %v741 = vor.u32 %v737, %v740
      %v742 = vrot.slane %v741, 4
      %v744 = vshrl.u32 %v720, 16
      %v746 = vrot.slane %v744, 4
      %v747 = vshll.u32 %v720, 16
      %v749 = vrot.slane %v747, 5
      %v750 = vor.u32 %v746, %v749
      %v751 = vrot.slane %v750, 4
      %v753 = vshrl.u32 %v721, 16
      %v755 = vrot.slane %v753, 4
      %v756 = vshll.u32 %v721, 16
      %v758 = vrot.slane %v756, 5
      %v759 = vor.u32 %v755, %v758
      %v760 = vrot.slane %v759, 4
      %v762 = vshrl.u32 %v722, 16
      %v764 = vrot.slane %v762, 4
      %v765 = vshll.u32 %v722, 16
      %v767 = vrot.slane %v765, 5
      %v768 = vor.u32 %v764, %v767
      %v769 = vrot.slane %v768, 4
      %v771 = vshrl.u32 %v723, 16
      %v773 = vrot.slane %v771, 4
      %v774 = vshll.u32 %v723, 16
      %v776 = vrot.slane %v774, 5
      %v777 = vor.u32 %v773, %v776
      %v778 = vrot.slane %v777, 4
      %v780 = vshrl.u32 %v724, 16
      %v782 = vrot.slane %v780, 4
      %v783 = vshll.u32 %v724, 16
      %v785 = vrot.slane %v783, 5
      %v786 = vor.u32 %v782, %v785
      %v787 = vrot.slane %v786, 4
      %v795 = vld [vmem:[#allocation2 + $0x8] sm:$0xf]
      %v796 = vsel %vm554, %v733, %v795
      %797 = vst [vmem:[#allocation2 + $0x8] sm:$0xf] %v796
      %v798 = vld [vmem:[#allocation2 + $0x14] sm:$0xf]
      %v799 = vsel %vm554, %v742, %v798
      %800 = vst [vmem:[#allocation2 + $0x14] sm:$0xf] %v799
      %v801 = vld [vmem:[#allocation2 + $0x20] sm:$0xf]
      %v802 = vsel %vm554, %v751, %v801
      %803 = vst [vmem:[#allocation2 + $0x20] sm:$0xf] %v802
      %v804 = vld [vmem:[#allocation2 + $0x2c] sm:$0xf]
      %v805 = vsel %vm554, %v760, %v804
      %806 = vst [vmem:[#allocation2 + $0x2c] sm:$0xf] %v805
      %v807 = vld [vmem:[#allocation2 + $0x38] sm:$0xf]
      %v808 = vsel %vm554, %v769, %v807
      %809 = vst [vmem:[#allocation2 + $0x38] sm:$0xf] %v808
      %v810 = vld [vmem:[#allocation2 + $0x44] sm:$0xf]
      %v811 = vsel %vm554, %v778, %v810
      %812 = vst [vmem:[#allocation2 + $0x44] sm:$0xf] %v811
      %v813 = vld [vmem:[#allocation2 + $0x50] sm:$0xf]
      %v814 = vsel %vm554, %v787, %v813
      %815 = vst [vmem:[#allocation2 + $0x50] sm:$0xf] %v814
      %v823 = vld [vmem:[#allocation2 + $0x8] sm:$0x8]
      %v824 = vsel %vm585, %v731, %v823
      %825 = vst [vmem:[#allocation2 + $0x8] sm:$0x8] %v824
      %v826 = vld [vmem:[#allocation2 + $0x14] sm:$0x8]
      %v827 = vsel %vm585, %v740, %v826
      %828 = vst [vmem:[#allocation2 + $0x14] sm:$0x8] %v827
      %v829 = vld [vmem:[#allocation2 + $0x20] sm:$0x8]
      %v830 = vsel %vm585, %v749, %v829
      %831 = vst [vmem:[#allocation2 + $0x20] sm:$0x8] %v830
      %v832 = vld [vmem:[#allocation2 + $0x2c] sm:$0x8]
      %v833 = vsel %vm585, %v758, %v832
      %834 = vst [vmem:[#allocation2 + $0x2c] sm:$0x8] %v833
      %v835 = vld [vmem:[#allocation2 + $0x38] sm:$0x8]
      %v836 = vsel %vm585, %v767, %v835
      %837 = vst [vmem:[#allocation2 + $0x38] sm:$0x8] %v836
      %v838 = vld [vmem:[#allocation2 + $0x44] sm:$0x8]
      %v839 = vsel %vm585, %v776, %v838
      %840 = vst [vmem:[#allocation2 + $0x44] sm:$0x8] %v839
      %v841 = vld [vmem:[#allocation2 + $0x50] sm:$0x8]
      %v842 = vsel %vm585, %v785, %v841
      %843 = vst [vmem:[#allocation2 + $0x50] sm:$0x8] %v842
      %v844 = vld [vmem:[#allocation2] sm:$0xff]
      %v845 = vld [vmem:[#allocation2 + $0x8] sm:$0xf]
      %v846 = vld [vmem:[#allocation2 + $0xc] sm:$0xff]
      %v847 = vld [vmem:[#allocation2 + $0x14] sm:$0xf]
      %v848 = vld [vmem:[#allocation2 + $0x18] sm:$0xff]
      %v849 = vld [vmem:[#allocation2 + $0x20] sm:$0xf]
      %v850 = vld [vmem:[#allocation2 + $0x24] sm:$0xff]
      %v851 = vld [vmem:[#allocation2 + $0x2c] sm:$0xf]
      %v852 = vld [vmem:[#allocation2 + $0x30] sm:$0xff]
      %v853 = vld [vmem:[#allocation2 + $0x38] sm:$0xf]
      %v854 = vld [vmem:[#allocation2 + $0x3c] sm:$0xff]
      %v855 = vld [vmem:[#allocation2 + $0x44] sm:$0xf]
      %v856 = vld [vmem:[#allocation2 + $0x48] sm:$0xff]
      %v857 = vld [vmem:[#allocation2 + $0x50] sm:$0xf]
      %s858 = scalar_lea.vmem %s3, 192
      %v859 = vld [vmem:[%s858] sm:$0xf]
      %v860 = vld [vmem:[%s858 + $0x4] sm:$0xf]
      %v861 = vld [vmem:[%s858 + $0x8] sm:$0xf]
      %v862 = vld [vmem:[%s858 + $0xc] sm:$0xf]
      %v863 = vld [vmem:[%s858 + $0x10] sm:$0xf]
      %v864 = vld [vmem:[%s858 + $0x14] sm:$0xf]
      %v865 = vld [vmem:[%s858 + $0x18] sm:$0xf]
      %v866 = vld [vmem:[%s858 + $0x1c] sm:$0xf]
      %v867 = vld [vmem:[%s858 + $0x20] sm:$0xf]
      %v868 = vld [vmem:[%s858 + $0x24] sm:$0xf]
      %v869 = vld [vmem:[%s858 + $0x28] sm:$0xf]
      %v870 = vld [vmem:[%s858 + $0x2c] sm:$0xf]
      %v871 = vld [vmem:[%s858 + $0x30] sm:$0xf]
      %v872 = vld [vmem:[%s858 + $0x34] sm:$0xf]
      %v873 = vld [vmem:[%s858 + $0x38] sm:$0xf]
      %v874 = vld [vmem:[%s858 + $0x3c] sm:$0xf]
      %v875 = vld [vmem:[%s858 + $0x40] sm:$0xf]
      %v876 = vld [vmem:[%s858 + $0x44] sm:$0xf]
      %v877 = vld [vmem:[%s858 + $0x48] sm:$0xf]
      %v878 = vld [vmem:[%s858 + $0x4c] sm:$0xf]
      %v879 = vld [vmem:[%s858 + $0x50] sm:$0xf]
      %v880 = vld [vmem:[%s858 + $0x54] sm:$0xf]
      %v881 = vld [vmem:[%s858 + $0x58] sm:$0xf]
      %v882 = vld [vmem:[%s858 + $0x5c] sm:$0xf]
      %v883 = vld [vmem:[%s858 + $0x60] sm:$0xf]
      %v884 = vld [vmem:[%s858 + $0x64] sm:$0xf]
      %v885 = vld [vmem:[%s858 + $0x68] sm:$0xf]
      %v886 = vld [vmem:[%s858 + $0x6c] sm:$0xf]
      %v887 = vld [vmem:[%s858 + $0x70] sm:$0xf]
      %v888 = vld [vmem:[%s858 + $0x74] sm:$0xf]
      %v889 = vld [vmem:[%s858 + $0x78] sm:$0xf]
      %v890 = vld [vmem:[%s858 + $0x7c] sm:$0xf]
      %v891 = vld [vmem:[%s858 + $0x80] sm:$0xf]
      %v892 = vld [vmem:[%s858 + $0x84] sm:$0xf]
      %v893 = vld [vmem:[%s858 + $0x88] sm:$0xf]
      %v894 = vld [vmem:[%s858 + $0x8c] sm:$0xf]
      %v895 = vld [vmem:[%s858 + $0x90] sm:$0xf]
      %v896 = vld [vmem:[%s858 + $0x94] sm:$0xf]
      %v897 = vld [vmem:[%s858 + $0x98] sm:$0xf]
      %v898 = vld [vmem:[%s858 + $0x9c] sm:$0xf]
      %v899 = vld [vmem:[%s858 + $0xa0] sm:$0xf]
      %v900 = vld [vmem:[%s858 + $0xa4] sm:$0xf]
      %v901 = vld [vmem:[%s858 + $0xa8] sm:$0xf]
      %v902 = vld [vmem:[%s858 + $0xac] sm:$0xf]
      %v903 = vld [vmem:[%s858 + $0xb0] sm:$0xf]
      %v904 = vld [vmem:[%s858 + $0xb4] sm:$0xf]
      %v905 = vld [vmem:[%s858 + $0xb8] sm:$0xf]
      %v906 = vld [vmem:[%s858 + $0xbc] sm:$0xf]
      %v921 = vunpack.c.l.b16 %v844
      %v922 = vunpack.c.h.b16 %v844
      %v923 = vunpack.c.l.b16 %v845
      %v924 = vunpack.c.l.b16 %v846
      %v925 = vunpack.c.h.b16 %v846
      %v926 = vunpack.c.l.b16 %v847
      %v927 = vunpack.c.l.b16 %v848
      %v928 = vunpack.c.h.b16 %v848
      %v929 = vunpack.c.l.b16 %v849
      %v930 = vunpack.c.l.b16 %v850
      %v931 = vunpack.c.h.b16 %v850
      %v932 = vunpack.c.l.b16 %v851
      %v933 = vunpack.c.l.b16 %v852
      %v934 = vunpack.c.h.b16 %v852
      %v935 = vunpack.c.l.b16 %v853
      %v936 = vunpack.c.l.b16 %v854
      %v937 = vunpack.c.h.b16 %v854
      %v938 = vunpack.c.l.b16 %v855
      %v939 = vunpack.c.l.b16 %v856
      %v940 = vunpack.c.h.b16 %v856
      %v941 = vunpack.c.l.b16 %v857
      %v942 = vpack.c.b16 %v924, %v921
      %v943 = vpack.c.b16 %v925, %v922
      %v944 = vpack.c.b16 %v926, %v923
      %v945 = vpack.c.b16 %v930, %v927
      %v946 = vpack.c.b16 %v931, %v928
      %v947 = vpack.c.b16 %v932, %v929
      %v948 = vpack.c.b16 %v936, %v933
      %v949 = vpack.c.b16 %v937, %v934
      %v950 = vpack.c.b16 %v938, %v935
      %v951 = vpack.c.b16 %v939, %v939
      %v952 = vpack.c.b16 %v940, %v940
      %v953 = vpack.c.b16 %v941, %v941
      %v1014 = vunpack.c.l.b16 %v859
      %v1015 = vunpack.c.l.b16 %v860
      %v1016 = vunpack.c.l.b16 %v861
      %v1017 = vunpack.c.l.b16 %v862
      %v1018 = vunpack.c.l.b16 %v863
      %v1019 = vunpack.c.l.b16 %v864
      %v1020 = vunpack.c.l.b16 %v865
      %v1021 = vunpack.c.l.b16 %v866
      %v1022 = vunpack.c.l.b16 %v867
      %v1023 = vunpack.c.l.b16 %v868
      %v1024 = vunpack.c.l.b16 %v869
      %v1025 = vunpack.c.l.b16 %v870
      %v1026 = vunpack.c.l.b16 %v871
      %v1027 = vunpack.c.l.b16 %v872
      %v1028 = vunpack.c.l.b16 %v873
      %v1029 = vunpack.c.l.b16 %v874
      %v1030 = vunpack.c.l.b16 %v875
      %v1031 = vunpack.c.l.b16 %v876
      %v1032 = vunpack.c.l.b16 %v877
      %v1033 = vunpack.c.l.b16 %v878
      %v1034 = vunpack.c.l.b16 %v879
      %v1035 = vunpack.c.l.b16 %v880
      %v1036 = vunpack.c.l.b16 %v881
      %v1037 = vunpack.c.l.b16 %v882
      %v1038 = vunpack.c.l.b16 %v883
      %v1039 = vunpack.c.l.b16 %v884
      %v1040 = vunpack.c.l.b16 %v885
      %v1041 = vunpack.c.l.b16 %v886
      %v1042 = vunpack.c.l.b16 %v887
      %v1043 = vunpack.c.l.b16 %v888
      %v1044 = vunpack.c.l.b16 %v889
      %v1045 = vunpack.c.l.b16 %v890
      %v1046 = vunpack.c.l.b16 %v891
      %v1047 = vunpack.c.l.b16 %v892
      %v1048 = vunpack.c.l.b16 %v893
      %v1049 = vunpack.c.l.b16 %v894
      %v1050 = vunpack.c.l.b16 %v895
      %v1051 = vunpack.c.l.b16 %v896
      %v1052 = vunpack.c.l.b16 %v897
      %v1053 = vunpack.c.l.b16 %v898
      %v1054 = vunpack.c.l.b16 %v899
      %v1055 = vunpack.c.l.b16 %v900
      %v1056 = vunpack.c.l.b16 %v901
      %v1057 = vunpack.c.l.b16 %v902
      %v1058 = vunpack.c.l.b16 %v903
      %v1059 = vunpack.c.l.b16 %v904
      %v1060 = vunpack.c.l.b16 %v905
      %v1061 = vunpack.c.l.b16 %v906
      %v1062 = vpack.c.b16 %v1015, %v1014
      %v1063 = vpack.c.b16 %v1017, %v1016
      %v1064 = vpack.c.b16 %v1019, %v1018
      %v1065 = vpack.c.b16 %v1021, %v1020
      %v1066 = vpack.c.b16 %v1023, %v1022
      %v1067 = vpack.c.b16 %v1025, %v1024
      %v1068 = vpack.c.b16 %v1027, %v1026
      %v1069 = vpack.c.b16 %v1029, %v1028
      %v1070 = vpack.c.b16 %v1031, %v1030
      %v1071 = vpack.c.b16 %v1033, %v1032
      %v1072 = vpack.c.b16 %v1035, %v1034
      %v1073 = vpack.c.b16 %v1037, %v1036
      %v1074 = vpack.c.b16 %v1039, %v1038
      %v1075 = vpack.c.b16 %v1041, %v1040
      %v1076 = vpack.c.b16 %v1043, %v1042
      %v1077 = vpack.c.b16 %v1045, %v1044
      %v1078 = vpack.c.b16 %v1047, %v1046
      %v1079 = vpack.c.b16 %v1049, %v1048
      %v1080 = vpack.c.b16 %v1051, %v1050
      %v1081 = vpack.c.b16 %v1053, %v1052
      %v1082 = vpack.c.b16 %v1055, %v1054
      %v1083 = vpack.c.b16 %v1057, %v1056
      %v1084 = vpack.c.b16 %v1059, %v1058
      %v1085 = vpack.c.b16 %v1061, %v1060
      %1110 = vmatprep.subr.bf16.mxu0 0
      %1111 = vmatpush1.bf16.msra.mxu0 %v1062
      %1112 = vmatprep.subr.bf16.mxu0 0
      %1113 = vmatpush1.bf16.msra.mxu0 %v1063
      %1114 = vmatprep.subr.bf16.mxu0 0
      %1115 = vmatpush1.bf16.msra.mxu0 %v1064
      %1116 = vmatprep.subr.bf16.mxu0 0
      %1117 = vmatpush1.bf16.msra.mxu0 %v1065
      %1118 = vmatprep.subr.bf16.mxu0 0
      %1119 = vmatpush1.bf16.msra.mxu0 %v1066
      %1120 = vmatprep.subr.bf16.mxu0 0
      %1121 = vmatpush1.bf16.msra.mxu0 %v1067
      %1122 = vmatprep.subr.bf16.mxu0 0
      %1123 = vmatpush1.bf16.msra.mxu0 %v1068
      %1124 = vmatprep.subr.bf16.mxu0 0
      %1125 = vmatpush1.bf16.msra.mxu0 %v1069
      %1126 = vmatprep.subr.bf16.mxu0 0
      %1127 = vmatpush1.bf16.msra.mxu0 %v1070
      %1128 = vmatprep.subr.bf16.mxu0 0
      %1129 = vmatpush1.bf16.msra.mxu0 %v1071
      %1130 = vmatprep.subr.bf16.mxu0 0
      %1131 = vmatpush1.bf16.msra.mxu0 %v1072
      %1132 = vmatprep.subr.bf16.mxu0 0
      %1133 = vmatpush1.bf16.msra.mxu0 %v1073
      %1134 = vmatprep.subr.bf16.mxu0 0
      %1135 = vmatpush1.bf16.msra.mxu0 %v1074
      %1136 = vmatprep.subr.bf16.mxu0 0
      %1137 = vmatpush1.bf16.msra.mxu0 %v1075
      %1138 = vmatprep.subr.bf16.mxu0 0
      %1139 = vmatpush1.bf16.msra.mxu0 %v1076
      %1140 = vmatprep.subr.bf16.mxu0 0
      %1141 = vmatpush1.bf16.msra.mxu0 %v1077
      %1142 = vmatprep.mubr.bf16.mxu0 %v943
      %1143 = vmatmul.mubr.bf16.gmra.mrb[0].mxu0 %v942
      %v1144 = vpop.f32.mrb[0].mxu0
      %v1145 = vadd.f32 0.0, %v1144
      %v1146 = vpop.f32.mrb[0].mxu0
      %v1147 = vpop.f32.mrb[0].mxu0
      %v1148 = vadd.f32 0.0, %v1147
      %v1149 = vpop.f32.mrb[0].mxu0
      %1150 = vmatprep.mubr.bf16.mxu0 %v946
      %1151 = vmatmul.mubr.bf16.gmra.mrb[0].mxu0 %v945
      %v1152 = vpop.f32.mrb[0].mxu0
      %v1153 = vadd.f32 0.0, %v1152
      %v1154 = vpop.f32.mrb[0].mxu0
      %v1155 = vpop.f32.mrb[0].mxu0
      %v1156 = vadd.f32 0.0, %v1155
      %v1157 = vpop.f32.mrb[0].mxu0
      %1158 = vmatprep.mubr.bf16.mxu0 %v949
      %1159 = vmatmul.mubr.bf16.gmra.mrb[0].mxu0 %v948
      %v1160 = vpop.f32.mrb[0].mxu0
      %v1161 = vadd.f32 0.0, %v1160
      %v1162 = vpop.f32.mrb[0].mxu0
      %v1163 = vpop.f32.mrb[0].mxu0
      %v1164 = vadd.f32 0.0, %v1163
      %v1165 = vpop.f32.mrb[0].mxu0
      %1166 = vmatprep.mubr.bf16.mxu0 %v952
      %1167 = vmatmul.mubr.bf16.gmra.mrb[0].mxu0 %v951
      %v1168 = vpop.f32.mrb[0].mxu0
      %v1169 = vadd.f32 0.0, %v1168
      %v1170 = vpop.f32.mrb[0].mxu0
      %v1171 = vpop.f32.mrb[0].mxu0
      %v1172 = vpop.f32.mrb[0].mxu0
      %1173 = vdwg.mxu0
      %1174 = vmatprep.subr.bf16.mxu0 0
      %1175 = vmatpush1.bf16.msra.mxu0 %v1078
      %1176 = vmatprep.subr.bf16.mxu0 0
      %1177 = vmatpush1.bf16.msra.mxu0 %v1079
      %1178 = vmatprep.subr.bf16.mxu0 0
      %1179 = vmatpush1.bf16.msra.mxu0 %v1080
      %1180 = vmatprep.subr.bf16.mxu0 0
      %1181 = vmatpush1.bf16.msra.mxu0 %v1081
      %1182 = vmatprep.subr.bf16.mxu0 0
      %1183 = vmatpush1.bf16.msra.mxu0 %v1082
      %1184 = vmatprep.subr.bf16.mxu0 0
      %1185 = vmatpush1.bf16.msra.mxu0 %v1083
      %1186 = vmatprep.subr.bf16.mxu0 0
      %1187 = vmatpush1.bf16.msra.mxu0 %v1084
      %1188 = vmatprep.subr.bf16.mxu0 0
      %1189 = vmatpush1.bf16.msra.mxu0 %v1085
      %1190 = vmatprep.subr.bf16.mxu0 0
      %1191 = vmatpush1.bf16.msra.mxu0 0
      %1192 = vmatprep.subr.bf16.mxu0 0
      %1193 = vmatpush1.bf16.msra.mxu0 0
      %1194 = vmatprep.subr.bf16.mxu0 0
      %1195 = vmatpush1.bf16.msra.mxu0 0
      %1196 = vmatprep.subr.bf16.mxu0 0
      %1197 = vmatpush1.bf16.msra.mxu0 0
      %1198 = vmatprep.subr.bf16.mxu0 0
      %1199 = vmatpush1.bf16.msra.mxu0 0
      %1200 = vmatprep.subr.bf16.mxu0 0
      %1201 = vmatpush1.bf16.msra.mxu0 0
      %1202 = vmatprep.subr.bf16.mxu0 0
      %1203 = vmatpush1.bf16.msra.mxu0 0
      %1204 = vmatprep.subr.bf16.mxu0 0
      %1205 = vmatpush1.bf16.msra.mxu0 0
      %1206 = vmatprep.mubr.bf16.mxu0 0
      %1207 = vmatmul.mubr.bf16.gmra.mrb[0].mxu0 %v944
      %v1208 = vpop.f32.mrb[0].mxu0
      %v1209 = vadd.f32 %v1145, %v1208
      %v1210 = vpop.f32.mrb[0].mxu0
      %v1211 = vpop.f32.mrb[0].mxu0
      %v1212 = vadd.f32 %v1148, %v1211
      %v1213 = vpop.f32.mrb[0].mxu0
      %1214 = vmatprep.mubr.bf16.mxu0 0
      %1215 = vmatmul.mubr.bf16.gmra.mrb[0].mxu0 %v947
      %v1216 = vpop.f32.mrb[0].mxu0
      %v1217 = vadd.f32 %v1153, %v1216
      %v1218 = vpop.f32.mrb[0].mxu0
      %v1219 = vpop.f32.mrb[0].mxu0
      %v1220 = vadd.f32 %v1156, %v1219
      %v1221 = vpop.f32.mrb[0].mxu0
      %1222 = vmatprep.mubr.bf16.mxu0 0
      %1223 = vmatmul.mubr.bf16.gmra.mrb[0].mxu0 %v950
      %v1224 = vpop.f32.mrb[0].mxu0
      %v1225 = vadd.f32 %v1161, %v1224
      %v1226 = vpop.f32.mrb[0].mxu0
      %v1227 = vpop.f32.mrb[0].mxu0
      %v1228 = vadd.f32 %v1164, %v1227
      %v1229 = vpop.f32.mrb[0].mxu0
      %1230 = vmatprep.mubr.bf16.mxu0 0
      %1231 = vmatmul.mubr.bf16.gmra.mrb[0].mxu0 %v953
      %v1232 = vpop.f32.mrb[0].mxu0
      %v1233 = vadd.f32 %v1169, %v1232
      %v1234 = vpop.f32.mrb[0].mxu0
      %v1235 = vpop.f32.mrb[0].mxu0
      %v1236 = vpop.f32.mrb[0].mxu0
      %1237 = vdwg.mxu0
      %v1252 = vunpack.c.l.b16 %v607
      %v1253 = vunpack.c.h.b16 %v607
      %v1254 = vunpack.c.l.b16 %v608
      %v1255 = vunpack.c.l.b16 %v609
      %v1256 = vunpack.c.h.b16 %v609
      %v1257 = vunpack.c.l.b16 %v610
      %v1258 = vunpack.c.l.b16 %v611
      %v1259 = vunpack.c.h.b16 %v611
      %v1260 = vunpack.c.l.b16 %v612
      %v1261 = vunpack.c.l.b16 %v613
      %v1262 = vunpack.c.h.b16 %v613
      %v1263 = vunpack.c.l.b16 %v614
      %v1264 = vunpack.c.l.b16 %v615
      %v1265 = vunpack.c.h.b16 %v615
      %v1266 = vunpack.c.l.b16 %v616
      %v1267 = vunpack.c.l.b16 %v617
      %v1268 = vunpack.c.h.b16 %v617
      %v1269 = vunpack.c.l.b16 %v618
      %v1270 = vunpack.c.l.b16 %v619
      %v1271 = vunpack.c.h.b16 %v619
      %v1272 = vunpack.c.l.b16 %v620
      %v1273 = vpack.c.b16 %v1255, %v1252
      %v1274 = vpack.c.b16 %v1256, %v1253
      %v1275 = vpack.c.b16 %v1257, %v1254
      %v1276 = vpack.c.b16 %v1261, %v1258
      %v1277 = vpack.c.b16 %v1262, %v1259
      %v1278 = vpack.c.b16 %v1263, %v1260
      %v1279 = vpack.c.b16 %v1267, %v1264
      %v1280 = vpack.c.b16 %v1268, %v1265
      %v1281 = vpack.c.b16 %v1269, %v1266
      %v1282 = vpack.c.b16 %v1270, %v1270
      %v1283 = vpack.c.b16 %v1271, %v1271
      %v1284 = vpack.c.b16 %v1272, %v1272
      %v1345 = vunpack.c.l.b16 %v621
      %v1346 = vunpack.c.l.b16 %v622
      %v1347 = vunpack.c.l.b16 %v623
      %v1348 = vunpack.c.l.b16 %v624
      %v1349 = vunpack.c.l.b16 %v625
      %v1350 = vunpack.c.l.b16 %v626
      %v1351 = vunpack.c.l.b16 %v627
      %v1352 = vunpack.c.l.b16 %v628
      %v1353 = vunpack.c.l.b16 %v629
      %v1354 = vunpack.c.l.b16 %v630
      %v1355 = vunpack.c.l.b16 %v631
      %v1356 = vunpack.c.l.b16 %v632
      %v1357 = vunpack.c.l.b16 %v633
      %v1358 = vunpack.c.l.b16 %v634
      %v1359 = vunpack.c.l.b16 %v635
      %v1360 = vunpack.c.l.b16 %v636
      %v1361 = vunpack.c.l.b16 %v637
      %v1362 = vunpack.c.l.b16 %v638
      %v1363 = vunpack.c.l.b16 %v639
      %v1364 = vunpack.c.l.b16 %v640
      %v1365 = vunpack.c.l.b16 %v641
      %v1366 = vunpack.c.l.b16 %v642
      %v1367 = vunpack.c.l.b16 %v643
      %v1368 = vunpack.c.l.b16 %v644
      %v1369 = vunpack.c.l.b16 %v645
      %v1370 = vunpack.c.l.b16 %v646
      %v1371 = vunpack.c.l.b16 %v647
      %v1372 = vunpack.c.l.b16 %v648
      %v1373 = vunpack.c.l.b16 %v649
      %v1374 = vunpack.c.l.b16 %v650
      %v1375 = vunpack.c.l.b16 %v651
      %v1376 = vunpack.c.l.b16 %v652
      %v1377 = vunpack.c.l.b16 %v653
      %v1378 = vunpack.c.l.b16 %v654
      %v1379 = vunpack.c.l.b16 %v655
      %v1380 = vunpack.c.l.b16 %v656
      %v1381 = vunpack.c.l.b16 %v657
      %v1382 = vunpack.c.l.b16 %v658
      %v1383 = vunpack.c.l.b16 %v659
      %v1384 = vunpack.c.l.b16 %v660
      %v1385 = vunpack.c.l.b16 %v661
      %v1386 = vunpack.c.l.b16 %v662
      %v1387 = vunpack.c.l.b16 %v663
      %v1388 = vunpack.c.l.b16 %v664
      %v1389 = vunpack.c.l.b16 %v665
      %v1390 = vunpack.c.l.b16 %v666
      %v1391 = vunpack.c.l.b16 %v667
      %v1392 = vunpack.c.l.b16 %v668
      %v1393 = vpack.c.b16 %v1346, %v1345
      %v1394 = vpack.c.b16 %v1348, %v1347
      %v1395 = vpack.c.b16 %v1350, %v1349
      %v1396 = vpack.c.b16 %v1352, %v1351
      %v1397 = vpack.c.b16 %v1354, %v1353
      %v1398 = vpack.c.b16 %v1356, %v1355
      %v1399 = vpack.c.b16 %v1358, %v1357
      %v1400 = vpack.c.b16 %v1360, %v1359
      %v1401 = vpack.c.b16 %v1362, %v1361
      %v1402 = vpack.c.b16 %v1364, %v1363
      %v1403 = vpack.c.b16 %v1366, %v1365
      %v1404 = vpack.c.b16 %v1368, %v1367
      %v1405 = vpack.c.b16 %v1370, %v1369
      %v1406 = vpack.c.b16 %v1372, %v1371
      %v1407 = vpack.c.b16 %v1374, %v1373
      %v1408 = vpack.c.b16 %v1376, %v1375
      %v1409 = vpack.c.b16 %v1378, %v1377
      %v1410 = vpack.c.b16 %v1380, %v1379
      %v1411 = vpack.c.b16 %v1382, %v1381
      %v1412 = vpack.c.b16 %v1384, %v1383
      %v1413 = vpack.c.b16 %v1386, %v1385
      %v1414 = vpack.c.b16 %v1388, %v1387
      %v1415 = vpack.c.b16 %v1390, %v1389
      %v1416 = vpack.c.b16 %v1392, %v1391
      %1441 = vmatprep.subr.bf16.mxu0 0
      %1442 = vmatpush1.bf16.msra.mxu0 %v1393
      %1443 = vmatprep.subr.bf16.mxu0 0
      %1444 = vmatpush1.bf16.msra.mxu0 %v1394
      %1445 = vmatprep.subr.bf16.mxu0 0
      %1446 = vmatpush1.bf16.msra.mxu0 %v1395
      %1447 = vmatprep.subr.bf16.mxu0 0
      %1448 = vmatpush1.bf16.msra.mxu0 %v1396
      %1449 = vmatprep.subr.bf16.mxu0 0
      %1450 = vmatpush1.bf16.msra.mxu0 %v1397
      %1451 = vmatprep.subr.bf16.mxu0 0
      %1452 = vmatpush1.bf16.msra.mxu0 %v1398
      %1453 = vmatprep.subr.bf16.mxu0 0
      %1454 = vmatpush1.bf16.msra.mxu0 %v1399
      %1455 = vmatprep.subr.bf16.mxu0 0
      %1456 = vmatpush1.bf16.msra.mxu0 %v1400
      %1457 = vmatprep.subr.bf16.mxu0 0
      %1458 = vmatpush1.bf16.msra.mxu0 %v1401
      %1459 = vmatprep.subr.bf16.mxu0 0
      %1460 = vmatpush1.bf16.msra.mxu0 %v1402
      %1461 = vmatprep.subr.bf16.mxu0 0
      %1462 = vmatpush1.bf16.msra.mxu0 %v1403
      %1463 = vmatprep.subr.bf16.mxu0 0
      %1464 = vmatpush1.bf16.msra.mxu0 %v1404
      %1465 = vmatprep.subr.bf16.mxu0 0
      %1466 = vmatpush1.bf16.msra.mxu0 %v1405
      %1467 = vmatprep.subr.bf16.mxu0 0
      %1468 = vmatpush1.bf16.msra.mxu0 %v1406
      %1469 = vmatprep.subr.bf16.mxu0 0
      %1470 = vmatpush1.bf16.msra.mxu0 %v1407
      %1471 = vmatprep.subr.bf16.mxu0 0
      %1472 = vmatpush1.bf16.msra.mxu0 %v1408
      %1473 = vmatprep.mubr.bf16.mxu0 %v1274
      %1474 = vmatmul.mubr.bf16.gmra.mrb[0].mxu0 %v1273
      %v1475 = vpop.f32.mrb[0].mxu0
      %v1476 = vadd.f32 %v1209, %v1475
      %v1477 = vpop.f32.mrb[0].mxu0
      %v1478 = vpop.f32.mrb[0].mxu0
      %v1479 = vadd.f32 %v1212, %v1478
      %v1480 = vpop.f32.mrb[0].mxu0
      %1481 = vmatprep.mubr.bf16.mxu0 %v1277
      %1482 = vmatmul.mubr.bf16.gmra.mrb[0].mxu0 %v1276
      %v1483 = vpop.f32.mrb[0].mxu0
      %v1484 = vadd.f32 %v1217, %v1483
      %v1485 = vpop.f32.mrb[0].mxu0
      %v1486 = vpop.f32.mrb[0].mxu0
      %v1487 = vadd.f32 %v1220, %v1486
      %v1488 = vpop.f32.mrb[0].mxu0
      %1489 = vmatprep.mubr.bf16.mxu0 %v1280
      %1490 = vmatmul.mubr.bf16.gmra.mrb[0].mxu0 %v1279
      %v1491 = vpop.f32.mrb[0].mxu0
      %v1492 = vadd.f32 %v1225, %v1491
      %v1493 = vpop.f32.mrb[0].mxu0
      %v1494 = vpop.f32.mrb[0].mxu0
      %v1495 = vadd.f32 %v1228, %v1494
      %v1496 = vpop.f32.mrb[0].mxu0
      %1497 = vmatprep.mubr.bf16.mxu0 %v1283
      %1498 = vmatmul.mubr.bf16.gmra.mrb[0].mxu0 %v1282
      %v1499 = vpop.f32.mrb[0].mxu0
      %v1500 = vadd.f32 %v1233, %v1499
      %v1501 = vpop.f32.mrb[0].mxu0
      %v1502 = vpop.f32.mrb[0].mxu0
      %v1503 = vpop.f32.mrb[0].mxu0
      %1504 = vdwg.mxu0
      %1505 = vmatprep.subr.bf16.mxu0 0
      %1506 = vmatpush1.bf16.msra.mxu0 %v1409
      %1507 = vmatprep.subr.bf16.mxu0 0
      %1508 = vmatpush1.bf16.msra.mxu0 %v1410
      %1509 = vmatprep.subr.bf16.mxu0 0
      %1510 = vmatpush1.bf16.msra.mxu0 %v1411
      %1511 = vmatprep.subr.bf16.mxu0 0
      %1512 = vmatpush1.bf16.msra.mxu0 %v1412
      %1513 = vmatprep.subr.bf16.mxu0 0
      %1514 = vmatpush1.bf16.msra.mxu0 %v1413
      %1515 = vmatprep.subr.bf16.mxu0 0
      %1516 = vmatpush1.bf16.msra.mxu0 %v1414
      %1517 = vmatprep.subr.bf16.mxu0 0
      %1518 = vmatpush1.bf16.msra.mxu0 %v1415
      %1519 = vmatprep.subr.bf16.mxu0 0
      %1520 = vmatpush1.bf16.msra.mxu0 %v1416
      %1521 = vmatprep.subr.bf16.mxu0 0
      %1522 = vmatpush1.bf16.msra.mxu0 0
      %1523 = vmatprep.subr.bf16.mxu0 0
      %1524 = vmatpush1.bf16.msra.mxu0 0
      %1525 = vmatprep.subr.bf16.mxu0 0
      %1526 = vmatpush1.bf16.msra.mxu0 0
      %1527 = vmatprep.subr.bf16.mxu0 0
      %1528 = vmatpush1.bf16.msra.mxu0 0
      %1529 = vmatprep.subr.bf16.mxu0 0
      %1530 = vmatpush1.bf16.msra.mxu0 0
      %1531 = vmatprep.subr.bf16.mxu0 0
      %1532 = vmatpush1.bf16.msra.mxu0 0
      %1533 = vmatprep.subr.bf16.mxu0 0
      %1534 = vmatpush1.bf16.msra.mxu0 0
      %1535 = vmatprep.subr.bf16.mxu0 0
      %1536 = vmatpush1.bf16.msra.mxu0 0
      %1537 = vmatprep.mubr.bf16.mxu0 0
      %1538 = vmatmul.mubr.bf16.gmra.mrb[0].mxu0 %v1275
      %v1539 = vpop.f32.mrb[0].mxu0
      %v1540 = vadd.f32 %v1476, %v1539
      %v1541 = vpop.f32.mrb[0].mxu0
      %v1542 = vpop.f32.mrb[0].mxu0
      %v1543 = vadd.f32 %v1479, %v1542
      %v1544 = vpop.f32.mrb[0].mxu0
      %1545 = vmatprep.mubr.bf16.mxu0 0
      %1546 = vmatmul.mubr.bf16.gmra.mrb[0].mxu0 %v1278
      %v1547 = vpop.f32.mrb[0].mxu0
      %v1548 = vadd.f32 %v1484, %v1547
      %v1549 = vpop.f32.mrb[0].mxu0
      %v1550 = vpop.f32.mrb[0].mxu0
      %v1551 = vadd.f32 %v1487, %v1550
      %v1552 = vpop.f32.mrb[0].mxu0
      %1553 = vmatprep.mubr.bf16.mxu0 0
      %1554 = vmatmul.mubr.bf16.gmra.mrb[0].mxu0 %v1281
      %v1555 = vpop.f32.mrb[0].mxu0
      %v1556 = vadd.f32 %v1492, %v1555
      %v1557 = vpop.f32.mrb[0].mxu0
      %v1558 = vpop.f32.mrb[0].mxu0
      %v1559 = vadd.f32 %v1495, %v1558
      %v1560 = vpop.f32.mrb[0].mxu0
      %1561 = vmatprep.mubr.bf16.mxu0 0
      %1562 = vmatmul.mubr.bf16.gmra.mrb[0].mxu0 %v1284
      %v1563 = vpop.f32.mrb[0].mxu0
      %v1564 = vadd.f32 %v1500, %v1563
      %v1565 = vpop.f32.mrb[0].mxu0
      %v1566 = vpop.f32.mrb[0].mxu0
      %v1567 = vpop.f32.mrb[0].mxu0
      %1568 = vdwg.mxu0
      %v1571 = vunpack.c.l.b16 %v424
      %v1572 = vunpack.c.l.b16 %v425
      %v1573 = vpack.c.b16 %v1572, %v1571
      %1575 = vst [vmem:[#allocation2] sm:$0xff] %v455
      %1576 = vst [vmem:[#allocation2 + $0xc] sm:$0xff] %v456
      %1577 = vst [vmem:[#allocation2 + $0x18] sm:$0xff] %v457
      %1578 = vst [vmem:[#allocation2 + $0x24] sm:$0xff] %v458
      %1579 = vst [vmem:[#allocation2 + $0x30] sm:$0xff] %v459
      %1580 = vst [vmem:[#allocation2 + $0x3c] sm:$0xff] %v460
      %1581 = vst [vmem:[#allocation2 + $0x48] sm:$0xff] %v1573
      %v1582 = vpack.c.b16 %v1571, %v1571
      %v1584 = vshrl.u32 %v1582, 16
      %v1586 = vrot.slane %v1584, 4
      %v1587 = vshll.u32 %v1582, 16
      %v1589 = vrot.slane %v1587, 5
      %v1590 = vor.u32 %v1586, %v1589
      %v1591 = vrot.slane %v1590, 4
      %v1593 = vld [vmem:[#allocation2 + $0x8] sm:$0xf]
      %v1594 = vsel %vm554, %v499, %v1593
      %1595 = vst [vmem:[#allocation2 + $0x8] sm:$0xf] %v1594
      %v1596 = vld [vmem:[#allocation2 + $0x14] sm:$0xf]
      %v1597 = vsel %vm554, %v508, %v1596
      %1598 = vst [vmem:[#allocation2 + $0x14] sm:$0xf] %v1597
      %v1599 = vld [vmem:[#allocation2 + $0x20] sm:$0xf]
      %v1600 = vsel %vm554, %v517, %v1599
      %1601 = vst [vmem:[#allocation2 + $0x20] sm:$0xf] %v1600
      %v1602 = vld [vmem:[#allocation2 + $0x2c] sm:$0xf]
      %v1603 = vsel %vm554, %v526, %v1602
      %1604 = vst [vmem:[#allocation2 + $0x2c] sm:$0xf] %v1603
      %v1605 = vld [vmem:[#allocation2 + $0x38] sm:$0xf]
      %v1606 = vsel %vm554, %v535, %v1605
      %1607 = vst [vmem:[#allocation2 + $0x38] sm:$0xf] %v1606
      %v1608 = vld [vmem:[#allocation2 + $0x44] sm:$0xf]
      %v1609 = vsel %vm554, %v544, %v1608
      %1610 = vst [vmem:[#allocation2 + $0x44] sm:$0xf] %v1609
      %v1611 = vld [vmem:[#allocation2 + $0x50] sm:$0xf]
      %v1612 = vsel %vm554, %v1591, %v1611
      %1613 = vst [vmem:[#allocation2 + $0x50] sm:$0xf] %v1612
      %v1615 = vld [vmem:[#allocation2 + $0x8] sm:$0x8]
      %v1616 = vsel %vm585, %v497, %v1615
      %1617 = vst [vmem:[#allocation2 + $0x8] sm:$0x8] %v1616
      %v1618 = vld [vmem:[#allocation2 + $0x14] sm:$0x8]
      %v1619 = vsel %vm585, %v506, %v1618
      %1620 = vst [vmem:[#allocation2 + $0x14] sm:$0x8] %v1619
      %v1621 = vld [vmem:[#allocation2 + $0x20] sm:$0x8]
      %v1622 = vsel %vm585, %v515, %v1621
      %1623 = vst [vmem:[#allocation2 + $0x20] sm:$0x8] %v1622
      %v1624 = vld [vmem:[#allocation2 + $0x2c] sm:$0x8]
      %v1625 = vsel %vm585, %v524, %v1624
      %1626 = vst [vmem:[#allocation2 + $0x2c] sm:$0x8] %v1625
      %v1627 = vld [vmem:[#allocation2 + $0x38] sm:$0x8]
      %v1628 = vsel %vm585, %v533, %v1627
      %1629 = vst [vmem:[#allocation2 + $0x38] sm:$0x8] %v1628
      %v1630 = vld [vmem:[#allocation2 + $0x44] sm:$0x8]
      %v1631 = vsel %vm585, %v542, %v1630
      %1632 = vst [vmem:[#allocation2 + $0x44] sm:$0x8] %v1631
      %v1633 = vld [vmem:[#allocation2 + $0x50] sm:$0x8]
      %v1634 = vsel %vm585, %v1589, %v1633
      %1635 = vst [vmem:[#allocation2 + $0x50] sm:$0x8] %v1634
      %v1636 = vld [vmem:[#allocation2] sm:$0xff]
      %v1637 = vld [vmem:[#allocation2 + $0x8] sm:$0xf]
      %v1638 = vld [vmem:[#allocation2 + $0xc] sm:$0xff]
      %v1639 = vld [vmem:[#allocation2 + $0x14] sm:$0xf]
      %v1640 = vld [vmem:[#allocation2 + $0x18] sm:$0xff]
      %v1641 = vld [vmem:[#allocation2 + $0x20] sm:$0xf]
      %v1642 = vld [vmem:[#allocation2 + $0x24] sm:$0xff]
      %v1643 = vld [vmem:[#allocation2 + $0x2c] sm:$0xf]
      %v1644 = vld [vmem:[#allocation2 + $0x30] sm:$0xff]
      %v1645 = vld [vmem:[#allocation2 + $0x38] sm:$0xf]
      %v1646 = vld [vmem:[#allocation2 + $0x3c] sm:$0xff]
      %v1647 = vld [vmem:[#allocation2 + $0x44] sm:$0xf]
      %v1648 = vld [vmem:[#allocation2 + $0x48] sm:$0xff]
      %v1649 = vld [vmem:[#allocation2 + $0x50] sm:$0xf]
      %s1650 = scalar_lea.vmem %s3, 384
      %v1651 = vld [vmem:[%s1650] sm:$0xf]
      %v1652 = vld [vmem:[%s1650 + $0x4] sm:$0xf]
      %v1653 = vld [vmem:[%s1650 + $0x8] sm:$0xf]
      %v1654 = vld [vmem:[%s1650 + $0xc] sm:$0xf]
      %v1655 = vld [vmem:[%s1650 + $0x10] sm:$0xf]
      %v1656 = vld [vmem:[%s1650 + $0x14] sm:$0xf]
      %v1657 = vld [vmem:[%s1650 + $0x18] sm:$0xf]
      %v1658 = vld [vmem:[%s1650 + $0x1c] sm:$0xf]
      %v1659 = vld [vmem:[%s1650 + $0x20] sm:$0xf]
      %v1660 = vld [vmem:[%s1650 + $0x24] sm:$0xf]
      %v1661 = vld [vmem:[%s1650 + $0x28] sm:$0xf]
      %v1662 = vld [vmem:[%s1650 + $0x2c] sm:$0xf]
      %v1663 = vld [vmem:[%s1650 + $0x30] sm:$0xf]
      %v1664 = vld [vmem:[%s1650 + $0x34] sm:$0xf]
      %v1665 = vld [vmem:[%s1650 + $0x38] sm:$0xf]
      %v1666 = vld [vmem:[%s1650 + $0x3c] sm:$0xf]
      %v1667 = vld [vmem:[%s1650 + $0x40] sm:$0xf]
      %v1668 = vld [vmem:[%s1650 + $0x44] sm:$0xf]
      %v1669 = vld [vmem:[%s1650 + $0x48] sm:$0xf]
      %v1670 = vld [vmem:[%s1650 + $0x4c] sm:$0xf]
      %v1671 = vld [vmem:[%s1650 + $0x50] sm:$0xf]
      %v1672 = vld [vmem:[%s1650 + $0x54] sm:$0xf]
      %v1673 = vld [vmem:[%s1650 + $0x58] sm:$0xf]
      %v1674 = vld [vmem:[%s1650 + $0x5c] sm:$0xf]
      %v1675 = vld [vmem:[%s1650 + $0x60] sm:$0xf]
      %v1676 = vld [vmem:[%s1650 + $0x64] sm:$0xf]
      %v1677 = vld [vmem:[%s1650 + $0x68] sm:$0xf]
      %v1678 = vld [vmem:[%s1650 + $0x6c] sm:$0xf]
      %v1679 = vld [vmem:[%s1650 + $0x70] sm:$0xf]
      %v1680 = vld [vmem:[%s1650 + $0x74] sm:$0xf]
      %v1681 = vld [vmem:[%s1650 + $0x78] sm:$0xf]
      %v1682 = vld [vmem:[%s1650 + $0x7c] sm:$0xf]
      %v1683 = vld [vmem:[%s1650 + $0x80] sm:$0xf]
      %v1684 = vld [vmem:[%s1650 + $0x84] sm:$0xf]
      %v1685 = vld [vmem:[%s1650 + $0x88] sm:$0xf]
      %v1686 = vld [vmem:[%s1650 + $0x8c] sm:$0xf]
      %v1687 = vld [vmem:[%s1650 + $0x90] sm:$0xf]
      %v1688 = vld [vmem:[%s1650 + $0x94] sm:$0xf]
      %v1689 = vld [vmem:[%s1650 + $0x98] sm:$0xf]
      %v1690 = vld [vmem:[%s1650 + $0x9c] sm:$0xf]
      %v1691 = vld [vmem:[%s1650 + $0xa0] sm:$0xf]
      %v1692 = vld [vmem:[%s1650 + $0xa4] sm:$0xf]
      %v1693 = vld [vmem:[%s1650 + $0xa8] sm:$0xf]
      %v1694 = vld [vmem:[%s1650 + $0xac] sm:$0xf]
      %v1695 = vld [vmem:[%s1650 + $0xb0] sm:$0xf]
      %v1696 = vld [vmem:[%s1650 + $0xb4] sm:$0xf]
      %v1697 = vld [vmem:[%s1650 + $0xb8] sm:$0xf]
      %v1698 = vld [vmem:[%s1650 + $0xbc] sm:$0xf]
      %v1713 = vunpack.c.l.b16 %v1636
      %v1714 = vunpack.c.h.b16 %v1636
      %v1715 = vunpack.c.l.b16 %v1637
      %v1716 = vunpack.c.l.b16 %v1638
      %v1717 = vunpack.c.h.b16 %v1638
      %v1718 = vunpack.c.l.b16 %v1639
      %v1719 = vunpack.c.l.b16 %v1640
      %v1720 = vunpack.c.h.b16 %v1640
      %v1721 = vunpack.c.l.b16 %v1641
      %v1722 = vunpack.c.l.b16 %v1642
      %v1723 = vunpack.c.h.b16 %v1642
      %v1724 = vunpack.c.l.b16 %v1643
      %v1725 = vunpack.c.l.b16 %v1644
      %v1726 = vunpack.c.h.b16 %v1644
      %v1727 = vunpack.c.l.b16 %v1645
      %v1728 = vunpack.c.l.b16 %v1646
      %v1729 = vunpack.c.h.b16 %v1646
      %v1730 = vunpack.c.l.b16 %v1647
      %v1731 = vunpack.c.l.b16 %v1648
      %v1732 = vunpack.c.h.b16 %v1648
      %v1733 = vunpack.c.l.b16 %v1649
      %v1734 = vpack.c.b16 %v1716, %v1713
      %v1735 = vpack.c.b16 %v1717, %v1714
      %v1736 = vpack.c.b16 %v1718, %v1715
      %v1737 = vpack.c.b16 %v1722, %v1719
      %v1738 = vpack.c.b16 %v1723, %v1720
      %v1739 = vpack.c.b16 %v1724, %v1721
      %v1740 = vpack.c.b16 %v1728, %v1725
      %v1741 = vpack.c.b16 %v1729, %v1726
      %v1742 = vpack.c.b16 %v1730, %v1727
      %v1743 = vpack.c.b16 %v1731, %v1731
      %v1744 = vpack.c.b16 %v1732, %v1732
      %v1745 = vpack.c.b16 %v1733, %v1733
      %v1806 = vunpack.c.l.b16 %v1651
      %v1807 = vunpack.c.l.b16 %v1652
      %v1808 = vunpack.c.l.b16 %v1653
      %v1809 = vunpack.c.l.b16 %v1654
      %v1810 = vunpack.c.l.b16 %v1655
      %v1811 = vunpack.c.l.b16 %v1656
      %v1812 = vunpack.c.l.b16 %v1657
      %v1813 = vunpack.c.l.b16 %v1658
      %v1814 = vunpack.c.l.b16 %v1659
      %v1815 = vunpack.c.l.b16 %v1660
      %v1816 = vunpack.c.l.b16 %v1661
      %v1817 = vunpack.c.l.b16 %v1662
      %v1818 = vunpack.c.l.b16 %v1663
      %v1819 = vunpack.c.l.b16 %v1664
      %v1820 = vunpack.c.l.b16 %v1665
      %v1821 = vunpack.c.l.b16 %v1666
      %v1822 = vunpack.c.l.b16 %v1667
      %v1823 = vunpack.c.l.b16 %v1668
      %v1824 = vunpack.c.l.b16 %v1669
      %v1825 = vunpack.c.l.b16 %v1670
      %v1826 = vunpack.c.l.b16 %v1671
      %v1827 = vunpack.c.l.b16 %v1672
      %v1828 = vunpack.c.l.b16 %v1673
      %v1829 = vunpack.c.l.b16 %v1674
      %v1830 = vunpack.c.l.b16 %v1675
      %v1831 = vunpack.c.l.b16 %v1676
      %v1832 = vunpack.c.l.b16 %v1677
      %v1833 = vunpack.c.l.b16 %v1678
      %v1834 = vunpack.c.l.b16 %v1679
      %v1835 = vunpack.c.l.b16 %v1680
      %v1836 = vunpack.c.l.b16 %v1681
      %v1837 = vunpack.c.l.b16 %v1682
      %v1838 = vunpack.c.l.b16 %v1683
      %v1839 = vunpack.c.l.b16 %v1684
      %v1840 = vunpack.c.l.b16 %v1685
      %v1841 = vunpack.c.l.b16 %v1686
      %v1842 = vunpack.c.l.b16 %v1687
      %v1843 = vunpack.c.l.b16 %v1688
      %v1844 = vunpack.c.l.b16 %v1689
      %v1845 = vunpack.c.l.b16 %v1690
      %v1846 = vunpack.c.l.b16 %v1691
      %v1847 = vunpack.c.l.b16 %v1692
      %v1848 = vunpack.c.l.b16 %v1693
      %v1849 = vunpack.c.l.b16 %v1694
      %v1850 = vunpack.c.l.b16 %v1695
      %v1851 = vunpack.c.l.b16 %v1696
      %v1852 = vunpack.c.l.b16 %v1697
      %v1853 = vunpack.c.l.b16 %v1698
      %v1854 = vpack.c.b16 %v1807, %v1806
      %v1855 = vpack.c.b16 %v1809, %v1808
      %v1856 = vpack.c.b16 %v1811, %v1810
      %v1857 = vpack.c.b16 %v1813, %v1812
      %v1858 = vpack.c.b16 %v1815, %v1814
      %v1859 = vpack.c.b16 %v1817, %v1816
      %v1860 = vpack.c.b16 %v1819, %v1818
      %v1861 = vpack.c.b16 %v1821, %v1820
      %v1862 = vpack.c.b16 %v1823, %v1822
      %v1863 = vpack.c.b16 %v1825, %v1824
      %v1864 = vpack.c.b16 %v1827, %v1826
      %v1865 = vpack.c.b16 %v1829, %v1828
      %v1866 = vpack.c.b16 %v1831, %v1830
      %v1867 = vpack.c.b16 %v1833, %v1832
      %v1868 = vpack.c.b16 %v1835, %v1834
      %v1869 = vpack.c.b16 %v1837, %v1836
      %v1870 = vpack.c.b16 %v1839, %v1838
      %v1871 = vpack.c.b16 %v1841, %v1840
      %v1872 = vpack.c.b16 %v1843, %v1842
      %v1873 = vpack.c.b16 %v1845, %v1844
      %v1874 = vpack.c.b16 %v1847, %v1846
      %v1875 = vpack.c.b16 %v1849, %v1848
      %v1876 = vpack.c.b16 %v1851, %v1850
      %v1877 = vpack.c.b16 %v1853, %v1852
      %1902 = vmatprep.subr.bf16.mxu0 0
      %1903 = vmatpush1.bf16.msra.mxu0 %v1854
      %1904 = vmatprep.subr.bf16.mxu0 0
      %1905 = vmatpush1.bf16.msra.mxu0 %v1855
      %1906 = vmatprep.subr.bf16.mxu0 0
      %1907 = vmatpush1.bf16.msra.mxu0 %v1856
      %1908 = vmatprep.subr.bf16.mxu0 0
      %1909 = vmatpush1.bf16.msra.mxu0 %v1857
      %1910 = vmatprep.subr.bf16.mxu0 0
      %1911 = vmatpush1.bf16.msra.mxu0 %v1858
      %1912 = vmatprep.subr.bf16.mxu0 0
      %1913 = vmatpush1.bf16.msra.mxu0 %v1859
      %1914 = vmatprep.subr.bf16.mxu0 0
      %1915 = vmatpush1.bf16.msra.mxu0 %v1860
      %1916 = vmatprep.subr.bf16.mxu0 0
      %1917 = vmatpush1.bf16.msra.mxu0 %v1861
      %1918 = vmatprep.subr.bf16.mxu0 0
      %1919 = vmatpush1.bf16.msra.mxu0 %v1862
      %1920 = vmatprep.subr.bf16.mxu0 0
      %1921 = vmatpush1.bf16.msra.mxu0 %v1863
      %1922 = vmatprep.subr.bf16.mxu0 0
      %1923 = vmatpush1.bf16.msra.mxu0 %v1864
      %1924 = vmatprep.subr.bf16.mxu0 0
      %1925 = vmatpush1.bf16.msra.mxu0 %v1865
      %1926 = vmatprep.subr.bf16.mxu0 0
      %1927 = vmatpush1.bf16.msra.mxu0 %v1866
      %1928 = vmatprep.subr.bf16.mxu0 0
      %1929 = vmatpush1.bf16.msra.mxu0 %v1867
      %1930 = vmatprep.subr.bf16.mxu0 0
      %1931 = vmatpush1.bf16.msra.mxu0 %v1868
      %1932 = vmatprep.subr.bf16.mxu0 0
      %1933 = vmatpush1.bf16.msra.mxu0 %v1869
      %1934 = vmatprep.mubr.bf16.mxu0 %v1735
      %1935 = vmatmul.mubr.bf16.gmra.mrb[0].mxu0 %v1734
      %v1936 = vpop.f32.mrb[0].mxu0
      %v1937 = vadd.f32 0.0, %v1936
      %v1938 = vpop.f32.mrb[0].mxu0
      %v1939 = vpop.f32.mrb[0].mxu0
      %v1940 = vadd.f32 0.0, %v1939
      %v1941 = vpop.f32.mrb[0].mxu0
      %1942 = vmatprep.mubr.bf16.mxu0 %v1738
      %1943 = vmatmul.mubr.bf16.gmra.mrb[0].mxu0 %v1737
      %v1944 = vpop.f32.mrb[0].mxu0
      %v1945 = vadd.f32 0.0, %v1944
      %v1946 = vpop.f32.mrb[0].mxu0
      %v1947 = vpop.f32.mrb[0].mxu0
      %v1948 = vadd.f32 0.0, %v1947
      %v1949 = vpop.f32.mrb[0].mxu0
      %1950 = vmatprep.mubr.bf16.mxu0 %v1741
      %1951 = vmatmul.mubr.bf16.gmra.mrb[0].mxu0 %v1740
      %v1952 = vpop.f32.mrb[0].mxu0
      %v1953 = vadd.f32 0.0, %v1952
      %v1954 = vpop.f32.mrb[0].mxu0
      %v1955 = vpop.f32.mrb[0].mxu0
      %v1956 = vadd.f32 0.0, %v1955
      %v1957 = vpop.f32.mrb[0].mxu0
      %1958 = vmatprep.mubr.bf16.mxu0 %v1744
      %1959 = vmatmul.mubr.bf16.gmra.mrb[0].mxu0 %v1743
      %v1960 = vpop.f32.mrb[0].mxu0
      %v1961 = vadd.f32 0.0, %v1960
      %v1962 = vpop.f32.mrb[0].mxu0
      %v1963 = vpop.f32.mrb[0].mxu0
      %v1964 = vpop.f32.mrb[0].mxu0
      %1965 = vdwg.mxu0
      %1966 = vmatprep.subr.bf16.mxu0 0
      %1967 = vmatpush1.bf16.msra.mxu0 %v1870
      %1968 = vmatprep.subr.bf16.mxu0 0
      %1969 = vmatpush1.bf16.msra.mxu0 %v1871
      %1970 = vmatprep.subr.bf16.mxu0 0
      %1971 = vmatpush1.bf16.msra.mxu0 %v1872
      %1972 = vmatprep.subr.bf16.mxu0 0
      %1973 = vmatpush1.bf16.msra.mxu0 %v1873
      %1974 = vmatprep.subr.bf16.mxu0 0
      %1975 = vmatpush1.bf16.msra.mxu0 %v1874
      %1976 = vmatprep.subr.bf16.mxu0 0
      %1977 = vmatpush1.bf16.msra.mxu0 %v1875
      %1978 = vmatprep.subr.bf16.mxu0 0
      %1979 = vmatpush1.bf16.msra.mxu0 %v1876
      %1980 = vmatprep.subr.bf16.mxu0 0
      %1981 = vmatpush1.bf16.msra.mxu0 %v1877
      %1982 = vmatprep.subr.bf16.mxu0 0
      %1983 = vmatpush1.bf16.msra.mxu0 0
      %1984 = vmatprep.subr.bf16.mxu0 0
      %1985 = vmatpush1.bf16.msra.mxu0 0
      %1986 = vmatprep.subr.bf16.mxu0 0
      %1987 = vmatpush1.bf16.msra.mxu0 0
      %1988 = vmatprep.subr.bf16.mxu0 0
      %1989 = vmatpush1.bf16.msra.mxu0 0
      %1990 = vmatprep.subr.bf16.mxu0 0
      %1991 = vmatpush1.bf16.msra.mxu0 0
      %1992 = vmatprep.subr.bf16.mxu0 0
      %1993 = vmatpush1.bf16.msra.mxu0 0
      %1994 = vmatprep.subr.bf16.mxu0 0
      %1995 = vmatpush1.bf16.msra.mxu0 0
      %1996 = vmatprep.subr.bf16.mxu0 0
      %1997 = vmatpush1.bf16.msra.mxu0 0
      %1998 = vmatprep.mubr.bf16.mxu0 0
      %1999 = vmatmul.mubr.bf16.gmra.mrb[0].mxu0 %v1736
      %v2000 = vpop.f32.mrb[0].mxu0
      %v2001 = vadd.f32 %v1937, %v2000
      %v2002 = vpop.f32.mrb[0].mxu0
      %v2003 = vpop.f32.mrb[0].mxu0
      %v2004 = vadd.f32 %v1940, %v2003
      %v2005 = vpop.f32.mrb[0].mxu0
      %2006 = vmatprep.mubr.bf16.mxu0 0
      %2007 = vmatmul.mubr.bf16.gmra.mrb[0].mxu0 %v1739
      %v2008 = vpop.f32.mrb[0].mxu0
      %v2009 = vadd.f32 %v1945, %v2008
      %v2010 = vpop.f32.mrb[0].mxu0
      %v2011 = vpop.f32.mrb[0].mxu0
      %v2012 = vadd.f32 %v1948, %v2011
      %v2013 = vpop.f32.mrb[0].mxu0
      %2014 = vmatprep.mubr.bf16.mxu0 0
      %2015 = vmatmul.mubr.bf16.gmra.mrb[0].mxu0 %v1742
      %v2016 = vpop.f32.mrb[0].mxu0
      %v2017 = vadd.f32 %v1953, %v2016
      %v2018 = vpop.f32.mrb[0].mxu0
      %v2019 = vpop.f32.mrb[0].mxu0
      %v2020 = vadd.f32 %v1956, %v2019
      %v2021 = vpop.f32.mrb[0].mxu0
      %2022 = vmatprep.mubr.bf16.mxu0 0
      %2023 = vmatmul.mubr.bf16.gmra.mrb[0].mxu0 %v1745
      %v2024 = vpop.f32.mrb[0].mxu0
      %v2025 = vadd.f32 %v1961, %v2024
      %v2026 = vpop.f32.mrb[0].mxu0
      %v2027 = vpop.f32.mrb[0].mxu0
      %v2028 = vpop.f32.mrb[0].mxu0
      %2029 = vdwg.mxu0
      %v2030 = vadd.f32 %v1540, %v2001
      %v2031 = vadd.f32 %v1543, %v2004
      %v2032 = vadd.f32 %v1548, %v2009
      %v2033 = vadd.f32 %v1551, %v2012
      %v2034 = vadd.f32 %v1556, %v2017
      %v2035 = vadd.f32 %v1559, %v2020
      %v2036 = vadd.f32 %v1564, %v2025
      %v2037 = vpack.c.bf16 %v2030, %v2030
      %v2038 = vpack.c.bf16 %v2031, %v2031
      %v2039 = vpack.c.bf16 %v2032, %v2032
      %v2040 = vpack.c.bf16 %v2033, %v2033
      %v2041 = vpack.c.bf16 %v2034, %v2034
      %v2042 = vpack.c.bf16 %v2035, %v2035
      %v2043 = vpack.c.bf16 %v2036, %v2036
      %2044 = vst [vmem:[%s231] sm:$0xf] %v2037
      %2045 = vst [vmem:[%s231 + $0x4] sm:$0xf] %v2038
      %2046 = vst [vmem:[%s231 + $0x8] sm:$0xf] %v2039
      %2047 = vst [vmem:[%s231 + $0xc] sm:$0xf] %v2040
      %2048 = vst [vmem:[%s231 + $0x10] sm:$0xf] %v2041
      %2049 = vst [vmem:[%s231 + $0x14] sm:$0xf] %v2042
      %2050 = vst [vmem:[%s231 + $0x18] sm:$0xf] %v2043
      %vm2051 = vcmask 1046528
      %v2052 = vsel %vm2051, %v2030, 0.0
      %v2053 = vsel %vm2051, %v2031, 0.0
      %v2054 = vadd.f32 %v2052, %v2053
      %v2055 = vsel %vm2051, %v2032, 0.0
      %v2056 = vadd.f32 %v2054, %v2055
      %v2057 = vsel %vm2051, %v2033, 0.0
      %v2058 = vadd.f32 %v2056, %v2057
      %v2059 = vsel %vm2051, %v2034, 0.0
      %v2060 = vadd.f32 %v2058, %v2059
      %v2061 = vsel %vm2051, %v2035, 0.0
      %v2062 = vadd.f32 %v2060, %v2061
      %v2063 = vsel %vm2051, %v2036, 0.0
      %v2064 = vadd.f32 %v2062, %v2063
      %v2065 = vsel %vm2051, %v2064, 0.0
      %v2066 = vrot.slane %v2065, 4
      %v2067 = vadd.f32 %v2065, %v2066
      %v2068 = vrot.slane %v2067, 2
      %v2069 = vadd.f32 %v2067, %v2068
      %v2070 = vrot.slane %v2069, 1
      %v2071 = vadd.f32 %v2069, %v2070
      %2072 = vst [vmem:[%s235] sm:$0x1] %v2071
      %v2073 = vmul.f32 %v2030, %v2030
      %v2074 = vmul.f32 %v2031, %v2031
      %v2075 = vmul.f32 %v2032, %v2032
      %v2076 = vmul.f32 %v2033, %v2033
      %v2077 = vmul.f32 %v2034, %v2034
      %v2078 = vmul.f32 %v2035, %v2035
      %v2079 = vmul.f32 %v2036, %v2036
      %v2080 = vsel %vm2051, %v2073, 0.0
      %v2081 = vsel %vm2051, %v2074, 0.0
      %v2082 = vadd.f32 %v2080, %v2081
      %v2083 = vsel %vm2051, %v2075, 0.0
      %v2084 = vadd.f32 %v2082, %v2083
      %v2085 = vsel %vm2051, %v2076, 0.0
      %v2086 = vadd.f32 %v2084, %v2085
      %v2087 = vsel %vm2051, %v2077, 0.0
      %v2088 = vadd.f32 %v2086, %v2087
      %v2089 = vsel %vm2051, %v2078, 0.0
      %v2090 = vadd.f32 %v2088, %v2089
      %v2091 = vsel %vm2051, %v2079, 0.0
      %v2092 = vadd.f32 %v2090, %v2091
      %v2093 = vsel %vm2051, %v2092, 0.0
      %v2094 = vrot.slane %v2093, 4
      %v2095 = vadd.f32 %v2093, %v2094
      %v2096 = vrot.slane %v2095, 2
      %v2097 = vadd.f32 %v2095, %v2096
      %v2098 = vrot.slane %v2097, 1
      %v2099 = vadd.f32 %v2097, %v2098
      %2100 = vst [vmem:[%s235 + $0x1] sm:$0x1] %v2099
      %p2101 = scmp.lt.s32.totalorder %s17, 1
      %s2102 = scalar_select %p2101, %s17, 1
      %s2103 = smul.addr %s2102, 7
      %s2104 = smul.addr %s2103, 4
      %s2105 = scalar_lea.vmem %s4, %s2104
      %p2106 = scmp.lt.s32.totalorder %s17, 1
      %s2107 = scalar_select %p2106, %s17, 1
      %s2108 = smul.addr %s2107, 2
      %s2109 = scalar_lea.vmem %s5, %s2108
      // Predicated region
      $region37: #{inception_b_forward.7} parent=35 // pred_check
        %p2110 = pneg %p124
      $region38: #{inception_b_forward.7} parent=35 // pred_check_branch
        %2112 = sbr.rel (%p2110) target = $region40
      $region39: #{inception_b_forward.7} parent=35 // pred_region
        _
      $region40: #{inception_b_forward.7} parent=35 // pred_fallthru
        _
      // Predicated region
      $region41: #{inception_b_forward.7} parent=35 // pred_check
        %p2113 = pneg %p150
      $region42: #{inception_b_forward.7} parent=35 // pred_check_branch
        %2115 = sbr.rel (%p2113) target = $region44
      $region43: #{inception_b_forward.7} parent=35 // pred_region
        _
      $region44: #{inception_b_forward.7} parent=35 // pred_fallthru
        _
    $region36: #{inception_b_forward.7} parent=5 // pred_fallthru
      _
    %p2116 = scmp.le.s32.totalorder 2, %s12
    // Predicated region
    $region45: #{inception_b_forward.7} parent=5 // pred_check
      %p2117 = pneg %p2116
    $region46: #{inception_b_forward.7} parent=5 // pred_check_branch
      %2119 = sbr.rel (%p2117) target = $region48
    $region47: #{inception_b_forward.7} parent=5 // pred_region
      %s2120 = ssub.s32 %s12, 2
      // Predicated region
      $region49: #{inception_b_forward.7} parent=47 // pred_check
        %p2121 = pneg %p130
      $region50: #{inception_b_forward.7} parent=47 // pred_check_branch
        %2123 = sbr.rel (%p2121) target = $region52
      $region51: #{inception_b_forward.7} parent=47 // pred_region
        %p2124 = scmp.lt.s32.totalorder %s18, 1
        %s2125 = scalar_select %p2124, %s18, 1
        %s2126 = smul.addr %s2125, 7
        %s2127 = smul.addr %s2126, 4
        %s2128 = scalar_lea.vmem %s4, %s2127
      $region52: #{inception_b_forward.7} parent=47 // pred_fallthru
        _
      // Predicated region
      $region53: #{inception_b_forward.7} parent=47 // pred_check
        %p2129 = pneg %p156
      $region54: #{inception_b_forward.7} parent=47 // pred_check_branch
        %2131 = sbr.rel (%p2129) target = $region56
      $region55: #{inception_b_forward.7} parent=47 // pred_region
        %p2132 = scmp.lt.s32.totalorder %s18, 1
        %s2133 = scalar_select %p2132, %s18, 1
        %s2134 = smul.addr %s2133, 2
        %s2135 = scalar_lea.vmem %s5, %s2134
      $region56: #{inception_b_forward.7} parent=47 // pred_fallthru
        _
    $region48: #{inception_b_forward.7} parent=5 // pred_fallthru
      _
  $region6: #{inception_b_forward.7} parent=0 // loop_footer
    %s16 = sadd.s32 1, %s12
  $region7: #{inception_b_forward.7} parent=0 // loop_footer_branch
    %11 = sbr.rel target = $region3
  $region8: #{inception_b_forward.7} parent=0 // loop_exit
    _

// kernel: inception_b_forward.8
$region0: #{inception_b_forward.8}
  #allocation0 [shape = 'u32[]', space=smem, size = 0x4, offset = 0x4, fixed_abs, tag = 'smem constant byte address 0x4 - core index']
  #allocation1 [shape = 'u32[144,128]{1,0:T(1,128)}', space=vmem, size = 0x12000, scoped, tag = 'internal scratch']
  #allocation2 [shape = 'bf16[7,8,12]{2,1,0:T(8,128)(2,1)}', space=vmem, size = 0x3800, scoped, tag = 'scratch operand']
  %s0 = inlined_call_operand.vmem [shape: bf16[2,16,8,8], index: 0, kind: input, shape index: {}]
  %s1 = inlined_call_operand.vmem [shape: bf16[3,12,384], index: 1, kind: input, shape index: {}]
  %s2 = inlined_call_operand.vmem [shape: bf16[2,7,8,384], index: 2, kind: output, shape index: {0}]
  %s3 = inlined_call_operand.vmem [shape: f32[2,2,384], index: 3, kind: output, shape index: {1}]
  %s4 = inlined_call_operand.vmem [shape: bf16[2,7,7,4], index: 4, kind: output, shape index: {2}]
  %5 = xla_tuple %s2, %s3, %s4
  %s6 = sld [smem:[#allocation0]]
  $region57: #{inception_b_forward.8} parent=0
    _
  %s8 = ssub.s32 1, %s6
  %s9 = scalar_select 0, %s8, %s6
  loop: start=0, step=1, limit=4
  $region2: #{inception_b_forward.8} parent=0 // loop_pre_header
    _
  $region3: #{inception_b_forward.8} parent=0 // loop_header
    %s11 = sphi 0, %s15
    %p12 = scmp.ge.s32.totalorder %s11, 4
    %s21 = sphi 0, %s23
    %s24 = sphi 0, %s21
    %s25 = sphi 0, %s24
    %s41 = sphi 0, %s25
    %s45 = sphi 0, %s45
    %s47 = sphi 0, %s45
    %s48 = sphi 0, %s47
    %s62 = sphi 0, %s48
    %s68 = sphi 0, %s70
    %s71 = sphi 0, %s68
    %s72 = sphi 0, %s71
    %s88 = sphi 0, %s72
    %s94 = sphi 0, %s96
    %s97 = sphi 0, %s94
    %s98 = sphi 0, %s97
    %s114 = sphi 0, %s98
    %s120 = sphi 0, %s122
    %s123 = sphi 0, %s120
    %s124 = sphi 0, %s123
    %s140 = sphi 0, %s124
  $region4: #{inception_b_forward.8} parent=0 // loop_header_branch
    %14 = sbr.rel (%p12) target = $region8
  $region5: #{inception_b_forward.8} parent=0 // loop_body
    %s16 = ssub.s32 %s11, 1
    %s17 = ssub.s32 %s11, 2
    %s18 = sadd.s32 %s11, 1
    %s19 = ssub.s32 %s11, %s18
    %p20 = scmp.eq.s32.totalorder %s19, 0
    %s22 = sadd.s32 %s21, 1
    %s23 = scalar_select %p20, %s21, %s22
    %p26 = pneg %p20
    %p27 = scmp.eq.s32.totalorder %s11, 1
    %p28 = por %p26, %p27
    %p29 = scmp.ne.s32.totalorder %s21, %s24
    %p30 = scmp.eq.s32.totalorder %s11, 0
    %p31 = por %p29, %p30
    %p32 = scmp.ne.s32.totalorder %s21, %s24
    %p33 = scmp.eq.s32.totalorder %s16, 1
    %p34 = por %p32, %p33
    %p35 = scmp.ne.s32.totalorder %s24, %s25
    %p36 = scmp.eq.s32.totalorder %s16, 0
    %p37 = por %p35, %p36
    %p38 = scmp.ne.s32.totalorder %s24, %s25
    %p39 = scmp.eq.s32.totalorder %s17, 1
    %p40 = por %p38, %p39
    %p42 = scmp.ne.s32.totalorder %s25, %s41
    %p43 = scmp.eq.s32.totalorder %s17, 0
    %p44 = por %p42, %p43
    %s46 = sadd.s32 %s45, 1
    %p49 = scmp.eq.s32.totalorder %s11, 1
    %p50 = scmp.ne.s32.totalorder %s45, %s47
    %p51 = scmp.eq.s32.totalorder %s11, 0
    %p52 = por %p50, %p51
    %p53 = scmp.ne.s32.totalorder %s45, %s47
    %p54 = scmp.eq.s32.totalorder %s16, 1
    %p55 = por %p53, %p54
    %p56 = scmp.ne.s32.totalorder %s47, %s48
    %p57 = scmp.eq.s32.totalorder %s16, 0
    %p58 = por %p56, %p57
    %p59 = scmp.ne.s32.totalorder %s47, %s48
    %p60 = scmp.eq.s32.totalorder %s17, 1
    %p61 = por %p59, %p60
    %p63 = scmp.ne.s32.totalorder %s48, %s62
    %p64 = scmp.eq.s32.totalorder %s17, 0
    %p65 = por %p63, %p64
    %s66 = ssub.s32 %s11, %s18
    %p67 = scmp.eq.s32.totalorder %s66, 0
    %s69 = sadd.s32 %s68, 1
    %s70 = scalar_select %p67, %s68, %s69
    %p73 = pneg %p67
    %p74 = scmp.eq.s32.totalorder %s11, 1
    %p75 = por %p73, %p74
    %p76 = scmp.ne.s32.totalorder %s68, %s71
    %p77 = scmp.eq.s32.totalorder %s11, 0
    %p78 = por %p76, %p77
    %p79 = scmp.ne.s32.totalorder %s68, %s71
    %p80 = scmp.eq.s32.totalorder %s16, 1
    %p81 = por %p79, %p80
    %p82 = scmp.ne.s32.totalorder %s71, %s72
    %p83 = scmp.eq.s32.totalorder %s16, 0
    %p84 = por %p82, %p83
    %p85 = scmp.ne.s32.totalorder %s71, %s72
    %p86 = scmp.eq.s32.totalorder %s17, 1
    %p87 = por %p85, %p86
    %p89 = scmp.ne.s32.totalorder %s72, %s88
    %p90 = scmp.eq.s32.totalorder %s17, 0
    %p91 = por %p89, %p90
    %s92 = ssub.s32 %s11, %s18
    %p93 = scmp.eq.s32.totalorder %s92, 0
    %s95 = sadd.s32 %s94, 1
    %s96 = scalar_select %p93, %s94, %s95
    %p99 = pneg %p93
    %p100 = scmp.eq.s32.totalorder %s11, 1
    %p101 = por %p99, %p100
    %p102 = scmp.ne.s32.totalorder %s94, %s97
    %p103 = scmp.eq.s32.totalorder %s11, 0
    %p104 = por %p102, %p103
    %p105 = scmp.ne.s32.totalorder %s94, %s97
    %p106 = scmp.eq.s32.totalorder %s16, 1
    %p107 = por %p105, %p106
    %p108 = scmp.ne.s32.totalorder %s97, %s98
    %p109 = scmp.eq.s32.totalorder %s16, 0
    %p110 = por %p108, %p109
    %p111 = scmp.ne.s32.totalorder %s97, %s98
    %p112 = scmp.eq.s32.totalorder %s17, 1
    %p113 = por %p111, %p112
    %p115 = scmp.ne.s32.totalorder %s98, %s114
    %p116 = scmp.eq.s32.totalorder %s17, 0
    %p117 = por %p115, %p116
    %s118 = ssub.s32 %s11, %s18
    %p119 = scmp.eq.s32.totalorder %s118, 0
    %s121 = sadd.s32 %s120, 1
    %s122 = scalar_select %p119, %s120, %s121
    %p125 = pneg %p119
    %p126 = scmp.eq.s32.totalorder %s11, 1
    %p127 = por %p125, %p126
    %p128 = scmp.ne.s32.totalorder %s120, %s123
    %p129 = scmp.eq.s32.totalorder %s11, 0
    %p130 = por %p128, %p129
    %p131 = scmp.ne.s32.totalorder %s120, %s123
    %p132 = scmp.eq.s32.totalorder %s16, 1
    %p133 = por %p131, %p132
    %p134 = scmp.ne.s32.totalorder %s123, %s124
    %p135 = scmp.eq.s32.totalorder %s16, 0
    %p136 = por %p134, %p135
    %p137 = scmp.ne.s32.totalorder %s123, %s124
    %p138 = scmp.eq.s32.totalorder %s17, 1
    %p139 = por %p137, %p138
    %p141 = scmp.ne.s32.totalorder %s124, %s140
    %p142 = scmp.eq.s32.totalorder %s17, 0
    %p143 = por %p141, %p142
    %p144 = scmp.le.s32.totalorder 1, %s11
    %p145 = scmp.lt.s32.totalorder %s11, 3
    %p146 = pnand %p144, %p145
    %p147 = pneg %p146
    // Predicated region
    $region9: #{inception_b_forward.8} parent=5 // pred_check
      _
    $region10: #{inception_b_forward.8} parent=5 // pred_check_branch
      %149 = sbr.rel (%p146) target = $region12
    $region11: #{inception_b_forward.8} parent=5 // pred_region
      %s150 = ssub.s32 %s11, 1
      // Predicated region
      $region13: #{inception_b_forward.8} parent=11 // pred_check
        %p151 = pneg %p58
      $region14: #{inception_b_forward.8} parent=11 // pred_check_branch
        %153 = sbr.rel (%p151) target = $region16
      $region15: #{inception_b_forward.8} parent=11 // pred_region
        _
      $region16: #{inception_b_forward.8} parent=11 // pred_fallthru
        _
    $region12: #{inception_b_forward.8} parent=5 // pred_fallthru
      _
    %p154 = scmp.lt.s32.totalorder %s11, 2
    // Predicated region
    $region17: #{inception_b_forward.8} parent=5 // pred_check
      %p155 = pneg %p154
    $region18: #{inception_b_forward.8} parent=5 // pred_check_branch
      %157 = sbr.rel (%p155) target = $region20
    $region19: #{inception_b_forward.8} parent=5 // pred_region
      // Predicated region
      $region21: #{inception_b_forward.8} parent=19 // pred_check
        %p158 = pneg %p31
      $region22: #{inception_b_forward.8} parent=19 // pred_check_branch
        %160 = sbr.rel (%p158) target = $region24
      $region23: #{inception_b_forward.8} parent=19 // pred_region
        %p161 = scmp.lt.s32.totalorder %s11, 1
        %s162 = scalar_select %p161, %s11, 1
        %s163 = smul.addr %s162, 16
        %s164 = smul.addr %s163, 4
        %s165 = scalar_lea.vmem %s0, %s164
      $region24: #{inception_b_forward.8} parent=19 // pred_fallthru
        _
    $region20: #{inception_b_forward.8} parent=5 // pred_fallthru
      _
    %p166 = scmp.le.s32.totalorder 1, %s11
    %p167 = scmp.lt.s32.totalorder %s11, 3
    %p168 = pnand %p166, %p167
    %p169 = pneg %p168
    // Predicated region
    $region25: #{inception_b_forward.8} parent=5 // pred_check
      _
    $region26: #{inception_b_forward.8} parent=5 // pred_check_branch
      %171 = sbr.rel (%p168) target = $region28
    $region27: #{inception_b_forward.8} parent=5 // pred_region
      %s172 = ssub.s32 %s11, 1
      %p173 = scmp.lt.s32.totalorder %s16, 1
      %s174 = scalar_select %p173, %s16, 1
      %s175 = smul.addr %s174, 16
      %s176 = smul.addr %s175, 4
      %s177 = scalar_lea.vmem %s0, %s176
      %p178 = pneg %p37
      %p179 = pneg %p34
      %p180 = pneg %p58
      %p181 = pneg %p55
      %p182 = pneg %p84
      %p183 = pneg %p81
      %p184 = scmp.lt.s32.totalorder %s16, 1
      %s185 = scalar_select %p184, %s16, 1
      %s186 = smul.addr %s185, 21
      %s187 = smul.addr %s186, 4
      %s188 = scalar_lea.vmem %s2, %s187
      %p189 = pneg %p110
      %p190 = pneg %p107
      %p191 = scmp.lt.s32.totalorder %s16, 1
      %s192 = scalar_select %p191, %s16, 1
      %s193 = smul.addr %s192, 3
      %s194 = smul.addr %s193, 2
      %s195 = scalar_lea.vmem %s3, %s194
      %p196 = pneg %p136
      %p197 = pneg %p133
      %p198 = scmp.lt.s32.totalorder %s16, 1
      %s199 = scalar_select %p198, %s16, 1
      %s200 = smul.addr %s199, 7
      %s201 = smul.addr %s200, 4
      %s202 = scalar_lea.vmem %s4, %s201
      %p203 = scmp.lt.s32.totalorder %s16, 1
      %s204 = scalar_select %p203, %s16, 1
      %s205 = smul.addr %s204, 16
      %s206 = smul.addr %s205, 4
      %s207 = scalar_lea.vmem %s0, %s206
      %p208 = scmp.lt.s32.totalorder %s16, 1
      %s209 = scalar_select %p208, %s16, 1
      %s210 = smul.addr %s209, 21
      %s211 = smul.addr %s210, 4
      %s212 = scalar_lea.vmem %s2, %s211
      %p213 = scmp.lt.s32.totalorder %s16, 1
      %s214 = scalar_select %p213, %s16, 1
      %s215 = smul.addr %s214, 3
      %s216 = smul.addr %s215, 2
      %s217 = scalar_lea.vmem %s3, %s216
      %p218 = scmp.lt.s32.totalorder %s16, 1
      %s219 = scalar_select %p218, %s16, 1
      %s220 = smul.addr %s219, 7
      %s221 = smul.addr %s220, 4
      %s222 = scalar_lea.vmem %s4, %s221
      %v224 = vld [vmem:[%s207] sm:$0xf]
      %v225 = vld [vmem:[%s207 + $0x4] sm:$0xf]
      %v226 = vld [vmem:[%s207 + $0x8] sm:$0xf]
      %v227 = vld [vmem:[%s207 + $0xc] sm:$0xf]
      %v228 = vld [vmem:[%s207 + $0x10] sm:$0xf]
      %v229 = vld [vmem:[%s207 + $0x14] sm:$0xf]
      %v230 = vld [vmem:[%s207 + $0x18] sm:$0xf]
      %v231 = vld [vmem:[%s207 + $0x1c] sm:$0xf]
      %v232 = vld [vmem:[%s207 + $0x20] sm:$0xf]
      %v233 = vld [vmem:[%s207 + $0x24] sm:$0xf]
      %v234 = vld [vmem:[%s207 + $0x28] sm:$0xf]
      %v235 = vld [vmem:[%s207 + $0x2c] sm:$0xf]
      %v236 = vld [vmem:[%s207 + $0x30] sm:$0xf]
      %v237 = vld [vmem:[%s207 + $0x34] sm:$0xf]
      %v238 = vld [vmem:[%s207 + $0x38] sm:$0xf]
      %vm239 = vcmask 60416
      %240 = vst.msk [vmem:[#allocation2] sm:$0xf] %vm239, %v224
      %241 = vst.msk [vmem:[#allocation2 + $0x4] sm:$0xf] %vm239, %v226
      %242 = vst.msk [vmem:[#allocation2 + $0x8] sm:$0xf] %vm239, %v228
      %243 = vst.msk [vmem:[#allocation2 + $0xc] sm:$0xf] %vm239, %v230
      %244 = vst.msk [vmem:[#allocation2 + $0x10] sm:$0xf] %vm239, %v232
      %245 = vst.msk [vmem:[#allocation2 + $0x14] sm:$0xf] %vm239, %v234
      %246 = vst.msk [vmem:[#allocation2 + $0x18] sm:$0xf] %vm239, %v236
      %v248 = vshrl.u32 %v224, 16
      %v250 = vrot.slane %v248, 4
      %v251 = vshll.u32 %v224, 16
      %v253 = vrot.slane %v251, 5
      %v254 = vor.u32 %v250, %v253
      %v255 = vrot.slane %v254, 4
      %v257 = vshrl.u32 %v226, 16
      %v259 = vrot.slane %v257, 4
      %v260 = vshll.u32 %v226, 16
      %v262 = vrot.slane %v260, 5
      %v263 = vor.u32 %v259, %v262
      %v264 = vrot.slane %v263, 4
      %v266 = vshrl.u32 %v228, 16
      %v268 = vrot.slane %v266, 4
      %v269 = vshll.u32 %v228, 16
      %v271 = vrot.slane %v269, 5
      %v272 = vor.u32 %v268, %v271
      %v273 = vrot.slane %v272, 4
      %v275 = vshrl.u32 %v230, 16
      %v277 = vrot.slane %v275, 4
      %v278 = vshll.u32 %v230, 16
      %v280 = vrot.slane %v278, 5
      %v281 = vor.u32 %v277, %v280
      %v282 = vrot.slane %v281, 4
      %v284 = vshrl.u32 %v232, 16
      %v286 = vrot.slane %v284, 4
      %v287 = vshll.u32 %v232, 16
      %v289 = vrot.slane %v287, 5
      %v290 = vor.u32 %v286, %v289
      %v291 = vrot.slane %v290, 4
      %v293 = vshrl.u32 %v234, 16
      %v295 = vrot.slane %v293, 4
      %v296 = vshll.u32 %v234, 16
      %v298 = vrot.slane %v296, 5
      %v299 = vor.u32 %v295, %v298
      %v300 = vrot.slane %v299, 4
      %v302 = vshrl.u32 %v236, 16
      %v304 = vrot.slane %v302, 4
      %v305 = vshll.u32 %v236, 16
      %v307 = vrot.slane %v305, 5
      %v308 = vor.u32 %v304, %v307
      %v309 = vrot.slane %v308, 4
      %310 = vrot.lane.b32.xlu0 %v255, 8
      %v311 = vpop.permute.xlu0 %310
      %312 = vrot.lane.b32.xlu0 %v264, 8
      %v313 = vpop.permute.xlu0 %312
      %314 = vrot.lane.b32.xlu0 %v273, 8
      %v315 = vpop.permute.xlu0 %314
      %316 = vrot.lane.b32.xlu0 %v282, 8
      %v317 = vpop.permute.xlu0 %316
      %318 = vrot.lane.b32.xlu0 %v291, 8
      %v319 = vpop.permute.xlu0 %318
      %320 = vrot.lane.b32.xlu0 %v300, 8
      %v321 = vpop.permute.xlu0 %320
      %322 = vrot.lane.b32.xlu0 %v309, 8
      %v323 = vpop.permute.xlu0 %322
      %vm331 = vcmask 93248
      %vm332 = vsmask.f32 3328
      %vm333 = vmand %vm331, %vm332
      %v334 = vld [vmem:[#allocation2] sm:$0xf]
      %v335 = vsel %vm333, %v311, %v334
      %336 = vst [vmem:[#allocation2] sm:$0xf] %v335
      %v337 = vld [vmem:[#allocation2 + $0x4] sm:$0xf]
      %v338 = vsel %vm333, %v313, %v337
      %339 = vst [vmem:[#allocation2 + $0x4] sm:$0xf] %v338
      %v340 = vld [vmem:[#allocation2 + $0x8] sm:$0xf]
      %v341 = vsel %vm333, %v315, %v340
      %342 = vst [vmem:[#allocation2 + $0x8] sm:$0xf] %v341
      %v343 = vld [vmem:[#allocation2 + $0xc] sm:$0xf]
      %v344 = vsel %vm333, %v317, %v343
      %345 = vst [vmem:[#allocation2 + $0xc] sm:$0xf] %v344
      %v346 = vld [vmem:[#allocation2 + $0x10] sm:$0xf]
      %v347 = vsel %vm333, %v319, %v346
      %348 = vst [vmem:[#allocation2 + $0x10] sm:$0xf] %v347
      %v349 = vld [vmem:[#allocation2 + $0x14] sm:$0xf]
      %v350 = vsel %vm333, %v321, %v349
      %351 = vst [vmem:[#allocation2 + $0x14] sm:$0xf] %v350
      %v352 = vld [vmem:[#allocation2 + $0x18] sm:$0xf]
      %v353 = vsel %vm333, %v323, %v352
      %354 = vst [vmem:[#allocation2 + $0x18] sm:$0xf] %v353
      %355 = vrot.lane.b32.xlu0 %v253, 8
      %v356 = vpop.permute.xlu0 %355
      %357 = vrot.lane.b32.xlu0 %v262, 8
      %v358 = vpop.permute.xlu0 %357
      %359 = vrot.lane.b32.xlu0 %v271, 8
      %v360 = vpop.permute.xlu0 %359
      %361 = vrot.lane.b32.xlu0 %v280, 8
      %v362 = vpop.permute.xlu0 %361
      %363 = vrot.lane.b32.xlu0 %v289, 8
      %v364 = vpop.permute.xlu0 %363
      %365 = vrot.lane.b32.xlu0 %v298, 8
      %v366 = vpop.permute.xlu0 %365
      %367 = vrot.lane.b32.xlu0 %v307, 8
      %v368 = vpop.permute.xlu0 %367
      %vm376 = vcmask 93251
      %vm377 = vsmask.f32 7950
      %vm378 = vmand %vm376, %vm377
      %v379 = vld [vmem:[#allocation2] sm:$0x8]
      %v380 = vsel %vm378, %v356, %v379
      %381 = vst [vmem:[#allocation2] sm:$0x8] %v380
      %v382 = vld [vmem:[#allocation2 + $0x4] sm:$0x8]
      %v383 = vsel %vm378, %v358, %v382
      %384 = vst [vmem:[#allocation2 + $0x4] sm:$0x8] %v383
      %v385 = vld [vmem:[#allocation2 + $0x8] sm:$0x8]
      %v386 = vsel %vm378, %v360, %v385
      %387 = vst [vmem:[#allocation2 + $0x8] sm:$0x8] %v386
      %v388 = vld [vmem:[#allocation2 + $0xc] sm:$0x8]
      %v389 = vsel %vm378, %v362, %v388
      %390 = vst [vmem:[#allocation2 + $0xc] sm:$0x8] %v389
      %v391 = vld [vmem:[#allocation2 + $0x10] sm:$0x8]
      %v392 = vsel %vm378, %v364, %v391
      %393 = vst [vmem:[#allocation2 + $0x10] sm:$0x8] %v392
      %v394 = vld [vmem:[#allocation2 + $0x14] sm:$0x8]
      %v395 = vsel %vm378, %v366, %v394
      %396 = vst [vmem:[#allocation2 + $0x14] sm:$0x8] %v395
      %v397 = vld [vmem:[#allocation2 + $0x18] sm:$0x8]
      %v398 = vsel %vm378, %v368, %v397
      %399 = vst [vmem:[#allocation2 + $0x18] sm:$0x8] %v398
      %v400 = vld [vmem:[#allocation2] sm:$0xf]
      %v401 = vld [vmem:[#allocation2 + $0x4] sm:$0xf]
      %v402 = vld [vmem:[#allocation2 + $0x8] sm:$0xf]
      %v403 = vld [vmem:[#allocation2 + $0xc] sm:$0xf]
      %v404 = vld [vmem:[#allocation2 + $0x10] sm:$0xf]
      %v405 = vld [vmem:[#allocation2 + $0x14] sm:$0xf]
      %v406 = vld [vmem:[#allocation2 + $0x18] sm:$0xf]
      %v407 = vld [vmem:[%s1] sm:$0xff]
      %v408 = vld [vmem:[%s1 + $0x8] sm:$0xf]
      %v409 = vld [vmem:[%s1 + $0xc] sm:$0x33]
      %v410 = vld [vmem:[%s1 + $0x14] sm:$0x3]
      %418 = vrot.lane.b32.xlu0 %v224, 124
      %v419 = vpop.permute.xlu0 %418
      %420 = vrot.lane.b32.xlu0 %v226, 124
      %v421 = vpop.permute.xlu0 %420
      %422 = vrot.lane.b32.xlu0 %v228, 124
      %v423 = vpop.permute.xlu0 %422
      %424 = vrot.lane.b32.xlu0 %v230, 124
      %v425 = vpop.permute.xlu0 %424
      %426 = vrot.lane.b32.xlu0 %v232, 124
      %v427 = vpop.permute.xlu0 %426
      %428 = vrot.lane.b32.xlu0 %v234, 124
      %v429 = vpop.permute.xlu0 %428
      %430 = vrot.lane.b32.xlu0 %v236, 124
      %v431 = vpop.permute.xlu0 %430
      %v439 = vmax.bf16 %v224, %v419
      %v440 = vmax.bf16 %v226, %v421
      %v441 = vmax.bf16 %v228, %v423
      %v442 = vmax.bf16 %v230, %v425
      %v443 = vmax.bf16 %v232, %v427
      %v444 = vmax.bf16 %v234, %v429
      %v445 = vmax.bf16 %v236, %v431
      %v453 = vmax.bf16 %v439, %v255
      %v454 = vmax.bf16 %v440, %v264
      %v455 = vmax.bf16 %v441, %v273
      %v456 = vmax.bf16 %v442, %v282
      %v457 = vmax.bf16 %v443, %v291
      %v458 = vmax.bf16 %v444, %v300
      %v459 = vmax.bf16 %v445, %v309
      %460 = vst.msk [vmem:[#allocation2] sm:$0xf] %vm239, %v225
      %461 = vst.msk [vmem:[#allocation2 + $0x4] sm:$0xf] %vm239, %v227
      %462 = vst.msk [vmem:[#allocation2 + $0x8] sm:$0xf] %vm239, %v229
      %463 = vst.msk [vmem:[#allocation2 + $0xc] sm:$0xf] %vm239, %v231
      %464 = vst.msk [vmem:[#allocation2 + $0x10] sm:$0xf] %vm239, %v233
      %465 = vst.msk [vmem:[#allocation2 + $0x14] sm:$0xf] %vm239, %v235
      %466 = vst.msk [vmem:[#allocation2 + $0x18] sm:$0xf] %vm239, %v237
      %v468 = vshrl.u32 %v225, 16
      %v470 = vrot.slane %v468, 4
      %v471 = vshll.u32 %v225, 16
      %v473 = vrot.slane %v471, 5
      %v474 = vor.u32 %v470, %v473
      %v475 = vrot.slane %v474, 4
      %v477 = vshrl.u32 %v227, 16
      %v479 = vrot.slane %v477, 4
      %v480 = vshll.u32 %v227, 16
      %v482 = vrot.slane %v480, 5
      %v483 = vor.u32 %v479, %v482
      %v484 = vrot.slane %v483, 4
      %v486 = vshrl.u32 %v229, 16
      %v488 = vrot.slane %v486, 4
      %v489 = vshll.u32 %v229, 16
      %v491 = vrot.slane %v489, 5
      %v492 = vor.u32 %v488, %v491
      %v493 = vrot.slane %v492, 4
      %v495 = vshrl.u32 %v231, 16
      %v497 = vrot.slane %v495, 4
      %v498 = vshll.u32 %v231, 16
      %v500 = vrot.slane %v498, 5
      %v501 = vor.u32 %v497, %v500
      %v502 = vrot.slane %v501, 4
      %v504 = vshrl.u32 %v233, 16
      %v506 = vrot.slane %v504, 4
      %v507 = vshll.u32 %v233, 16
      %v509 = vrot.slane %v507, 5
      %v510 = vor.u32 %v506, %v509
      %v511 = vrot.slane %v510, 4
      %v513 = vshrl.u32 %v235, 16
      %v515 = vrot.slane %v513, 4
      %v516 = vshll.u32 %v235, 16
      %v518 = vrot.slane %v516, 5
      %v519 = vor.u32 %v515, %v518
      %v520 = vrot.slane %v519, 4
      %v522 = vshrl.u32 %v237, 16
      %v524 = vrot.slane %v522, 4
      %v525 = vshll.u32 %v237, 16
      %v527 = vrot.slane %v525, 5
      %v528 = vor.u32 %v524, %v527
      %v529 = vrot.slane %v528, 4
      %530 = vrot.lane.b32.xlu0 %v475, 8
      %v531 = vpop.permute.xlu0 %530
      %532 = vrot.lane.b32.xlu0 %v484, 8
      %v533 = vpop.permute.xlu0 %532
      %534 = vrot.lane.b32.xlu0 %v493, 8
      %v535 = vpop.permute.xlu0 %534
      %536 = vrot.lane.b32.xlu0 %v502, 8
      %v537 = vpop.permute.xlu0 %536
      %538 = vrot.lane.b32.xlu0 %v511, 8
      %v539 = vpop.permute.xlu0 %538
      %540 = vrot.lane.b32.xlu0 %v520, 8
      %v541 = vpop.permute.xlu0 %540
      %542 = vrot.lane.b32.xlu0 %v529, 8
      %v543 = vpop.permute.xlu0 %542
      %v551 = vld [vmem:[#allocation2] sm:$0xf]
      %v552 = vsel %vm333, %v531, %v551
      %553 = vst [vmem:[#allocation2] sm:$0xf] %v552
      %v554 = vld [vmem:[#allocation2 + $0x4] sm:$0xf]
      %v555 = vsel %vm333, %v533, %v554
      %556 = vst [vmem:[#allocation2 + $0x4] sm:$0xf] %v555
      %v557 = vld [vmem:[#allocation2 + $0x8] sm:$0xf]
      %v558 = vsel %vm333, %v535, %v557
      %559 = vst [vmem:[#allocation2 + $0x8] sm:$0xf] %v558
      %v560 = vld [vmem:[#allocation2 + $0xc] sm:$0xf]
      %v561 = vsel %vm333, %v537, %v560
      %562 = vst [vmem:[#allocation2 + $0xc] sm:$0xf] %v561
      %v563 = vld [vmem:[#allocation2 + $0x10] sm:$0xf]
      %v564 = vsel %vm333, %v539, %v563
      %565 = vst [vmem:[#allocation2 + $0x10] sm:$0xf] %v564
      %v566 = vld [vmem:[#allocation2 + $0x14] sm:$0xf]
      %v567 = vsel %vm333, %v541, %v566
      %568 = vst [vmem:[#allocation2 + $0x14] sm:$0xf] %v567
      %v569 = vld [vmem:[#allocation2 + $0x18] sm:$0xf]
      %v570 = vsel %vm333, %v543, %v569
      %571 = vst [vmem:[#allocation2 + $0x18] sm:$0xf] %v570
      %572 = vrot.lane.b32.xlu0 %v473, 8
      %v573 = vpop.permute.xlu0 %572
      %574 = vrot.lane.b32.xlu0 %v482, 8
      %v575 = vpop.permute.xlu0 %574
      %576 = vrot.lane.b32.xlu0 %v491, 8
      %v577 = vpop.permute.xlu0 %576
      %578 = vrot.lane.b32.xlu0 %v500, 8
      %v579 = vpop.permute.xlu0 %578
      %580 = vrot.lane.b32.xlu0 %v509, 8
      %v581 = vpop.permute.xlu0 %580
      %582 = vrot.lane.b32.xlu0 %v518, 8
      %v583 = vpop.permute.xlu0 %582
      %584 = vrot.lane.b32.xlu0 %v527, 8
      %v585 = vpop.permute.xlu0 %584
      %v593 = vld [vmem:[#allocation2] sm:$0x8]
      %v594 = vsel %vm378, %v573, %v593
      %595 = vst [vmem:[#allocation2] sm:$0x8] %v594
      %v596 = vld [vmem:[#allocation2 + $0x4] sm:$0x8]
      %v597 = vsel %vm378, %v575, %v596
      %598 = vst [vmem:[#allocation2 + $0x4] sm:$0x8] %v597
      %v599 = vld [vmem:[#allocation2 + $0x8] sm:$0x8]
      %v600 = vsel %vm378, %v577, %v599
      %601 = vst [vmem:[#allocation2 + $0x8] sm:$0x8] %v600
      %v602 = vld [vmem:[#allocation2 + $0xc] sm:$0x8]
      %v603 = vsel %vm378, %v579, %v602
      %604 = vst [vmem:[#allocation2 + $0xc] sm:$0x8] %v603
      %v605 = vld [vmem:[#allocation2 + $0x10] sm:$0x8]
      %v606 = vsel %vm378, %v581, %v605
      %607 = vst [vmem:[#allocation2 + $0x10] sm:$0x8] %v606
      %v608 = vld [vmem:[#allocation2 + $0x14] sm:$0x8]
      %v609 = vsel %vm378, %v583, %v608
      %610 = vst [vmem:[#allocation2 + $0x14] sm:$0x8] %v609
      %v611 = vld [vmem:[#allocation2 + $0x18] sm:$0x8]
      %v612 = vsel %vm378, %v585, %v611
      %613 = vst [vmem:[#allocation2 + $0x18] sm:$0x8] %v612
      %v614 = vld [vmem:[#allocation2] sm:$0xf]
      %v615 = vld [vmem:[#allocation2 + $0x4] sm:$0xf]
      %v616 = vld [vmem:[#allocation2 + $0x8] sm:$0xf]
      %v617 = vld [vmem:[#allocation2 + $0xc] sm:$0xf]
      %v618 = vld [vmem:[#allocation2 + $0x10] sm:$0xf]
      %v619 = vld [vmem:[#allocation2 + $0x14] sm:$0xf]
      %v620 = vld [vmem:[#allocation2 + $0x18] sm:$0xf]
      %s621 = scalar_lea.vmem %s1, 24
      %v622 = vld [vmem:[%s621] sm:$0xff]
      %v623 = vld [vmem:[%s621 + $0x8] sm:$0xf]
      %v624 = vld [vmem:[%s621 + $0xc] sm:$0x33]
      %v625 = vld [vmem:[%s621 + $0x14] sm:$0x3]
      %v633 = vunpack.c.l.b16 %v614
      %v634 = vunpack.c.l.b16 %v615
      %v635 = vunpack.c.l.b16 %v616
      %v636 = vunpack.c.l.b16 %v617
      %v637 = vunpack.c.l.b16 %v618
      %v638 = vunpack.c.l.b16 %v619
      %v639 = vunpack.c.l.b16 %v620
      %v640 = vpack.c.b16 %v634, %v633
      %v641 = vpack.c.b16 %v636, %v635
      %v642 = vpack.c.b16 %v638, %v637
      %v643 = vpack.c.b16 %v639, %v639
      %v648 = vunpack.c.l.b16 %v622
      %v649 = vunpack.c.h.b16 %v622
      %v650 = vunpack.c.l.b16 %v623
      %v651 = vunpack.c.l.b16 %v624
      %v652 = vunpack.c.h.b16 %v624
      %v653 = vunpack.c.l.b16 %v625
      %v654 = vpack.c.b16 %v651, %v648
      %v655 = vpack.c.b16 %v652, %v649
      %v656 = vpack.c.b16 %v653, %v650
      %vm657 = vcmask 97280
      %v659 = vsel %vm657, %v640, 0
      %v662 = vsel %vm657, %v641, 0
      %v665 = vsel %vm657, %v642, 0
      %v668 = vsel %vm657, %v643, 0
      %vm670 = vcmask 1045504
      %v672 = vsel %vm670, %v654, 0
      %v675 = vsel %vm670, %v655, 0
      %v678 = vsel %vm670, %v656, 0
      %680 = vmatprep.subr.bf16.mxu0 %v675
      %681 = vmatpush1.bf16.msra.mxu0 %v672
      %682 = vmatprep.subr.bf16.mxu0 0
      %683 = vmatpush1.bf16.msra.mxu0 0
      %684 = vmatprep.subr.bf16.mxu0 0
      %685 = vmatpush1.bf16.msra.mxu0 0
      %686 = vmatprep.subr.bf16.mxu0 0
      %687 = vmatpush1.bf16.msra.mxu0 0
      %688 = vmatprep.subr.bf16.mxu0 0
      %689 = vmatpush1.bf16.msra.mxu0 0
      %690 = vmatprep.subr.bf16.mxu0 0
      %691 = vmatpush1.bf16.msra.mxu0 0
      %692 = vmatprep.subr.bf16.mxu0 0
      %693 = vmatpush1.bf16.msra.mxu0 0
      %694 = vmatprep.subr.bf16.mxu0 0
      %695 = vmatpush1.bf16.msra.mxu0 0
      %696 = vmatprep.subr.bf16.mxu0 0
      %697 = vmatpush1.bf16.msra.mxu0 0
      %698 = vmatprep.subr.bf16.mxu0 0
      %699 = vmatpush1.bf16.msra.mxu0 0
      %700 = vmatprep.subr.bf16.mxu0 0
      %701 = vmatpush1.bf16.msra.mxu0 0
      %702 = vmatprep.subr.bf16.mxu0 0
      %703 = vmatpush1.bf16.msra.mxu0 0
      %704 = vmatprep.subr.bf16.mxu0 0
      %705 = vmatpush1.bf16.msra.mxu0 0
      %706 = vmatprep.subr.bf16.mxu0 0
      %707 = vmatpush1.bf16.msra.mxu0 0
      %708 = vmatprep.subr.bf16.mxu0 0
      %709 = vmatpush1.bf16.msra.mxu0 0
      %710 = vmatprep.subr.bf16.mxu0 0
      %711 = vmatpush1.bf16.msra.mxu0 0
      %712 = vmatprep.mubr.bf16.mxu0 0
      %713 = vmatmul.mubr.bf16.gmra.mrb[0].mxu0 %v659
      %v714 = vpop.f32.mrb[0].mxu0
      %v715 = vadd.f32 0.0, %v714
      %v716 = vpop.f32.mrb[0].mxu0
      %v717 = vadd.f32 0.0, %v716
      %v718 = vpop.f32.mrb[0].mxu0
      %v719 = vadd.f32 0.0, %v718
      %v720 = vpop.f32.mrb[0].mxu0
      %v721 = vadd.f32 0.0, %v720
      %722 = vmatprep.mubr.bf16.mxu0 0
      %723 = vmatmul.mubr.bf16.gmra.mrb[0].mxu0 %v662
      %v724 = vpop.f32.mrb[0].mxu0
      %v725 = vadd.f32 0.0, %v724
      %v726 = vpop.f32.mrb[0].mxu0
      %v727 = vadd.f32 0.0, %v726
      %v728 = vpop.f32.mrb[0].mxu0
      %v729 = vadd.f32 0.0, %v728
      %v730 = vpop.f32.mrb[0].mxu0
      %v731 = vadd.f32 0.0, %v730
      %732 = vmatprep.mubr.bf16.mxu0 0
      %733 = vmatmul.mubr.bf16.gmra.mrb[0].mxu0 %v665
      %v734 = vpop.f32.mrb[0].mxu0
      %v735 = vadd.f32 0.0, %v734
      %v736 = vpop.f32.mrb[0].mxu0
      %v737 = vadd.f32 0.0, %v736
      %v738 = vpop.f32.mrb[0].mxu0
      %v739 = vadd.f32 0.0, %v738
      %v740 = vpop.f32.mrb[0].mxu0
      %v741 = vadd.f32 0.0, %v740
      %742 = vmatprep.mubr.bf16.mxu0 0
      %743 = vmatmul.mubr.bf16.gmra.mrb[0].mxu0 %v668
      %v744 = vpop.f32.mrb[0].mxu0
      %v745 = vadd.f32 0.0, %v744
      %v746 = vpop.f32.mrb[0].mxu0
      %v747 = vadd.f32 0.0, %v746
      %v748 = vpop.f32.mrb[0].mxu0
      %v749 = vpop.f32.mrb[0].mxu0
      %750 = vdwg.mxu0
      %751 = vmatprep.subr.bf16.mxu0 0
      %752 = vmatpush1.bf16.msra.mxu0 %v678
      %753 = vmatprep.subr.bf16.mxu0 0
      %754 = vmatpush1.bf16.msra.mxu0 0
      %755 = vmatprep.subr.bf16.mxu0 0
      %756 = vmatpush1.bf16.msra.mxu0 0
      %757 = vmatprep.subr.bf16.mxu0 0
      %758 = vmatpush1.bf16.msra.mxu0 0
      %759 = vmatprep.subr.bf16.mxu0 0
      %760 = vmatpush1.bf16.msra.mxu0 0
      %761 = vmatprep.subr.bf16.mxu0 0
      %762 = vmatpush1.bf16.msra.mxu0 0
      %763 = vmatprep.subr.bf16.mxu0 0
      %764 = vmatpush1.bf16.msra.mxu0 0
      %765 = vmatprep.subr.bf16.mxu0 0
      %766 = vmatpush1.bf16.msra.mxu0 0
      %767 = vmatprep.subr.bf16.mxu0 0
      %768 = vmatpush1.bf16.msra.mxu0 0
      %769 = vmatprep.subr.bf16.mxu0 0
      %770 = vmatpush1.bf16.msra.mxu0 0
      %771 = vmatprep.subr.bf16.mxu0 0
      %772 = vmatpush1.bf16.msra.mxu0 0
      %773 = vmatprep.subr.bf16.mxu0 0
      %774 = vmatpush1.bf16.msra.mxu0 0
      %775 = vmatprep.subr.bf16.mxu0 0
      %776 = vmatpush1.bf16.msra.mxu0 0
      %777 = vmatprep.subr.bf16.mxu0 0
      %778 = vmatpush1.bf16.msra.mxu0 0
      %779 = vmatprep.subr.bf16.mxu0 0
      %780 = vmatpush1.bf16.msra.mxu0 0
      %781 = vmatprep.subr.bf16.mxu0 0
      %782 = vmatpush1.bf16.msra.mxu0 0
      %783 = vmatprep.mubr.bf16.mxu0 0
      %784 = vmatmul.mubr.bf16.gmra.mrb[0].mxu0 %v659
      %v785 = vpop.f32.mrb[0].mxu0
      %v786 = vadd.f32 0.0, %v785
      %v787 = vpop.f32.mrb[0].mxu0
      %v788 = vpop.f32.mrb[0].mxu0
      %v789 = vadd.f32 0.0, %v788
      %v790 = vpop.f32.mrb[0].mxu0
      %791 = vmatprep.mubr.bf16.mxu0 0
      %792 = vmatmul.mubr.bf16.gmra.mrb[0].mxu0 %v662
      %v793 = vpop.f32.mrb[0].mxu0
      %v794 = vadd.f32 0.0, %v793
      %v795 = vpop.f32.mrb[0].mxu0
      %v796 = vpop.f32.mrb[0].mxu0
      %v797 = vadd.f32 0.0, %v796
      %v798 = vpop.f32.mrb[0].mxu0
      %799 = vmatprep.mubr.bf16.mxu0 0
      %800 = vmatmul.mubr.bf16.gmra.mrb[0].mxu0 %v665
      %v801 = vpop.f32.mrb[0].mxu0
      %v802 = vadd.f32 0.0, %v801
      %v803 = vpop.f32.mrb[0].mxu0
      %v804 = vpop.f32.mrb[0].mxu0
      %v805 = vadd.f32 0.0, %v804
      %v806 = vpop.f32.mrb[0].mxu0
      %807 = vmatprep.mubr.bf16.mxu0 0
      %808 = vmatmul.mubr.bf16.gmra.mrb[0].mxu0 %v668
      %v809 = vpop.f32.mrb[0].mxu0
      %v810 = vadd.f32 0.0, %v809
      %v811 = vpop.f32.mrb[0].mxu0
      %v812 = vpop.f32.mrb[0].mxu0
      %v813 = vpop.f32.mrb[0].mxu0
      %814 = vdwg.mxu0
      %v822 = vunpack.c.l.b16 %v400
      %v823 = vunpack.c.l.b16 %v401
      %v824 = vunpack.c.l.b16 %v402
      %v825 = vunpack.c.l.b16 %v403
      %v826 = vunpack.c.l.b16 %v404
      %v827 = vunpack.c.l.b16 %v405
      %v828 = vunpack.c.l.b16 %v406
      %v829 = vpack.c.b16 %v823, %v822
      %v830 = vpack.c.b16 %v825, %v824
      %v831 = vpack.c.b16 %v827, %v826
      %v832 = vpack.c.b16 %v828, %v828
      %v837 = vunpack.c.l.b16 %v407
      %v838 = vunpack.c.h.b16 %v407
      %v839 = vunpack.c.l.b16 %v408
      %v840 = vunpack.c.l.b16 %v409
      %v841 = vunpack.c.h.b16 %v409
      %v842 = vunpack.c.l.b16 %v410
      %v843 = vpack.c.b16 %v840, %v837
      %v844 = vpack.c.b16 %v841, %v838
      %v845 = vpack.c.b16 %v842, %v839
      %v847 = vsel %vm657, %v829, 0
      %v850 = vsel %vm657, %v830, 0
      %v853 = vsel %vm657, %v831, 0
      %v856 = vsel %vm657, %v832, 0
      %v859 = vsel %vm670, %v843, 0
      %v862 = vsel %vm670, %v844, 0
      %v865 = vsel %vm670, %v845, 0
      %867 = vmatprep.subr.bf16.mxu0 %v862
      %868 = vmatpush1.bf16.msra.mxu0 %v859
      %869 = vmatprep.subr.bf16.mxu0 0
      %870 = vmatpush1.bf16.msra.mxu0 0
      %871 = vmatprep.subr.bf16.mxu0 0
      %872 = vmatpush1.bf16.msra.mxu0 0
      %873 = vmatprep.subr.bf16.mxu0 0
      %874 = vmatpush1.bf16.msra.mxu0 0
      %875 = vmatprep.subr.bf16.mxu0 0
      %876 = vmatpush1.bf16.msra.mxu0 0
      %877 = vmatprep.subr.bf16.mxu0 0
      %878 = vmatpush1.bf16.msra.mxu0 0
      %879 = vmatprep.subr.bf16.mxu0 0
      %880 = vmatpush1.bf16.msra.mxu0 0
      %881 = vmatprep.subr.bf16.mxu0 0
      %882 = vmatpush1.bf16.msra.mxu0 0
      %883 = vmatprep.subr.bf16.mxu0 0
      %884 = vmatpush1.bf16.msra.mxu0 0
      %885 = vmatprep.subr.bf16.mxu0 0
      %886 = vmatpush1.bf16.msra.mxu0 0
      %887 = vmatprep.subr.bf16.mxu0 0
      %888 = vmatpush1.bf16.msra.mxu0 0
      %889 = vmatprep.subr.bf16.mxu0 0
      %890 = vmatpush1.bf16.msra.mxu0 0
      %891 = vmatprep.subr.bf16.mxu0 0
      %892 = vmatpush1.bf16.msra.mxu0 0
      %893 = vmatprep.subr.bf16.mxu0 0
      %894 = vmatpush1.bf16.msra.mxu0 0
      %895 = vmatprep.subr.bf16.mxu0 0
      %896 = vmatpush1.bf16.msra.mxu0 0
      %897 = vmatprep.subr.bf16.mxu0 0
      %898 = vmatpush1.bf16.msra.mxu0 0
      %899 = vmatprep.mubr.bf16.mxu0 0
      %900 = vmatmul.mubr.bf16.gmra.mrb[0].mxu0 %v847
      %v901 = vpop.f32.mrb[0].mxu0
      %v902 = vadd.f32 %v715, %v901
      %v903 = vpop.f32.mrb[0].mxu0
      %v904 = vadd.f32 %v717, %v903
      %v905 = vpop.f32.mrb[0].mxu0
      %v906 = vadd.f32 %v719, %v905
      %v907 = vpop.f32.mrb[0].mxu0
      %v908 = vadd.f32 %v721, %v907
      %909 = vmatprep.mubr.bf16.mxu0 0
      %910 = vmatmul.mubr.bf16.gmra.mrb[0].mxu0 %v850
      %v911 = vpop.f32.mrb[0].mxu0
      %v912 = vadd.f32 %v725, %v911
      %v913 = vpop.f32.mrb[0].mxu0
      %v914 = vadd.f32 %v727, %v913
      %v915 = vpop.f32.mrb[0].mxu0
      %v916 = vadd.f32 %v729, %v915
      %v917 = vpop.f32.mrb[0].mxu0
      %v918 = vadd.f32 %v731, %v917
      %919 = vmatprep.mubr.bf16.mxu0 0
      %920 = vmatmul.mubr.bf16.gmra.mrb[0].mxu0 %v853
      %v921 = vpop.f32.mrb[0].mxu0
      %v922 = vadd.f32 %v735, %v921
      %v923 = vpop.f32.mrb[0].mxu0
      %v924 = vadd.f32 %v737, %v923
      %v925 = vpop.f32.mrb[0].mxu0
      %v926 = vadd.f32 %v739, %v925
      %v927 = vpop.f32.mrb[0].mxu0
      %v928 = vadd.f32 %v741, %v927
      %929 = vmatprep.mubr.bf16.mxu0 0
      %930 = vmatmul.mubr.bf16.gmra.mrb[0].mxu0 %v856
      %v931 = vpop.f32.mrb[0].mxu0
      %v932 = vadd.f32 %v745, %v931
      %v933 = vpop.f32.mrb[0].mxu0
      %v934 = vadd.f32 %v747, %v933
      %v935 = vpop.f32.mrb[0].mxu0
      %v936 = vpop.f32.mrb[0].mxu0
      %937 = vdwg.mxu0
      %938 = vmatprep.subr.bf16.mxu0 0
      %939 = vmatpush1.bf16.msra.mxu0 %v865
      %940 = vmatprep.subr.bf16.mxu0 0
      %941 = vmatpush1.bf16.msra.mxu0 0
      %942 = vmatprep.subr.bf16.mxu0 0
      %943 = vmatpush1.bf16.msra.mxu0 0
      %944 = vmatprep.subr.bf16.mxu0 0
      %945 = vmatpush1.bf16.msra.mxu0 0
      %946 = vmatprep.subr.bf16.mxu0 0
      %947 = vmatpush1.bf16.msra.mxu0 0
      %948 = vmatprep.subr.bf16.mxu0 0
      %949 = vmatpush1.bf16.msra.mxu0 0
      %950 = vmatprep.subr.bf16.mxu0 0
      %951 = vmatpush1.bf16.msra.mxu0 0
      %952 = vmatprep.subr.bf16.mxu0 0
      %953 = vmatpush1.bf16.msra.mxu0 0
      %954 = vmatprep.subr.bf16.mxu0 0
      %955 = vmatpush1.bf16.msra.mxu0 0
      %956 = vmatprep.subr.bf16.mxu0 0
      %957 = vmatpush1.bf16.msra.mxu0 0
      %958 = vmatprep.subr.bf16.mxu0 0
      %959 = vmatpush1.bf16.msra.mxu0 0
      %960 = vmatprep.subr.bf16.mxu0 0
      %961 = vmatpush1.bf16.msra.mxu0 0
      %962 = vmatprep.subr.bf16.mxu0 0
      %963 = vmatpush1.bf16.msra.mxu0 0
      %964 = vmatprep.subr.bf16.mxu0 0
      %965 = vmatpush1.bf16.msra.mxu0 0
      %966 = vmatprep.subr.bf16.mxu0 0
      %967 = vmatpush1.bf16.msra.mxu0 0
      %968 = vmatprep.subr.bf16.mxu0 0
      %969 = vmatpush1.bf16.msra.mxu0 0
      %970 = vmatprep.mubr.bf16.mxu0 0
      %971 = vmatmul.mubr.bf16.gmra.mrb[0].mxu0 %v847
      %v972 = vpop.f32.mrb[0].mxu0
      %v973 = vadd.f32 %v786, %v972
      %v974 = vpop.f32.mrb[0].mxu0
      %v975 = vpop.f32.mrb[0].mxu0
      %v976 = vadd.f32 %v789, %v975
      %v977 = vpop.f32.mrb[0].mxu0
      %978 = vmatprep.mubr.bf16.mxu0 0
      %979 = vmatmul.mubr.bf16.gmra.mrb[0].mxu0 %v850
      %v980 = vpop.f32.mrb[0].mxu0
      %v981 = vadd.f32 %v794, %v980
      %v982 = vpop.f32.mrb[0].mxu0
      %v983 = vpop.f32.mrb[0].mxu0
      %v984 = vadd.f32 %v797, %v983
      %v985 = vpop.f32.mrb[0].mxu0
      %986 = vmatprep.mubr.bf16.mxu0 0
      %987 = vmatmul.mubr.bf16.gmra.mrb[0].mxu0 %v853
      %v988 = vpop.f32.mrb[0].mxu0
      %v989 = vadd.f32 %v802, %v988
      %v990 = vpop.f32.mrb[0].mxu0
      %v991 = vpop.f32.mrb[0].mxu0
      %v992 = vadd.f32 %v805, %v991
      %v993 = vpop.f32.mrb[0].mxu0
      %994 = vmatprep.mubr.bf16.mxu0 0
      %995 = vmatmul.mubr.bf16.gmra.mrb[0].mxu0 %v856
      %v996 = vpop.f32.mrb[0].mxu0
      %v997 = vadd.f32 %v810, %v996
      %v998 = vpop.f32.mrb[0].mxu0
      %v999 = vpop.f32.mrb[0].mxu0
      %v1000 = vpop.f32.mrb[0].mxu0
      %1001 = vdwg.mxu0
      %1009 = vrot.lane.b32.xlu0 %v225, 124
      %v1010 = vpop.permute.xlu0 %1009
      %1011 = vrot.lane.b32.xlu0 %v227, 124
      %v1012 = vpop.permute.xlu0 %1011
      %1013 = vrot.lane.b32.xlu0 %v229, 124
      %v1014 = vpop.permute.xlu0 %1013
      %1015 = vrot.lane.b32.xlu0 %v231, 124
      %v1016 = vpop.permute.xlu0 %1015
      %1017 = vrot.lane.b32.xlu0 %v233, 124
      %v1018 = vpop.permute.xlu0 %1017
      %1019 = vrot.lane.b32.xlu0 %v235, 124
      %v1020 = vpop.permute.xlu0 %1019
      %1021 = vrot.lane.b32.xlu0 %v237, 124
      %v1022 = vpop.permute.xlu0 %1021
      %v1030 = vmax.bf16 %v225, %v1010
      %v1031 = vmax.bf16 %v227, %v1012
      %v1032 = vmax.bf16 %v229, %v1014
      %v1033 = vmax.bf16 %v231, %v1016
      %v1034 = vmax.bf16 %v233, %v1018
      %v1035 = vmax.bf16 %v235, %v1020
      %v1036 = vmax.bf16 %v237, %v1022
      %v1044 = vmax.bf16 %v1030, %v475
      %v1045 = vmax.bf16 %v1031, %v484
      %v1046 = vmax.bf16 %v1032, %v493
      %v1047 = vmax.bf16 %v1033, %v502
      %v1048 = vmax.bf16 %v1034, %v511
      %v1049 = vmax.bf16 %v1035, %v520
      %v1050 = vmax.bf16 %v1036, %v529
      %v1051 = vmax.bf16 %v453, %v1044
      %v1052 = vmax.bf16 %v454, %v1045
      %v1053 = vmax.bf16 %v455, %v1046
      %v1054 = vmax.bf16 %v456, %v1047
      %v1055 = vmax.bf16 %v457, %v1048
      %v1056 = vmax.bf16 %v458, %v1049
      %v1057 = vmax.bf16 %v459, %v1050
      %1058 = vst.msk [vmem:[#allocation2] sm:$0xf] %vm239, %v226
      %1059 = vst.msk [vmem:[#allocation2 + $0x4] sm:$0xf] %vm239, %v228
      %1060 = vst.msk [vmem:[#allocation2 + $0x8] sm:$0xf] %vm239, %v230
      %1061 = vst.msk [vmem:[#allocation2 + $0xc] sm:$0xf] %vm239, %v232
      %1062 = vst.msk [vmem:[#allocation2 + $0x10] sm:$0xf] %vm239, %v234
      %1063 = vst.msk [vmem:[#allocation2 + $0x14] sm:$0xf] %vm239, %v236
      %1064 = vst.msk [vmem:[#allocation2 + $0x18] sm:$0xf] %vm239, %v238
      %v1066 = vshrl.u32 %v238, 16
      %v1068 = vrot.slane %v1066, 4
      %v1069 = vshll.u32 %v238, 16
      %v1071 = vrot.slane %v1069, 5
      %v1072 = vor.u32 %v1068, %v1071
      %v1073 = vrot.slane %v1072, 4
      %1074 = vrot.lane.b32.xlu0 %v1073, 8
      %v1075 = vpop.permute.xlu0 %1074
      %v1077 = vld [vmem:[#allocation2] sm:$0xf]
      %v1078 = vsel %vm333, %v313, %v1077
      %1079 = vst [vmem:[#allocation2] sm:$0xf] %v1078
      %v1080 = vld [vmem:[#allocation2 + $0x4] sm:$0xf]
      %v1081 = vsel %vm333, %v315, %v1080
      %1082 = vst [vmem:[#allocation2 + $0x4] sm:$0xf] %v1081
      %v1083 = vld [vmem:[#allocation2 + $0x8] sm:$0xf]
      %v1084 = vsel %vm333, %v317, %v1083
      %1085 = vst [vmem:[#allocation2 + $0x8] sm:$0xf] %v1084
      %v1086 = vld [vmem:[#allocation2 + $0xc] sm:$0xf]
      %v1087 = vsel %vm333, %v319, %v1086
      %1088 = vst [vmem:[#allocation2 + $0xc] sm:$0xf] %v1087
      %v1089 = vld [vmem:[#allocation2 + $0x10] sm:$0xf]
      %v1090 = vsel %vm333, %v321, %v1089
      %1091 = vst [vmem:[#allocation2 + $0x10] sm:$0xf] %v1090
      %v1092 = vld [vmem:[#allocation2 + $0x14] sm:$0xf]
      %v1093 = vsel %vm333, %v323, %v1092
      %1094 = vst [vmem:[#allocation2 + $0x14] sm:$0xf] %v1093
      %v1095 = vld [vmem:[#allocation2 + $0x18] sm:$0xf]
      %v1096 = vsel %vm333, %v1075, %v1095
      %1097 = vst [vmem:[#allocation2 + $0x18] sm:$0xf] %v1096
      %1098 = vrot.lane.b32.xlu0 %v1071, 8
      %v1099 = vpop.permute.xlu0 %1098
      %v1101 = vld [vmem:[#allocation2] sm:$0x8]
      %v1102 = vsel %vm378, %v358, %v1101
      %1103 = vst [vmem:[#allocation2] sm:$0x8] %v1102
      %v1104 = vld [vmem:[#allocation2 + $0x4] sm:$0x8]
      %v1105 = vsel %vm378, %v360, %v1104
      %1106 = vst [vmem:[#allocation2 + $0x4] sm:$0x8] %v1105
      %v1107 = vld [vmem:[#allocation2 + $0x8] sm:$0x8]
      %v1108 = vsel %vm378, %v362, %v1107
      %1109 = vst [vmem:[#allocation2 + $0x8] sm:$0x8] %v1108
      %v1110 = vld [vmem:[#allocation2 + $0xc] sm:$0x8]
      %v1111 = vsel %vm378, %v364, %v1110
      %1112 = vst [vmem:[#allocation2 + $0xc] sm:$0x8] %v1111
      %v1113 = vld [vmem:[#allocation2 + $0x10] sm:$0x8]
      %v1114 = vsel %vm378, %v366, %v1113
      %1115 = vst [vmem:[#allocation2 + $0x10] sm:$0x8] %v1114
      %v1116 = vld [vmem:[#allocation2 + $0x14] sm:$0x8]
      %v1117 = vsel %vm378, %v368, %v1116
      %1118 = vst [vmem:[#allocation2 + $0x14] sm:$0x8] %v1117
      %v1119 = vld [vmem:[#allocation2 + $0x18] sm:$0x8]
      %v1120 = vsel %vm378, %v1099, %v1119
      %1121 = vst [vmem:[#allocation2 + $0x18] sm:$0x8] %v1120
      %v1122 = vld [vmem:[#allocation2] sm:$0xf]
      %v1123 = vld [vmem:[#allocation2 + $0x4] sm:$0xf]
      %v1124 = vld [vmem:[#allocation2 + $0x8] sm:$0xf]
      %v1125 = vld [vmem:[#allocation2 + $0xc] sm:$0xf]
      %v1126 = vld [vmem:[#allocation2 + $0x10] sm:$0xf]
      %v1127 = vld [vmem:[#allocation2 + $0x14] sm:$0xf]
      %v1128 = vld [vmem:[#allocation2 + $0x18] sm:$0xf]
      %s1129 = scalar_lea.vmem %s1, 48
      %v1130 = vld [vmem:[%s1129] sm:$0xff]
      %v1131 = vld [vmem:[%s1129 + $0x8] sm:$0xf]
      %v1132 = vld [vmem:[%s1129 + $0xc] sm:$0x33]
      %v1133 = vld [vmem:[%s1129 + $0x14] sm:$0x3]
      %v1141 = vunpack.c.l.b16 %v1122
      %v1142 = vunpack.c.l.b16 %v1123
      %v1143 = vunpack.c.l.b16 %v1124
      %v1144 = vunpack.c.l.b16 %v1125
      %v1145 = vunpack.c.l.b16 %v1126
      %v1146 = vunpack.c.l.b16 %v1127
      %v1147 = vunpack.c.l.b16 %v1128
      %v1148 = vpack.c.b16 %v1142, %v1141
      %v1149 = vpack.c.b16 %v1144, %v1143
      %v1150 = vpack.c.b16 %v1146, %v1145
      %v1151 = vpack.c.b16 %v1147, %v1147
      %v1156 = vunpack.c.l.b16 %v1130
      %v1157 = vunpack.c.h.b16 %v1130
      %v1158 = vunpack.c.l.b16 %v1131
      %v1159 = vunpack.c.l.b16 %v1132
      %v1160 = vunpack.c.h.b16 %v1132
      %v1161 = vunpack.c.l.b16 %v1133
      %v1162 = vpack.c.b16 %v1159, %v1156
      %v1163 = vpack.c.b16 %v1160, %v1157
      %v1164 = vpack.c.b16 %v1161, %v1158
      %v1166 = vsel %vm657, %v1148, 0
      %v1169 = vsel %vm657, %v1149, 0
      %v1172 = vsel %vm657, %v1150, 0
      %v1175 = vsel %vm657, %v1151, 0
      %v1178 = vsel %vm670, %v1162, 0
      %v1181 = vsel %vm670, %v1163, 0
      %v1184 = vsel %vm670, %v1164, 0
      %1186 = vmatprep.subr.bf16.mxu0 %v1181
      %1187 = vmatpush1.bf16.msra.mxu0 %v1178
      %1188 = vmatprep.subr.bf16.mxu0 0
      %1189 = vmatpush1.bf16.msra.mxu0 0
      %1190 = vmatprep.subr.bf16.mxu0 0
      %1191 = vmatpush1.bf16.msra.mxu0 0
      %1192 = vmatprep.subr.bf16.mxu0 0
      %1193 = vmatpush1.bf16.msra.mxu0 0
      %1194 = vmatprep.subr.bf16.mxu0 0
      %1195 = vmatpush1.bf16.msra.mxu0 0
      %1196 = vmatprep.subr.bf16.mxu0 0
      %1197 = vmatpush1.bf16.msra.mxu0 0
      %1198 = vmatprep.subr.bf16.mxu0 0
      %1199 = vmatpush1.bf16.msra.mxu0 0
      %1200 = vmatprep.subr.bf16.mxu0 0
      %1201 = vmatpush1.bf16.msra.mxu0 0
      %1202 = vmatprep.subr.bf16.mxu0 0
      %1203 = vmatpush1.bf16.msra.mxu0 0
      %1204 = vmatprep.subr.bf16.mxu0 0
      %1205 = vmatpush1.bf16.msra.mxu0 0
      %1206 = vmatprep.subr.bf16.mxu0 0
      %1207 = vmatpush1.bf16.msra.mxu0 0
      %1208 = vmatprep.subr.bf16.mxu0 0
      %1209 = vmatpush1.bf16.msra.mxu0 0
      %1210 = vmatprep.subr.bf16.mxu0 0
      %1211 = vmatpush1.bf16.msra.mxu0 0
      %1212 = vmatprep.subr.bf16.mxu0 0
      %1213 = vmatpush1.bf16.msra.mxu0 0
      %1214 = vmatprep.subr.bf16.mxu0 0
      %1215 = vmatpush1.bf16.msra.mxu0 0
      %1216 = vmatprep.subr.bf16.mxu0 0
      %1217 = vmatpush1.bf16.msra.mxu0 0
      %1218 = vmatprep.mubr.bf16.mxu0 0
      %1219 = vmatmul.mubr.bf16.gmra.mrb[0].mxu0 %v1166
      %v1220 = vpop.f32.mrb[0].mxu0
      %v1221 = vadd.f32 0.0, %v1220
      %v1222 = vpop.f32.mrb[0].mxu0
      %v1223 = vadd.f32 0.0, %v1222
      %v1224 = vpop.f32.mrb[0].mxu0
      %v1225 = vadd.f32 0.0, %v1224
      %v1226 = vpop.f32.mrb[0].mxu0
      %v1227 = vadd.f32 0.0, %v1226
      %1228 = vmatprep.mubr.bf16.mxu0 0
      %1229 = vmatmul.mubr.bf16.gmra.mrb[0].mxu0 %v1169
      %v1230 = vpop.f32.mrb[0].mxu0
      %v1231 = vadd.f32 0.0, %v1230
      %v1232 = vpop.f32.mrb[0].mxu0
      %v1233 = vadd.f32 0.0, %v1232
      %v1234 = vpop.f32.mrb[0].mxu0
      %v1235 = vadd.f32 0.0, %v1234
      %v1236 = vpop.f32.mrb[0].mxu0
      %v1237 = vadd.f32 0.0, %v1236
      %1238 = vmatprep.mubr.bf16.mxu0 0
      %1239 = vmatmul.mubr.bf16.gmra.mrb[0].mxu0 %v1172
      %v1240 = vpop.f32.mrb[0].mxu0
      %v1241 = vadd.f32 0.0, %v1240
      %v1242 = vpop.f32.mrb[0].mxu0
      %v1243 = vadd.f32 0.0, %v1242
      %v1244 = vpop.f32.mrb[0].mxu0
      %v1245 = vadd.f32 0.0, %v1244
      %v1246 = vpop.f32.mrb[0].mxu0
      %v1247 = vadd.f32 0.0, %v1246
      %1248 = vmatprep.mubr.bf16.mxu0 0
      %1249 = vmatmul.mubr.bf16.gmra.mrb[0].mxu0 %v1175
      %v1250 = vpop.f32.mrb[0].mxu0
      %v1251 = vadd.f32 0.0, %v1250
      %v1252 = vpop.f32.mrb[0].mxu0
      %v1253 = vadd.f32 0.0, %v1252
      %v1254 = vpop.f32.mrb[0].mxu0
      %v1255 = vpop.f32.mrb[0].mxu0
      %1256 = vdwg.mxu0
      %1257 = vmatprep.subr.bf16.mxu0 0
      %1258 = vmatpush1.bf16.msra.mxu0 %v1184
      %1259 = vmatprep.subr.bf16.mxu0 0
      %1260 = vmatpush1.bf16.msra.mxu0 0
      %1261 = vmatprep.subr.bf16.mxu0 0
      %1262 = vmatpush1.bf16.msra.mxu0 0
      %1263 = vmatprep.subr.bf16.mxu0 0
      %1264 = vmatpush1.bf16.msra.mxu0 0
      %1265 = vmatprep.subr.bf16.mxu0 0
      %1266 = vmatpush1.bf16.msra.mxu0 0
      %1267 = vmatprep.subr.bf16.mxu0 0
      %1268 = vmatpush1.bf16.msra.mxu0 0
      %1269 = vmatprep.subr.bf16.mxu0 0
      %1270 = vmatpush1.bf16.msra.mxu0 0
      %1271 = vmatprep.subr.bf16.mxu0 0
      %1272 = vmatpush1.bf16.msra.mxu0 0
      %1273 = vmatprep.subr.bf16.mxu0 0
      %1274 = vmatpush1.bf16.msra.mxu0 0
      %1275 = vmatprep.subr.bf16.mxu0 0
      %1276 = vmatpush1.bf16.msra.mxu0 0
      %1277 = vmatprep.subr.bf16.mxu0 0
      %1278 = vmatpush1.bf16.msra.mxu0 0
      %1279 = vmatprep.subr.bf16.mxu0 0
      %1280 = vmatpush1.bf16.msra.mxu0 0
      %1281 = vmatprep.subr.bf16.mxu0 0
      %1282 = vmatpush1.bf16.msra.mxu0 0
      %1283 = vmatprep.subr.bf16.mxu0 0
      %1284 = vmatpush1.bf16.msra.mxu0 0
      %1285 = vmatprep.subr.bf16.mxu0 0
      %1286 = vmatpush1.bf16.msra.mxu0 0
      %1287 = vmatprep.subr.bf16.mxu0 0
      %1288 = vmatpush1.bf16.msra.mxu0 0
      %1289 = vmatprep.mubr.bf16.mxu0 0
      %1290 = vmatmul.mubr.bf16.gmra.mrb[0].mxu0 %v1166
      %v1291 = vpop.f32.mrb[0].mxu0
      %v1292 = vadd.f32 0.0, %v1291
      %v1293 = vpop.f32.mrb[0].mxu0
      %v1294 = vpop.f32.mrb[0].mxu0
      %v1295 = vadd.f32 0.0, %v1294
      %v1296 = vpop.f32.mrb[0].mxu0
      %1297 = vmatprep.mubr.bf16.mxu0 0
      %1298 = vmatmul.mubr.bf16.gmra.mrb[0].mxu0 %v1169
      %v1299 = vpop.f32.mrb[0].mxu0
      %v1300 = vadd.f32 0.0, %v1299
      %v1301 = vpop.f32.mrb[0].mxu0
      %v1302 = vpop.f32.mrb[0].mxu0
      %v1303 = vadd.f32 0.0, %v1302
      %v1304 = vpop.f32.mrb[0].mxu0
      %1305 = vmatprep.mubr.bf16.mxu0 0
      %1306 = vmatmul.mubr.bf16.gmra.mrb[0].mxu0 %v1172
      %v1307 = vpop.f32.mrb[0].mxu0
      %v1308 = vadd.f32 0.0, %v1307
      %v1309 = vpop.f32.mrb[0].mxu0
      %v1310 = vpop.f32.mrb[0].mxu0
      %v1311 = vadd.f32 0.0, %v1310
      %v1312 = vpop.f32.mrb[0].mxu0
      %1313 = vmatprep.mubr.bf16.mxu0 0
      %1314 = vmatmul.mubr.bf16.gmra.mrb[0].mxu0 %v1175
      %v1315 = vpop.f32.mrb[0].mxu0
      %v1316 = vadd.f32 0.0, %v1315
      %v1317 = vpop.f32.mrb[0].mxu0
      %v1318 = vpop.f32.mrb[0].mxu0
      %v1319 = vpop.f32.mrb[0].mxu0
      %1320 = vdwg.mxu0
      %v1321 = vadd.f32 %v902, %v1221
      %v1322 = vadd.f32 %v904, %v1223
      %v1323 = vadd.f32 %v973, %v1292
      %v1324 = vadd.f32 %v906, %v1225
      %v1325 = vadd.f32 %v908, %v1227
      %v1326 = vadd.f32 %v976, %v1295
      %v1327 = vadd.f32 %v912, %v1231
      %v1328 = vadd.f32 %v914, %v1233
      %v1329 = vadd.f32 %v981, %v1300
      %v1330 = vadd.f32 %v916, %v1235
      %v1331 = vadd.f32 %v918, %v1237
      %v1332 = vadd.f32 %v984, %v1303
      %v1333 = vadd.f32 %v922, %v1241
      %v1334 = vadd.f32 %v924, %v1243
      %v1335 = vadd.f32 %v989, %v1308
      %v1336 = vadd.f32 %v926, %v1245
      %v1337 = vadd.f32 %v928, %v1247
      %v1338 = vadd.f32 %v992, %v1311
      %v1339 = vadd.f32 %v932, %v1251
      %v1340 = vadd.f32 %v934, %v1253
      %v1341 = vadd.f32 %v997, %v1316
      %1343 = vrot.lane.b32.xlu0 %v238, 124
      %v1344 = vpop.permute.xlu0 %1343
      %v1346 = vmax.bf16 %v238, %v1344
      %v1348 = vmax.bf16 %v1346, %v1073
      %v1349 = vmax.bf16 %v1051, %v454
      %v1350 = vmax.bf16 %v1052, %v455
      %v1351 = vmax.bf16 %v1053, %v456
      %v1352 = vmax.bf16 %v1054, %v457
      %v1353 = vmax.bf16 %v1055, %v458
      %v1354 = vmax.bf16 %v1056, %v459
      %v1355 = vmax.bf16 %v1057, %v1348
      %v1356 = vpack.c.bf16 %v1321, %v1321
      %v1357 = vpack.c.bf16 %v1322, %v1322
      %v1358 = vpack.c.bf16 %v1323, %v1323
      %v1359 = vpack.c.bf16 %v1324, %v1324
      %v1360 = vpack.c.bf16 %v1325, %v1325
      %v1361 = vpack.c.bf16 %v1326, %v1326
      %v1362 = vpack.c.bf16 %v1327, %v1327
      %v1363 = vpack.c.bf16 %v1328, %v1328
      %v1364 = vpack.c.bf16 %v1329, %v1329
      %v1365 = vpack.c.bf16 %v1330, %v1330
      %v1366 = vpack.c.bf16 %v1331, %v1331
      %v1367 = vpack.c.bf16 %v1332, %v1332
      %v1368 = vpack.c.bf16 %v1333, %v1333
      %v1369 = vpack.c.bf16 %v1334, %v1334
      %v1370 = vpack.c.bf16 %v1335, %v1335
      %v1371 = vpack.c.bf16 %v1336, %v1336
      %v1372 = vpack.c.bf16 %v1337, %v1337
      %v1373 = vpack.c.bf16 %v1338, %v1338
      %v1374 = vpack.c.bf16 %v1339, %v1339
      %v1375 = vpack.c.bf16 %v1340, %v1340
      %v1376 = vpack.c.bf16 %v1341, %v1341
      %v1398 = vunpack.c.l.b16 %v1356
      %v1399 = vunpack.c.l.b16 %v1357
      %v1400 = vunpack.c.l.b16 %v1358
      %v1401 = vunpack.c.l.b16 %v1359
      %v1402 = vunpack.c.l.b16 %v1360
      %v1403 = vunpack.c.l.b16 %v1361
      %v1404 = vunpack.c.l.b16 %v1362
      %v1405 = vunpack.c.l.b16 %v1363
      %v1406 = vunpack.c.l.b16 %v1364
      %v1407 = vunpack.c.l.b16 %v1365
      %v1408 = vunpack.c.l.b16 %v1366
      %v1409 = vunpack.c.l.b16 %v1367
      %v1410 = vunpack.c.l.b16 %v1368
      %v1411 = vunpack.c.l.b16 %v1369
      %v1412 = vunpack.c.l.b16 %v1370
      %v1413 = vunpack.c.l.b16 %v1371
      %v1414 = vunpack.c.l.b16 %v1372
      %v1415 = vunpack.c.l.b16 %v1373
      %v1416 = vunpack.c.l.b16 %v1374
      %v1417 = vunpack.c.l.b16 %v1375
      %v1418 = vunpack.c.l.b16 %v1376
      %v1419 = vpack.c.b16 %v1399, %v1398
      %v1420 = vpack.c.b16 %v1400, %v1400
      %v1421 = vpack.c.b16 %v1402, %v1401
      %v1422 = vpack.c.b16 %v1403, %v1403
      %v1423 = vpack.c.b16 %v1405, %v1404
      %v1424 = vpack.c.b16 %v1406, %v1406
      %v1425 = vpack.c.b16 %v1408, %v1407
      %v1426 = vpack.c.b16 %v1409, %v1409
      %v1427 = vpack.c.b16 %v1411, %v1410
      %v1428 = vpack.c.b16 %v1412, %v1412
      %v1429 = vpack.c.b16 %v1414, %v1413
      %v1430 = vpack.c.b16 %v1415, %v1415
      %v1431 = vpack.c.b16 %v1417, %v1416
      %v1432 = vpack.c.b16 %v1418, %v1418
      %1447 = vst [vmem:[%s212] sm:$0xff] %v1419
      %1448 = vst [vmem:[%s212 + $0x8] sm:$0xf] %v1420
      %1449 = vst [vmem:[%s212 + $0xc] sm:$0xff] %v1421
      %1450 = vst [vmem:[%s212 + $0x14] sm:$0xf] %v1422
      %1451 = vst [vmem:[%s212 + $0x18] sm:$0xff] %v1423
      %1452 = vst [vmem:[%s212 + $0x20] sm:$0xf] %v1424
      %1453 = vst [vmem:[%s212 + $0x24] sm:$0xff] %v1425
      %1454 = vst [vmem:[%s212 + $0x2c] sm:$0xf] %v1426
      %1455 = vst [vmem:[%s212 + $0x30] sm:$0xff] %v1427
      %1456 = vst [vmem:[%s212 + $0x38] sm:$0xf] %v1428
      %1457 = vst [vmem:[%s212 + $0x3c] sm:$0xff] %v1429
      %1458 = vst [vmem:[%s212 + $0x44] sm:$0xf] %v1430
      %1459 = vst [vmem:[%s212 + $0x48] sm:$0xff] %v1431
      %1460 = vst [vmem:[%s212 + $0x50] sm:$0xf] %v1432
      %vm1461 = vcmask 1046528
      %v1462 = vsel %vm1461, %v1321, 0.0
      %v1463 = vsel %vm1461, %v1324, 0.0
      %v1464 = vadd.f32 %v1462, %v1463
      %v1465 = vsel %vm1461, %v1327, 0.0
      %v1466 = vadd.f32 %v1464, %v1465
      %v1467 = vsel %vm1461, %v1330, 0.0
      %v1468 = vadd.f32 %v1466, %v1467
      %v1469 = vsel %vm1461, %v1333, 0.0
      %v1470 = vadd.f32 %v1468, %v1469
      %v1471 = vsel %vm1461, %v1336, 0.0
      %v1472 = vadd.f32 %v1470, %v1471
      %v1473 = vsel %vm1461, %v1339, 0.0
      %v1474 = vadd.f32 %v1472, %v1473
      %v1475 = vsel %vm1461, %v1322, 0.0
      %v1476 = vsel %vm1461, %v1325, 0.0
      %v1477 = vadd.f32 %v1475, %v1476
      %v1478 = vsel %vm1461, %v1328, 0.0
      %v1479 = vadd.f32 %v1477, %v1478
      %v1480 = vsel %vm1461, %v1331, 0.0
      %v1481 = vadd.f32 %v1479, %v1480
      %v1482 = vsel %vm1461, %v1334, 0.0
      %v1483 = vadd.f32 %v1481, %v1482
      %v1484 = vsel %vm1461, %v1337, 0.0
      %v1485 = vadd.f32 %v1483, %v1484
      %v1486 = vsel %vm1461, %v1340, 0.0
      %v1487 = vadd.f32 %v1485, %v1486
      %v1488 = vsel %vm1461, %v1323, 0.0
      %v1489 = vsel %vm1461, %v1326, 0.0
      %v1490 = vadd.f32 %v1488, %v1489
      %v1491 = vsel %vm1461, %v1329, 0.0
      %v1492 = vadd.f32 %v1490, %v1491
      %v1493 = vsel %vm1461, %v1332, 0.0
      %v1494 = vadd.f32 %v1492, %v1493
      %v1495 = vsel %vm1461, %v1335, 0.0
      %v1496 = vadd.f32 %v1494, %v1495
      %v1497 = vsel %vm1461, %v1338, 0.0
      %v1498 = vadd.f32 %v1496, %v1497
      %v1499 = vsel %vm1461, %v1341, 0.0
      %v1500 = vadd.f32 %v1498, %v1499
      %v1501 = vsel %vm1461, %v1474, 0.0
      %v1502 = vrot.slane %v1501, 4
      %v1503 = vadd.f32 %v1501, %v1502
      %v1504 = vrot.slane %v1503, 2
      %v1505 = vadd.f32 %v1503, %v1504
      %v1506 = vrot.slane %v1505, 1
      %v1507 = vadd.f32 %v1505, %v1506
      %v1508 = vsel %vm1461, %v1487, 0.0
      %v1509 = vrot.slane %v1508, 4
      %v1510 = vadd.f32 %v1508, %v1509
      %v1511 = vrot.slane %v1510, 2
      %v1512 = vadd.f32 %v1510, %v1511
      %v1513 = vrot.slane %v1512, 1
      %v1514 = vadd.f32 %v1512, %v1513
      %v1515 = vsel %vm1461, %v1500, 0.0
      %v1516 = vrot.slane %v1515, 4
      %v1517 = vadd.f32 %v1515, %v1516
      %v1518 = vrot.slane %v1517, 2
      %v1519 = vadd.f32 %v1517, %v1518
      %v1520 = vrot.slane %v1519, 1
      %v1521 = vadd.f32 %v1519, %v1520
      %v1525 = vcombine.low %v1507, %v1514
      %v1527 = vunpack.c.l.s4 1966171168
      %v1528 = vunpack.c.0.s8 %v1527
      %v1529 = vlaneseq
      %v1530 = vshrl.u32 %v1529, 7
      %v1531 = vsub.s32 %v1528, %v1530
      %v1532 = vrot.slane %v1525, %v1531
      %v1534 = vunpack.c.l.s4 1966171168
      %v1535 = vunpack.c.0.s8 %v1534
      %v1536 = vlaneseq
      %v1537 = vshrl.u32 %v1536, 7
      %v1538 = vsub.s32 %v1535, %v1537
      %v1539 = vrot.slane %v1521, %v1538
      %v1540 = vcombine.low %v1532, %v1539
      %v1542 = vunpack.c.l.s4 1966171168
      %v1543 = vunpack.c.0.s8 %v1542
      %v1544 = vlaneseq
      %v1545 = vshrl.u32 %v1544, 7
      %v1546 = vsub.s32 %v1543, %v1545
      %v1547 = vrot.slane %v1540, %v1546
      %v1549 = vlaneseq
      %vm1550 = vcmp.ge.s32.totalorder %v1549, 0
      %vm1551 = vcmp.lt.s32.totalorder %v1549, 384
      %vm1552 = vmand %vm1550, %vm1551
      %1553 = vst.msk [vmem:[%s217] ss:$2 sm:$0x7] %vm1552, %v1547
      %v1554 = vmul.f32 %v1321, %v1321
      %v1555 = vmul.f32 %v1322, %v1322
      %v1556 = vmul.f32 %v1323, %v1323
      %v1557 = vmul.f32 %v1324, %v1324
      %v1558 = vmul.f32 %v1325, %v1325
      %v1559 = vmul.f32 %v1326, %v1326
      %v1560 = vmul.f32 %v1327, %v1327
      %v1561 = vmul.f32 %v1328, %v1328
      %v1562 = vmul.f32 %v1329, %v1329
      %v1563 = vmul.f32 %v1330, %v1330
      %v1564 = vmul.f32 %v1331, %v1331
      %v1565 = vmul.f32 %v1332, %v1332
      %v1566 = vmul.f32 %v1333, %v1333
      %v1567 = vmul.f32 %v1334, %v1334
      %v1568 = vmul.f32 %v1335, %v1335
      %v1569 = vmul.f32 %v1336, %v1336
      %v1570 = vmul.f32 %v1337, %v1337
      %v1571 = vmul.f32 %v1338, %v1338
      %v1572 = vmul.f32 %v1339, %v1339
      %v1573 = vmul.f32 %v1340, %v1340
      %v1574 = vmul.f32 %v1341, %v1341
      %v1575 = vsel %vm1461, %v1554, 0.0
      %v1576 = vsel %vm1461, %v1557, 0.0
      %v1577 = vadd.f32 %v1575, %v1576
      %v1578 = vsel %vm1461, %v1560, 0.0
      %v1579 = vadd.f32 %v1577, %v1578
      %v1580 = vsel %vm1461, %v1563, 0.0
      %v1581 = vadd.f32 %v1579, %v1580
      %v1582 = vsel %vm1461, %v1566, 0.0
      %v1583 = vadd.f32 %v1581, %v1582
      %v1584 = vsel %vm1461, %v1569, 0.0
      %v1585 = vadd.f32 %v1583, %v1584
      %v1586 = vsel %vm1461, %v1572, 0.0
      %v1587 = vadd.f32 %v1585, %v1586
      %v1588 = vsel %vm1461, %v1555, 0.0
      %v1589 = vsel %vm1461, %v1558, 0.0
      %v1590 = vadd.f32 %v1588, %v1589
      %v1591 = vsel %vm1461, %v1561, 0.0
      %v1592 = vadd.f32 %v1590, %v1591
      %v1593 = vsel %vm1461, %v1564, 0.0
      %v1594 = vadd.f32 %v1592, %v1593
      %v1595 = vsel %vm1461, %v1567, 0.0
      %v1596 = vadd.f32 %v1594, %v1595
      %v1597 = vsel %vm1461, %v1570, 0.0
      %v1598 = vadd.f32 %v1596, %v1597
      %v1599 = vsel %vm1461, %v1573, 0.0
      %v1600 = vadd.f32 %v1598, %v1599
      %v1601 = vsel %vm1461, %v1556, 0.0
      %v1602 = vsel %vm1461, %v1559, 0.0
      %v1603 = vadd.f32 %v1601, %v1602
      %v1604 = vsel %vm1461, %v1562, 0.0
      %v1605 = vadd.f32 %v1603, %v1604
      %v1606 = vsel %vm1461, %v1565, 0.0
      %v1607 = vadd.f32 %v1605, %v1606
      %v1608 = vsel %vm1461, %v1568, 0.0
      %v1609 = vadd.f32 %v1607, %v1608
      %v1610 = vsel %vm1461, %v1571, 0.0
      %v1611 = vadd.f32 %v1609, %v1610
      %v1612 = vsel %vm1461, %v1574, 0.0
      %v1613 = vadd.f32 %v1611, %v1612
      %v1614 = vsel %vm1461, %v1587, 0.0
      %v1615 = vrot.slane %v1614, 4
      %v1616 = vadd.f32 %v1614, %v1615
      %v1617 = vrot.slane %v1616, 2
      %v1618 = vadd.f32 %v1616, %v1617
      %v1619 = vrot.slane %v1618, 1
      %v1620 = vadd.f32 %v1618, %v1619
      %v1621 = vsel %vm1461, %v1600, 0.0
      %v1622 = vrot.slane %v1621, 4
      %v1623 = vadd.f32 %v1621, %v1622
      %v1624 = vrot.slane %v1623, 2
      %v1625 = vadd.f32 %v1623, %v1624
      %v1626 = vrot.slane %v1625, 1
      %v1627 = vadd.f32 %v1625, %v1626
      %v1628 = vsel %vm1461, %v1613, 0.0
      %v1629 = vrot.slane %v1628, 4
      %v1630 = vadd.f32 %v1628, %v1629
      %v1631 = vrot.slane %v1630, 2
      %v1632 = vadd.f32 %v1630, %v1631
      %v1633 = vrot.slane %v1632, 1
      %v1634 = vadd.f32 %v1632, %v1633
      %v1638 = vcombine.low %v1620, %v1627
      %v1640 = vunpack.c.l.s4 1966171168
      %v1641 = vunpack.c.0.s8 %v1640
      %v1642 = vlaneseq
      %v1643 = vshrl.u32 %v1642, 7
      %v1644 = vsub.s32 %v1641, %v1643
      %v1645 = vrot.slane %v1638, %v1644
      %v1647 = vunpack.c.l.s4 1966171168
      %v1648 = vunpack.c.0.s8 %v1647
      %v1649 = vlaneseq
      %v1650 = vshrl.u32 %v1649, 7
      %v1651 = vsub.s32 %v1648, %v1650
      %v1652 = vrot.slane %v1634, %v1651
      %v1653 = vcombine.low %v1645, %v1652
      %v1655 = vunpack.c.l.s4 1966171168
      %v1656 = vunpack.c.0.s8 %v1655
      %v1657 = vlaneseq
      %v1658 = vshrl.u32 %v1657, 7
      %v1659 = vsub.s32 %v1656, %v1658
      %v1660 = vrot.slane %v1653, %v1659
      %s1662 = scalar_lea.vmem %s217, 1
      %1663 = vst.msk [vmem:[%s1662] ss:$2 sm:$0x7] %vm1552, %v1660
      %vm1664 = vcmask 27648
      %vm1665 = vmand %vm1664, %vm332
      %v1666 = vld [vmem:[%s222] sm:$0xf]
      %v1667 = vsel %vm1665, %v1349, %v1666
      %1668 = vst [vmem:[%s222] sm:$0xf] %v1667
      %v1669 = vld [vmem:[%s222 + $0x4] sm:$0xf]
      %v1670 = vsel %vm1665, %v1350, %v1669
      %1671 = vst [vmem:[%s222 + $0x4] sm:$0xf] %v1670
      %v1672 = vld [vmem:[%s222 + $0x8] sm:$0xf]
      %v1673 = vsel %vm1665, %v1351, %v1672
      %1674 = vst [vmem:[%s222 + $0x8] sm:$0xf] %v1673
      %v1675 = vld [vmem:[%s222 + $0xc] sm:$0xf]
      %v1676 = vsel %vm1665, %v1352, %v1675
      %1677 = vst [vmem:[%s222 + $0xc] sm:$0xf] %v1676
      %v1678 = vld [vmem:[%s222 + $0x10] sm:$0xf]
      %v1679 = vsel %vm1665, %v1353, %v1678
      %1680 = vst [vmem:[%s222 + $0x10] sm:$0xf] %v1679
      %v1681 = vld [vmem:[%s222 + $0x14] sm:$0xf]
      %v1682 = vsel %vm1665, %v1354, %v1681
      %1683 = vst [vmem:[%s222 + $0x14] sm:$0xf] %v1682
      %v1684 = vld [vmem:[%s222 + $0x18] sm:$0xf]
      %v1685 = vsel %vm1665, %v1355, %v1684
      %1686 = vst [vmem:[%s222 + $0x18] sm:$0xf] %v1685
      %p1687 = scmp.lt.s32.totalorder %s16, 1
      %s1688 = scalar_select %p1687, %s16, 1
      %s1689 = smul.addr %s1688, 21
      %s1690 = smul.addr %s1689, 4
      %s1691 = scalar_lea.vmem %s2, %s1690
      %p1692 = scmp.lt.s32.totalorder %s16, 1
      %s1693 = scalar_select %p1692, %s16, 1
      %s1694 = smul.addr %s1693, 3
      %s1695 = smul.addr %s1694, 2
      %s1696 = scalar_lea.vmem %s3, %s1695
      %p1697 = scmp.lt.s32.totalorder %s16, 1
      %s1698 = scalar_select %p1697, %s16, 1
      %s1699 = smul.addr %s1698, 7
      %s1700 = smul.addr %s1699, 4
      %s1701 = scalar_lea.vmem %s4, %s1700
      // Predicated region
      $region29: #{inception_b_forward.8} parent=27 // pred_check
        %p1702 = pneg %p81
      $region30: #{inception_b_forward.8} parent=27 // pred_check_branch
        %1704 = sbr.rel (%p1702) target = $region32
      $region31: #{inception_b_forward.8} parent=27 // pred_region
        _
      $region32: #{inception_b_forward.8} parent=27 // pred_fallthru
        _
      // Predicated region
      $region33: #{inception_b_forward.8} parent=27 // pred_check
        %p1705 = pneg %p107
      $region34: #{inception_b_forward.8} parent=27 // pred_check_branch
        %1707 = sbr.rel (%p1705) target = $region36
      $region35: #{inception_b_forward.8} parent=27 // pred_region
        _
      $region36: #{inception_b_forward.8} parent=27 // pred_fallthru
        _
      // Predicated region
      $region37: #{inception_b_forward.8} parent=27 // pred_check
        %p1708 = pneg %p133
      $region38: #{inception_b_forward.8} parent=27 // pred_check_branch
        %1710 = sbr.rel (%p1708) target = $region40
      $region39: #{inception_b_forward.8} parent=27 // pred_region
        _
      $region40: #{inception_b_forward.8} parent=27 // pred_fallthru
        _
    $region28: #{inception_b_forward.8} parent=5 // pred_fallthru
      _
    %p1711 = scmp.le.s32.totalorder 2, %s11
    // Predicated region
    $region41: #{inception_b_forward.8} parent=5 // pred_check
      %p1712 = pneg %p1711
    $region42: #{inception_b_forward.8} parent=5 // pred_check_branch
      %1714 = sbr.rel (%p1712) target = $region44
    $region43: #{inception_b_forward.8} parent=5 // pred_region
      %s1715 = ssub.s32 %s11, 2
      // Predicated region
      $region45: #{inception_b_forward.8} parent=43 // pred_check
        %p1716 = pneg %p87
      $region46: #{inception_b_forward.8} parent=43 // pred_check_branch
        %1718 = sbr.rel (%p1716) target = $region48
      $region47: #{inception_b_forward.8} parent=43 // pred_region
        %p1719 = scmp.lt.s32.totalorder %s17, 1
        %s1720 = scalar_select %p1719, %s17, 1
        %s1721 = smul.addr %s1720, 21
        %s1722 = smul.addr %s1721, 4
        %s1723 = scalar_lea.vmem %s2, %s1722
      $region48: #{inception_b_forward.8} parent=43 // pred_fallthru
        _
      // Predicated region
      $region49: #{inception_b_forward.8} parent=43 // pred_check
        %p1724 = pneg %p113
      $region50: #{inception_b_forward.8} parent=43 // pred_check_branch
        %1726 = sbr.rel (%p1724) target = $region52
      $region51: #{inception_b_forward.8} parent=43 // pred_region
        %p1727 = scmp.lt.s32.totalorder %s17, 1
        %s1728 = scalar_select %p1727, %s17, 1
        %s1729 = smul.addr %s1728, 3
        %s1730 = smul.addr %s1729, 2
        %s1731 = scalar_lea.vmem %s3, %s1730
      $region52: #{inception_b_forward.8} parent=43 // pred_fallthru
        _
      // Predicated region
      $region53: #{inception_b_forward.8} parent=43 // pred_check
        %p1732 = pneg %p139
      $region54: #{inception_b_forward.8} parent=43 // pred_check_branch
        %1734 = sbr.rel (%p1732) target = $region56
      $region55: #{inception_b_forward.8} parent=43 // pred_region
        %p1735 = scmp.lt.s32.totalorder %s17, 1
        %s1736 = scalar_select %p1735, %s17, 1
        %s1737 = smul.addr %s1736, 7
        %s1738 = smul.addr %s1737, 4
        %s1739 = scalar_lea.vmem %s4, %s1738
      $region56: #{inception_b_forward.8} parent=43 // pred_fallthru
        _
    $region44: #{inception_b_forward.8} parent=5 // pred_fallthru
      _
  $region6: #{inception_b_forward.8} parent=0 // loop_footer
    %s15 = sadd.s32 1, %s11
  $region7: #{inception_b_forward.8} parent=0 // loop_footer_branch
    %10 = sbr.rel target = $region3
  $region8: #{inception_b_forward.8} parent=0 // loop_exit
    _

// kernel: inception_b_forward.6
$region0: #{inception_b_forward.6}
  #allocation0 [shape = 'u32[]', space=smem, size = 0x4, offset = 0x4, fixed_abs, tag = 'smem constant byte address 0x4 - core index']
  #allocation1 [shape = 'u32[144,128]{1,0:T(1,128)}', space=vmem, size = 0x12000, scoped, tag = 'internal scratch']
  #allocation2 [shape = 'bf16[18,18,64]{2,1,0:T(8,128)(2,1)}', space=vmem, size = 0x1b000, scoped, tag = 'scratch operand']
  #allocation3 [shape = 'bf16[16,16,192]{2,1,0:T(16,128)(2,1)}', space=vmem, size = 0x20000, scoped, tag = 'scratch operand']
  %s0 = inlined_call_operand.vmem [shape: bf16[2,16,16,64], index: 0, kind: input, shape index: {}]
  %s1 = inlined_call_operand.vmem [shape: f32[1,64], index: 1, kind: input, shape index: {}]
  %s2 = inlined_call_operand.vmem [shape: f32[1,64], index: 2, kind: input, shape index: {}]
  %s3 = inlined_call_operand.vmem [shape: bf16[3,192,128], index: 3, kind: input, shape index: {}]
  %s4 = inlined_call_operand.vmem [shape: bf16[2,16,16,128], index: 4, kind: output, shape index: {0}]
  %s5 = inlined_call_operand.vmem [shape: f32[2,2,128], index: 5, kind: output, shape index: {1}]
  %6 = xla_tuple %s4, %s5
  %s7 = sld [smem:[#allocation0]]
  $region57: #{inception_b_forward.6} parent=0
    _
  %s9 = ssub.s32 1, %s7
  %s10 = scalar_select 0, %s9, %s7
  loop: start=0, step=1, limit=4
  $region2: #{inception_b_forward.6} parent=0 // loop_pre_header
    _
  $region3: #{inception_b_forward.6} parent=0 // loop_header
    %s12 = sphi 0, %s16
    %p13 = scmp.ge.s32.totalorder %s12, 4
    %s22 = sphi 0, %s24
    %s25 = sphi 0, %s22
    %s26 = sphi 0, %s25
    %s42 = sphi 0, %s26
    %s46 = sphi 0, %s46
    %s48 = sphi 0, %s46
    %s49 = sphi 0, %s48
    %s63 = sphi 0, %s49
    %s67 = sphi 0, %s67
    %s69 = sphi 0, %s67
    %s70 = sphi 0, %s69
    %s84 = sphi 0, %s70
    %s88 = sphi 0, %s88
    %s90 = sphi 0, %s88
    %s91 = sphi 0, %s90
    %s105 = sphi 0, %s91
    %s111 = sphi 0, %s113
    %s114 = sphi 0, %s111
    %s115 = sphi 0, %s114
    %s131 = sphi 0, %s115
    %s137 = sphi 0, %s139
    %s140 = sphi 0, %s137
    %s141 = sphi 0, %s140
    %s157 = sphi 0, %s141
  $region4: #{inception_b_forward.6} parent=0 // loop_header_branch
    %15 = sbr.rel (%p13) target = $region8
  $region5: #{inception_b_forward.6} parent=0 // loop_body
    %s17 = ssub.s32 %s12, 1
    %s18 = ssub.s32 %s12, 2
    %s19 = sadd.s32 %s12, 1
    %s20 = ssub.s32 %s12, %s19
    %p21 = scmp.eq.s32.totalorder %s20, 0
    %s23 = sadd.s32 %s22, 1
    %s24 = scalar_select %p21, %s22, %s23
    %p27 = pneg %p21
    %p28 = scmp.eq.s32.totalorder %s12, 1
    %p29 = por %p27, %p28
    %p30 = scmp.ne.s32.totalorder %s22, %s25
    %p31 = scmp.eq.s32.totalorder %s12, 0
    %p32 = por %p30, %p31
    %p33 = scmp.ne.s32.totalorder %s22, %s25
    %p34 = scmp.eq.s32.totalorder %s17, 1
    %p35 = por %p33, %p34
    %p36 = scmp.ne.s32.totalorder %s25, %s26
    %p37 = scmp.eq.s32.totalorder %s17, 0
    %p38 = por %p36, %p37
    %p39 = scmp.ne.s32.totalorder %s25, %s26
    %p40 = scmp.eq.s32.totalorder %s18, 1
    %p41 = por %p39, %p40
    %p43 = scmp.ne.s32.totalorder %s26, %s42
    %p44 = scmp.eq.s32.totalorder %s18, 0
    %p45 = por %p43, %p44
    %s47 = sadd.s32 %s46, 1
    %p50 = scmp.eq.s32.totalorder %s12, 1
    %p51 = scmp.ne.s32.totalorder %s46, %s48
    %p52 = scmp.eq.s32.totalorder %s12, 0
    %p53 = por %p51, %p52
    %p54 = scmp.ne.s32.totalorder %s46, %s48
    %p55 = scmp.eq.s32.totalorder %s17, 1
    %p56 = por %p54, %p55
    %p57 = scmp.ne.s32.totalorder %s48, %s49
    %p58 = scmp.eq.s32.totalorder %s17, 0
    %p59 = por %p57, %p58
    %p60 = scmp.ne.s32.totalorder %s48, %s49
    %p61 = scmp.eq.s32.totalorder %s18, 1
    %p62 = por %p60, %p61
    %p64 = scmp.ne.s32.totalorder %s49, %s63
    %p65 = scmp.eq.s32.totalorder %s18, 0
    %p66 = por %p64, %p65
    %s68 = sadd.s32 %s67, 1
    %p71 = scmp.eq.s32.totalorder %s12, 1
    %p72 = scmp.ne.s32.totalorder %s67, %s69
    %p73 = scmp.eq.s32.totalorder %s12, 0
    %p74 = por %p72, %p73
    %p75 = scmp.ne.s32.totalorder %s67, %s69
    %p76 = scmp.eq.s32.totalorder %s17, 1
    %p77 = por %p75, %p76
    %p78 = scmp.ne.s32.totalorder %s69, %s70
    %p79 = scmp.eq.s32.totalorder %s17, 0
    %p80 = por %p78, %p79
    %p81 = scmp.ne.s32.totalorder %s69, %s70
    %p82 = scmp.eq.s32.totalorder %s18, 1
    %p83 = por %p81, %p82
    %p85 = scmp.ne.s32.totalorder %s70, %s84
    %p86 = scmp.eq.s32.totalorder %s18, 0
    %p87 = por %p85, %p86
    %s89 = sadd.s32 %s88, 1
    %p92 = scmp.eq.s32.totalorder %s12, 1
    %p93 = scmp.ne.s32.totalorder %s88, %s90
    %p94 = scmp.eq.s32.totalorder %s12, 0
    %p95 = por %p93, %p94
    %p96 = scmp.ne.s32.totalorder %s88, %s90
    %p97 = scmp.eq.s32.totalorder %s17, 1
    %p98 = por %p96, %p97
    %p99 = scmp.ne.s32.totalorder %s90, %s91
    %p100 = scmp.eq.s32.totalorder %s17, 0
    %p101 = por %p99, %p100
    %p102 = scmp.ne.s32.totalorder %s90, %s91
    %p103 = scmp.eq.s32.totalorder %s18, 1
    %p104 = por %p102, %p103
    %p106 = scmp.ne.s32.totalorder %s91, %s105
    %p107 = scmp.eq.s32.totalorder %s18, 0
    %p108 = por %p106, %p107
    %s109 = ssub.s32 %s12, %s19
    %p110 = scmp.eq.s32.totalorder %s109, 0
    %s112 = sadd.s32 %s111, 1
    %s113 = scalar_select %p110, %s111, %s112
    %p116 = pneg %p110
    %p117 = scmp.eq.s32.totalorder %s12, 1
    %p118 = por %p116, %p117
    %p119 = scmp.ne.s32.totalorder %s111, %s114
    %p120 = scmp.eq.s32.totalorder %s12, 0
    %p121 = por %p119, %p120
    %p122 = scmp.ne.s32.totalorder %s111, %s114
    %p123 = scmp.eq.s32.totalorder %s17, 1
    %p124 = por %p122, %p123
    %p125 = scmp.ne.s32.totalorder %s114, %s115
    %p126 = scmp.eq.s32.totalorder %s17, 0
    %p127 = por %p125, %p126
    %p128 = scmp.ne.s32.totalorder %s114, %s115
    %p129 = scmp.eq.s32.totalorder %s18, 1
    %p130 = por %p128, %p129
    %p132 = scmp.ne.s32.totalorder %s115, %s131
    %p133 = scmp.eq.s32.totalorder %s18, 0
    %p134 = por %p132, %p133
    %s135 = ssub.s32 %s12, %s19
    %p136 = scmp.eq.s32.totalorder %s135, 0
    %s138 = sadd.s32 %s137, 1
    %s139 = scalar_select %p136, %s137, %s138
    %p142 = pneg %p136
    %p143 = scmp.eq.s32.totalorder %s12, 1
    %p144 = por %p142, %p143
    %p145 = scmp.ne.s32.totalorder %s137, %s140
    %p146 = scmp.eq.s32.totalorder %s12, 0
    %p147 = por %p145, %p146
    %p148 = scmp.ne.s32.totalorder %s137, %s140
    %p149 = scmp.eq.s32.totalorder %s17, 1
    %p150 = por %p148, %p149
    %p151 = scmp.ne.s32.totalorder %s140, %s141
    %p152 = scmp.eq.s32.totalorder %s17, 0
    %p153 = por %p151, %p152
    %p154 = scmp.ne.s32.totalorder %s140, %s141
    %p155 = scmp.eq.s32.totalorder %s18, 1
    %p156 = por %p154, %p155
    %p158 = scmp.ne.s32.totalorder %s141, %s157
    %p159 = scmp.eq.s32.totalorder %s18, 0
    %p160 = por %p158, %p159
    %p161 = scmp.le.s32.totalorder 1, %s12
    %p162 = scmp.lt.s32.totalorder %s12, 3
    %p163 = pnand %p161, %p162
    %p164 = pneg %p163
    // Predicated region
    $region9: #{inception_b_forward.6} parent=5 // pred_check
      _
    $region10: #{inception_b_forward.6} parent=5 // pred_check_branch
      %166 = sbr.rel (%p163) target = $region12
    $region11: #{inception_b_forward.6} parent=5 // pred_region
      %s167 = ssub.s32 %s12, 1
      // Predicated region
      $region13: #{inception_b_forward.6} parent=11 // pred_check
        %p168 = pneg %p59
      $region14: #{inception_b_forward.6} parent=11 // pred_check_branch
        %170 = sbr.rel (%p168) target = $region16
      $region15: #{inception_b_forward.6} parent=11 // pred_region
        _
      $region16: #{inception_b_forward.6} parent=11 // pred_fallthru
        _
      // Predicated region
      $region17: #{inception_b_forward.6} parent=11 // pred_check
        %p171 = pneg %p80
      $region18: #{inception_b_forward.6} parent=11 // pred_check_branch
        %173 = sbr.rel (%p171) target = $region20
      $region19: #{inception_b_forward.6} parent=11 // pred_region
        _
      $region20: #{inception_b_forward.6} parent=11 // pred_fallthru
        _
      // Predicated region
      $region21: #{inception_b_forward.6} parent=11 // pred_check
        %p174 = pneg %p101
      $region22: #{inception_b_forward.6} parent=11 // pred_check_branch
        %176 = sbr.rel (%p174) target = $region24
      $region23: #{inception_b_forward.6} parent=11 // pred_region
        _
      $region24: #{inception_b_forward.6} parent=11 // pred_fallthru
        _
    $region12: #{inception_b_forward.6} parent=5 // pred_fallthru
      _
    %p177 = scmp.lt.s32.totalorder %s12, 2
    // Predicated region
    $region25: #{inception_b_forward.6} parent=5 // pred_check
      %p178 = pneg %p177
    $region26: #{inception_b_forward.6} parent=5 // pred_check_branch
      %180 = sbr.rel (%p178) target = $region28
    $region27: #{inception_b_forward.6} parent=5 // pred_region
      // Predicated region
      $region29: #{inception_b_forward.6} parent=27 // pred_check
        %p181 = pneg %p32
      $region30: #{inception_b_forward.6} parent=27 // pred_check_branch
        %183 = sbr.rel (%p181) target = $region32
      $region31: #{inception_b_forward.6} parent=27 // pred_region
        %p184 = scmp.lt.s32.totalorder %s12, 1
        %s185 = scalar_select %p184, %s12, 1
        %s186 = smul.addr %s185, 32
        %s187 = smul.addr %s186, 4
        %s188 = scalar_lea.vmem %s0, %s187
      $region32: #{inception_b_forward.6} parent=27 // pred_fallthru
        _
    $region28: #{inception_b_forward.6} parent=5 // pred_fallthru
      _
    %p189 = scmp.le.s32.totalorder 1, %s12
    %p190 = scmp.lt.s32.totalorder %s12, 3
    %p191 = pnand %p189, %p190
    %p192 = pneg %p191
    // Predicated region
    $region33: #{inception_b_forward.6} parent=5 // pred_check
      _
    $region34: #{inception_b_forward.6} parent=5 // pred_check_branch
      %194 = sbr.rel (%p191) target = $region36
    $region35: #{inception_b_forward.6} parent=5 // pred_region
      %s195 = ssub.s32 %s12, 1
      %p196 = scmp.lt.s32.totalorder %s17, 1
      %s197 = scalar_select %p196, %s17, 1
      %s198 = smul.addr %s197, 32
      %s199 = smul.addr %s198, 4
      %s200 = scalar_lea.vmem %s0, %s199
      %p201 = pneg %p38
      %p202 = pneg %p35
      %p203 = pneg %p59
      %p204 = pneg %p56
      %p205 = pneg %p80
      %p206 = pneg %p77
      %p207 = pneg %p101
      %p208 = pneg %p98
      %p209 = pneg %p127
      %p210 = pneg %p124
      %p211 = scmp.lt.s32.totalorder %s17, 1
      %s212 = scalar_select %p211, %s17, 1
      %s213 = smul.addr %s212, 32
      %s214 = smul.addr %s213, 4
      %s215 = scalar_lea.vmem %s4, %s214
      %p216 = pneg %p153
      %p217 = pneg %p150
      %p218 = scmp.lt.s32.totalorder %s17, 1
      %s219 = scalar_select %p218, %s17, 1
      %s220 = smul.addr %s219, 2
      %s221 = scalar_lea.vmem %s5, %s220
      %p222 = scmp.lt.s32.totalorder %s17, 1
      %s223 = scalar_select %p222, %s17, 1
      %s224 = smul.addr %s223, 32
      %s225 = smul.addr %s224, 4
      %s226 = scalar_lea.vmem %s0, %s225
      %p227 = scmp.lt.s32.totalorder %s17, 1
      %s228 = scalar_select %p227, %s17, 1
      %s229 = smul.addr %s228, 32
      %s230 = smul.addr %s229, 4
      %s231 = scalar_lea.vmem %s4, %s230
      %p232 = scmp.lt.s32.totalorder %s17, 1
      %s233 = scalar_select %p232, %s17, 1
      %s234 = smul.addr %s233, 2
      %s235 = scalar_lea.vmem %s5, %s234
      %v237 = vld [vmem:[%s1] sm:$0x1]
      %v238 = vld [vmem:[%s2] sm:$0x1]
      %v239 = vld [vmem:[%s226] sm:$0xf]
      %v240 = vld [vmem:[%s226 + $0x4] sm:$0xf]
      %v241 = vld [vmem:[%s226 + $0x8] sm:$0xf]
      %v242 = vld [vmem:[%s226 + $0xc] sm:$0xf]
      %v243 = vld [vmem:[%s226 + $0x10] sm:$0xf]
      %v244 = vld [vmem:[%s226 + $0x14] sm:$0xf]
      %v245 = vld [vmem:[%s226 + $0x18] sm:$0xf]
      %v246 = vld [vmem:[%s226 + $0x1c] sm:$0xf]
      %v247 = vld [vmem:[%s226 + $0x20] sm:$0xf]
      %v248 = vld [vmem:[%s226 + $0x24] sm:$0xf]
      %v249 = vld [vmem:[%s226 + $0x28] sm:$0xf]
      %v250 = vld [vmem:[%s226 + $0x2c] sm:$0xf]
      %v251 = vld [vmem:[%s226 + $0x30] sm:$0xf]
      %v252 = vld [vmem:[%s226 + $0x34] sm:$0xf]
      %v253 = vld [vmem:[%s226 + $0x38] sm:$0xf]
      %v254 = vld [vmem:[%s226 + $0x3c] sm:$0xf]
      %v255 = vld [vmem:[%s226 + $0x40] sm:$0xf]
      %v256 = vld [vmem:[%s226 + $0x44] sm:$0xf]
      %v257 = vld [vmem:[%s226 + $0x48] sm:$0xf]
      %v258 = vld [vmem:[%s226 + $0x4c] sm:$0xf]
      %v259 = vld [vmem:[%s226 + $0x50] sm:$0xf]
      %v260 = vld [vmem:[%s226 + $0x54] sm:$0xf]
      %v261 = vld [vmem:[%s226 + $0x58] sm:$0xf]
      %v262 = vld [vmem:[%s226 + $0x5c] sm:$0xf]
      %v263 = vld [vmem:[%s226 + $0x60] sm:$0xf]
      %v264 = vld [vmem:[%s226 + $0x64] sm:$0xf]
      %v265 = vld [vmem:[%s226 + $0x68] sm:$0xf]
      %v266 = vld [vmem:[%s226 + $0x6c] sm:$0xf]
      %v267 = vld [vmem:[%s226 + $0x70] sm:$0xf]
      %v268 = vld [vmem:[%s226 + $0x74] sm:$0xf]
      %v269 = vld [vmem:[%s226 + $0x78] sm:$0xf]
      %v270 = vld [vmem:[%s226 + $0x7c] sm:$0xf]
      %v271 = vunpack.c.l.bf16 %v239
      %v272 = vunpack.c.l.bf16 %v240
      %v273 = vunpack.c.l.bf16 %v241
      %v274 = vunpack.c.l.bf16 %v242
      %v275 = vunpack.c.l.bf16 %v243
      %v276 = vunpack.c.l.bf16 %v244
      %v277 = vunpack.c.l.bf16 %v245
      %v278 = vunpack.c.l.bf16 %v246
      %v279 = vunpack.c.l.bf16 %v247
      %v280 = vunpack.c.l.bf16 %v248
      %v281 = vunpack.c.l.bf16 %v249
      %v282 = vunpack.c.l.bf16 %v250
      %v283 = vunpack.c.l.bf16 %v251
      %v284 = vunpack.c.l.bf16 %v252
      %v285 = vunpack.c.l.bf16 %v253
      %v286 = vunpack.c.l.bf16 %v254
      %v287 = vunpack.c.l.bf16 %v255
      %v288 = vunpack.c.l.bf16 %v256
      %v289 = vunpack.c.l.bf16 %v257
      %v290 = vunpack.c.l.bf16 %v258
      %v291 = vunpack.c.l.bf16 %v259
      %v292 = vunpack.c.l.bf16 %v260
      %v293 = vunpack.c.l.bf16 %v261
      %v294 = vunpack.c.l.bf16 %v262
      %v295 = vunpack.c.l.bf16 %v263
      %v296 = vunpack.c.l.bf16 %v264
      %v297 = vunpack.c.l.bf16 %v265
      %v298 = vunpack.c.l.bf16 %v266
      %v299 = vunpack.c.l.bf16 %v267
      %v300 = vunpack.c.l.bf16 %v268
      %v301 = vunpack.c.l.bf16 %v269
      %v302 = vunpack.c.l.bf16 %v270
      %v304 = vlaneseq
      %v305 = vshrl.u32 %v304, 7
      %v306 = vsub.s32 0, %v305
      %v307 = vrot.slane %v237, %v306
      %v309 = vmul.f32 %v271, %v307
      %v310 = vmul.f32 %v272, %v307
      %v311 = vmul.f32 %v273, %v307
      %v312 = vmul.f32 %v274, %v307
      %v313 = vmul.f32 %v275, %v307
      %v314 = vmul.f32 %v276, %v307
      %v315 = vmul.f32 %v277, %v307
      %v316 = vmul.f32 %v278, %v307
      %v317 = vmul.f32 %v279, %v307
      %v318 = vmul.f32 %v280, %v307
      %v319 = vmul.f32 %v281, %v307
      %v320 = vmul.f32 %v282, %v307
      %v321 = vmul.f32 %v283, %v307
      %v322 = vmul.f32 %v284, %v307
      %v323 = vmul.f32 %v285, %v307
      %v324 = vmul.f32 %v286, %v307
      %v325 = vmul.f32 %v287, %v307
      %v326 = vmul.f32 %v288, %v307
      %v327 = vmul.f32 %v289, %v307
      %v328 = vmul.f32 %v290, %v307
      %v329 = vmul.f32 %v291, %v307
      %v330 = vmul.f32 %v292, %v307
      %v331 = vmul.f32 %v293, %v307
      %v332 = vmul.f32 %v294, %v307
      %v333 = vmul.f32 %v295, %v307
      %v334 = vmul.f32 %v296, %v307
      %v335 = vmul.f32 %v297, %v307
      %v336 = vmul.f32 %v298, %v307
      %v337 = vmul.f32 %v299, %v307
      %v338 = vmul.f32 %v300, %v307
      %v339 = vmul.f32 %v301, %v307
      %v340 = vmul.f32 %v302, %v307
      %v342 = vlaneseq
      %v343 = vshrl.u32 %v342, 7
      %v344 = vsub.s32 0, %v343
      %v345 = vrot.slane %v238, %v344
      %v347 = vadd.f32 %v309, %v345
      %v348 = vadd.f32 %v310, %v345
      %v349 = vadd.f32 %v311, %v345
      %v350 = vadd.f32 %v312, %v345
      %v351 = vadd.f32 %v313, %v345
      %v352 = vadd.f32 %v314, %v345
      %v353 = vadd.f32 %v315, %v345
      %v354 = vadd.f32 %v316, %v345
      %v355 = vadd.f32 %v317, %v345
      %v356 = vadd.f32 %v318, %v345
      %v357 = vadd.f32 %v319, %v345
      %v358 = vadd.f32 %v320, %v345
      %v359 = vadd.f32 %v321, %v345
      %v360 = vadd.f32 %v322, %v345
      %v361 = vadd.f32 %v323, %v345
      %v362 = vadd.f32 %v324, %v345
      %v363 = vadd.f32 %v325, %v345
      %v364 = vadd.f32 %v326, %v345
      %v365 = vadd.f32 %v327, %v345
      %v366 = vadd.f32 %v328, %v345
      %v367 = vadd.f32 %v329, %v345
      %v368 = vadd.f32 %v330, %v345
      %v369 = vadd.f32 %v331, %v345
      %v370 = vadd.f32 %v332, %v345
      %v371 = vadd.f32 %v333, %v345
      %v372 = vadd.f32 %v334, %v345
      %v373 = vadd.f32 %v335, %v345
      %v374 = vadd.f32 %v336, %v345
      %v375 = vadd.f32 %v337, %v345
      %v376 = vadd.f32 %v338, %v345
      %v377 = vadd.f32 %v339, %v345
      %v378 = vadd.f32 %v340, %v345
      %v379 = vmax.f32 %v347, 0.0
      %v380 = vmax.f32 %v348, 0.0
      %v381 = vmax.f32 %v349, 0.0
      %v382 = vmax.f32 %v350, 0.0
      %v383 = vmax.f32 %v351, 0.0
      %v384 = vmax.f32 %v352, 0.0
      %v385 = vmax.f32 %v353, 0.0
      %v386 = vmax.f32 %v354, 0.0
      %v387 = vmax.f32 %v355, 0.0
      %v388 = vmax.f32 %v356, 0.0
      %v389 = vmax.f32 %v357, 0.0
      %v390 = vmax.f32 %v358, 0.0
      %v391 = vmax.f32 %v359, 0.0
      %v392 = vmax.f32 %v360, 0.0
      %v393 = vmax.f32 %v361, 0.0
      %v394 = vmax.f32 %v362, 0.0
      %v395 = vmax.f32 %v363, 0.0
      %v396 = vmax.f32 %v364, 0.0
      %v397 = vmax.f32 %v365, 0.0
      %v398 = vmax.f32 %v366, 0.0
      %v399 = vmax.f32 %v367, 0.0
      %v400 = vmax.f32 %v368, 0.0
      %v401 = vmax.f32 %v369, 0.0
      %v402 = vmax.f32 %v370, 0.0
      %v403 = vmax.f32 %v371, 0.0
      %v404 = vmax.f32 %v372, 0.0
      %v405 = vmax.f32 %v373, 0.0
      %v406 = vmax.f32 %v374, 0.0
      %v407 = vmax.f32 %v375, 0.0
      %v408 = vmax.f32 %v376, 0.0
      %v409 = vmax.f32 %v377, 0.0
      %v410 = vmax.f32 %v378, 0.0
      %vm411 = vcmask 519168
      %412 = vst.msk [vmem:[#allocation2] sm:$0xf] %vm411, 0
      %413 = vst.msk [vmem:[#allocation2 + $0x4] sm:$0xf] %vm411, 0
      %vm414 = vcmask 516096
      %415 = vst.msk [vmem:[#allocation2 + $0x8] sm:$0x1] %vm414, 0
      %s416 = scalar_lea.vmem [#allocation2], 204
      %417 = vst.msk [vmem:[%s416] sm:$0xf] %vm411, 0
      %418 = vst.msk [vmem:[%s416 + $0x4] sm:$0xf] %vm411, 0
      %419 = vst.msk [vmem:[%s416 + $0x8] sm:$0x1] %vm414, 0
      %vm420 = vcmask 516096
      %vm421 = vsmask.f32 256
      %vm422 = vmand %vm420, %vm421
      %v423 = vld [vmem:[#allocation2] sm:$0x1]
      %v424 = vsel %vm422, 0, %v423
      %425 = vst [vmem:[#allocation2] sm:$0x1] %v424
      %v426 = vld [vmem:[#allocation2 + $0xc] sm:$0x1]
      %v427 = vsel %vm422, 0, %v426
      %428 = vst [vmem:[#allocation2 + $0xc] sm:$0x1] %v427
      %v429 = vld [vmem:[#allocation2 + $0x18] sm:$0x1]
      %v430 = vsel %vm422, 0, %v429
      %431 = vst [vmem:[#allocation2 + $0x18] sm:$0x1] %v430
      %v432 = vld [vmem:[#allocation2 + $0x24] sm:$0x1]
      %v433 = vsel %vm422, 0, %v432
      %434 = vst [vmem:[#allocation2 + $0x24] sm:$0x1] %v433
      %v435 = vld [vmem:[#allocation2 + $0x30] sm:$0x1]
      %v436 = vsel %vm422, 0, %v435
      %437 = vst [vmem:[#allocation2 + $0x30] sm:$0x1] %v436
      %v438 = vld [vmem:[#allocation2 + $0x3c] sm:$0x1]
      %v439 = vsel %vm422, 0, %v438
      %440 = vst [vmem:[#allocation2 + $0x3c] sm:$0x1] %v439
      %v441 = vld [vmem:[#allocation2 + $0x48] sm:$0x1]
      %v442 = vsel %vm422, 0, %v441
      %443 = vst [vmem:[#allocation2 + $0x48] sm:$0x1] %v442
      %v444 = vld [vmem:[#allocation2 + $0x54] sm:$0x1]
      %v445 = vsel %vm422, 0, %v444
      %446 = vst [vmem:[#allocation2 + $0x54] sm:$0x1] %v445
      %v447 = vld [vmem:[#allocation2 + $0x60] sm:$0x1]
      %v448 = vsel %vm422, 0, %v447
      %449 = vst [vmem:[#allocation2 + $0x60] sm:$0x1] %v448
      %v450 = vld [vmem:[#allocation2 + $0x6c] sm:$0x1]
      %v451 = vsel %vm422, 0, %v450
      %452 = vst [vmem:[#allocation2 + $0x6c] sm:$0x1] %v451
      %v453 = vld [vmem:[#allocation2 + $0x78] sm:$0x1]
      %v454 = vsel %vm422, 0, %v453
      %455 = vst [vmem:[#allocation2 + $0x78] sm:$0x1] %v454
      %v456 = vld [vmem:[#allocation2 + $0x84] sm:$0x1]
      %v457 = vsel %vm422, 0, %v456
      %458 = vst [vmem:[#allocation2 + $0x84] sm:$0x1] %v457
      %v459 = vld [vmem:[#allocation2 + $0x90] sm:$0x1]
      %v460 = vsel %vm422, 0, %v459
      %461 = vst [vmem:[#allocation2 + $0x90] sm:$0x1] %v460
      %v462 = vld [vmem:[#allocation2 + $0x9c] sm:$0x1]
      %v463 = vsel %vm422, 0, %v462
      %464 = vst [vmem:[#allocation2 + $0x9c] sm:$0x1] %v463
      %v465 = vld [vmem:[#allocation2 + $0xa8] sm:$0x1]
      %v466 = vsel %vm422, 0, %v465
      %467 = vst [vmem:[#allocation2 + $0xa8] sm:$0x1] %v466
      %v468 = vld [vmem:[#allocation2 + $0xb4] sm:$0x1]
      %v469 = vsel %vm422, 0, %v468
      %470 = vst [vmem:[#allocation2 + $0xb4] sm:$0x1] %v469
      %v471 = vld [vmem:[#allocation2 + $0xc0] sm:$0x1]
      %v472 = vsel %vm422, 0, %v471
      %473 = vst [vmem:[#allocation2 + $0xc0] sm:$0x1] %v472
      %v474 = vld [vmem:[#allocation2 + $0xcc] sm:$0x1]
      %v475 = vsel %vm422, 0, %v474
      %476 = vst [vmem:[#allocation2 + $0xcc] sm:$0x1] %v475
      %vm477 = vsmask.f32 7938
      %vm478 = vmand %vm420, %vm477
      %v479 = vld [vmem:[#allocation2 + $0x8] sm:$0x1]
      %v480 = vsel %vm478, 0, %v479
      %481 = vst [vmem:[#allocation2 + $0x8] sm:$0x1] %v480
      %v482 = vld [vmem:[#allocation2 + $0x14] sm:$0x1]
      %v483 = vsel %vm478, 0, %v482
      %484 = vst [vmem:[#allocation2 + $0x14] sm:$0x1] %v483
      %v485 = vld [vmem:[#allocation2 + $0x20] sm:$0x1]
      %v486 = vsel %vm478, 0, %v485
      %487 = vst [vmem:[#allocation2 + $0x20] sm:$0x1] %v486
      %v488 = vld [vmem:[#allocation2 + $0x2c] sm:$0x1]
      %v489 = vsel %vm478, 0, %v488
      %490 = vst [vmem:[#allocation2 + $0x2c] sm:$0x1] %v489
      %v491 = vld [vmem:[#allocation2 + $0x38] sm:$0x1]
      %v492 = vsel %vm478, 0, %v491
      %493 = vst [vmem:[#allocation2 + $0x38] sm:$0x1] %v492
      %v494 = vld [vmem:[#allocation2 + $0x44] sm:$0x1]
      %v495 = vsel %vm478, 0, %v494
      %496 = vst [vmem:[#allocation2 + $0x44] sm:$0x1] %v495
      %v497 = vld [vmem:[#allocation2 + $0x50] sm:$0x1]
      %v498 = vsel %vm478, 0, %v497
      %499 = vst [vmem:[#allocation2 + $0x50] sm:$0x1] %v498
      %v500 = vld [vmem:[#allocation2 + $0x5c] sm:$0x1]
      %v501 = vsel %vm478, 0, %v500
      %502 = vst [vmem:[#allocation2 + $0x5c] sm:$0x1] %v501
      %v503 = vld [vmem:[#allocation2 + $0x68] sm:$0x1]
      %v504 = vsel %vm478, 0, %v503
      %505 = vst [vmem:[#allocation2 + $0x68] sm:$0x1] %v504
      %v506 = vld [vmem:[#allocation2 + $0x74] sm:$0x1]
      %v507 = vsel %vm478, 0, %v506
      %508 = vst [vmem:[#allocation2 + $0x74] sm:$0x1] %v507
      %v509 = vld [vmem:[#allocation2 + $0x80] sm:$0x1]
      %v510 = vsel %vm478, 0, %v509
      %511 = vst [vmem:[#allocation2 + $0x80] sm:$0x1] %v510
      %v512 = vld [vmem:[#allocation2 + $0x8c] sm:$0x1]
      %v513 = vsel %vm478, 0, %v512
      %514 = vst [vmem:[#allocation2 + $0x8c] sm:$0x1] %v513
      %v515 = vld [vmem:[#allocation2 + $0x98] sm:$0x1]
      %v516 = vsel %vm478, 0, %v515
      %517 = vst [vmem:[#allocation2 + $0x98] sm:$0x1] %v516
      %v518 = vld [vmem:[#allocation2 + $0xa4] sm:$0x1]
      %v519 = vsel %vm478, 0, %v518
      %520 = vst [vmem:[#allocation2 + $0xa4] sm:$0x1] %v519
      %v521 = vld [vmem:[#allocation2 + $0xb0] sm:$0x1]
      %v522 = vsel %vm478, 0, %v521
      %523 = vst [vmem:[#allocation2 + $0xb0] sm:$0x1] %v522
      %v524 = vld [vmem:[#allocation2 + $0xbc] sm:$0x1]
      %v525 = vsel %vm478, 0, %v524
      %526 = vst [vmem:[#allocation2 + $0xbc] sm:$0x1] %v525
      %v527 = vld [vmem:[#allocation2 + $0xc8] sm:$0x1]
      %v528 = vsel %vm478, 0, %v527
      %529 = vst [vmem:[#allocation2 + $0xc8] sm:$0x1] %v528
      %v530 = vld [vmem:[#allocation2 + $0xd4] sm:$0x1]
      %v531 = vsel %vm478, 0, %v530
      %532 = vst [vmem:[#allocation2 + $0xd4] sm:$0x1] %v531
      %v533 = vpack.c.bf16 %v380, %v379
      %v534 = vpack.c.bf16 %v382, %v381
      %v535 = vpack.c.bf16 %v384, %v383
      %v536 = vpack.c.bf16 %v386, %v385
      %v537 = vpack.c.bf16 %v388, %v387
      %v538 = vpack.c.bf16 %v390, %v389
      %v539 = vpack.c.bf16 %v392, %v391
      %v540 = vpack.c.bf16 %v394, %v393
      %v541 = vpack.c.bf16 %v396, %v395
      %v542 = vpack.c.bf16 %v398, %v397
      %v543 = vpack.c.bf16 %v400, %v399
      %v544 = vpack.c.bf16 %v402, %v401
      %v545 = vpack.c.bf16 %v404, %v403
      %v546 = vpack.c.bf16 %v406, %v405
      %v547 = vpack.c.bf16 %v408, %v407
      %v548 = vpack.c.bf16 %v410, %v409
      %v565 = vunpack.c.l.b16 %v533
      %v566 = vunpack.c.h.b16 %v533
      %v567 = vunpack.c.l.b16 %v534
      %v568 = vunpack.c.h.b16 %v534
      %v569 = vunpack.c.l.b16 %v535
      %v570 = vunpack.c.h.b16 %v535
      %v571 = vunpack.c.l.b16 %v536
      %v572 = vunpack.c.h.b16 %v536
      %v573 = vunpack.c.l.b16 %v537
      %v574 = vunpack.c.h.b16 %v537
      %v575 = vunpack.c.l.b16 %v538
      %v576 = vunpack.c.h.b16 %v538
      %v577 = vunpack.c.l.b16 %v539
      %v578 = vunpack.c.h.b16 %v539
      %v579 = vunpack.c.l.b16 %v540
      %v580 = vunpack.c.h.b16 %v540
      %v581 = vunpack.c.l.b16 %v541
      %v582 = vunpack.c.h.b16 %v541
      %v583 = vunpack.c.l.b16 %v542
      %v584 = vunpack.c.h.b16 %v542
      %v585 = vunpack.c.l.b16 %v543
      %v586 = vunpack.c.h.b16 %v543
      %v587 = vunpack.c.l.b16 %v544
      %v588 = vunpack.c.h.b16 %v544
      %v589 = vunpack.c.l.b16 %v545
      %v590 = vunpack.c.h.b16 %v545
      %v591 = vunpack.c.l.b16 %v546
      %v592 = vunpack.c.h.b16 %v546
      %v593 = vunpack.c.l.b16 %v547
      %v594 = vunpack.c.h.b16 %v547
      %v595 = vunpack.c.l.b16 %v548
      %v596 = vunpack.c.h.b16 %v548
      %v597 = vpack.c.b16 %v565, %v565
      %v598 = vpack.c.b16 %v566, %v566
      %v599 = vpack.c.b16 %v567, %v567
      %v600 = vpack.c.b16 %v568, %v568
      %v601 = vpack.c.b16 %v569, %v569
      %v602 = vpack.c.b16 %v570, %v570
      %v603 = vpack.c.b16 %v571, %v571
      %v604 = vpack.c.b16 %v572, %v572
      %v605 = vpack.c.b16 %v573, %v573
      %v606 = vpack.c.b16 %v574, %v574
      %v607 = vpack.c.b16 %v575, %v575
      %v608 = vpack.c.b16 %v576, %v576
      %v609 = vpack.c.b16 %v577, %v577
      %v610 = vpack.c.b16 %v578, %v578
      %v611 = vpack.c.b16 %v579, %v579
      %v612 = vpack.c.b16 %v580, %v580
      %v613 = vpack.c.b16 %v581, %v581
      %v614 = vpack.c.b16 %v582, %v582
      %v615 = vpack.c.b16 %v583, %v583
      %v616 = vpack.c.b16 %v584, %v584
      %v617 = vpack.c.b16 %v585, %v585
      %v618 = vpack.c.b16 %v586, %v586
      %v619 = vpack.c.b16 %v587, %v587
      %v620 = vpack.c.b16 %v588, %v588
      %v621 = vpack.c.b16 %v589, %v589
      %v622 = vpack.c.b16 %v590, %v590
      %v623 = vpack.c.b16 %v591, %v591
      %v624 = vpack.c.b16 %v592, %v592
      %v625 = vpack.c.b16 %v593, %v593
      %v626 = vpack.c.b16 %v594, %v594
      %v627 = vpack.c.b16 %v595, %v595
      %v628 = vpack.c.b16 %v596, %v596
      %vm629 = vsmask.f32 4368
      %vm630 = vmor %vm421, %vm629
      %v632 = vshrl.u32 %v597, 16
      %v634 = vrot.slane %v632, 7
      %v635 = vshll.u32 %v597, 16
      %v637 = vor.u32 %v634, %v635
      %v638 = vrot.slane %v634, 4
      %v640 = vshrl.u32 %v598, 16
      %v642 = vrot.slane %v640, 7
      %v643 = vshll.u32 %v598, 16
      %v645 = vor.u32 %v642, %v643
      %v646 = vsel %vm630, %v638, %v645
      %v647 = vrot.slane %v642, 4
      %v649 = vshrl.u32 %v599, 16
      %v651 = vrot.slane %v649, 7
      %v652 = vshll.u32 %v599, 16
      %v654 = vor.u32 %v651, %v652
      %v655 = vrot.slane %v651, 4
      %v657 = vshrl.u32 %v600, 16
      %v659 = vrot.slane %v657, 7
      %v660 = vshll.u32 %v600, 16
      %v662 = vor.u32 %v659, %v660
      %v663 = vsel %vm630, %v655, %v662
      %v664 = vrot.slane %v659, 4
      %v666 = vshrl.u32 %v601, 16
      %v668 = vrot.slane %v666, 7
      %v669 = vshll.u32 %v601, 16
      %v671 = vor.u32 %v668, %v669
      %v672 = vrot.slane %v668, 4
      %v674 = vshrl.u32 %v602, 16
      %v676 = vrot.slane %v674, 7
      %v677 = vshll.u32 %v602, 16
      %v679 = vor.u32 %v676, %v677
      %v680 = vsel %vm630, %v672, %v679
      %v681 = vrot.slane %v676, 4
      %v683 = vshrl.u32 %v603, 16
      %v685 = vrot.slane %v683, 7
      %v686 = vshll.u32 %v603, 16
      %v688 = vor.u32 %v685, %v686
      %v689 = vrot.slane %v685, 4
      %v691 = vshrl.u32 %v604, 16
      %v693 = vrot.slane %v691, 7
      %v694 = vshll.u32 %v604, 16
      %v696 = vor.u32 %v693, %v694
      %v697 = vsel %vm630, %v689, %v696
      %v698 = vrot.slane %v693, 4
      %v700 = vshrl.u32 %v605, 16
      %v702 = vrot.slane %v700, 7
      %v703 = vshll.u32 %v605, 16
      %v705 = vor.u32 %v702, %v703
      %v706 = vrot.slane %v702, 4
      %v708 = vshrl.u32 %v606, 16
      %v710 = vrot.slane %v708, 7
      %v711 = vshll.u32 %v606, 16
      %v713 = vor.u32 %v710, %v711
      %v714 = vsel %vm630, %v706, %v713
      %v715 = vrot.slane %v710, 4
      %v717 = vshrl.u32 %v607, 16
      %v719 = vrot.slane %v717, 7
      %v720 = vshll.u32 %v607, 16
      %v722 = vor.u32 %v719, %v720
      %v723 = vrot.slane %v719, 4
      %v725 = vshrl.u32 %v608, 16
      %v727 = vrot.slane %v725, 7
      %v728 = vshll.u32 %v608, 16
      %v730 = vor.u32 %v727, %v728
      %v731 = vsel %vm630, %v723, %v730
      %v732 = vrot.slane %v727, 4
      %v734 = vshrl.u32 %v609, 16
      %v736 = vrot.slane %v734, 7
      %v737 = vshll.u32 %v609, 16
      %v739 = vor.u32 %v736, %v737
      %v740 = vrot.slane %v736, 4
      %v742 = vshrl.u32 %v610, 16
      %v744 = vrot.slane %v742, 7
      %v745 = vshll.u32 %v610, 16
      %v747 = vor.u32 %v744, %v745
      %v748 = vsel %vm630, %v740, %v747
      %v749 = vrot.slane %v744, 4
      %v751 = vshrl.u32 %v611, 16
      %v753 = vrot.slane %v751, 7
      %v754 = vshll.u32 %v611, 16
      %v756 = vor.u32 %v753, %v754
      %v757 = vrot.slane %v753, 4
      %v759 = vshrl.u32 %v612, 16
      %v761 = vrot.slane %v759, 7
      %v762 = vshll.u32 %v612, 16
      %v764 = vor.u32 %v761, %v762
      %v765 = vsel %vm630, %v757, %v764
      %v766 = vrot.slane %v761, 4
      %v768 = vshrl.u32 %v613, 16
      %v770 = vrot.slane %v768, 7
      %v771 = vshll.u32 %v613, 16
      %v773 = vor.u32 %v770, %v771
      %v774 = vrot.slane %v770, 4
      %v776 = vshrl.u32 %v614, 16
      %v778 = vrot.slane %v776, 7
      %v779 = vshll.u32 %v614, 16
      %v781 = vor.u32 %v778, %v779
      %v782 = vsel %vm630, %v774, %v781
      %v783 = vrot.slane %v778, 4
      %v785 = vshrl.u32 %v615, 16
      %v787 = vrot.slane %v785, 7
      %v788 = vshll.u32 %v615, 16
      %v790 = vor.u32 %v787, %v788
      %v791 = vrot.slane %v787, 4
      %v793 = vshrl.u32 %v616, 16
      %v795 = vrot.slane %v793, 7
      %v796 = vshll.u32 %v616, 16
      %v798 = vor.u32 %v795, %v796
      %v799 = vsel %vm630, %v791, %v798
      %v800 = vrot.slane %v795, 4
      %v802 = vshrl.u32 %v617, 16
      %v804 = vrot.slane %v802, 7
      %v805 = vshll.u32 %v617, 16
      %v807 = vor.u32 %v804, %v805
      %v808 = vrot.slane %v804, 4
      %v810 = vshrl.u32 %v618, 16
      %v812 = vrot.slane %v810, 7
      %v813 = vshll.u32 %v618, 16
      %v815 = vor.u32 %v812, %v813
      %v816 = vsel %vm630, %v808, %v815
      %v817 = vrot.slane %v812, 4
      %v819 = vshrl.u32 %v619, 16
      %v821 = vrot.slane %v819, 7
      %v822 = vshll.u32 %v619, 16
      %v824 = vor.u32 %v821, %v822
      %v825 = vrot.slane %v821, 4
      %v827 = vshrl.u32 %v620, 16
      %v829 = vrot.slane %v827, 7
      %v830 = vshll.u32 %v620, 16
      %v832 = vor.u32 %v829, %v830
      %v833 = vsel %vm630, %v825, %v832
      %v834 = vrot.slane %v829, 4
      %v836 = vshrl.u32 %v621, 16
      %v838 = vrot.slane %v836, 7
      %v839 = vshll.u32 %v621, 16
      %v841 = vor.u32 %v838, %v839
      %v842 = vrot.slane %v838, 4
      %v844 = vshrl.u32 %v622, 16
      %v846 = vrot.slane %v844, 7
      %v847 = vshll.u32 %v622, 16
      %v849 = vor.u32 %v846, %v847
      %v850 = vsel %vm630, %v842, %v849
      %v851 = vrot.slane %v846, 4
      %v853 = vshrl.u32 %v623, 16
      %v855 = vrot.slane %v853, 7
      %v856 = vshll.u32 %v623, 16
      %v858 = vor.u32 %v855, %v856
      %v859 = vrot.slane %v855, 4
      %v861 = vshrl.u32 %v624, 16
      %v863 = vrot.slane %v861, 7
      %v864 = vshll.u32 %v624, 16
      %v866 = vor.u32 %v863, %v864
      %v867 = vsel %vm630, %v859, %v866
      %v868 = vrot.slane %v863, 4
      %v870 = vshrl.u32 %v625, 16
      %v872 = vrot.slane %v870, 7
      %v873 = vshll.u32 %v625, 16
      %v875 = vor.u32 %v872, %v873
      %v876 = vrot.slane %v872, 4
      %v878 = vshrl.u32 %v626, 16
      %v880 = vrot.slane %v878, 7
      %v881 = vshll.u32 %v626, 16
      %v883 = vor.u32 %v880, %v881
      %v884 = vsel %vm630, %v876, %v883
      %v885 = vrot.slane %v880, 4
      %v887 = vshrl.u32 %v627, 16
      %v889 = vrot.slane %v887, 7
      %v890 = vshll.u32 %v627, 16
      %v892 = vor.u32 %v889, %v890
      %v893 = vrot.slane %v889, 4
      %v895 = vshrl.u32 %v628, 16
      %v897 = vrot.slane %v895, 7
      %v898 = vshll.u32 %v628, 16
      %v900 = vor.u32 %v897, %v898
      %v901 = vsel %vm630, %v893, %v900
      %v902 = vrot.slane %v897, 4
      %s951 = scalar_lea.vmem [#allocation2], 12
      %vm952 = vcmask 519168
      %vm953 = vmand %vm952, %vm477
      %v954 = vld [vmem:[%s951] sm:$0xf]
      %v955 = vsel %vm953, %v637, %v954
      %956 = vst [vmem:[%s951] sm:$0xf] %v955
      %957 = vst.msk [vmem:[%s951 + $0x4] sm:$0xf] %vm411, %v646
      %v958 = vld [vmem:[%s951 + $0x8] sm:$0x1]
      %v959 = vsel %vm422, %v647, %v958
      %960 = vst [vmem:[%s951 + $0x8] sm:$0x1] %v959
      %v961 = vld [vmem:[%s951 + $0xc] sm:$0xf]
      %v962 = vsel %vm953, %v654, %v961
      %963 = vst [vmem:[%s951 + $0xc] sm:$0xf] %v962
      %964 = vst.msk [vmem:[%s951 + $0x10] sm:$0xf] %vm411, %v663
      %v965 = vld [vmem:[%s951 + $0x14] sm:$0x1]
      %v966 = vsel %vm422, %v664, %v965
      %967 = vst [vmem:[%s951 + $0x14] sm:$0x1] %v966
      %v968 = vld [vmem:[%s951 + $0x18] sm:$0xf]
      %v969 = vsel %vm953, %v671, %v968
      %970 = vst [vmem:[%s951 + $0x18] sm:$0xf] %v969
      %971 = vst.msk [vmem:[%s951 + $0x1c] sm:$0xf] %vm411, %v680
      %v972 = vld [vmem:[%s951 + $0x20] sm:$0x1]
      %v973 = vsel %vm422, %v681, %v972
      %974 = vst [vmem:[%s951 + $0x20] sm:$0x1] %v973
      %v975 = vld [vmem:[%s951 + $0x24] sm:$0xf]
      %v976 = vsel %vm953, %v688, %v975
      %977 = vst [vmem:[%s951 + $0x24] sm:$0xf] %v976
      %978 = vst.msk [vmem:[%s951 + $0x28] sm:$0xf] %vm411, %v697
      %v979 = vld [vmem:[%s951 + $0x2c] sm:$0x1]
      %v980 = vsel %vm422, %v698, %v979
      %981 = vst [vmem:[%s951 + $0x2c] sm:$0x1] %v980
      %v982 = vld [vmem:[%s951 + $0x30] sm:$0xf]
      %v983 = vsel %vm953, %v705, %v982
      %984 = vst [vmem:[%s951 + $0x30] sm:$0xf] %v983
      %985 = vst.msk [vmem:[%s951 + $0x34] sm:$0xf] %vm411, %v714
      %v986 = vld [vmem:[%s951 + $0x38] sm:$0x1]
      %v987 = vsel %vm422, %v715, %v986
      %988 = vst [vmem:[%s951 + $0x38] sm:$0x1] %v987
      %v989 = vld [vmem:[%s951 + $0x3c] sm:$0xf]
      %v990 = vsel %vm953, %v722, %v989
      %991 = vst [vmem:[%s951 + $0x3c] sm:$0xf] %v990
      %992 = vst.msk [vmem:[%s951 + $0x40] sm:$0xf] %vm411, %v731
      %v993 = vld [vmem:[%s951 + $0x44] sm:$0x1]
      %v994 = vsel %vm422, %v732, %v993
      %995 = vst [vmem:[%s951 + $0x44] sm:$0x1] %v994
      %v996 = vld [vmem:[%s951 + $0x48] sm:$0xf]
      %v997 = vsel %vm953, %v739, %v996
      %998 = vst [vmem:[%s951 + $0x48] sm:$0xf] %v997
      %999 = vst.msk [vmem:[%s951 + $0x4c] sm:$0xf] %vm411, %v748
      %v1000 = vld [vmem:[%s951 + $0x50] sm:$0x1]
      %v1001 = vsel %vm422, %v749, %v1000
      %1002 = vst [vmem:[%s951 + $0x50] sm:$0x1] %v1001
      %v1003 = vld [vmem:[%s951 + $0x54] sm:$0xf]
      %v1004 = vsel %vm953, %v756, %v1003
      %1005 = vst [vmem:[%s951 + $0x54] sm:$0xf] %v1004
      %1006 = vst.msk [vmem:[%s951 + $0x58] sm:$0xf] %vm411, %v765
      %v1007 = vld [vmem:[%s951 + $0x5c] sm:$0x1]
      %v1008 = vsel %vm422, %v766, %v1007
      %1009 = vst [vmem:[%s951 + $0x5c] sm:$0x1] %v1008
      %v1010 = vld [vmem:[%s951 + $0x60] sm:$0xf]
      %v1011 = vsel %vm953, %v773, %v1010
      %1012 = vst [vmem:[%s951 + $0x60] sm:$0xf] %v1011
      %1013 = vst.msk [vmem:[%s951 + $0x64] sm:$0xf] %vm411, %v782
      %v1014 = vld [vmem:[%s951 + $0x68] sm:$0x1]
      %v1015 = vsel %vm422, %v783, %v1014
      %1016 = vst [vmem:[%s951 + $0x68] sm:$0x1] %v1015
      %v1017 = vld [vmem:[%s951 + $0x6c] sm:$0xf]
      %v1018 = vsel %vm953, %v790, %v1017
      %1019 = vst [vmem:[%s951 + $0x6c] sm:$0xf] %v1018
      %1020 = vst.msk [vmem:[%s951 + $0x70] sm:$0xf] %vm411, %v799
      %v1021 = vld [vmem:[%s951 + $0x74] sm:$0x1]
      %v1022 = vsel %vm422, %v800, %v1021
      %1023 = vst [vmem:[%s951 + $0x74] sm:$0x1] %v1022
      %v1024 = vld [vmem:[%s951 + $0x78] sm:$0xf]
      %v1025 = vsel %vm953, %v807, %v1024
      %1026 = vst [vmem:[%s951 + $0x78] sm:$0xf] %v1025
      %1027 = vst.msk [vmem:[%s951 + $0x7c] sm:$0xf] %vm411, %v816
      %v1028 = vld [vmem:[%s951 + $0x80] sm:$0x1]
      %v1029 = vsel %vm422, %v817, %v1028
      %1030 = vst [vmem:[%s951 + $0x80] sm:$0x1] %v1029
      %v1031 = vld [vmem:[%s951 + $0x84] sm:$0xf]
      %v1032 = vsel %vm953, %v824, %v1031
      %1033 = vst [vmem:[%s951 + $0x84] sm:$0xf] %v1032
      %1034 = vst.msk [vmem:[%s951 + $0x88] sm:$0xf] %vm411, %v833
      %v1035 = vld [vmem:[%s951 + $0x8c] sm:$0x1]
      %v1036 = vsel %vm422, %v834, %v1035
      %1037 = vst [vmem:[%s951 + $0x8c] sm:$0x1] %v1036
      %v1038 = vld [vmem:[%s951 + $0x90] sm:$0xf]
      %v1039 = vsel %vm953, %v841, %v1038
      %1040 = vst [vmem:[%s951 + $0x90] sm:$0xf] %v1039
      %1041 = vst.msk [vmem:[%s951 + $0x94] sm:$0xf] %vm411, %v850
      %v1042 = vld [vmem:[%s951 + $0x98] sm:$0x1]
      %v1043 = vsel %vm422, %v851, %v1042
      %1044 = vst [vmem:[%s951 + $0x98] sm:$0x1] %v1043
      %v1045 = vld [vmem:[%s951 + $0x9c] sm:$0xf]
      %v1046 = vsel %vm953, %v858, %v1045
      %1047 = vst [vmem:[%s951 + $0x9c] sm:$0xf] %v1046
      %1048 = vst.msk [vmem:[%s951 + $0xa0] sm:$0xf] %vm411, %v867
      %v1049 = vld [vmem:[%s951 + $0xa4] sm:$0x1]
      %v1050 = vsel %vm422, %v868, %v1049
      %1051 = vst [vmem:[%s951 + $0xa4] sm:$0x1] %v1050
      %v1052 = vld [vmem:[%s951 + $0xa8] sm:$0xf]
      %v1053 = vsel %vm953, %v875, %v1052
      %1054 = vst [vmem:[%s951 + $0xa8] sm:$0xf] %v1053
      %1055 = vst.msk [vmem:[%s951 + $0xac] sm:$0xf] %vm411, %v884
      %v1056 = vld [vmem:[%s951 + $0xb0] sm:$0x1]
      %v1057 = vsel %vm422, %v885, %v1056
      %1058 = vst [vmem:[%s951 + $0xb0] sm:$0x1] %v1057
      %v1059 = vld [vmem:[%s951 + $0xb4] sm:$0xf]
      %v1060 = vsel %vm953, %v892, %v1059
      %1061 = vst [vmem:[%s951 + $0xb4] sm:$0xf] %v1060
      %1062 = vst.msk [vmem:[%s951 + $0xb8] sm:$0xf] %vm411, %v901
      %v1063 = vld [vmem:[%s951 + $0xbc] sm:$0x1]
      %v1064 = vsel %vm422, %v902, %v1063
      %1065 = vst [vmem:[%s951 + $0xbc] sm:$0x1] %v1064
      %v1066 = vld [vmem:[#allocation2] sm:$0xf]
      %v1067 = vld [vmem:[#allocation2 + $0x4] sm:$0xf]
      %v1068 = vld [vmem:[#allocation2 + $0xc] sm:$0xf]
      %v1069 = vld [vmem:[#allocation2 + $0x10] sm:$0xf]
      %v1070 = vld [vmem:[#allocation2 + $0x18] sm:$0xf]
      %v1071 = vld [vmem:[#allocation2 + $0x1c] sm:$0xf]
      %v1072 = vld [vmem:[#allocation2 + $0x24] sm:$0xf]
      %v1073 = vld [vmem:[#allocation2 + $0x28] sm:$0xf]
      %v1074 = vld [vmem:[#allocation2 + $0x30] sm:$0xf]
      %v1075 = vld [vmem:[#allocation2 + $0x34] sm:$0xf]
      %v1076 = vld [vmem:[#allocation2 + $0x3c] sm:$0xf]
      %v1077 = vld [vmem:[#allocation2 + $0x40] sm:$0xf]
      %v1078 = vld [vmem:[#allocation2 + $0x48] sm:$0xf]
      %v1079 = vld [vmem:[#allocation2 + $0x4c] sm:$0xf]
      %v1080 = vld [vmem:[#allocation2 + $0x54] sm:$0xf]
      %v1081 = vld [vmem:[#allocation2 + $0x58] sm:$0xf]
      %v1082 = vld [vmem:[#allocation2 + $0x60] sm:$0xf]
      %v1083 = vld [vmem:[#allocation2 + $0x64] sm:$0xf]
      %v1084 = vld [vmem:[#allocation2 + $0x6c] sm:$0xf]
      %v1085 = vld [vmem:[#allocation2 + $0x70] sm:$0xf]
      %v1086 = vld [vmem:[#allocation2 + $0x78] sm:$0xf]
      %v1087 = vld [vmem:[#allocation2 + $0x7c] sm:$0xf]
      %v1088 = vld [vmem:[#allocation2 + $0x84] sm:$0xf]
      %v1089 = vld [vmem:[#allocation2 + $0x88] sm:$0xf]
      %v1090 = vld [vmem:[#allocation2 + $0x90] sm:$0xf]
      %v1091 = vld [vmem:[#allocation2 + $0x94] sm:$0xf]
      %v1092 = vld [vmem:[#allocation2 + $0x9c] sm:$0xf]
      %v1093 = vld [vmem:[#allocation2 + $0xa0] sm:$0xf]
      %v1094 = vld [vmem:[#allocation2 + $0xa8] sm:$0xf]
      %v1095 = vld [vmem:[#allocation2 + $0xac] sm:$0xf]
      %v1096 = vld [vmem:[#allocation2 + $0xb4] sm:$0xf]
      %v1097 = vld [vmem:[#allocation2 + $0xb8] sm:$0xf]
      %v1130 = vunpack.c.l.b16 %v1066
      %v1131 = vunpack.c.l.b16 %v1067
      %v1132 = vunpack.c.l.b16 %v1068
      %v1133 = vunpack.c.l.b16 %v1069
      %v1134 = vunpack.c.l.b16 %v1070
      %v1135 = vunpack.c.l.b16 %v1071
      %v1136 = vunpack.c.l.b16 %v1072
      %v1137 = vunpack.c.l.b16 %v1073
      %v1138 = vunpack.c.l.b16 %v1074
      %v1139 = vunpack.c.l.b16 %v1075
      %v1140 = vunpack.c.l.b16 %v1076
      %v1141 = vunpack.c.l.b16 %v1077
      %v1142 = vunpack.c.l.b16 %v1078
      %v1143 = vunpack.c.l.b16 %v1079
      %v1144 = vunpack.c.l.b16 %v1080
      %v1145 = vunpack.c.l.b16 %v1081
      %v1146 = vunpack.c.l.b16 %v1082
      %v1147 = vunpack.c.l.b16 %v1083
      %v1148 = vunpack.c.l.b16 %v1084
      %v1149 = vunpack.c.l.b16 %v1085
      %v1150 = vunpack.c.l.b16 %v1086
      %v1151 = vunpack.c.l.b16 %v1087
      %v1152 = vunpack.c.l.b16 %v1088
      %v1153 = vunpack.c.l.b16 %v1089
      %v1154 = vunpack.c.l.b16 %v1090
      %v1155 = vunpack.c.l.b16 %v1091
      %v1156 = vunpack.c.l.b16 %v1092
      %v1157 = vunpack.c.l.b16 %v1093
      %v1158 = vunpack.c.l.b16 %v1094
      %v1159 = vunpack.c.l.b16 %v1095
      %v1160 = vunpack.c.l.b16 %v1096
      %v1161 = vunpack.c.l.b16 %v1097
      %v1162 = vpack.c.b16 %v1131, %v1130
      %v1163 = vpack.c.b16 %v1133, %v1132
      %v1164 = vpack.c.b16 %v1135, %v1134
      %v1165 = vpack.c.b16 %v1137, %v1136
      %v1166 = vpack.c.b16 %v1139, %v1138
      %v1167 = vpack.c.b16 %v1141, %v1140
      %v1168 = vpack.c.b16 %v1143, %v1142
      %v1169 = vpack.c.b16 %v1145, %v1144
      %v1170 = vpack.c.b16 %v1147, %v1146
      %v1171 = vpack.c.b16 %v1149, %v1148
      %v1172 = vpack.c.b16 %v1151, %v1150
      %v1173 = vpack.c.b16 %v1153, %v1152
      %v1174 = vpack.c.b16 %v1155, %v1154
      %v1175 = vpack.c.b16 %v1157, %v1156
      %v1176 = vpack.c.b16 %v1159, %v1158
      %v1177 = vpack.c.b16 %v1161, %v1160
      %vm1194 = vcmask 523264
      %1195 = vst.msk [vmem:[#allocation3] sm:$0xff] %vm1194, %v1162
      %1196 = vst.msk [vmem:[#allocation3 + $0x10] sm:$0xff] %vm1194, %v1163
      %1197 = vst.msk [vmem:[#allocation3 + $0x20] sm:$0xff] %vm1194, %v1164
      %1198 = vst.msk [vmem:[#allocation3 + $0x30] sm:$0xff] %vm1194, %v1165
      %1199 = vst.msk [vmem:[#allocation3 + $0x40] sm:$0xff] %vm1194, %v1166
      %1200 = vst.msk [vmem:[#allocation3 + $0x50] sm:$0xff] %vm1194, %v1167
      %1201 = vst.msk [vmem:[#allocation3 + $0x60] sm:$0xff] %vm1194, %v1168
      %1202 = vst.msk [vmem:[#allocation3 + $0x70] sm:$0xff] %vm1194, %v1169
      %1203 = vst.msk [vmem:[#allocation3 + $0x80] sm:$0xff] %vm1194, %v1170
      %1204 = vst.msk [vmem:[#allocation3 + $0x90] sm:$0xff] %vm1194, %v1171
      %1205 = vst.msk [vmem:[#allocation3 + $0xa0] sm:$0xff] %vm1194, %v1172
      %1206 = vst.msk [vmem:[#allocation3 + $0xb0] sm:$0xff] %vm1194, %v1173
      %1207 = vst.msk [vmem:[#allocation3 + $0xc0] sm:$0xff] %vm1194, %v1174
      %1208 = vst.msk [vmem:[#allocation3 + $0xd0] sm:$0xff] %vm1194, %v1175
      %1209 = vst.msk [vmem:[#allocation3 + $0xe0] sm:$0xff] %vm1194, %v1176
      %1210 = vst.msk [vmem:[#allocation3 + $0xf0] sm:$0xff] %vm1194, %v1177
      %v1211 = vld [vmem:[#allocation2] sm:$0xf]
      %v1212 = vld [vmem:[#allocation2 + $0x4] sm:$0xf]
      %v1213 = vld [vmem:[#allocation2 + $0x8] sm:$0x1]
      %v1214 = vld [vmem:[#allocation2 + $0xc] sm:$0xf]
      %v1215 = vld [vmem:[#allocation2 + $0x10] sm:$0xf]
      %v1216 = vld [vmem:[#allocation2 + $0x14] sm:$0x1]
      %v1217 = vld [vmem:[#allocation2 + $0x18] sm:$0xf]
      %v1218 = vld [vmem:[#allocation2 + $0x1c] sm:$0xf]
      %v1219 = vld [vmem:[#allocation2 + $0x20] sm:$0x1]
      %v1220 = vld [vmem:[#allocation2 + $0x24] sm:$0xf]
      %v1221 = vld [vmem:[#allocation2 + $0x28] sm:$0xf]
      %v1222 = vld [vmem:[#allocation2 + $0x2c] sm:$0x1]
      %v1223 = vld [vmem:[#allocation2 + $0x30] sm:$0xf]
      %v1224 = vld [vmem:[#allocation2 + $0x34] sm:$0xf]
      %v1225 = vld [vmem:[#allocation2 + $0x38] sm:$0x1]
      %v1226 = vld [vmem:[#allocation2 + $0x3c] sm:$0xf]
      %v1227 = vld [vmem:[#allocation2 + $0x40] sm:$0xf]
      %v1228 = vld [vmem:[#allocation2 + $0x44] sm:$0x1]
      %v1229 = vld [vmem:[#allocation2 + $0x48] sm:$0xf]
      %v1230 = vld [vmem:[#allocation2 + $0x4c] sm:$0xf]
      %v1231 = vld [vmem:[#allocation2 + $0x50] sm:$0x1]
      %v1232 = vld [vmem:[#allocation2 + $0x54] sm:$0xf]
      %v1233 = vld [vmem:[#allocation2 + $0x58] sm:$0xf]
      %v1234 = vld [vmem:[#allocation2 + $0x5c] sm:$0x1]
      %v1235 = vld [vmem:[#allocation2 + $0x60] sm:$0xf]
      %v1236 = vld [vmem:[#allocation2 + $0x64] sm:$0xf]
      %v1237 = vld [vmem:[#allocation2 + $0x68] sm:$0x1]
      %v1238 = vld [vmem:[#allocation2 + $0x6c] sm:$0xf]
      %v1239 = vld [vmem:[#allocation2 + $0x70] sm:$0xf]
      %v1240 = vld [vmem:[#allocation2 + $0x74] sm:$0x1]
      %v1241 = vld [vmem:[#allocation2 + $0x78] sm:$0xf]
      %v1242 = vld [vmem:[#allocation2 + $0x7c] sm:$0xf]
      %v1243 = vld [vmem:[#allocation2 + $0x80] sm:$0x1]
      %v1244 = vld [vmem:[#allocation2 + $0x84] sm:$0xf]
      %v1245 = vld [vmem:[#allocation2 + $0x88] sm:$0xf]
      %v1246 = vld [vmem:[#allocation2 + $0x8c] sm:$0x1]
      %v1247 = vld [vmem:[#allocation2 + $0x90] sm:$0xf]
      %v1248 = vld [vmem:[#allocation2 + $0x94] sm:$0xf]
      %v1249 = vld [vmem:[#allocation2 + $0x98] sm:$0x1]
      %v1250 = vld [vmem:[#allocation2 + $0x9c] sm:$0xf]
      %v1251 = vld [vmem:[#allocation2 + $0xa0] sm:$0xf]
      %v1252 = vld [vmem:[#allocation2 + $0xa4] sm:$0x1]
      %v1253 = vld [vmem:[#allocation2 + $0xa8] sm:$0xf]
      %v1254 = vld [vmem:[#allocation2 + $0xac] sm:$0xf]
      %v1255 = vld [vmem:[#allocation2 + $0xb0] sm:$0x1]
      %v1256 = vld [vmem:[#allocation2 + $0xb4] sm:$0xf]
      %v1257 = vld [vmem:[#allocation2 + $0xb8] sm:$0xf]
      %v1258 = vld [vmem:[#allocation2 + $0xbc] sm:$0x1]
      %v1307 = vunpack.c.l.b16 %v1211
      %v1308 = vunpack.c.l.b16 %v1212
      %v1309 = vunpack.c.l.b16 %v1213
      %v1310 = vunpack.c.l.b16 %v1214
      %v1311 = vunpack.c.l.b16 %v1215
      %v1312 = vunpack.c.l.b16 %v1216
      %v1313 = vunpack.c.l.b16 %v1217
      %v1314 = vunpack.c.l.b16 %v1218
      %v1315 = vunpack.c.l.b16 %v1219
      %v1316 = vunpack.c.l.b16 %v1220
      %v1317 = vunpack.c.l.b16 %v1221
      %v1318 = vunpack.c.l.b16 %v1222
      %v1319 = vunpack.c.l.b16 %v1223
      %v1320 = vunpack.c.l.b16 %v1224
      %v1321 = vunpack.c.l.b16 %v1225
      %v1322 = vunpack.c.l.b16 %v1226
      %v1323 = vunpack.c.l.b16 %v1227
      %v1324 = vunpack.c.l.b16 %v1228
      %v1325 = vunpack.c.l.b16 %v1229
      %v1326 = vunpack.c.l.b16 %v1230
      %v1327 = vunpack.c.l.b16 %v1231
      %v1328 = vunpack.c.l.b16 %v1232
      %v1329 = vunpack.c.l.b16 %v1233
      %v1330 = vunpack.c.l.b16 %v1234
      %v1331 = vunpack.c.l.b16 %v1235
      %v1332 = vunpack.c.l.b16 %v1236
      %v1333 = vunpack.c.l.b16 %v1237
      %v1334 = vunpack.c.l.b16 %v1238
      %v1335 = vunpack.c.l.b16 %v1239
      %v1336 = vunpack.c.l.b16 %v1240
      %v1337 = vunpack.c.l.b16 %v1241
      %v1338 = vunpack.c.l.b16 %v1242
      %v1339 = vunpack.c.l.b16 %v1243
      %v1340 = vunpack.c.l.b16 %v1244
      %v1341 = vunpack.c.l.b16 %v1245
      %v1342 = vunpack.c.l.b16 %v1246
      %v1343 = vunpack.c.l.b16 %v1247
      %v1344 = vunpack.c.l.b16 %v1248
      %v1345 = vunpack.c.l.b16 %v1249
      %v1346 = vunpack.c.l.b16 %v1250
      %v1347 = vunpack.c.l.b16 %v1251
      %v1348 = vunpack.c.l.b16 %v1252
      %v1349 = vunpack.c.l.b16 %v1253
      %v1350 = vunpack.c.l.b16 %v1254
      %v1351 = vunpack.c.l.b16 %v1255
      %v1352 = vunpack.c.l.b16 %v1256
      %v1353 = vunpack.c.l.b16 %v1257
      %v1354 = vunpack.c.l.b16 %v1258
      %v1355 = vpack.c.b16 %v1308, %v1307
      %v1356 = vpack.c.b16 %v1309, %v1309
      %v1357 = vpack.c.b16 %v1311, %v1310
      %v1358 = vpack.c.b16 %v1312, %v1312
      %v1359 = vpack.c.b16 %v1314, %v1313
      %v1360 = vpack.c.b16 %v1315, %v1315
      %v1361 = vpack.c.b16 %v1317, %v1316
      %v1362 = vpack.c.b16 %v1318, %v1318
      %v1363 = vpack.c.b16 %v1320, %v1319
      %v1364 = vpack.c.b16 %v1321, %v1321
      %v1365 = vpack.c.b16 %v1323, %v1322
      %v1366 = vpack.c.b16 %v1324, %v1324
      %v1367 = vpack.c.b16 %v1326, %v1325
      %v1368 = vpack.c.b16 %v1327, %v1327
      %v1369 = vpack.c.b16 %v1329, %v1328
      %v1370 = vpack.c.b16 %v1330, %v1330
      %v1371 = vpack.c.b16 %v1332, %v1331
      %v1372 = vpack.c.b16 %v1333, %v1333
      %v1373 = vpack.c.b16 %v1335, %v1334
      %v1374 = vpack.c.b16 %v1336, %v1336
      %v1375 = vpack.c.b16 %v1338, %v1337
      %v1376 = vpack.c.b16 %v1339, %v1339
      %v1377 = vpack.c.b16 %v1341, %v1340
      %v1378 = vpack.c.b16 %v1342, %v1342
      %v1379 = vpack.c.b16 %v1344, %v1343
      %v1380 = vpack.c.b16 %v1345, %v1345
      %v1381 = vpack.c.b16 %v1347, %v1346
      %v1382 = vpack.c.b16 %v1348, %v1348
      %v1383 = vpack.c.b16 %v1350, %v1349
      %v1384 = vpack.c.b16 %v1351, %v1351
      %v1385 = vpack.c.b16 %v1353, %v1352
      %v1386 = vpack.c.b16 %v1354, %v1354
      %vm1387 = vsmask.f32 7424
      %v1389 = vshrl.u32 %v1355, 16
      %v1391 = vshll.u32 %v1355, 16
      %v1393 = vrot.slane %v1391, 1
      %v1394 = vor.u32 %v1389, %v1393
      %v1396 = vshll.u32 %v1356, 16
      %v1398 = vrot.slane %v1396, 1
      %v1399 = vsel %vm1387, %v1394, %v1398
      %v1401 = vshrl.u32 %v1357, 16
      %v1403 = vshll.u32 %v1357, 16
      %v1405 = vrot.slane %v1403, 1
      %v1406 = vor.u32 %v1401, %v1405
      %v1408 = vshll.u32 %v1358, 16
      %v1410 = vrot.slane %v1408, 1
      %v1411 = vsel %vm1387, %v1406, %v1410
      %v1413 = vshrl.u32 %v1359, 16
      %v1415 = vshll.u32 %v1359, 16
      %v1417 = vrot.slane %v1415, 1
      %v1418 = vor.u32 %v1413, %v1417
      %v1420 = vshll.u32 %v1360, 16
      %v1422 = vrot.slane %v1420, 1
      %v1423 = vsel %vm1387, %v1418, %v1422
      %v1425 = vshrl.u32 %v1361, 16
      %v1427 = vshll.u32 %v1361, 16
      %v1429 = vrot.slane %v1427, 1
      %v1430 = vor.u32 %v1425, %v1429
      %v1432 = vshll.u32 %v1362, 16
      %v1434 = vrot.slane %v1432, 1
      %v1435 = vsel %vm1387, %v1430, %v1434
      %v1437 = vshrl.u32 %v1363, 16
      %v1439 = vshll.u32 %v1363, 16
      %v1441 = vrot.slane %v1439, 1
      %v1442 = vor.u32 %v1437, %v1441
      %v1444 = vshll.u32 %v1364, 16
      %v1446 = vrot.slane %v1444, 1
      %v1447 = vsel %vm1387, %v1442, %v1446
      %v1449 = vshrl.u32 %v1365, 16
      %v1451 = vshll.u32 %v1365, 16
      %v1453 = vrot.slane %v1451, 1
      %v1454 = vor.u32 %v1449, %v1453
      %v1456 = vshll.u32 %v1366, 16
      %v1458 = vrot.slane %v1456, 1
      %v1459 = vsel %vm1387, %v1454, %v1458
      %v1461 = vshrl.u32 %v1367, 16
      %v1463 = vshll.u32 %v1367, 16
      %v1465 = vrot.slane %v1463, 1
      %v1466 = vor.u32 %v1461, %v1465
      %v1468 = vshll.u32 %v1368, 16
      %v1470 = vrot.slane %v1468, 1
      %v1471 = vsel %vm1387, %v1466, %v1470
      %v1473 = vshrl.u32 %v1369, 16
      %v1475 = vshll.u32 %v1369, 16
      %v1477 = vrot.slane %v1475, 1
      %v1478 = vor.u32 %v1473, %v1477
      %v1480 = vshll.u32 %v1370, 16
      %v1482 = vrot.slane %v1480, 1
      %v1483 = vsel %vm1387, %v1478, %v1482
      %v1485 = vshrl.u32 %v1371, 16
      %v1487 = vshll.u32 %v1371, 16
      %v1489 = vrot.slane %v1487, 1
      %v1490 = vor.u32 %v1485, %v1489
      %v1492 = vshll.u32 %v1372, 16
      %v1494 = vrot.slane %v1492, 1
      %v1495 = vsel %vm1387, %v1490, %v1494
      %v1497 = vshrl.u32 %v1373, 16
      %v1499 = vshll.u32 %v1373, 16
      %v1501 = vrot.slane %v1499, 1
      %v1502 = vor.u32 %v1497, %v1501
      %v1504 = vshll.u32 %v1374, 16
      %v1506 = vrot.slane %v1504, 1
      %v1507 = vsel %vm1387, %v1502, %v1506
      %v1509 = vshrl.u32 %v1375, 16
      %v1511 = vshll.u32 %v1375, 16
      %v1513 = vrot.slane %v1511, 1
      %v1514 = vor.u32 %v1509, %v1513
      %v1516 = vshll.u32 %v1376, 16
      %v1518 = vrot.slane %v1516, 1
      %v1519 = vsel %vm1387, %v1514, %v1518
      %v1521 = vshrl.u32 %v1377, 16
      %v1523 = vshll.u32 %v1377, 16
      %v1525 = vrot.slane %v1523, 1
      %v1526 = vor.u32 %v1521, %v1525
      %v1528 = vshll.u32 %v1378, 16
      %v1530 = vrot.slane %v1528, 1
      %v1531 = vsel %vm1387, %v1526, %v1530
      %v1533 = vshrl.u32 %v1379, 16
      %v1535 = vshll.u32 %v1379, 16
      %v1537 = vrot.slane %v1535, 1
      %v1538 = vor.u32 %v1533, %v1537
      %v1540 = vshll.u32 %v1380, 16
      %v1542 = vrot.slane %v1540, 1
      %v1543 = vsel %vm1387, %v1538, %v1542
      %v1545 = vshrl.u32 %v1381, 16
      %v1547 = vshll.u32 %v1381, 16
      %v1549 = vrot.slane %v1547, 1
      %v1550 = vor.u32 %v1545, %v1549
      %v1552 = vshll.u32 %v1382, 16
      %v1554 = vrot.slane %v1552, 1
      %v1555 = vsel %vm1387, %v1550, %v1554
      %v1557 = vshrl.u32 %v1383, 16
      %v1559 = vshll.u32 %v1383, 16
      %v1561 = vrot.slane %v1559, 1
      %v1562 = vor.u32 %v1557, %v1561
      %v1564 = vshll.u32 %v1384, 16
      %v1566 = vrot.slane %v1564, 1
      %v1567 = vsel %vm1387, %v1562, %v1566
      %v1569 = vshrl.u32 %v1385, 16
      %v1571 = vshll.u32 %v1385, 16
      %v1573 = vrot.slane %v1571, 1
      %v1574 = vor.u32 %v1569, %v1573
      %v1576 = vshll.u32 %v1386, 16
      %v1578 = vrot.slane %v1576, 1
      %v1579 = vsel %vm1387, %v1574, %v1578
      %1580 = vrot.lane.b32.xlu0 %v1399, 64
      %v1581 = vpop.permute.xlu0 %1580
      %1582 = vrot.lane.b32.xlu0 %v1411, 64
      %v1583 = vpop.permute.xlu0 %1582
      %1584 = vrot.lane.b32.xlu0 %v1423, 64
      %v1585 = vpop.permute.xlu0 %1584
      %1586 = vrot.lane.b32.xlu0 %v1435, 64
      %v1587 = vpop.permute.xlu0 %1586
      %1588 = vrot.lane.b32.xlu0 %v1447, 64
      %v1589 = vpop.permute.xlu0 %1588
      %1590 = vrot.lane.b32.xlu0 %v1459, 64
      %v1591 = vpop.permute.xlu0 %1590
      %1592 = vrot.lane.b32.xlu0 %v1471, 64
      %v1593 = vpop.permute.xlu0 %1592
      %1594 = vrot.lane.b32.xlu0 %v1483, 64
      %v1595 = vpop.permute.xlu0 %1594
      %1596 = vrot.lane.b32.xlu0 %v1495, 64
      %v1597 = vpop.permute.xlu0 %1596
      %1598 = vrot.lane.b32.xlu0 %v1507, 64
      %v1599 = vpop.permute.xlu0 %1598
      %1600 = vrot.lane.b32.xlu0 %v1519, 64
      %v1601 = vpop.permute.xlu0 %1600
      %1602 = vrot.lane.b32.xlu0 %v1531, 64
      %v1603 = vpop.permute.xlu0 %1602
      %1604 = vrot.lane.b32.xlu0 %v1543, 64
      %v1605 = vpop.permute.xlu0 %1604
      %1606 = vrot.lane.b32.xlu0 %v1555, 64
      %v1607 = vpop.permute.xlu0 %1606
      %1608 = vrot.lane.b32.xlu0 %v1567, 64
      %v1609 = vpop.permute.xlu0 %1608
      %1610 = vrot.lane.b32.xlu0 %v1579, 64
      %v1611 = vpop.permute.xlu0 %1610
      %vm1628 = vcmask 1048064
      %1629 = vst.msk [vmem:[#allocation3] sm:$0xff] %vm1628, %v1581
      %1630 = vst.msk [vmem:[#allocation3 + $0x10] sm:$0xff] %vm1628, %v1583
      %1631 = vst.msk [vmem:[#allocation3 + $0x20] sm:$0xff] %vm1628, %v1585
      %1632 = vst.msk [vmem:[#allocation3 + $0x30] sm:$0xff] %vm1628, %v1587
      %1633 = vst.msk [vmem:[#allocation3 + $0x40] sm:$0xff] %vm1628, %v1589
      %1634 = vst.msk [vmem:[#allocation3 + $0x50] sm:$0xff] %vm1628, %v1591
      %1635 = vst.msk [vmem:[#allocation3 + $0x60] sm:$0xff] %vm1628, %v1593
      %1636 = vst.msk [vmem:[#allocation3 + $0x70] sm:$0xff] %vm1628, %v1595
      %1637 = vst.msk [vmem:[#allocation3 + $0x80] sm:$0xff] %vm1628, %v1597
      %1638 = vst.msk [vmem:[#allocation3 + $0x90] sm:$0xff] %vm1628, %v1599
      %1639 = vst.msk [vmem:[#allocation3 + $0xa0] sm:$0xff] %vm1628, %v1601
      %1640 = vst.msk [vmem:[#allocation3 + $0xb0] sm:$0xff] %vm1628, %v1603
      %1641 = vst.msk [vmem:[#allocation3 + $0xc0] sm:$0xff] %vm1628, %v1605
      %1642 = vst.msk [vmem:[#allocation3 + $0xd0] sm:$0xff] %vm1628, %v1607
      %1643 = vst.msk [vmem:[#allocation3 + $0xe0] sm:$0xff] %vm1628, %v1609
      %1644 = vst.msk [vmem:[#allocation3 + $0xf0] sm:$0xff] %vm1628, %v1611
      %v1645 = vld [vmem:[#allocation2] sm:$0xe]
      %v1646 = vld [vmem:[#allocation2 + $0x4] sm:$0xf]
      %v1647 = vld [vmem:[#allocation2 + $0x8] sm:$0x1]
      %v1648 = vld [vmem:[#allocation2 + $0xc] sm:$0xe]
      %v1649 = vld [vmem:[#allocation2 + $0x10] sm:$0xf]
      %v1650 = vld [vmem:[#allocation2 + $0x14] sm:$0x1]
      %v1651 = vld [vmem:[#allocation2 + $0x18] sm:$0xe]
      %v1652 = vld [vmem:[#allocation2 + $0x1c] sm:$0xf]
      %v1653 = vld [vmem:[#allocation2 + $0x20] sm:$0x1]
      %v1654 = vld [vmem:[#allocation2 + $0x24] sm:$0xe]
      %v1655 = vld [vmem:[#allocation2 + $0x28] sm:$0xf]
      %v1656 = vld [vmem:[#allocation2 + $0x2c] sm:$0x1]
      %v1657 = vld [vmem:[#allocation2 + $0x30] sm:$0xe]
      %v1658 = vld [vmem:[#allocation2 + $0x34] sm:$0xf]
      %v1659 = vld [vmem:[#allocation2 + $0x38] sm:$0x1]
      %v1660 = vld [vmem:[#allocation2 + $0x3c] sm:$0xe]
      %v1661 = vld [vmem:[#allocation2 + $0x40] sm:$0xf]
      %v1662 = vld [vmem:[#allocation2 + $0x44] sm:$0x1]
      %v1663 = vld [vmem:[#allocation2 + $0x48] sm:$0xe]
      %v1664 = vld [vmem:[#allocation2 + $0x4c] sm:$0xf]
      %v1665 = vld [vmem:[#allocation2 + $0x50] sm:$0x1]
      %v1666 = vld [vmem:[#allocation2 + $0x54] sm:$0xe]
      %v1667 = vld [vmem:[#allocation2 + $0x58] sm:$0xf]
      %v1668 = vld [vmem:[#allocation2 + $0x5c] sm:$0x1]
      %v1669 = vld [vmem:[#allocation2 + $0x60] sm:$0xe]
      %v1670 = vld [vmem:[#allocation2 + $0x64] sm:$0xf]
      %v1671 = vld [vmem:[#allocation2 + $0x68] sm:$0x1]
      %v1672 = vld [vmem:[#allocation2 + $0x6c] sm:$0xe]
      %v1673 = vld [vmem:[#allocation2 + $0x70] sm:$0xf]
      %v1674 = vld [vmem:[#allocation2 + $0x74] sm:$0x1]
      %v1675 = vld [vmem:[#allocation2 + $0x78] sm:$0xe]
      %v1676 = vld [vmem:[#allocation2 + $0x7c] sm:$0xf]
      %v1677 = vld [vmem:[#allocation2 + $0x80] sm:$0x1]
      %v1678 = vld [vmem:[#allocation2 + $0x84] sm:$0xe]
      %v1679 = vld [vmem:[#allocation2 + $0x88] sm:$0xf]
      %v1680 = vld [vmem:[#allocation2 + $0x8c] sm:$0x1]
      %v1681 = vld [vmem:[#allocation2 + $0x90] sm:$0xe]
      %v1682 = vld [vmem:[#allocation2 + $0x94] sm:$0xf]
      %v1683 = vld [vmem:[#allocation2 + $0x98] sm:$0x1]
      %v1684 = vld [vmem:[#allocation2 + $0x9c] sm:$0xe]
      %v1685 = vld [vmem:[#allocation2 + $0xa0] sm:$0xf]
      %v1686 = vld [vmem:[#allocation2 + $0xa4] sm:$0x1]
      %v1687 = vld [vmem:[#allocation2 + $0xa8] sm:$0xe]
      %v1688 = vld [vmem:[#allocation2 + $0xac] sm:$0xf]
      %v1689 = vld [vmem:[#allocation2 + $0xb0] sm:$0x1]
      %v1690 = vld [vmem:[#allocation2 + $0xb4] sm:$0xe]
      %v1691 = vld [vmem:[#allocation2 + $0xb8] sm:$0xf]
      %v1692 = vld [vmem:[#allocation2 + $0xbc] sm:$0x1]
      %v1741 = vunpack.c.l.b16 %v1645
      %v1742 = vunpack.c.l.b16 %v1646
      %v1743 = vunpack.c.l.b16 %v1647
      %v1744 = vunpack.c.l.b16 %v1648
      %v1745 = vunpack.c.l.b16 %v1649
      %v1746 = vunpack.c.l.b16 %v1650
      %v1747 = vunpack.c.l.b16 %v1651
      %v1748 = vunpack.c.l.b16 %v1652
      %v1749 = vunpack.c.l.b16 %v1653
      %v1750 = vunpack.c.l.b16 %v1654
      %v1751 = vunpack.c.l.b16 %v1655
      %v1752 = vunpack.c.l.b16 %v1656
      %v1753 = vunpack.c.l.b16 %v1657
      %v1754 = vunpack.c.l.b16 %v1658
      %v1755 = vunpack.c.l.b16 %v1659
      %v1756 = vunpack.c.l.b16 %v1660
      %v1757 = vunpack.c.l.b16 %v1661
      %v1758 = vunpack.c.l.b16 %v1662
      %v1759 = vunpack.c.l.b16 %v1663
      %v1760 = vunpack.c.l.b16 %v1664
      %v1761 = vunpack.c.l.b16 %v1665
      %v1762 = vunpack.c.l.b16 %v1666
      %v1763 = vunpack.c.l.b16 %v1667
      %v1764 = vunpack.c.l.b16 %v1668
      %v1765 = vunpack.c.l.b16 %v1669
      %v1766 = vunpack.c.l.b16 %v1670
      %v1767 = vunpack.c.l.b16 %v1671
      %v1768 = vunpack.c.l.b16 %v1672
      %v1769 = vunpack.c.l.b16 %v1673
      %v1770 = vunpack.c.l.b16 %v1674
      %v1771 = vunpack.c.l.b16 %v1675
      %v1772 = vunpack.c.l.b16 %v1676
      %v1773 = vunpack.c.l.b16 %v1677
      %v1774 = vunpack.c.l.b16 %v1678
      %v1775 = vunpack.c.l.b16 %v1679
      %v1776 = vunpack.c.l.b16 %v1680
      %v1777 = vunpack.c.l.b16 %v1681
      %v1778 = vunpack.c.l.b16 %v1682
      %v1779 = vunpack.c.l.b16 %v1683
      %v1780 = vunpack.c.l.b16 %v1684
      %v1781 = vunpack.c.l.b16 %v1685
      %v1782 = vunpack.c.l.b16 %v1686
      %v1783 = vunpack.c.l.b16 %v1687
      %v1784 = vunpack.c.l.b16 %v1688
      %v1785 = vunpack.c.l.b16 %v1689
      %v1786 = vunpack.c.l.b16 %v1690
      %v1787 = vunpack.c.l.b16 %v1691
      %v1788 = vunpack.c.l.b16 %v1692
      %v1789 = vpack.c.b16 %v1742, %v1741
      %v1790 = vpack.c.b16 %v1743, %v1743
      %v1791 = vpack.c.b16 %v1745, %v1744
      %v1792 = vpack.c.b16 %v1746, %v1746
      %v1793 = vpack.c.b16 %v1748, %v1747
      %v1794 = vpack.c.b16 %v1749, %v1749
      %v1795 = vpack.c.b16 %v1751, %v1750
      %v1796 = vpack.c.b16 %v1752, %v1752
      %v1797 = vpack.c.b16 %v1754, %v1753
      %v1798 = vpack.c.b16 %v1755, %v1755
      %v1799 = vpack.c.b16 %v1757, %v1756
      %v1800 = vpack.c.b16 %v1758, %v1758
      %v1801 = vpack.c.b16 %v1760, %v1759
      %v1802 = vpack.c.b16 %v1761, %v1761
      %v1803 = vpack.c.b16 %v1763, %v1762
      %v1804 = vpack.c.b16 %v1764, %v1764
      %v1805 = vpack.c.b16 %v1766, %v1765
      %v1806 = vpack.c.b16 %v1767, %v1767
      %v1807 = vpack.c.b16 %v1769, %v1768
      %v1808 = vpack.c.b16 %v1770, %v1770
      %v1809 = vpack.c.b16 %v1772, %v1771
      %v1810 = vpack.c.b16 %v1773, %v1773
      %v1811 = vpack.c.b16 %v1775, %v1774
      %v1812 = vpack.c.b16 %v1776, %v1776
      %v1813 = vpack.c.b16 %v1778, %v1777
      %v1814 = vpack.c.b16 %v1779, %v1779
      %v1815 = vpack.c.b16 %v1781, %v1780
      %v1816 = vpack.c.b16 %v1782, %v1782
      %v1817 = vpack.c.b16 %v1784, %v1783
      %v1818 = vpack.c.b16 %v1785, %v1785
      %v1819 = vpack.c.b16 %v1787, %v1786
      %v1820 = vpack.c.b16 %v1788, %v1788
      %vm1821 = vcmask 1046528
      %v1822 = vrot.slane %v1789, 1
      %v1823 = vrot.slane %v1790, 1
      %v1824 = vsel %vm1821, %v1822, %v1823
      %v1825 = vrot.slane %v1791, 1
      %v1826 = vrot.slane %v1792, 1
      %v1827 = vsel %vm1821, %v1825, %v1826
      %v1828 = vrot.slane %v1793, 1
      %v1829 = vrot.slane %v1794, 1
      %v1830 = vsel %vm1821, %v1828, %v1829
      %v1831 = vrot.slane %v1795, 1
      %v1832 = vrot.slane %v1796, 1
      %v1833 = vsel %vm1821, %v1831, %v1832
      %v1834 = vrot.slane %v1797, 1
      %v1835 = vrot.slane %v1798, 1
      %v1836 = vsel %vm1821, %v1834, %v1835
      %v1837 = vrot.slane %v1799, 1
      %v1838 = vrot.slane %v1800, 1
      %v1839 = vsel %vm1821, %v1837, %v1838
      %v1840 = vrot.slane %v1801, 1
      %v1841 = vrot.slane %v1802, 1
      %v1842 = vsel %vm1821, %v1840, %v1841
      %v1843 = vrot.slane %v1803, 1
      %v1844 = vrot.slane %v1804, 1
      %v1845 = vsel %vm1821, %v1843, %v1844
      %v1846 = vrot.slane %v1805, 1
      %v1847 = vrot.slane %v1806, 1
      %v1848 = vsel %vm1821, %v1846, %v1847
      %v1849 = vrot.slane %v1807, 1
      %v1850 = vrot.slane %v1808, 1
      %v1851 = vsel %vm1821, %v1849, %v1850
      %v1852 = vrot.slane %v1809, 1
      %v1853 = vrot.slane %v1810, 1
      %v1854 = vsel %vm1821, %v1852, %v1853
      %v1855 = vrot.slane %v1811, 1
      %v1856 = vrot.slane %v1812, 1
      %v1857 = vsel %vm1821, %v1855, %v1856
      %v1858 = vrot.slane %v1813, 1
      %v1859 = vrot.slane %v1814, 1
      %v1860 = vsel %vm1821, %v1858, %v1859
      %v1861 = vrot.slane %v1815, 1
      %v1862 = vrot.slane %v1816, 1
      %v1863 = vsel %vm1821, %v1861, %v1862
      %v1864 = vrot.slane %v1817, 1
      %v1865 = vrot.slane %v1818, 1
      %v1866 = vsel %vm1821, %v1864, %v1865
      %v1867 = vrot.slane %v1819, 1
      %v1868 = vrot.slane %v1820, 1
      %v1869 = vsel %vm1821, %v1867, %v1868
      %1886 = vst.msk [vmem:[#allocation3 + $0x8] sm:$0xff] %vm1194, %v1824
      %1887 = vst.msk [vmem:[#allocation3 + $0x18] sm:$0xff] %vm1194, %v1827
      %1888 = vst.msk [vmem:[#allocation3 + $0x28] sm:$0xff] %vm1194, %v1830
      %1889 = vst.msk [vmem:[#allocation3 + $0x38] sm:$0xff] %vm1194, %v1833
      %1890 = vst.msk [vmem:[#allocation3 + $0x48] sm:$0xff] %vm1194, %v1836
      %1891 = vst.msk [vmem:[#allocation3 + $0x58] sm:$0xff] %vm1194, %v1839
      %1892 = vst.msk [vmem:[#allocation3 + $0x68] sm:$0xff] %vm1194, %v1842
      %1893 = vst.msk [vmem:[#allocation3 + $0x78] sm:$0xff] %vm1194, %v1845
      %1894 = vst.msk [vmem:[#allocation3 + $0x88] sm:$0xff] %vm1194, %v1848
      %1895 = vst.msk [vmem:[#allocation3 + $0x98] sm:$0xff] %vm1194, %v1851
      %1896 = vst.msk [vmem:[#allocation3 + $0xa8] sm:$0xff] %vm1194, %v1854
      %1897 = vst.msk [vmem:[#allocation3 + $0xb8] sm:$0xff] %vm1194, %v1857
      %1898 = vst.msk [vmem:[#allocation3 + $0xc8] sm:$0xff] %vm1194, %v1860
      %1899 = vst.msk [vmem:[#allocation3 + $0xd8] sm:$0xff] %vm1194, %v1863
      %1900 = vst.msk [vmem:[#allocation3 + $0xe8] sm:$0xff] %vm1194, %v1866
      %1901 = vst.msk [vmem:[#allocation3 + $0xf8] sm:$0xff] %vm1194, %v1869
      %v1902 = vld [vmem:[#allocation3] sm:$0xff]
      %v1903 = vld [vmem:[#allocation3 + $0x8] sm:$0xff]
      %v1904 = vld [vmem:[#allocation3 + $0x10] sm:$0xff]
      %v1905 = vld [vmem:[#allocation3 + $0x18] sm:$0xff]
      %v1906 = vld [vmem:[#allocation3 + $0x20] sm:$0xff]
      %v1907 = vld [vmem:[#allocation3 + $0x28] sm:$0xff]
      %v1908 = vld [vmem:[#allocation3 + $0x30] sm:$0xff]
      %v1909 = vld [vmem:[#allocation3 + $0x38] sm:$0xff]
      %v1910 = vld [vmem:[#allocation3 + $0x40] sm:$0xff]
      %v1911 = vld [vmem:[#allocation3 + $0x48] sm:$0xff]
      %v1912 = vld [vmem:[#allocation3 + $0x50] sm:$0xff]
      %v1913 = vld [vmem:[#allocation3 + $0x58] sm:$0xff]
      %v1914 = vld [vmem:[#allocation3 + $0x60] sm:$0xff]
      %v1915 = vld [vmem:[#allocation3 + $0x68] sm:$0xff]
      %v1916 = vld [vmem:[#allocation3 + $0x70] sm:$0xff]
      %v1917 = vld [vmem:[#allocation3 + $0x78] sm:$0xff]
      %v1918 = vld [vmem:[#allocation3 + $0x80] sm:$0xff]
      %v1919 = vld [vmem:[#allocation3 + $0x88] sm:$0xff]
      %v1920 = vld [vmem:[#allocation3 + $0x90] sm:$0xff]
      %v1921 = vld [vmem:[#allocation3 + $0x98] sm:$0xff]
      %v1922 = vld [vmem:[#allocation3 + $0xa0] sm:$0xff]
      %v1923 = vld [vmem:[#allocation3 + $0xa8] sm:$0xff]
      %v1924 = vld [vmem:[#allocation3 + $0xb0] sm:$0xff]
      %v1925 = vld [vmem:[#allocation3 + $0xb8] sm:$0xff]
      %v1926 = vld [vmem:[#allocation3 + $0xc0] sm:$0xff]
      %v1927 = vld [vmem:[#allocation3 + $0xc8] sm:$0xff]
      %v1928 = vld [vmem:[#allocation3 + $0xd0] sm:$0xff]
      %v1929 = vld [vmem:[#allocation3 + $0xd8] sm:$0xff]
      %v1930 = vld [vmem:[#allocation3 + $0xe0] sm:$0xff]
      %v1931 = vld [vmem:[#allocation3 + $0xe8] sm:$0xff]
      %v1932 = vld [vmem:[#allocation3 + $0xf0] sm:$0xff]
      %v1933 = vld [vmem:[#allocation3 + $0xf8] sm:$0xff]
      %v1934 = vld [vmem:[%s3] sm:$0xf]
      %v1935 = vld [vmem:[%s3 + $0x4] sm:$0xf]
      %v1936 = vld [vmem:[%s3 + $0x8] sm:$0xf]
      %v1937 = vld [vmem:[%s3 + $0xc] sm:$0xf]
      %v1938 = vld [vmem:[%s3 + $0x10] sm:$0xf]
      %v1939 = vld [vmem:[%s3 + $0x14] sm:$0xf]
      %v1940 = vld [vmem:[%s3 + $0x18] sm:$0xf]
      %v1941 = vld [vmem:[%s3 + $0x1c] sm:$0xf]
      %v1942 = vld [vmem:[%s3 + $0x20] sm:$0xf]
      %v1943 = vld [vmem:[%s3 + $0x24] sm:$0xf]
      %v1944 = vld [vmem:[%s3 + $0x28] sm:$0xf]
      %v1945 = vld [vmem:[%s3 + $0x2c] sm:$0xf]
      %v1946 = vld [vmem:[%s3 + $0x30] sm:$0xf]
      %v1947 = vld [vmem:[%s3 + $0x34] sm:$0xf]
      %v1948 = vld [vmem:[%s3 + $0x38] sm:$0xf]
      %v1949 = vld [vmem:[%s3 + $0x3c] sm:$0xf]
      %v1950 = vld [vmem:[%s3 + $0x40] sm:$0xf]
      %v1951 = vld [vmem:[%s3 + $0x44] sm:$0xf]
      %v1952 = vld [vmem:[%s3 + $0x48] sm:$0xf]
      %v1953 = vld [vmem:[%s3 + $0x4c] sm:$0xf]
      %v1954 = vld [vmem:[%s3 + $0x50] sm:$0xf]
      %v1955 = vld [vmem:[%s3 + $0x54] sm:$0xf]
      %v1956 = vld [vmem:[%s3 + $0x58] sm:$0xf]
      %v1957 = vld [vmem:[%s3 + $0x5c] sm:$0xf]
      %v1958 = vld [vmem:[%s951] sm:$0xf]
      %v1959 = vld [vmem:[%s951 + $0x4] sm:$0xf]
      %v1960 = vld [vmem:[%s951 + $0xc] sm:$0xf]
      %v1961 = vld [vmem:[%s951 + $0x10] sm:$0xf]
      %v1962 = vld [vmem:[%s951 + $0x18] sm:$0xf]
      %v1963 = vld [vmem:[%s951 + $0x1c] sm:$0xf]
      %v1964 = vld [vmem:[%s951 + $0x24] sm:$0xf]
      %v1965 = vld [vmem:[%s951 + $0x28] sm:$0xf]
      %v1966 = vld [vmem:[%s951 + $0x30] sm:$0xf]
      %v1967 = vld [vmem:[%s951 + $0x34] sm:$0xf]
      %v1968 = vld [vmem:[%s951 + $0x3c] sm:$0xf]
      %v1969 = vld [vmem:[%s951 + $0x40] sm:$0xf]
      %v1970 = vld [vmem:[%s951 + $0x48] sm:$0xf]
      %v1971 = vld [vmem:[%s951 + $0x4c] sm:$0xf]
      %v1972 = vld [vmem:[%s951 + $0x54] sm:$0xf]
      %v1973 = vld [vmem:[%s951 + $0x58] sm:$0xf]
      %v1974 = vld [vmem:[%s951 + $0x60] sm:$0xf]
      %v1975 = vld [vmem:[%s951 + $0x64] sm:$0xf]
      %v1976 = vld [vmem:[%s951 + $0x6c] sm:$0xf]
      %v1977 = vld [vmem:[%s951 + $0x70] sm:$0xf]
      %v1978 = vld [vmem:[%s951 + $0x78] sm:$0xf]
      %v1979 = vld [vmem:[%s951 + $0x7c] sm:$0xf]
      %v1980 = vld [vmem:[%s951 + $0x84] sm:$0xf]
      %v1981 = vld [vmem:[%s951 + $0x88] sm:$0xf]
      %v1982 = vld [vmem:[%s951 + $0x90] sm:$0xf]
      %v1983 = vld [vmem:[%s951 + $0x94] sm:$0xf]
      %v1984 = vld [vmem:[%s951 + $0x9c] sm:$0xf]
      %v1985 = vld [vmem:[%s951 + $0xa0] sm:$0xf]
      %v1986 = vld [vmem:[%s951 + $0xa8] sm:$0xf]
      %v1987 = vld [vmem:[%s951 + $0xac] sm:$0xf]
      %v1988 = vld [vmem:[%s951 + $0xb4] sm:$0xf]
      %v1989 = vld [vmem:[%s951 + $0xb8] sm:$0xf]
      %v2022 = vunpack.c.l.b16 %v1958
      %v2023 = vunpack.c.l.b16 %v1959
      %v2024 = vunpack.c.l.b16 %v1960
      %v2025 = vunpack.c.l.b16 %v1961
      %v2026 = vunpack.c.l.b16 %v1962
      %v2027 = vunpack.c.l.b16 %v1963
      %v2028 = vunpack.c.l.b16 %v1964
      %v2029 = vunpack.c.l.b16 %v1965
      %v2030 = vunpack.c.l.b16 %v1966
      %v2031 = vunpack.c.l.b16 %v1967
      %v2032 = vunpack.c.l.b16 %v1968
      %v2033 = vunpack.c.l.b16 %v1969
      %v2034 = vunpack.c.l.b16 %v1970
      %v2035 = vunpack.c.l.b16 %v1971
      %v2036 = vunpack.c.l.b16 %v1972
      %v2037 = vunpack.c.l.b16 %v1973
      %v2038 = vunpack.c.l.b16 %v1974
      %v2039 = vunpack.c.l.b16 %v1975
      %v2040 = vunpack.c.l.b16 %v1976
      %v2041 = vunpack.c.l.b16 %v1977
      %v2042 = vunpack.c.l.b16 %v1978
      %v2043 = vunpack.c.l.b16 %v1979
      %v2044 = vunpack.c.l.b16 %v1980
      %v2045 = vunpack.c.l.b16 %v1981
      %v2046 = vunpack.c.l.b16 %v1982
      %v2047 = vunpack.c.l.b16 %v1983
      %v2048 = vunpack.c.l.b16 %v1984
      %v2049 = vunpack.c.l.b16 %v1985
      %v2050 = vunpack.c.l.b16 %v1986
      %v2051 = vunpack.c.l.b16 %v1987
      %v2052 = vunpack.c.l.b16 %v1988
      %v2053 = vunpack.c.l.b16 %v1989
      %v2054 = vpack.c.b16 %v2023, %v2022
      %v2055 = vpack.c.b16 %v2025, %v2024
      %v2056 = vpack.c.b16 %v2027, %v2026
      %v2057 = vpack.c.b16 %v2029, %v2028
      %v2058 = vpack.c.b16 %v2031, %v2030
      %v2059 = vpack.c.b16 %v2033, %v2032
      %v2060 = vpack.c.b16 %v2035, %v2034
      %v2061 = vpack.c.b16 %v2037, %v2036
      %v2062 = vpack.c.b16 %v2039, %v2038
      %v2063 = vpack.c.b16 %v2041, %v2040
      %v2064 = vpack.c.b16 %v2043, %v2042
      %v2065 = vpack.c.b16 %v2045, %v2044
      %v2066 = vpack.c.b16 %v2047, %v2046
      %v2067 = vpack.c.b16 %v2049, %v2048
      %v2068 = vpack.c.b16 %v2051, %v2050
      %v2069 = vpack.c.b16 %v2053, %v2052
      %2086 = vst.msk [vmem:[#allocation3] sm:$0xff] %vm1194, %v2054
      %2087 = vst.msk [vmem:[#allocation3 + $0x10] sm:$0xff] %vm1194, %v2055
      %2088 = vst.msk [vmem:[#allocation3 + $0x20] sm:$0xff] %vm1194, %v2056
      %2089 = vst.msk [vmem:[#allocation3 + $0x30] sm:$0xff] %vm1194, %v2057
      %2090 = vst.msk [vmem:[#allocation3 + $0x40] sm:$0xff] %vm1194, %v2058
      %2091 = vst.msk [vmem:[#allocation3 + $0x50] sm:$0xff] %vm1194, %v2059
      %2092 = vst.msk [vmem:[#allocation3 + $0x60] sm:$0xff] %vm1194, %v2060
      %2093 = vst.msk [vmem:[#allocation3 + $0x70] sm:$0xff] %vm1194, %v2061
      %2094 = vst.msk [vmem:[#allocation3 + $0x80] sm:$0xff] %vm1194, %v2062
      %2095 = vst.msk [vmem:[#allocation3 + $0x90] sm:$0xff] %vm1194, %v2063
      %2096 = vst.msk [vmem:[#allocation3 + $0xa0] sm:$0xff] %vm1194, %v2064
      %2097 = vst.msk [vmem:[#allocation3 + $0xb0] sm:$0xff] %vm1194, %v2065
      %2098 = vst.msk [vmem:[#allocation3 + $0xc0] sm:$0xff] %vm1194, %v2066
      %2099 = vst.msk [vmem:[#allocation3 + $0xd0] sm:$0xff] %vm1194, %v2067
      %2100 = vst.msk [vmem:[#allocation3 + $0xe0] sm:$0xff] %vm1194, %v2068
      %2101 = vst.msk [vmem:[#allocation3 + $0xf0] sm:$0xff] %vm1194, %v2069
      %v2102 = vld [vmem:[%s951] sm:$0xf]
      %v2103 = vld [vmem:[%s951 + $0x4] sm:$0xf]
      %v2104 = vld [vmem:[%s951 + $0x8] sm:$0x1]
      %v2105 = vld [vmem:[%s951 + $0xc] sm:$0xf]
      %v2106 = vld [vmem:[%s951 + $0x10] sm:$0xf]
      %v2107 = vld [vmem:[%s951 + $0x14] sm:$0x1]
      %v2108 = vld [vmem:[%s951 + $0x18] sm:$0xf]
      %v2109 = vld [vmem:[%s951 + $0x1c] sm:$0xf]
      %v2110 = vld [vmem:[%s951 + $0x20] sm:$0x1]
      %v2111 = vld [vmem:[%s951 + $0x24] sm:$0xf]
      %v2112 = vld [vmem:[%s951 + $0x28] sm:$0xf]
      %v2113 = vld [vmem:[%s951 + $0x2c] sm:$0x1]
      %v2114 = vld [vmem:[%s951 + $0x30] sm:$0xf]
      %v2115 = vld [vmem:[%s951 + $0x34] sm:$0xf]
      %v2116 = vld [vmem:[%s951 + $0x38] sm:$0x1]
      %v2117 = vld [vmem:[%s951 + $0x3c] sm:$0xf]
      %v2118 = vld [vmem:[%s951 + $0x40] sm:$0xf]
      %v2119 = vld [vmem:[%s951 + $0x44] sm:$0x1]
      %v2120 = vld [vmem:[%s951 + $0x48] sm:$0xf]
      %v2121 = vld [vmem:[%s951 + $0x4c] sm:$0xf]
      %v2122 = vld [vmem:[%s951 + $0x50] sm:$0x1]
      %v2123 = vld [vmem:[%s951 + $0x54] sm:$0xf]
      %v2124 = vld [vmem:[%s951 + $0x58] sm:$0xf]
      %v2125 = vld [vmem:[%s951 + $0x5c] sm:$0x1]
      %v2126 = vld [vmem:[%s951 + $0x60] sm:$0xf]
      %v2127 = vld [vmem:[%s951 + $0x64] sm:$0xf]
      %v2128 = vld [vmem:[%s951 + $0x68] sm:$0x1]
      %v2129 = vld [vmem:[%s951 + $0x6c] sm:$0xf]
      %v2130 = vld [vmem:[%s951 + $0x70] sm:$0xf]
      %v2131 = vld [vmem:[%s951 + $0x74] sm:$0x1]
      %v2132 = vld [vmem:[%s951 + $0x78] sm:$0xf]
      %v2133 = vld [vmem:[%s951 + $0x7c] sm:$0xf]
      %v2134 = vld [vmem:[%s951 + $0x80] sm:$0x1]
      %v2135 = vld [vmem:[%s951 + $0x84] sm:$0xf]
      %v2136 = vld [vmem:[%s951 + $0x88] sm:$0xf]
      %v2137 = vld [vmem:[%s951 + $0x8c] sm:$0x1]
      %v2138 = vld [vmem:[%s951 + $0x90] sm:$0xf]
      %v2139 = vld [vmem:[%s951 + $0x94] sm:$0xf]
      %v2140 = vld [vmem:[%s951 + $0x98] sm:$0x1]
      %v2141 = vld [vmem:[%s951 + $0x9c] sm:$0xf]
      %v2142 = vld [vmem:[%s951 + $0xa0] sm:$0xf]
      %v2143 = vld [vmem:[%s951 + $0xa4] sm:$0x1]
      %v2144 = vld [vmem:[%s951 + $0xa8] sm:$0xf]
      %v2145 = vld [vmem:[%s951 + $0xac] sm:$0xf]
      %v2146 = vld [vmem:[%s951 + $0xb0] sm:$0x1]
      %v2147 = vld [vmem:[%s951 + $0xb4] sm:$0xf]
      %v2148 = vld [vmem:[%s951 + $0xb8] sm:$0xf]
      %v2149 = vld [vmem:[%s951 + $0xbc] sm:$0x1]
      %v2198 = vunpack.c.l.b16 %v2102
      %v2199 = vunpack.c.l.b16 %v2103
      %v2200 = vunpack.c.l.b16 %v2104
      %v2201 = vunpack.c.l.b16 %v2105
      %v2202 = vunpack.c.l.b16 %v2106
      %v2203 = vunpack.c.l.b16 %v2107
      %v2204 = vunpack.c.l.b16 %v2108
      %v2205 = vunpack.c.l.b16 %v2109
      %v2206 = vunpack.c.l.b16 %v2110
      %v2207 = vunpack.c.l.b16 %v2111
      %v2208 = vunpack.c.l.b16 %v2112
      %v2209 = vunpack.c.l.b16 %v2113
      %v2210 = vunpack.c.l.b16 %v2114
      %v2211 = vunpack.c.l.b16 %v2115
      %v2212 = vunpack.c.l.b16 %v2116
      %v2213 = vunpack.c.l.b16 %v2117
      %v2214 = vunpack.c.l.b16 %v2118
      %v2215 = vunpack.c.l.b16 %v2119
      %v2216 = vunpack.c.l.b16 %v2120
      %v2217 = vunpack.c.l.b16 %v2121
      %v2218 = vunpack.c.l.b16 %v2122
      %v2219 = vunpack.c.l.b16 %v2123
      %v2220 = vunpack.c.l.b16 %v2124
      %v2221 = vunpack.c.l.b16 %v2125
      %v2222 = vunpack.c.l.b16 %v2126
      %v2223 = vunpack.c.l.b16 %v2127
      %v2224 = vunpack.c.l.b16 %v2128
      %v2225 = vunpack.c.l.b16 %v2129
      %v2226 = vunpack.c.l.b16 %v2130
      %v2227 = vunpack.c.l.b16 %v2131
      %v2228 = vunpack.c.l.b16 %v2132
      %v2229 = vunpack.c.l.b16 %v2133
      %v2230 = vunpack.c.l.b16 %v2134
      %v2231 = vunpack.c.l.b16 %v2135
      %v2232 = vunpack.c.l.b16 %v2136
      %v2233 = vunpack.c.l.b16 %v2137
      %v2234 = vunpack.c.l.b16 %v2138
      %v2235 = vunpack.c.l.b16 %v2139
      %v2236 = vunpack.c.l.b16 %v2140
      %v2237 = vunpack.c.l.b16 %v2141
      %v2238 = vunpack.c.l.b16 %v2142
      %v2239 = vunpack.c.l.b16 %v2143
      %v2240 = vunpack.c.l.b16 %v2144
      %v2241 = vunpack.c.l.b16 %v2145
      %v2242 = vunpack.c.l.b16 %v2146
      %v2243 = vunpack.c.l.b16 %v2147
      %v2244 = vunpack.c.l.b16 %v2148
      %v2245 = vunpack.c.l.b16 %v2149
      %v2246 = vpack.c.b16 %v2199, %v2198
      %v2247 = vpack.c.b16 %v2200, %v2200
      %v2248 = vpack.c.b16 %v2202, %v2201
      %v2249 = vpack.c.b16 %v2203, %v2203
      %v2250 = vpack.c.b16 %v2205, %v2204
      %v2251 = vpack.c.b16 %v2206, %v2206
      %v2252 = vpack.c.b16 %v2208, %v2207
      %v2253 = vpack.c.b16 %v2209, %v2209
      %v2254 = vpack.c.b16 %v2211, %v2210
      %v2255 = vpack.c.b16 %v2212, %v2212
      %v2256 = vpack.c.b16 %v2214, %v2213
      %v2257 = vpack.c.b16 %v2215, %v2215
      %v2258 = vpack.c.b16 %v2217, %v2216
      %v2259 = vpack.c.b16 %v2218, %v2218
      %v2260 = vpack.c.b16 %v2220, %v2219
      %v2261 = vpack.c.b16 %v2221, %v2221
      %v2262 = vpack.c.b16 %v2223, %v2222
      %v2263 = vpack.c.b16 %v2224, %v2224
      %v2264 = vpack.c.b16 %v2226, %v2225
      %v2265 = vpack.c.b16 %v2227, %v2227
      %v2266 = vpack.c.b16 %v2229, %v2228
      %v2267 = vpack.c.b16 %v2230, %v2230
      %v2268 = vpack.c.b16 %v2232, %v2231
      %v2269 = vpack.c.b16 %v2233, %v2233
      %v2270 = vpack.c.b16 %v2235, %v2234
      %v2271 = vpack.c.b16 %v2236, %v2236
      %v2272 = vpack.c.b16 %v2238, %v2237
      %v2273 = vpack.c.b16 %v2239, %v2239
      %v2274 = vpack.c.b16 %v2241, %v2240
      %v2275 = vpack.c.b16 %v2242, %v2242
      %v2276 = vpack.c.b16 %v2244, %v2243
      %v2277 = vpack.c.b16 %v2245, %v2245
      %v2279 = vshrl.u32 %v2246, 16
      %v2281 = vshll.u32 %v2246, 16
      %v2283 = vrot.slane %v2281, 1
      %v2284 = vor.u32 %v2279, %v2283
      %v2286 = vshll.u32 %v2247, 16
      %v2288 = vrot.slane %v2286, 1
      %v2289 = vsel %vm1387, %v2284, %v2288
      %v2291 = vshrl.u32 %v2248, 16
      %v2293 = vshll.u32 %v2248, 16
      %v2295 = vrot.slane %v2293, 1
      %v2296 = vor.u32 %v2291, %v2295
      %v2298 = vshll.u32 %v2249, 16
      %v2300 = vrot.slane %v2298, 1
      %v2301 = vsel %vm1387, %v2296, %v2300
      %v2303 = vshrl.u32 %v2250, 16
      %v2305 = vshll.u32 %v2250, 16
      %v2307 = vrot.slane %v2305, 1
      %v2308 = vor.u32 %v2303, %v2307
      %v2310 = vshll.u32 %v2251, 16
      %v2312 = vrot.slane %v2310, 1
      %v2313 = vsel %vm1387, %v2308, %v2312
      %v2315 = vshrl.u32 %v2252, 16
      %v2317 = vshll.u32 %v2252, 16
      %v2319 = vrot.slane %v2317, 1
      %v2320 = vor.u32 %v2315, %v2319
      %v2322 = vshll.u32 %v2253, 16
      %v2324 = vrot.slane %v2322, 1
      %v2325 = vsel %vm1387, %v2320, %v2324
      %v2327 = vshrl.u32 %v2254, 16
      %v2329 = vshll.u32 %v2254, 16
      %v2331 = vrot.slane %v2329, 1
      %v2332 = vor.u32 %v2327, %v2331
      %v2334 = vshll.u32 %v2255, 16
      %v2336 = vrot.slane %v2334, 1
      %v2337 = vsel %vm1387, %v2332, %v2336
      %v2339 = vshrl.u32 %v2256, 16
      %v2341 = vshll.u32 %v2256, 16
      %v2343 = vrot.slane %v2341, 1
      %v2344 = vor.u32 %v2339, %v2343
      %v2346 = vshll.u32 %v2257, 16
      %v2348 = vrot.slane %v2346, 1
      %v2349 = vsel %vm1387, %v2344, %v2348
      %v2351 = vshrl.u32 %v2258, 16
      %v2353 = vshll.u32 %v2258, 16
      %v2355 = vrot.slane %v2353, 1
      %v2356 = vor.u32 %v2351, %v2355
      %v2358 = vshll.u32 %v2259, 16
      %v2360 = vrot.slane %v2358, 1
      %v2361 = vsel %vm1387, %v2356, %v2360
      %v2363 = vshrl.u32 %v2260, 16
      %v2365 = vshll.u32 %v2260, 16
      %v2367 = vrot.slane %v2365, 1
      %v2368 = vor.u32 %v2363, %v2367
      %v2370 = vshll.u32 %v2261, 16
      %v2372 = vrot.slane %v2370, 1
      %v2373 = vsel %vm1387, %v2368, %v2372
      %v2375 = vshrl.u32 %v2262, 16
      %v2377 = vshll.u32 %v2262, 16
      %v2379 = vrot.slane %v2377, 1
      %v2380 = vor.u32 %v2375, %v2379
      %v2382 = vshll.u32 %v2263, 16
      %v2384 = vrot.slane %v2382, 1
      %v2385 = vsel %vm1387, %v2380, %v2384
      %v2387 = vshrl.u32 %v2264, 16
      %v2389 = vshll.u32 %v2264, 16
      %v2391 = vrot.slane %v2389, 1
      %v2392 = vor.u32 %v2387, %v2391
      %v2394 = vshll.u32 %v2265, 16
      %v2396 = vrot.slane %v2394, 1
      %v2397 = vsel %vm1387, %v2392, %v2396
      %v2399 = vshrl.u32 %v2266, 16
      %v2401 = vshll.u32 %v2266, 16
      %v2403 = vrot.slane %v2401, 1
      %v2404 = vor.u32 %v2399, %v2403
      %v2406 = vshll.u32 %v2267, 16
      %v2408 = vrot.slane %v2406, 1
      %v2409 = vsel %vm1387, %v2404, %v2408
      %v2411 = vshrl.u32 %v2268, 16
      %v2413 = vshll.u32 %v2268, 16
      %v2415 = vrot.slane %v2413, 1
      %v2416 = vor.u32 %v2411, %v2415
      %v2418 = vshll.u32 %v2269, 16
      %v2420 = vrot.slane %v2418, 1
      %v2421 = vsel %vm1387, %v2416, %v2420
      %v2423 = vshrl.u32 %v2270, 16
      %v2425 = vshll.u32 %v2270, 16
      %v2427 = vrot.slane %v2425, 1
      %v2428 = vor.u32 %v2423, %v2427
      %v2430 = vshll.u32 %v2271, 16
      %v2432 = vrot.slane %v2430, 1
      %v2433 = vsel %vm1387, %v2428, %v2432
      %v2435 = vshrl.u32 %v2272, 16
      %v2437 = vshll.u32 %v2272, 16
      %v2439 = vrot.slane %v2437, 1
      %v2440 = vor.u32 %v2435, %v2439
      %v2442 = vshll.u32 %v2273, 16
      %v2444 = vrot.slane %v2442, 1
      %v2445 = vsel %vm1387, %v2440, %v2444
      %v2447 = vshrl.u32 %v2274, 16
      %v2449 = vshll.u32 %v2274, 16
      %v2451 = vrot.slane %v2449, 1
      %v2452 = vor.u32 %v2447, %v2451
      %v2454 = vshll.u32 %v2275, 16
      %v2456 = vrot.slane %v2454, 1
      %v2457 = vsel %vm1387, %v2452, %v2456
      %v2459 = vshrl.u32 %v2276, 16
      %v2461 = vshll.u32 %v2276, 16
      %v2463 = vrot.slane %v2461, 1
      %v2464 = vor.u32 %v2459, %v2463
      %v2466 = vshll.u32 %v2277, 16
      %v2468 = vrot.slane %v2466, 1
      %v2469 = vsel %vm1387, %v2464, %v2468
      %2470 = vrot.lane.b32.xlu0 %v2289, 64
      %v2471 = vpop.permute.xlu0 %2470
      %2472 = vrot.lane.b32.xlu0 %v2301, 64
      %v2473 = vpop.permute.xlu0 %2472
      %2474 = vrot.lane.b32.xlu0 %v2313, 64
      %v2475 = vpop.permute.xlu0 %2474
      %2476 = vrot.lane.b32.xlu0 %v2325, 64
      %v2477 = vpop.permute.xlu0 %2476
      %2478 = vrot.lane.b32.xlu0 %v2337, 64
      %v2479 = vpop.permute.xlu0 %2478
      %2480 = vrot.lane.b32.xlu0 %v2349, 64
      %v2481 = vpop.permute.xlu0 %2480
      %2482 = vrot.lane.b32.xlu0 %v2361, 64
      %v2483 = vpop.permute.xlu0 %2482
      %2484 = vrot.lane.b32.xlu0 %v2373, 64
      %v2485 = vpop.permute.xlu0 %2484
      %2486 = vrot.lane.b32.xlu0 %v2385, 64
      %v2487 = vpop.permute.xlu0 %2486
      %2488 = vrot.lane.b32.xlu0 %v2397, 64
      %v2489 = vpop.permute.xlu0 %2488
      %2490 = vrot.lane.b32.xlu0 %v2409, 64
      %v2491 = vpop.permute.xlu0 %2490
      %2492 = vrot.lane.b32.xlu0 %v2421, 64
      %v2493 = vpop.permute.xlu0 %2492
      %2494 = vrot.lane.b32.xlu0 %v2433, 64
      %v2495 = vpop.permute.xlu0 %2494
      %2496 = vrot.lane.b32.xlu0 %v2445, 64
      %v2497 = vpop.permute.xlu0 %2496
      %2498 = vrot.lane.b32.xlu0 %v2457, 64
      %v2499 = vpop.permute.xlu0 %2498
      %2500 = vrot.lane.b32.xlu0 %v2469, 64
      %v2501 = vpop.permute.xlu0 %2500
      %2518 = vst.msk [vmem:[#allocation3] sm:$0xff] %vm1628, %v2471
      %2519 = vst.msk [vmem:[#allocation3 + $0x10] sm:$0xff] %vm1628, %v2473
      %2520 = vst.msk [vmem:[#allocation3 + $0x20] sm:$0xff] %vm1628, %v2475
      %2521 = vst.msk [vmem:[#allocation3 + $0x30] sm:$0xff] %vm1628, %v2477
      %2522 = vst.msk [vmem:[#allocation3 + $0x40] sm:$0xff] %vm1628, %v2479
      %2523 = vst.msk [vmem:[#allocation3 + $0x50] sm:$0xff] %vm1628, %v2481
      %2524 = vst.msk [vmem:[#allocation3 + $0x60] sm:$0xff] %vm1628, %v2483
      %2525 = vst.msk [vmem:[#allocation3 + $0x70] sm:$0xff] %vm1628, %v2485
      %2526 = vst.msk [vmem:[#allocation3 + $0x80] sm:$0xff] %vm1628, %v2487
      %2527 = vst.msk [vmem:[#allocation3 + $0x90] sm:$0xff] %vm1628, %v2489
      %2528 = vst.msk [vmem:[#allocation3 + $0xa0] sm:$0xff] %vm1628, %v2491
      %2529 = vst.msk [vmem:[#allocation3 + $0xb0] sm:$0xff] %vm1628, %v2493
      %2530 = vst.msk [vmem:[#allocation3 + $0xc0] sm:$0xff] %vm1628, %v2495
      %2531 = vst.msk [vmem:[#allocation3 + $0xd0] sm:$0xff] %vm1628, %v2497
      %2532 = vst.msk [vmem:[#allocation3 + $0xe0] sm:$0xff] %vm1628, %v2499
      %2533 = vst.msk [vmem:[#allocation3 + $0xf0] sm:$0xff] %vm1628, %v2501
      %v2534 = vld [vmem:[%s951] sm:$0xe]
      %v2535 = vld [vmem:[%s951 + $0x4] sm:$0xf]
      %v2536 = vld [vmem:[%s951 + $0x8] sm:$0x1]
      %v2537 = vld [vmem:[%s951 + $0xc] sm:$0xe]
      %v2538 = vld [vmem:[%s951 + $0x10] sm:$0xf]
      %v2539 = vld [vmem:[%s951 + $0x14] sm:$0x1]
      %v2540 = vld [vmem:[%s951 + $0x18] sm:$0xe]
      %v2541 = vld [vmem:[%s951 + $0x1c] sm:$0xf]
      %v2542 = vld [vmem:[%s951 + $0x20] sm:$0x1]
      %v2543 = vld [vmem:[%s951 + $0x24] sm:$0xe]
      %v2544 = vld [vmem:[%s951 + $0x28] sm:$0xf]
      %v2545 = vld [vmem:[%s951 + $0x2c] sm:$0x1]
      %v2546 = vld [vmem:[%s951 + $0x30] sm:$0xe]
      %v2547 = vld [vmem:[%s951 + $0x34] sm:$0xf]
      %v2548 = vld [vmem:[%s951 + $0x38] sm:$0x1]
      %v2549 = vld [vmem:[%s951 + $0x3c] sm:$0xe]
      %v2550 = vld [vmem:[%s951 + $0x40] sm:$0xf]
      %v2551 = vld [vmem:[%s951 + $0x44] sm:$0x1]
      %v2552 = vld [vmem:[%s951 + $0x48] sm:$0xe]
      %v2553 = vld [vmem:[%s951 + $0x4c] sm:$0xf]
      %v2554 = vld [vmem:[%s951 + $0x50] sm:$0x1]
      %v2555 = vld [vmem:[%s951 + $0x54] sm:$0xe]
      %v2556 = vld [vmem:[%s951 + $0x58] sm:$0xf]
      %v2557 = vld [vmem:[%s951 + $0x5c] sm:$0x1]
      %v2558 = vld [vmem:[%s951 + $0x60] sm:$0xe]
      %v2559 = vld [vmem:[%s951 + $0x64] sm:$0xf]
      %v2560 = vld [vmem:[%s951 + $0x68] sm:$0x1]
      %v2561 = vld [vmem:[%s951 + $0x6c] sm:$0xe]
      %v2562 = vld [vmem:[%s951 + $0x70] sm:$0xf]
      %v2563 = vld [vmem:[%s951 + $0x74] sm:$0x1]
      %v2564 = vld [vmem:[%s951 + $0x78] sm:$0xe]
      %v2565 = vld [vmem:[%s951 + $0x7c] sm:$0xf]
      %v2566 = vld [vmem:[%s951 + $0x80] sm:$0x1]
      %v2567 = vld [vmem:[%s951 + $0x84] sm:$0xe]
      %v2568 = vld [vmem:[%s951 + $0x88] sm:$0xf]
      %v2569 = vld [vmem:[%s951 + $0x8c] sm:$0x1]
      %v2570 = vld [vmem:[%s951 + $0x90] sm:$0xe]
      %v2571 = vld [vmem:[%s951 + $0x94] sm:$0xf]
      %v2572 = vld [vmem:[%s951 + $0x98] sm:$0x1]
      %v2573 = vld [vmem:[%s951 + $0x9c] sm:$0xe]
      %v2574 = vld [vmem:[%s951 + $0xa0] sm:$0xf]
      %v2575 = vld [vmem:[%s951 + $0xa4] sm:$0x1]
      %v2576 = vld [vmem:[%s951 + $0xa8] sm:$0xe]
      %v2577 = vld [vmem:[%s951 + $0xac] sm:$0xf]
      %v2578 = vld [vmem:[%s951 + $0xb0] sm:$0x1]
      %v2579 = vld [vmem:[%s951 + $0xb4] sm:$0xe]
      %v2580 = vld [vmem:[%s951 + $0xb8] sm:$0xf]
      %v2581 = vld [vmem:[%s951 + $0xbc] sm:$0x1]
      %v2630 = vunpack.c.l.b16 %v2534
      %v2631 = vunpack.c.l.b16 %v2535
      %v2632 = vunpack.c.l.b16 %v2536
      %v2633 = vunpack.c.l.b16 %v2537
      %v2634 = vunpack.c.l.b16 %v2538
      %v2635 = vunpack.c.l.b16 %v2539
      %v2636 = vunpack.c.l.b16 %v2540
      %v2637 = vunpack.c.l.b16 %v2541
      %v2638 = vunpack.c.l.b16 %v2542
      %v2639 = vunpack.c.l.b16 %v2543
      %v2640 = vunpack.c.l.b16 %v2544
      %v2641 = vunpack.c.l.b16 %v2545
      %v2642 = vunpack.c.l.b16 %v2546
      %v2643 = vunpack.c.l.b16 %v2547
      %v2644 = vunpack.c.l.b16 %v2548
      %v2645 = vunpack.c.l.b16 %v2549
      %v2646 = vunpack.c.l.b16 %v2550
      %v2647 = vunpack.c.l.b16 %v2551
      %v2648 = vunpack.c.l.b16 %v2552
      %v2649 = vunpack.c.l.b16 %v2553
      %v2650 = vunpack.c.l.b16 %v2554
      %v2651 = vunpack.c.l.b16 %v2555
      %v2652 = vunpack.c.l.b16 %v2556
      %v2653 = vunpack.c.l.b16 %v2557
      %v2654 = vunpack.c.l.b16 %v2558
      %v2655 = vunpack.c.l.b16 %v2559
      %v2656 = vunpack.c.l.b16 %v2560
      %v2657 = vunpack.c.l.b16 %v2561
      %v2658 = vunpack.c.l.b16 %v2562
      %v2659 = vunpack.c.l.b16 %v2563
      %v2660 = vunpack.c.l.b16 %v2564
      %v2661 = vunpack.c.l.b16 %v2565
      %v2662 = vunpack.c.l.b16 %v2566
      %v2663 = vunpack.c.l.b16 %v2567
      %v2664 = vunpack.c.l.b16 %v2568
      %v2665 = vunpack.c.l.b16 %v2569
      %v2666 = vunpack.c.l.b16 %v2570
      %v2667 = vunpack.c.l.b16 %v2571
      %v2668 = vunpack.c.l.b16 %v2572
      %v2669 = vunpack.c.l.b16 %v2573
      %v2670 = vunpack.c.l.b16 %v2574
      %v2671 = vunpack.c.l.b16 %v2575
      %v2672 = vunpack.c.l.b16 %v2576
      %v2673 = vunpack.c.l.b16 %v2577
      %v2674 = vunpack.c.l.b16 %v2578
      %v2675 = vunpack.c.l.b16 %v2579
      %v2676 = vunpack.c.l.b16 %v2580
      %v2677 = vunpack.c.l.b16 %v2581
      %v2678 = vpack.c.b16 %v2631, %v2630
      %v2679 = vpack.c.b16 %v2632, %v2632
      %v2680 = vpack.c.b16 %v2634, %v2633
      %v2681 = vpack.c.b16 %v2635, %v2635
      %v2682 = vpack.c.b16 %v2637, %v2636
      %v2683 = vpack.c.b16 %v2638, %v2638
      %v2684 = vpack.c.b16 %v2640, %v2639
      %v2685 = vpack.c.b16 %v2641, %v2641
      %v2686 = vpack.c.b16 %v2643, %v2642
      %v2687 = vpack.c.b16 %v2644, %v2644
      %v2688 = vpack.c.b16 %v2646, %v2645
      %v2689 = vpack.c.b16 %v2647, %v2647
      %v2690 = vpack.c.b16 %v2649, %v2648
      %v2691 = vpack.c.b16 %v2650, %v2650
      %v2692 = vpack.c.b16 %v2652, %v2651
      %v2693 = vpack.c.b16 %v2653, %v2653
      %v2694 = vpack.c.b16 %v2655, %v2654
      %v2695 = vpack.c.b16 %v2656, %v2656
      %v2696 = vpack.c.b16 %v2658, %v2657
      %v2697 = vpack.c.b16 %v2659, %v2659
      %v2698 = vpack.c.b16 %v2661, %v2660
      %v2699 = vpack.c.b16 %v2662, %v2662
      %v2700 = vpack.c.b16 %v2664, %v2663
      %v2701 = vpack.c.b16 %v2665, %v2665
      %v2702 = vpack.c.b16 %v2667, %v2666
      %v2703 = vpack.c.b16 %v2668, %v2668
      %v2704 = vpack.c.b16 %v2670, %v2669
      %v2705 = vpack.c.b16 %v2671, %v2671
      %v2706 = vpack.c.b16 %v2673, %v2672
      %v2707 = vpack.c.b16 %v2674, %v2674
      %v2708 = vpack.c.b16 %v2676, %v2675
      %v2709 = vpack.c.b16 %v2677, %v2677
      %v2710 = vrot.slane %v2678, 1
      %v2711 = vrot.slane %v2679, 1
      %v2712 = vsel %vm1821, %v2710, %v2711
      %v2713 = vrot.slane %v2680, 1
      %v2714 = vrot.slane %v2681, 1
      %v2715 = vsel %vm1821, %v2713, %v2714
      %v2716 = vrot.slane %v2682, 1
      %v2717 = vrot.slane %v2683, 1
      %v2718 = vsel %vm1821, %v2716, %v2717
      %v2719 = vrot.slane %v2684, 1
      %v2720 = vrot.slane %v2685, 1
      %v2721 = vsel %vm1821, %v2719, %v2720
      %v2722 = vrot.slane %v2686, 1
      %v2723 = vrot.slane %v2687, 1
      %v2724 = vsel %vm1821, %v2722, %v2723
      %v2725 = vrot.slane %v2688, 1
      %v2726 = vrot.slane %v2689, 1
      %v2727 = vsel %vm1821, %v2725, %v2726
      %v2728 = vrot.slane %v2690, 1
      %v2729 = vrot.slane %v2691, 1
      %v2730 = vsel %vm1821, %v2728, %v2729
      %v2731 = vrot.slane %v2692, 1
      %v2732 = vrot.slane %v2693, 1
      %v2733 = vsel %vm1821, %v2731, %v2732
      %v2734 = vrot.slane %v2694, 1
      %v2735 = vrot.slane %v2695, 1
      %v2736 = vsel %vm1821, %v2734, %v2735
      %v2737 = vrot.slane %v2696, 1
      %v2738 = vrot.slane %v2697, 1
      %v2739 = vsel %vm1821, %v2737, %v2738
      %v2740 = vrot.slane %v2698, 1
      %v2741 = vrot.slane %v2699, 1
      %v2742 = vsel %vm1821, %v2740, %v2741
      %v2743 = vrot.slane %v2700, 1
      %v2744 = vrot.slane %v2701, 1
      %v2745 = vsel %vm1821, %v2743, %v2744
      %v2746 = vrot.slane %v2702, 1
      %v2747 = vrot.slane %v2703, 1
      %v2748 = vsel %vm1821, %v2746, %v2747
      %v2749 = vrot.slane %v2704, 1
      %v2750 = vrot.slane %v2705, 1
      %v2751 = vsel %vm1821, %v2749, %v2750
      %v2752 = vrot.slane %v2706, 1
      %v2753 = vrot.slane %v2707, 1
      %v2754 = vsel %vm1821, %v2752, %v2753
      %v2755 = vrot.slane %v2708, 1
      %v2756 = vrot.slane %v2709, 1
      %v2757 = vsel %vm1821, %v2755, %v2756
      %2774 = vst.msk [vmem:[#allocation3 + $0x8] sm:$0xff] %vm1194, %v2712
      %2775 = vst.msk [vmem:[#allocation3 + $0x18] sm:$0xff] %vm1194, %v2715
      %2776 = vst.msk [vmem:[#allocation3 + $0x28] sm:$0xff] %vm1194, %v2718
      %2777 = vst.msk [vmem:[#allocation3 + $0x38] sm:$0xff] %vm1194, %v2721
      %2778 = vst.msk [vmem:[#allocation3 + $0x48] sm:$0xff] %vm1194, %v2724
      %2779 = vst.msk [vmem:[#allocation3 + $0x58] sm:$0xff] %vm1194, %v2727
      %2780 = vst.msk [vmem:[#allocation3 + $0x68] sm:$0xff] %vm1194, %v2730
      %2781 = vst.msk [vmem:[#allocation3 + $0x78] sm:$0xff] %vm1194, %v2733
      %2782 = vst.msk [vmem:[#allocation3 + $0x88] sm:$0xff] %vm1194, %v2736
      %2783 = vst.msk [vmem:[#allocation3 + $0x98] sm:$0xff] %vm1194, %v2739
      %2784 = vst.msk [vmem:[#allocation3 + $0xa8] sm:$0xff] %vm1194, %v2742
      %2785 = vst.msk [vmem:[#allocation3 + $0xb8] sm:$0xff] %vm1194, %v2745
      %2786 = vst.msk [vmem:[#allocation3 + $0xc8] sm:$0xff] %vm1194, %v2748
      %2787 = vst.msk [vmem:[#allocation3 + $0xd8] sm:$0xff] %vm1194, %v2751
      %2788 = vst.msk [vmem:[#allocation3 + $0xe8] sm:$0xff] %vm1194, %v2754
      %2789 = vst.msk [vmem:[#allocation3 + $0xf8] sm:$0xff] %vm1194, %v2757
      %v2790 = vld [vmem:[#allocation3] sm:$0xff]
      %v2791 = vld [vmem:[#allocation3 + $0x8] sm:$0xff]
      %v2792 = vld [vmem:[#allocation3 + $0x10] sm:$0xff]
      %v2793 = vld [vmem:[#allocation3 + $0x18] sm:$0xff]
      %v2794 = vld [vmem:[#allocation3 + $0x20] sm:$0xff]
      %v2795 = vld [vmem:[#allocation3 + $0x28] sm:$0xff]
      %v2796 = vld [vmem:[#allocation3 + $0x30] sm:$0xff]
      %v2797 = vld [vmem:[#allocation3 + $0x38] sm:$0xff]
      %v2798 = vld [vmem:[#allocation3 + $0x40] sm:$0xff]
      %v2799 = vld [vmem:[#allocation3 + $0x48] sm:$0xff]
      %v2800 = vld [vmem:[#allocation3 + $0x50] sm:$0xff]
      %v2801 = vld [vmem:[#allocation3 + $0x58] sm:$0xff]
      %v2802 = vld [vmem:[#allocation3 + $0x60] sm:$0xff]
      %v2803 = vld [vmem:[#allocation3 + $0x68] sm:$0xff]
      %v2804 = vld [vmem:[#allocation3 + $0x70] sm:$0xff]
      %v2805 = vld [vmem:[#allocation3 + $0x78] sm:$0xff]
      %v2806 = vld [vmem:[#allocation3 + $0x80] sm:$0xff]
      %v2807 = vld [vmem:[#allocation3 + $0x88] sm:$0xff]
      %v2808 = vld [vmem:[#allocation3 + $0x90] sm:$0xff]
      %v2809 = vld [vmem:[#allocation3 + $0x98] sm:$0xff]
      %v2810 = vld [vmem:[#allocation3 + $0xa0] sm:$0xff]
      %v2811 = vld [vmem:[#allocation3 + $0xa8] sm:$0xff]
      %v2812 = vld [vmem:[#allocation3 + $0xb0] sm:$0xff]
      %v2813 = vld [vmem:[#allocation3 + $0xb8] sm:$0xff]
      %v2814 = vld [vmem:[#allocation3 + $0xc0] sm:$0xff]
      %v2815 = vld [vmem:[#allocation3 + $0xc8] sm:$0xff]
      %v2816 = vld [vmem:[#allocation3 + $0xd0] sm:$0xff]
      %v2817 = vld [vmem:[#allocation3 + $0xd8] sm:$0xff]
      %v2818 = vld [vmem:[#allocation3 + $0xe0] sm:$0xff]
      %v2819 = vld [vmem:[#allocation3 + $0xe8] sm:$0xff]
      %v2820 = vld [vmem:[#allocation3 + $0xf0] sm:$0xff]
      %v2821 = vld [vmem:[#allocation3 + $0xf8] sm:$0xff]
      %s2822 = scalar_lea.vmem %s3, 96
      %v2823 = vld [vmem:[%s2822] sm:$0xf]
      %v2824 = vld [vmem:[%s2822 + $0x4] sm:$0xf]
      %v2825 = vld [vmem:[%s2822 + $0x8] sm:$0xf]
      %v2826 = vld [vmem:[%s2822 + $0xc] sm:$0xf]
      %v2827 = vld [vmem:[%s2822 + $0x10] sm:$0xf]
      %v2828 = vld [vmem:[%s2822 + $0x14] sm:$0xf]
      %v2829 = vld [vmem:[%s2822 + $0x18] sm:$0xf]
      %v2830 = vld [vmem:[%s2822 + $0x1c] sm:$0xf]
      %v2831 = vld [vmem:[%s2822 + $0x20] sm:$0xf]
      %v2832 = vld [vmem:[%s2822 + $0x24] sm:$0xf]
      %v2833 = vld [vmem:[%s2822 + $0x28] sm:$0xf]
      %v2834 = vld [vmem:[%s2822 + $0x2c] sm:$0xf]
      %v2835 = vld [vmem:[%s2822 + $0x30] sm:$0xf]
      %v2836 = vld [vmem:[%s2822 + $0x34] sm:$0xf]
      %v2837 = vld [vmem:[%s2822 + $0x38] sm:$0xf]
      %v2838 = vld [vmem:[%s2822 + $0x3c] sm:$0xf]
      %v2839 = vld [vmem:[%s2822 + $0x40] sm:$0xf]
      %v2840 = vld [vmem:[%s2822 + $0x44] sm:$0xf]
      %v2841 = vld [vmem:[%s2822 + $0x48] sm:$0xf]
      %v2842 = vld [vmem:[%s2822 + $0x4c] sm:$0xf]
      %v2843 = vld [vmem:[%s2822 + $0x50] sm:$0xf]
      %v2844 = vld [vmem:[%s2822 + $0x54] sm:$0xf]
      %v2845 = vld [vmem:[%s2822 + $0x58] sm:$0xf]
      %v2846 = vld [vmem:[%s2822 + $0x5c] sm:$0xf]
      %v2871 = vunpack.c.l.b16 %v2823
      %v2872 = vunpack.c.l.b16 %v2824
      %v2873 = vunpack.c.l.b16 %v2825
      %v2874 = vunpack.c.l.b16 %v2826
      %v2875 = vunpack.c.l.b16 %v2827
      %v2876 = vunpack.c.l.b16 %v2828
      %v2877 = vunpack.c.l.b16 %v2829
      %v2878 = vunpack.c.l.b16 %v2830
      %v2879 = vunpack.c.l.b16 %v2831
      %v2880 = vunpack.c.l.b16 %v2832
      %v2881 = vunpack.c.l.b16 %v2833
      %v2882 = vunpack.c.l.b16 %v2834
      %v2883 = vunpack.c.l.b16 %v2835
      %v2884 = vunpack.c.l.b16 %v2836
      %v2885 = vunpack.c.l.b16 %v2837
      %v2886 = vunpack.c.l.b16 %v2838
      %v2887 = vunpack.c.l.b16 %v2839
      %v2888 = vunpack.c.l.b16 %v2840
      %v2889 = vunpack.c.l.b16 %v2841
      %v2890 = vunpack.c.l.b16 %v2842
      %v2891 = vunpack.c.l.b16 %v2843
      %v2892 = vunpack.c.l.b16 %v2844
      %v2893 = vunpack.c.l.b16 %v2845
      %v2894 = vunpack.c.l.b16 %v2846
      %v2895 = vpack.c.b16 %v2872, %v2871
      %v2896 = vpack.c.b16 %v2874, %v2873
      %v2897 = vpack.c.b16 %v2876, %v2875
      %v2898 = vpack.c.b16 %v2878, %v2877
      %v2899 = vpack.c.b16 %v2880, %v2879
      %v2900 = vpack.c.b16 %v2882, %v2881
      %v2901 = vpack.c.b16 %v2884, %v2883
      %v2902 = vpack.c.b16 %v2886, %v2885
      %v2903 = vpack.c.b16 %v2888, %v2887
      %v2904 = vpack.c.b16 %v2890, %v2889
      %v2905 = vpack.c.b16 %v2892, %v2891
      %v2906 = vpack.c.b16 %v2894, %v2893
      %v2920 = vsel %vm1194, %v2791, 0
      %v2923 = vsel %vm1194, %v2793, 0
      %v2926 = vsel %vm1194, %v2795, 0
      %v2929 = vsel %vm1194, %v2797, 0
      %v2932 = vsel %vm1194, %v2799, 0
      %v2935 = vsel %vm1194, %v2801, 0
      %v2938 = vsel %vm1194, %v2803, 0
      %v2941 = vsel %vm1194, %v2805, 0
      %v2944 = vsel %vm1194, %v2807, 0
      %v2947 = vsel %vm1194, %v2809, 0
      %v2950 = vsel %vm1194, %v2811, 0
      %v2953 = vsel %vm1194, %v2813, 0
      %v2956 = vsel %vm1194, %v2815, 0
      %v2959 = vsel %vm1194, %v2817, 0
      %v2962 = vsel %vm1194, %v2819, 0
      %v2965 = vsel %vm1194, %v2821, 0
      %2967 = vmatprep.subr.bf16.mxu0 0
      %2968 = vmatpush1.bf16.msra.mxu0 %v2895
      %2969 = vmatprep.subr.bf16.mxu0 0
      %2970 = vmatpush1.bf16.msra.mxu0 %v2896
      %2971 = vmatprep.subr.bf16.mxu0 0
      %2972 = vmatpush1.bf16.msra.mxu0 %v2897
      %2973 = vmatprep.subr.bf16.mxu0 0
      %2974 = vmatpush1.bf16.msra.mxu0 %v2898
      %2975 = vmatprep.subr.bf16.mxu0 0
      %2976 = vmatpush1.bf16.msra.mxu0 %v2899
      %2977 = vmatprep.subr.bf16.mxu0 0
      %2978 = vmatpush1.bf16.msra.mxu0 %v2900
      %2979 = vmatprep.subr.bf16.mxu0 0
      %2980 = vmatpush1.bf16.msra.mxu0 %v2901
      %2981 = vmatprep.subr.bf16.mxu0 0
      %2982 = vmatpush1.bf16.msra.mxu0 %v2902
      %2983 = vmatprep.subr.bf16.mxu0 0
      %2984 = vmatpush1.bf16.msra.mxu0 %v2903
      %2985 = vmatprep.subr.bf16.mxu0 0
      %2986 = vmatpush1.bf16.msra.mxu0 %v2904
      %2987 = vmatprep.subr.bf16.mxu0 0
      %2988 = vmatpush1.bf16.msra.mxu0 %v2905
      %2989 = vmatprep.subr.bf16.mxu0 0
      %2990 = vmatpush1.bf16.msra.mxu0 %v2906
      %2991 = vmatprep.subr.bf16.mxu0 0
      %2992 = vmatpush1.bf16.msra.mxu0 0
      %2993 = vmatprep.subr.bf16.mxu0 0
      %2994 = vmatpush1.bf16.msra.mxu0 0
      %2995 = vmatprep.subr.bf16.mxu0 0
      %2996 = vmatpush1.bf16.msra.mxu0 0
      %2997 = vmatprep.subr.bf16.mxu0 0
      %2998 = vmatpush1.bf16.msra.mxu0 0
      %2999 = vmatprep.mubr.bf16.mxu0 %v2920
      %3000 = vmatmul.mubr.bf16.gmra.mrb[0].mxu0 %v2790
      %v3001 = vpop.f32.mrb[0].mxu0
      %v3002 = vadd.f32 0.0, %v3001
      %v3003 = vpop.f32.mrb[0].mxu0
      %v3004 = vpop.f32.mrb[0].mxu0
      %v3005 = vadd.f32 0.0, %v3004
      %v3006 = vpop.f32.mrb[0].mxu0
      %3007 = vmatprep.mubr.bf16.mxu0 %v2923
      %3008 = vmatmul.mubr.bf16.gmra.mrb[0].mxu0 %v2792
      %v3009 = vpop.f32.mrb[0].mxu0
      %v3010 = vadd.f32 0.0, %v3009
      %v3011 = vpop.f32.mrb[0].mxu0
      %v3012 = vpop.f32.mrb[0].mxu0
      %v3013 = vadd.f32 0.0, %v3012
      %v3014 = vpop.f32.mrb[0].mxu0
      %3015 = vmatprep.mubr.bf16.mxu0 %v2926
      %3016 = vmatmul.mubr.bf16.gmra.mrb[0].mxu0 %v2794
      %v3017 = vpop.f32.mrb[0].mxu0
      %v3018 = vadd.f32 0.0, %v3017
      %v3019 = vpop.f32.mrb[0].mxu0
      %v3020 = vpop.f32.mrb[0].mxu0
      %v3021 = vadd.f32 0.0, %v3020
      %v3022 = vpop.f32.mrb[0].mxu0
      %3023 = vmatprep.mubr.bf16.mxu0 %v2929
      %3024 = vmatmul.mubr.bf16.gmra.mrb[0].mxu0 %v2796
      %v3025 = vpop.f32.mrb[0].mxu0
      %v3026 = vadd.f32 0.0, %v3025
      %v3027 = vpop.f32.mrb[0].mxu0
      %v3028 = vpop.f32.mrb[0].mxu0
      %v3029 = vadd.f32 0.0, %v3028
      %v3030 = vpop.f32.mrb[0].mxu0
      %3031 = vmatprep.mubr.bf16.mxu0 %v2932
      %3032 = vmatmul.mubr.bf16.gmra.mrb[0].mxu0 %v2798
      %v3033 = vpop.f32.mrb[0].mxu0
      %v3034 = vadd.f32 0.0, %v3033
      %v3035 = vpop.f32.mrb[0].mxu0
      %v3036 = vpop.f32.mrb[0].mxu0
      %v3037 = vadd.f32 0.0, %v3036
      %v3038 = vpop.f32.mrb[0].mxu0
      %3039 = vmatprep.mubr.bf16.mxu0 %v2935
      %3040 = vmatmul.mubr.bf16.gmra.mrb[0].mxu0 %v2800
      %v3041 = vpop.f32.mrb[0].mxu0
      %v3042 = vadd.f32 0.0, %v3041
      %v3043 = vpop.f32.mrb[0].mxu0
      %v3044 = vpop.f32.mrb[0].mxu0
      %v3045 = vadd.f32 0.0, %v3044
      %v3046 = vpop.f32.mrb[0].mxu0
      %3047 = vmatprep.mubr.bf16.mxu0 %v2938
      %3048 = vmatmul.mubr.bf16.gmra.mrb[0].mxu0 %v2802
      %v3049 = vpop.f32.mrb[0].mxu0
      %v3050 = vadd.f32 0.0, %v3049
      %v3051 = vpop.f32.mrb[0].mxu0
      %v3052 = vpop.f32.mrb[0].mxu0
      %v3053 = vadd.f32 0.0, %v3052
      %v3054 = vpop.f32.mrb[0].mxu0
      %3055 = vmatprep.mubr.bf16.mxu0 %v2941
      %3056 = vmatmul.mubr.bf16.gmra.mrb[0].mxu0 %v2804
      %v3057 = vpop.f32.mrb[0].mxu0
      %v3058 = vadd.f32 0.0, %v3057
      %v3059 = vpop.f32.mrb[0].mxu0
      %v3060 = vpop.f32.mrb[0].mxu0
      %v3061 = vadd.f32 0.0, %v3060
      %v3062 = vpop.f32.mrb[0].mxu0
      %3063 = vmatprep.mubr.bf16.mxu0 %v2944
      %3064 = vmatmul.mubr.bf16.gmra.mrb[0].mxu0 %v2806
      %v3065 = vpop.f32.mrb[0].mxu0
      %v3066 = vadd.f32 0.0, %v3065
      %v3067 = vpop.f32.mrb[0].mxu0
      %v3068 = vpop.f32.mrb[0].mxu0
      %v3069 = vadd.f32 0.0, %v3068
      %v3070 = vpop.f32.mrb[0].mxu0
      %3071 = vmatprep.mubr.bf16.mxu0 %v2947
      %3072 = vmatmul.mubr.bf16.gmra.mrb[0].mxu0 %v2808
      %v3073 = vpop.f32.mrb[0].mxu0
      %v3074 = vadd.f32 0.0, %v3073
      %v3075 = vpop.f32.mrb[0].mxu0
      %v3076 = vpop.f32.mrb[0].mxu0
      %v3077 = vadd.f32 0.0, %v3076
      %v3078 = vpop.f32.mrb[0].mxu0
      %3079 = vmatprep.mubr.bf16.mxu0 %v2950
      %3080 = vmatmul.mubr.bf16.gmra.mrb[0].mxu0 %v2810
      %v3081 = vpop.f32.mrb[0].mxu0
      %v3082 = vadd.f32 0.0, %v3081
      %v3083 = vpop.f32.mrb[0].mxu0
      %v3084 = vpop.f32.mrb[0].mxu0
      %v3085 = vadd.f32 0.0, %v3084
      %v3086 = vpop.f32.mrb[0].mxu0
      %3087 = vmatprep.mubr.bf16.mxu0 %v2953
      %3088 = vmatmul.mubr.bf16.gmra.mrb[0].mxu0 %v2812
      %v3089 = vpop.f32.mrb[0].mxu0
      %v3090 = vadd.f32 0.0, %v3089
      %v3091 = vpop.f32.mrb[0].mxu0
      %v3092 = vpop.f32.mrb[0].mxu0
      %v3093 = vadd.f32 0.0, %v3092
      %v3094 = vpop.f32.mrb[0].mxu0
      %3095 = vmatprep.mubr.bf16.mxu0 %v2956
      %3096 = vmatmul.mubr.bf16.gmra.mrb[0].mxu0 %v2814
      %v3097 = vpop.f32.mrb[0].mxu0
      %v3098 = vadd.f32 0.0, %v3097
      %v3099 = vpop.f32.mrb[0].mxu0
      %v3100 = vpop.f32.mrb[0].mxu0
      %v3101 = vadd.f32 0.0, %v3100
      %v3102 = vpop.f32.mrb[0].mxu0
      %3103 = vmatprep.mubr.bf16.mxu0 %v2959
      %3104 = vmatmul.mubr.bf16.gmra.mrb[0].mxu0 %v2816
      %v3105 = vpop.f32.mrb[0].mxu0
      %v3106 = vadd.f32 0.0, %v3105
      %v3107 = vpop.f32.mrb[0].mxu0
      %v3108 = vpop.f32.mrb[0].mxu0
      %v3109 = vadd.f32 0.0, %v3108
      %v3110 = vpop.f32.mrb[0].mxu0
      %3111 = vmatprep.mubr.bf16.mxu0 %v2962
      %3112 = vmatmul.mubr.bf16.gmra.mrb[0].mxu0 %v2818
      %v3113 = vpop.f32.mrb[0].mxu0
      %v3114 = vadd.f32 0.0, %v3113
      %v3115 = vpop.f32.mrb[0].mxu0
      %v3116 = vpop.f32.mrb[0].mxu0
      %v3117 = vadd.f32 0.0, %v3116
      %v3118 = vpop.f32.mrb[0].mxu0
      %3119 = vmatprep.mubr.bf16.mxu0 %v2965
      %3120 = vmatmul.mubr.bf16.gmra.mrb[0].mxu0 %v2820
      %v3121 = vpop.f32.mrb[0].mxu0
      %v3122 = vadd.f32 0.0, %v3121
      %v3123 = vpop.f32.mrb[0].mxu0
      %v3124 = vpop.f32.mrb[0].mxu0
      %v3125 = vadd.f32 0.0, %v3124
      %v3126 = vpop.f32.mrb[0].mxu0
      %3127 = vdwg.mxu0
      %v3152 = vunpack.c.l.b16 %v1934
      %v3153 = vunpack.c.l.b16 %v1935
      %v3154 = vunpack.c.l.b16 %v1936
      %v3155 = vunpack.c.l.b16 %v1937
      %v3156 = vunpack.c.l.b16 %v1938
      %v3157 = vunpack.c.l.b16 %v1939
      %v3158 = vunpack.c.l.b16 %v1940
      %v3159 = vunpack.c.l.b16 %v1941
      %v3160 = vunpack.c.l.b16 %v1942
      %v3161 = vunpack.c.l.b16 %v1943
      %v3162 = vunpack.c.l.b16 %v1944
      %v3163 = vunpack.c.l.b16 %v1945
      %v3164 = vunpack.c.l.b16 %v1946
      %v3165 = vunpack.c.l.b16 %v1947
      %v3166 = vunpack.c.l.b16 %v1948
      %v3167 = vunpack.c.l.b16 %v1949
      %v3168 = vunpack.c.l.b16 %v1950
      %v3169 = vunpack.c.l.b16 %v1951
      %v3170 = vunpack.c.l.b16 %v1952
      %v3171 = vunpack.c.l.b16 %v1953
      %v3172 = vunpack.c.l.b16 %v1954
      %v3173 = vunpack.c.l.b16 %v1955
      %v3174 = vunpack.c.l.b16 %v1956
      %v3175 = vunpack.c.l.b16 %v1957
      %v3176 = vpack.c.b16 %v3153, %v3152
      %v3177 = vpack.c.b16 %v3155, %v3154
      %v3178 = vpack.c.b16 %v3157, %v3156
      %v3179 = vpack.c.b16 %v3159, %v3158
      %v3180 = vpack.c.b16 %v3161, %v3160
      %v3181 = vpack.c.b16 %v3163, %v3162
      %v3182 = vpack.c.b16 %v3165, %v3164
      %v3183 = vpack.c.b16 %v3167, %v3166
      %v3184 = vpack.c.b16 %v3169, %v3168
      %v3185 = vpack.c.b16 %v3171, %v3170
      %v3186 = vpack.c.b16 %v3173, %v3172
      %v3187 = vpack.c.b16 %v3175, %v3174
      %v3201 = vsel %vm1194, %v1903, 0
      %v3204 = vsel %vm1194, %v1905, 0
      %v3207 = vsel %vm1194, %v1907, 0
      %v3210 = vsel %vm1194, %v1909, 0
      %v3213 = vsel %vm1194, %v1911, 0
      %v3216 = vsel %vm1194, %v1913, 0
      %v3219 = vsel %vm1194, %v1915, 0
      %v3222 = vsel %vm1194, %v1917, 0
      %v3225 = vsel %vm1194, %v1919, 0
      %v3228 = vsel %vm1194, %v1921, 0
      %v3231 = vsel %vm1194, %v1923, 0
      %v3234 = vsel %vm1194, %v1925, 0
      %v3237 = vsel %vm1194, %v1927, 0
      %v3240 = vsel %vm1194, %v1929, 0
      %v3243 = vsel %vm1194, %v1931, 0
      %v3246 = vsel %vm1194, %v1933, 0
      %3248 = vmatprep.subr.bf16.mxu0 0
      %3249 = vmatpush1.bf16.msra.mxu0 %v3176
      %3250 = vmatprep.subr.bf16.mxu0 0
      %3251 = vmatpush1.bf16.msra.mxu0 %v3177
      %3252 = vmatprep.subr.bf16.mxu0 0
      %3253 = vmatpush1.bf16.msra.mxu0 %v3178
      %3254 = vmatprep.subr.bf16.mxu0 0
      %3255 = vmatpush1.bf16.msra.mxu0 %v3179
      %3256 = vmatprep.subr.bf16.mxu0 0
      %3257 = vmatpush1.bf16.msra.mxu0 %v3180
      %3258 = vmatprep.subr.bf16.mxu0 0
      %3259 = vmatpush1.bf16.msra.mxu0 %v3181
      %3260 = vmatprep.subr.bf16.mxu0 0
      %3261 = vmatpush1.bf16.msra.mxu0 %v3182
      %3262 = vmatprep.subr.bf16.mxu0 0
      %3263 = vmatpush1.bf16.msra.mxu0 %v3183
      %3264 = vmatprep.subr.bf16.mxu0 0
      %3265 = vmatpush1.bf16.msra.mxu0 %v3184
      %3266 = vmatprep.subr.bf16.mxu0 0
      %3267 = vmatpush1.bf16.msra.mxu0 %v3185
      %3268 = vmatprep.subr.bf16.mxu0 0
      %3269 = vmatpush1.bf16.msra.mxu0 %v3186
      %3270 = vmatprep.subr.bf16.mxu0 0
      %3271 = vmatpush1.bf16.msra.mxu0 %v3187
      %3272 = vmatprep.subr.bf16.mxu0 0
      %3273 = vmatpush1.bf16.msra.mxu0 0
      %3274 = vmatprep.subr.bf16.mxu0 0
      %3275 = vmatpush1.bf16.msra.mxu0 0
      %3276 = vmatprep.subr.bf16.mxu0 0
      %3277 = vmatpush1.bf16.msra.mxu0 0
      %3278 = vmatprep.subr.bf16.mxu0 0
      %3279 = vmatpush1.bf16.msra.mxu0 0
      %3280 = vmatprep.mubr.bf16.mxu0 %v3201
      %3281 = vmatmul.mubr.bf16.gmra.mrb[0].mxu0 %v1902
      %v3282 = vpop.f32.mrb[0].mxu0
      %v3283 = vadd.f32 %v3002, %v3282
      %v3284 = vpop.f32.mrb[0].mxu0
      %v3285 = vpop.f32.mrb[0].mxu0
      %v3286 = vadd.f32 %v3005, %v3285
      %v3287 = vpop.f32.mrb[0].mxu0
      %3288 = vmatprep.mubr.bf16.mxu0 %v3204
      %3289 = vmatmul.mubr.bf16.gmra.mrb[0].mxu0 %v1904
      %v3290 = vpop.f32.mrb[0].mxu0
      %v3291 = vadd.f32 %v3010, %v3290
      %v3292 = vpop.f32.mrb[0].mxu0
      %v3293 = vpop.f32.mrb[0].mxu0
      %v3294 = vadd.f32 %v3013, %v3293
      %v3295 = vpop.f32.mrb[0].mxu0
      %3296 = vmatprep.mubr.bf16.mxu0 %v3207
      %3297 = vmatmul.mubr.bf16.gmra.mrb[0].mxu0 %v1906
      %v3298 = vpop.f32.mrb[0].mxu0
      %v3299 = vadd.f32 %v3018, %v3298
      %v3300 = vpop.f32.mrb[0].mxu0
      %v3301 = vpop.f32.mrb[0].mxu0
      %v3302 = vadd.f32 %v3021, %v3301
      %v3303 = vpop.f32.mrb[0].mxu0
      %3304 = vmatprep.mubr.bf16.mxu0 %v3210
      %3305 = vmatmul.mubr.bf16.gmra.mrb[0].mxu0 %v1908
      %v3306 = vpop.f32.mrb[0].mxu0
      %v3307 = vadd.f32 %v3026, %v3306
      %v3308 = vpop.f32.mrb[0].mxu0
      %v3309 = vpop.f32.mrb[0].mxu0
      %v3310 = vadd.f32 %v3029, %v3309
      %v3311 = vpop.f32.mrb[0].mxu0
      %3312 = vmatprep.mubr.bf16.mxu0 %v3213
      %3313 = vmatmul.mubr.bf16.gmra.mrb[0].mxu0 %v1910
      %v3314 = vpop.f32.mrb[0].mxu0
      %v3315 = vadd.f32 %v3034, %v3314
      %v3316 = vpop.f32.mrb[0].mxu0
      %v3317 = vpop.f32.mrb[0].mxu0
      %v3318 = vadd.f32 %v3037, %v3317
      %v3319 = vpop.f32.mrb[0].mxu0
      %3320 = vmatprep.mubr.bf16.mxu0 %v3216
      %3321 = vmatmul.mubr.bf16.gmra.mrb[0].mxu0 %v1912
      %v3322 = vpop.f32.mrb[0].mxu0
      %v3323 = vadd.f32 %v3042, %v3322
      %v3324 = vpop.f32.mrb[0].mxu0
      %v3325 = vpop.f32.mrb[0].mxu0
      %v3326 = vadd.f32 %v3045, %v3325
      %v3327 = vpop.f32.mrb[0].mxu0
      %3328 = vmatprep.mubr.bf16.mxu0 %v3219
      %3329 = vmatmul.mubr.bf16.gmra.mrb[0].mxu0 %v1914
      %v3330 = vpop.f32.mrb[0].mxu0
      %v3331 = vadd.f32 %v3050, %v3330
      %v3332 = vpop.f32.mrb[0].mxu0
      %v3333 = vpop.f32.mrb[0].mxu0
      %v3334 = vadd.f32 %v3053, %v3333
      %v3335 = vpop.f32.mrb[0].mxu0
      %3336 = vmatprep.mubr.bf16.mxu0 %v3222
      %3337 = vmatmul.mubr.bf16.gmra.mrb[0].mxu0 %v1916
      %v3338 = vpop.f32.mrb[0].mxu0
      %v3339 = vadd.f32 %v3058, %v3338
      %v3340 = vpop.f32.mrb[0].mxu0
      %v3341 = vpop.f32.mrb[0].mxu0
      %v3342 = vadd.f32 %v3061, %v3341
      %v3343 = vpop.f32.mrb[0].mxu0
      %3344 = vmatprep.mubr.bf16.mxu0 %v3225
      %3345 = vmatmul.mubr.bf16.gmra.mrb[0].mxu0 %v1918
      %v3346 = vpop.f32.mrb[0].mxu0
      %v3347 = vadd.f32 %v3066, %v3346
      %v3348 = vpop.f32.mrb[0].mxu0
      %v3349 = vpop.f32.mrb[0].mxu0
      %v3350 = vadd.f32 %v3069, %v3349
      %v3351 = vpop.f32.mrb[0].mxu0
      %3352 = vmatprep.mubr.bf16.mxu0 %v3228
      %3353 = vmatmul.mubr.bf16.gmra.mrb[0].mxu0 %v1920
      %v3354 = vpop.f32.mrb[0].mxu0
      %v3355 = vadd.f32 %v3074, %v3354
      %v3356 = vpop.f32.mrb[0].mxu0
      %v3357 = vpop.f32.mrb[0].mxu0
      %v3358 = vadd.f32 %v3077, %v3357
      %v3359 = vpop.f32.mrb[0].mxu0
      %3360 = vmatprep.mubr.bf16.mxu0 %v3231
      %3361 = vmatmul.mubr.bf16.gmra.mrb[0].mxu0 %v1922
      %v3362 = vpop.f32.mrb[0].mxu0
      %v3363 = vadd.f32 %v3082, %v3362
      %v3364 = vpop.f32.mrb[0].mxu0
      %v3365 = vpop.f32.mrb[0].mxu0
      %v3366 = vadd.f32 %v3085, %v3365
      %v3367 = vpop.f32.mrb[0].mxu0
      %3368 = vmatprep.mubr.bf16.mxu0 %v3234
      %3369 = vmatmul.mubr.bf16.gmra.mrb[0].mxu0 %v1924
      %v3370 = vpop.f32.mrb[0].mxu0
      %v3371 = vadd.f32 %v3090, %v3370
      %v3372 = vpop.f32.mrb[0].mxu0
      %v3373 = vpop.f32.mrb[0].mxu0
      %v3374 = vadd.f32 %v3093, %v3373
      %v3375 = vpop.f32.mrb[0].mxu0
      %3376 = vmatprep.mubr.bf16.mxu0 %v3237
      %3377 = vmatmul.mubr.bf16.gmra.mrb[0].mxu0 %v1926
      %v3378 = vpop.f32.mrb[0].mxu0
      %v3379 = vadd.f32 %v3098, %v3378
      %v3380 = vpop.f32.mrb[0].mxu0
      %v3381 = vpop.f32.mrb[0].mxu0
      %v3382 = vadd.f32 %v3101, %v3381
      %v3383 = vpop.f32.mrb[0].mxu0
      %3384 = vmatprep.mubr.bf16.mxu0 %v3240
      %3385 = vmatmul.mubr.bf16.gmra.mrb[0].mxu0 %v1928
      %v3386 = vpop.f32.mrb[0].mxu0
      %v3387 = vadd.f32 %v3106, %v3386
      %v3388 = vpop.f32.mrb[0].mxu0
      %v3389 = vpop.f32.mrb[0].mxu0
      %v3390 = vadd.f32 %v3109, %v3389
      %v3391 = vpop.f32.mrb[0].mxu0
      %3392 = vmatprep.mubr.bf16.mxu0 %v3243
      %3393 = vmatmul.mubr.bf16.gmra.mrb[0].mxu0 %v1930
      %v3394 = vpop.f32.mrb[0].mxu0
      %v3395 = vadd.f32 %v3114, %v3394
      %v3396 = vpop.f32.mrb[0].mxu0
      %v3397 = vpop.f32.mrb[0].mxu0
      %v3398 = vadd.f32 %v3117, %v3397
      %v3399 = vpop.f32.mrb[0].mxu0
      %3400 = vmatprep.mubr.bf16.mxu0 %v3246
      %3401 = vmatmul.mubr.bf16.gmra.mrb[0].mxu0 %v1932
      %v3402 = vpop.f32.mrb[0].mxu0
      %v3403 = vadd.f32 %v3122, %v3402
      %v3404 = vpop.f32.mrb[0].mxu0
      %v3405 = vpop.f32.mrb[0].mxu0
      %v3406 = vadd.f32 %v3125, %v3405
      %v3407 = vpop.f32.mrb[0].mxu0
      %3408 = vdwg.mxu0
      %s3409 = scalar_lea.vmem [#allocation2], 24
      %v3410 = vld [vmem:[%s3409] sm:$0xf]
      %v3411 = vld [vmem:[%s3409 + $0x4] sm:$0xf]
      %v3412 = vld [vmem:[%s3409 + $0xc] sm:$0xf]
      %v3413 = vld [vmem:[%s3409 + $0x10] sm:$0xf]
      %v3414 = vld [vmem:[%s3409 + $0x18] sm:$0xf]
      %v3415 = vld [vmem:[%s3409 + $0x1c] sm:$0xf]
      %v3416 = vld [vmem:[%s3409 + $0x24] sm:$0xf]
      %v3417 = vld [vmem:[%s3409 + $0x28] sm:$0xf]
      %v3418 = vld [vmem:[%s3409 + $0x30] sm:$0xf]
      %v3419 = vld [vmem:[%s3409 + $0x34] sm:$0xf]
      %v3420 = vld [vmem:[%s3409 + $0x3c] sm:$0xf]
      %v3421 = vld [vmem:[%s3409 + $0x40] sm:$0xf]
      %v3422 = vld [vmem:[%s3409 + $0x48] sm:$0xf]
      %v3423 = vld [vmem:[%s3409 + $0x4c] sm:$0xf]
      %v3424 = vld [vmem:[%s3409 + $0x54] sm:$0xf]
      %v3425 = vld [vmem:[%s3409 + $0x58] sm:$0xf]
      %v3426 = vld [vmem:[%s3409 + $0x60] sm:$0xf]
      %v3427 = vld [vmem:[%s3409 + $0x64] sm:$0xf]
      %v3428 = vld [vmem:[%s3409 + $0x6c] sm:$0xf]
      %v3429 = vld [vmem:[%s3409 + $0x70] sm:$0xf]
      %v3430 = vld [vmem:[%s3409 + $0x78] sm:$0xf]
      %v3431 = vld [vmem:[%s3409 + $0x7c] sm:$0xf]
      %v3432 = vld [vmem:[%s3409 + $0x84] sm:$0xf]
      %v3433 = vld [vmem:[%s3409 + $0x88] sm:$0xf]
      %v3434 = vld [vmem:[%s3409 + $0x90] sm:$0xf]
      %v3435 = vld [vmem:[%s3409 + $0x94] sm:$0xf]
      %v3436 = vld [vmem:[%s3409 + $0x9c] sm:$0xf]
      %v3437 = vld [vmem:[%s3409 + $0xa0] sm:$0xf]
      %v3438 = vld [vmem:[%s3409 + $0xa8] sm:$0xf]
      %v3439 = vld [vmem:[%s3409 + $0xac] sm:$0xf]
      %v3440 = vld [vmem:[%s3409 + $0xb4] sm:$0xf]
      %v3441 = vld [vmem:[%s3409 + $0xb8] sm:$0xf]
      %v3474 = vunpack.c.l.b16 %v3410
      %v3475 = vunpack.c.l.b16 %v3411
      %v3476 = vunpack.c.l.b16 %v3412
      %v3477 = vunpack.c.l.b16 %v3413
      %v3478 = vunpack.c.l.b16 %v3414
      %v3479 = vunpack.c.l.b16 %v3415
      %v3480 = vunpack.c.l.b16 %v3416
      %v3481 = vunpack.c.l.b16 %v3417
      %v3482 = vunpack.c.l.b16 %v3418
      %v3483 = vunpack.c.l.b16 %v3419
      %v3484 = vunpack.c.l.b16 %v3420
      %v3485 = vunpack.c.l.b16 %v3421
      %v3486 = vunpack.c.l.b16 %v3422
      %v3487 = vunpack.c.l.b16 %v3423
      %v3488 = vunpack.c.l.b16 %v3424
      %v3489 = vunpack.c.l.b16 %v3425
      %v3490 = vunpack.c.l.b16 %v3426
      %v3491 = vunpack.c.l.b16 %v3427
      %v3492 = vunpack.c.l.b16 %v3428
      %v3493 = vunpack.c.l.b16 %v3429
      %v3494 = vunpack.c.l.b16 %v3430
      %v3495 = vunpack.c.l.b16 %v3431
      %v3496 = vunpack.c.l.b16 %v3432
      %v3497 = vunpack.c.l.b16 %v3433
      %v3498 = vunpack.c.l.b16 %v3434
      %v3499 = vunpack.c.l.b16 %v3435
      %v3500 = vunpack.c.l.b16 %v3436
      %v3501 = vunpack.c.l.b16 %v3437
      %v3502 = vunpack.c.l.b16 %v3438
      %v3503 = vunpack.c.l.b16 %v3439
      %v3504 = vunpack.c.l.b16 %v3440
      %v3505 = vunpack.c.l.b16 %v3441
      %v3506 = vpack.c.b16 %v3475, %v3474
      %v3507 = vpack.c.b16 %v3477, %v3476
      %v3508 = vpack.c.b16 %v3479, %v3478
      %v3509 = vpack.c.b16 %v3481, %v3480
      %v3510 = vpack.c.b16 %v3483, %v3482
      %v3511 = vpack.c.b16 %v3485, %v3484
      %v3512 = vpack.c.b16 %v3487, %v3486
      %v3513 = vpack.c.b16 %v3489, %v3488
      %v3514 = vpack.c.b16 %v3491, %v3490
      %v3515 = vpack.c.b16 %v3493, %v3492
      %v3516 = vpack.c.b16 %v3495, %v3494
      %v3517 = vpack.c.b16 %v3497, %v3496
      %v3518 = vpack.c.b16 %v3499, %v3498
      %v3519 = vpack.c.b16 %v3501, %v3500
      %v3520 = vpack.c.b16 %v3503, %v3502
      %v3521 = vpack.c.b16 %v3505, %v3504
      %3538 = vst.msk [vmem:[#allocation3] sm:$0xff] %vm1194, %v3506
      %3539 = vst.msk [vmem:[#allocation3 + $0x10] sm:$0xff] %vm1194, %v3507
      %3540 = vst.msk [vmem:[#allocation3 + $0x20] sm:$0xff] %vm1194, %v3508
      %3541 = vst.msk [vmem:[#allocation3 + $0x30] sm:$0xff] %vm1194, %v3509
      %3542 = vst.msk [vmem:[#allocation3 + $0x40] sm:$0xff] %vm1194, %v3510
      %3543 = vst.msk [vmem:[#allocation3 + $0x50] sm:$0xff] %vm1194, %v3511
      %3544 = vst.msk [vmem:[#allocation3 + $0x60] sm:$0xff] %vm1194, %v3512
      %3545 = vst.msk [vmem:[#allocation3 + $0x70] sm:$0xff] %vm1194, %v3513
      %3546 = vst.msk [vmem:[#allocation3 + $0x80] sm:$0xff] %vm1194, %v3514
      %3547 = vst.msk [vmem:[#allocation3 + $0x90] sm:$0xff] %vm1194, %v3515
      %3548 = vst.msk [vmem:[#allocation3 + $0xa0] sm:$0xff] %vm1194, %v3516
      %3549 = vst.msk [vmem:[#allocation3 + $0xb0] sm:$0xff] %vm1194, %v3517
      %3550 = vst.msk [vmem:[#allocation3 + $0xc0] sm:$0xff] %vm1194, %v3518
      %3551 = vst.msk [vmem:[#allocation3 + $0xd0] sm:$0xff] %vm1194, %v3519
      %3552 = vst.msk [vmem:[#allocation3 + $0xe0] sm:$0xff] %vm1194, %v3520
      %3553 = vst.msk [vmem:[#allocation3 + $0xf0] sm:$0xff] %vm1194, %v3521
      %v3554 = vld [vmem:[%s3409] sm:$0xf]
      %v3555 = vld [vmem:[%s3409 + $0x4] sm:$0xf]
      %v3556 = vld [vmem:[%s3409 + $0x8] sm:$0x1]
      %v3557 = vld [vmem:[%s3409 + $0xc] sm:$0xf]
      %v3558 = vld [vmem:[%s3409 + $0x10] sm:$0xf]
      %v3559 = vld [vmem:[%s3409 + $0x14] sm:$0x1]
      %v3560 = vld [vmem:[%s3409 + $0x18] sm:$0xf]
      %v3561 = vld [vmem:[%s3409 + $0x1c] sm:$0xf]
      %v3562 = vld [vmem:[%s3409 + $0x20] sm:$0x1]
      %v3563 = vld [vmem:[%s3409 + $0x24] sm:$0xf]
      %v3564 = vld [vmem:[%s3409 + $0x28] sm:$0xf]
      %v3565 = vld [vmem:[%s3409 + $0x2c] sm:$0x1]
      %v3566 = vld [vmem:[%s3409 + $0x30] sm:$0xf]
      %v3567 = vld [vmem:[%s3409 + $0x34] sm:$0xf]
      %v3568 = vld [vmem:[%s3409 + $0x38] sm:$0x1]
      %v3569 = vld [vmem:[%s3409 + $0x3c] sm:$0xf]
      %v3570 = vld [vmem:[%s3409 + $0x40] sm:$0xf]
      %v3571 = vld [vmem:[%s3409 + $0x44] sm:$0x1]
      %v3572 = vld [vmem:[%s3409 + $0x48] sm:$0xf]
      %v3573 = vld [vmem:[%s3409 + $0x4c] sm:$0xf]
      %v3574 = vld [vmem:[%s3409 + $0x50] sm:$0x1]
      %v3575 = vld [vmem:[%s3409 + $0x54] sm:$0xf]
      %v3576 = vld [vmem:[%s3409 + $0x58] sm:$0xf]
      %v3577 = vld [vmem:[%s3409 + $0x5c] sm:$0x1]
      %v3578 = vld [vmem:[%s3409 + $0x60] sm:$0xf]
      %v3579 = vld [vmem:[%s3409 + $0x64] sm:$0xf]
      %v3580 = vld [vmem:[%s3409 + $0x68] sm:$0x1]
      %v3581 = vld [vmem:[%s3409 + $0x6c] sm:$0xf]
      %v3582 = vld [vmem:[%s3409 + $0x70] sm:$0xf]
      %v3583 = vld [vmem:[%s3409 + $0x74] sm:$0x1]
      %v3584 = vld [vmem:[%s3409 + $0x78] sm:$0xf]
      %v3585 = vld [vmem:[%s3409 + $0x7c] sm:$0xf]
      %v3586 = vld [vmem:[%s3409 + $0x80] sm:$0x1]
      %v3587 = vld [vmem:[%s3409 + $0x84] sm:$0xf]
      %v3588 = vld [vmem:[%s3409 + $0x88] sm:$0xf]
      %v3589 = vld [vmem:[%s3409 + $0x8c] sm:$0x1]
      %v3590 = vld [vmem:[%s3409 + $0x90] sm:$0xf]
      %v3591 = vld [vmem:[%s3409 + $0x94] sm:$0xf]
      %v3592 = vld [vmem:[%s3409 + $0x98] sm:$0x1]
      %v3593 = vld [vmem:[%s3409 + $0x9c] sm:$0xf]
      %v3594 = vld [vmem:[%s3409 + $0xa0] sm:$0xf]
      %v3595 = vld [vmem:[%s3409 + $0xa4] sm:$0x1]
      %v3596 = vld [vmem:[%s3409 + $0xa8] sm:$0xf]
      %v3597 = vld [vmem:[%s3409 + $0xac] sm:$0xf]
      %v3598 = vld [vmem:[%s3409 + $0xb0] sm:$0x1]
      %v3599 = vld [vmem:[%s3409 + $0xb4] sm:$0xf]
      %v3600 = vld [vmem:[%s3409 + $0xb8] sm:$0xf]
      %v3601 = vld [vmem:[%s3409 + $0xbc] sm:$0x1]
      %v3650 = vunpack.c.l.b16 %v3554
      %v3651 = vunpack.c.l.b16 %v3555
      %v3652 = vunpack.c.l.b16 %v3556
      %v3653 = vunpack.c.l.b16 %v3557
      %v3654 = vunpack.c.l.b16 %v3558
      %v3655 = vunpack.c.l.b16 %v3559
      %v3656 = vunpack.c.l.b16 %v3560
      %v3657 = vunpack.c.l.b16 %v3561
      %v3658 = vunpack.c.l.b16 %v3562
      %v3659 = vunpack.c.l.b16 %v3563
      %v3660 = vunpack.c.l.b16 %v3564
      %v3661 = vunpack.c.l.b16 %v3565
      %v3662 = vunpack.c.l.b16 %v3566
      %v3663 = vunpack.c.l.b16 %v3567
      %v3664 = vunpack.c.l.b16 %v3568
      %v3665 = vunpack.c.l.b16 %v3569
      %v3666 = vunpack.c.l.b16 %v3570
      %v3667 = vunpack.c.l.b16 %v3571
      %v3668 = vunpack.c.l.b16 %v3572
      %v3669 = vunpack.c.l.b16 %v3573
      %v3670 = vunpack.c.l.b16 %v3574
      %v3671 = vunpack.c.l.b16 %v3575
      %v3672 = vunpack.c.l.b16 %v3576
      %v3673 = vunpack.c.l.b16 %v3577
      %v3674 = vunpack.c.l.b16 %v3578
      %v3675 = vunpack.c.l.b16 %v3579
      %v3676 = vunpack.c.l.b16 %v3580
      %v3677 = vunpack.c.l.b16 %v3581
      %v3678 = vunpack.c.l.b16 %v3582
      %v3679 = vunpack.c.l.b16 %v3583
      %v3680 = vunpack.c.l.b16 %v3584
      %v3681 = vunpack.c.l.b16 %v3585
      %v3682 = vunpack.c.l.b16 %v3586
      %v3683 = vunpack.c.l.b16 %v3587
      %v3684 = vunpack.c.l.b16 %v3588
      %v3685 = vunpack.c.l.b16 %v3589
      %v3686 = vunpack.c.l.b16 %v3590
      %v3687 = vunpack.c.l.b16 %v3591
      %v3688 = vunpack.c.l.b16 %v3592
      %v3689 = vunpack.c.l.b16 %v3593
      %v3690 = vunpack.c.l.b16 %v3594
      %v3691 = vunpack.c.l.b16 %v3595
      %v3692 = vunpack.c.l.b16 %v3596
      %v3693 = vunpack.c.l.b16 %v3597
      %v3694 = vunpack.c.l.b16 %v3598
      %v3695 = vunpack.c.l.b16 %v3599
      %v3696 = vunpack.c.l.b16 %v3600
      %v3697 = vunpack.c.l.b16 %v3601
      %v3698 = vpack.c.b16 %v3651, %v3650
      %v3699 = vpack.c.b16 %v3652, %v3652
      %v3700 = vpack.c.b16 %v3654, %v3653
      %v3701 = vpack.c.b16 %v3655, %v3655
      %v3702 = vpack.c.b16 %v3657, %v3656
      %v3703 = vpack.c.b16 %v3658, %v3658
      %v3704 = vpack.c.b16 %v3660, %v3659
      %v3705 = vpack.c.b16 %v3661, %v3661
      %v3706 = vpack.c.b16 %v3663, %v3662
      %v3707 = vpack.c.b16 %v3664, %v3664
      %v3708 = vpack.c.b16 %v3666, %v3665
      %v3709 = vpack.c.b16 %v3667, %v3667
      %v3710 = vpack.c.b16 %v3669, %v3668
      %v3711 = vpack.c.b16 %v3670, %v3670
      %v3712 = vpack.c.b16 %v3672, %v3671
      %v3713 = vpack.c.b16 %v3673, %v3673
      %v3714 = vpack.c.b16 %v3675, %v3674
      %v3715 = vpack.c.b16 %v3676, %v3676
      %v3716 = vpack.c.b16 %v3678, %v3677
      %v3717 = vpack.c.b16 %v3679, %v3679
      %v3718 = vpack.c.b16 %v3681, %v3680
      %v3719 = vpack.c.b16 %v3682, %v3682
      %v3720 = vpack.c.b16 %v3684, %v3683
      %v3721 = vpack.c.b16 %v3685, %v3685
      %v3722 = vpack.c.b16 %v3687, %v3686
      %v3723 = vpack.c.b16 %v3688, %v3688
      %v3724 = vpack.c.b16 %v3690, %v3689
      %v3725 = vpack.c.b16 %v3691, %v3691
      %v3726 = vpack.c.b16 %v3693, %v3692
      %v3727 = vpack.c.b16 %v3694, %v3694
      %v3728 = vpack.c.b16 %v3696, %v3695
      %v3729 = vpack.c.b16 %v3697, %v3697
      %v3731 = vshrl.u32 %v3698, 16
      %v3733 = vshll.u32 %v3698, 16
      %v3735 = vrot.slane %v3733, 1
      %v3736 = vor.u32 %v3731, %v3735
      %v3738 = vshll.u32 %v3699, 16
      %v3740 = vrot.slane %v3738, 1
      %v3741 = vsel %vm1387, %v3736, %v3740
      %v3743 = vshrl.u32 %v3700, 16
      %v3745 = vshll.u32 %v3700, 16
      %v3747 = vrot.slane %v3745, 1
      %v3748 = vor.u32 %v3743, %v3747
      %v3750 = vshll.u32 %v3701, 16
      %v3752 = vrot.slane %v3750, 1
      %v3753 = vsel %vm1387, %v3748, %v3752
      %v3755 = vshrl.u32 %v3702, 16
      %v3757 = vshll.u32 %v3702, 16
      %v3759 = vrot.slane %v3757, 1
      %v3760 = vor.u32 %v3755, %v3759
      %v3762 = vshll.u32 %v3703, 16
      %v3764 = vrot.slane %v3762, 1
      %v3765 = vsel %vm1387, %v3760, %v3764
      %v3767 = vshrl.u32 %v3704, 16
      %v3769 = vshll.u32 %v3704, 16
      %v3771 = vrot.slane %v3769, 1
      %v3772 = vor.u32 %v3767, %v3771
      %v3774 = vshll.u32 %v3705, 16
      %v3776 = vrot.slane %v3774, 1
      %v3777 = vsel %vm1387, %v3772, %v3776
      %v3779 = vshrl.u32 %v3706, 16
      %v3781 = vshll.u32 %v3706, 16
      %v3783 = vrot.slane %v3781, 1
      %v3784 = vor.u32 %v3779, %v3783
      %v3786 = vshll.u32 %v3707, 16
      %v3788 = vrot.slane %v3786, 1
      %v3789 = vsel %vm1387, %v3784, %v3788
      %v3791 = vshrl.u32 %v3708, 16
      %v3793 = vshll.u32 %v3708, 16
      %v3795 = vrot.slane %v3793, 1
      %v3796 = vor.u32 %v3791, %v3795
      %v3798 = vshll.u32 %v3709, 16
      %v3800 = vrot.slane %v3798, 1
      %v3801 = vsel %vm1387, %v3796, %v3800
      %v3803 = vshrl.u32 %v3710, 16
      %v3805 = vshll.u32 %v3710, 16
      %v3807 = vrot.slane %v3805, 1
      %v3808 = vor.u32 %v3803, %v3807
      %v3810 = vshll.u32 %v3711, 16
      %v3812 = vrot.slane %v3810, 1
      %v3813 = vsel %vm1387, %v3808, %v3812
      %v3815 = vshrl.u32 %v3712, 16
      %v3817 = vshll.u32 %v3712, 16
      %v3819 = vrot.slane %v3817, 1
      %v3820 = vor.u32 %v3815, %v3819
      %v3822 = vshll.u32 %v3713, 16
      %v3824 = vrot.slane %v3822, 1
      %v3825 = vsel %vm1387, %v3820, %v3824
      %v3827 = vshrl.u32 %v3714, 16
      %v3829 = vshll.u32 %v3714, 16
      %v3831 = vrot.slane %v3829, 1
      %v3832 = vor.u32 %v3827, %v3831
      %v3834 = vshll.u32 %v3715, 16
      %v3836 = vrot.slane %v3834, 1
      %v3837 = vsel %vm1387, %v3832, %v3836
      %v3839 = vshrl.u32 %v3716, 16
      %v3841 = vshll.u32 %v3716, 16
      %v3843 = vrot.slane %v3841, 1
      %v3844 = vor.u32 %v3839, %v3843
      %v3846 = vshll.u32 %v3717, 16
      %v3848 = vrot.slane %v3846, 1
      %v3849 = vsel %vm1387, %v3844, %v3848
      %v3851 = vshrl.u32 %v3718, 16
      %v3853 = vshll.u32 %v3718, 16
      %v3855 = vrot.slane %v3853, 1
      %v3856 = vor.u32 %v3851, %v3855
      %v3858 = vshll.u32 %v3719, 16
      %v3860 = vrot.slane %v3858, 1
      %v3861 = vsel %vm1387, %v3856, %v3860
      %v3863 = vshrl.u32 %v3720, 16
      %v3865 = vshll.u32 %v3720, 16
      %v3867 = vrot.slane %v3865, 1
      %v3868 = vor.u32 %v3863, %v3867
      %v3870 = vshll.u32 %v3721, 16
      %v3872 = vrot.slane %v3870, 1
      %v3873 = vsel %vm1387, %v3868, %v3872
      %v3875 = vshrl.u32 %v3722, 16
      %v3877 = vshll.u32 %v3722, 16
      %v3879 = vrot.slane %v3877, 1
      %v3880 = vor.u32 %v3875, %v3879
      %v3882 = vshll.u32 %v3723, 16
      %v3884 = vrot.slane %v3882, 1
      %v3885 = vsel %vm1387, %v3880, %v3884
      %v3887 = vshrl.u32 %v3724, 16
      %v3889 = vshll.u32 %v3724, 16
      %v3891 = vrot.slane %v3889, 1
      %v3892 = vor.u32 %v3887, %v3891
      %v3894 = vshll.u32 %v3725, 16
      %v3896 = vrot.slane %v3894, 1
      %v3897 = vsel %vm1387, %v3892, %v3896
      %v3899 = vshrl.u32 %v3726, 16
      %v3901 = vshll.u32 %v3726, 16
      %v3903 = vrot.slane %v3901, 1
      %v3904 = vor.u32 %v3899, %v3903
      %v3906 = vshll.u32 %v3727, 16
      %v3908 = vrot.slane %v3906, 1
      %v3909 = vsel %vm1387, %v3904, %v3908
      %v3911 = vshrl.u32 %v3728, 16
      %v3913 = vshll.u32 %v3728, 16
      %v3915 = vrot.slane %v3913, 1
      %v3916 = vor.u32 %v3911, %v3915
      %v3918 = vshll.u32 %v3729, 16
      %v3920 = vrot.slane %v3918, 1
      %v3921 = vsel %vm1387, %v3916, %v3920
      %3922 = vrot.lane.b32.xlu0 %v3741, 64
      %v3923 = vpop.permute.xlu0 %3922
      %3924 = vrot.lane.b32.xlu0 %v3753, 64
      %v3925 = vpop.permute.xlu0 %3924
      %3926 = vrot.lane.b32.xlu0 %v3765, 64
      %v3927 = vpop.permute.xlu0 %3926
      %3928 = vrot.lane.b32.xlu0 %v3777, 64
      %v3929 = vpop.permute.xlu0 %3928
      %3930 = vrot.lane.b32.xlu0 %v3789, 64
      %v3931 = vpop.permute.xlu0 %3930
      %3932 = vrot.lane.b32.xlu0 %v3801, 64
      %v3933 = vpop.permute.xlu0 %3932
      %3934 = vrot.lane.b32.xlu0 %v3813, 64
      %v3935 = vpop.permute.xlu0 %3934
      %3936 = vrot.lane.b32.xlu0 %v3825, 64
      %v3937 = vpop.permute.xlu0 %3936
      %3938 = vrot.lane.b32.xlu0 %v3837, 64
      %v3939 = vpop.permute.xlu0 %3938
      %3940 = vrot.lane.b32.xlu0 %v3849, 64
      %v3941 = vpop.permute.xlu0 %3940
      %3942 = vrot.lane.b32.xlu0 %v3861, 64
      %v3943 = vpop.permute.xlu0 %3942
      %3944 = vrot.lane.b32.xlu0 %v3873, 64
      %v3945 = vpop.permute.xlu0 %3944
      %3946 = vrot.lane.b32.xlu0 %v3885, 64
      %v3947 = vpop.permute.xlu0 %3946
      %3948 = vrot.lane.b32.xlu0 %v3897, 64
      %v3949 = vpop.permute.xlu0 %3948
      %3950 = vrot.lane.b32.xlu0 %v3909, 64
      %v3951 = vpop.permute.xlu0 %3950
      %3952 = vrot.lane.b32.xlu0 %v3921, 64
      %v3953 = vpop.permute.xlu0 %3952
      %3970 = vst.msk [vmem:[#allocation3] sm:$0xff] %vm1628, %v3923
      %3971 = vst.msk [vmem:[#allocation3 + $0x10] sm:$0xff] %vm1628, %v3925
      %3972 = vst.msk [vmem:[#allocation3 + $0x20] sm:$0xff] %vm1628, %v3927
      %3973 = vst.msk [vmem:[#allocation3 + $0x30] sm:$0xff] %vm1628, %v3929
      %3974 = vst.msk [vmem:[#allocation3 + $0x40] sm:$0xff] %vm1628, %v3931
      %3975 = vst.msk [vmem:[#allocation3 + $0x50] sm:$0xff] %vm1628, %v3933
      %3976 = vst.msk [vmem:[#allocation3 + $0x60] sm:$0xff] %vm1628, %v3935
      %3977 = vst.msk [vmem:[#allocation3 + $0x70] sm:$0xff] %vm1628, %v3937
      %3978 = vst.msk [vmem:[#allocation3 + $0x80] sm:$0xff] %vm1628, %v3939
      %3979 = vst.msk [vmem:[#allocation3 + $0x90] sm:$0xff] %vm1628, %v3941
      %3980 = vst.msk [vmem:[#allocation3 + $0xa0] sm:$0xff] %vm1628, %v3943
      %3981 = vst.msk [vmem:[#allocation3 + $0xb0] sm:$0xff] %vm1628, %v3945
      %3982 = vst.msk [vmem:[#allocation3 + $0xc0] sm:$0xff] %vm1628, %v3947
      %3983 = vst.msk [vmem:[#allocation3 + $0xd0] sm:$0xff] %vm1628, %v3949
      %3984 = vst.msk [vmem:[#allocation3 + $0xe0] sm:$0xff] %vm1628, %v3951
      %3985 = vst.msk [vmem:[#allocation3 + $0xf0] sm:$0xff] %vm1628, %v3953
      %v3986 = vld [vmem:[%s3409] sm:$0xe]
      %v3987 = vld [vmem:[%s3409 + $0x4] sm:$0xf]
      %v3988 = vld [vmem:[%s3409 + $0x8] sm:$0x1]
      %v3989 = vld [vmem:[%s3409 + $0xc] sm:$0xe]
      %v3990 = vld [vmem:[%s3409 + $0x10] sm:$0xf]
      %v3991 = vld [vmem:[%s3409 + $0x14] sm:$0x1]
      %v3992 = vld [vmem:[%s3409 + $0x18] sm:$0xe]
      %v3993 = vld [vmem:[%s3409 + $0x1c] sm:$0xf]
      %v3994 = vld [vmem:[%s3409 + $0x20] sm:$0x1]
      %v3995 = vld [vmem:[%s3409 + $0x24] sm:$0xe]
      %v3996 = vld [vmem:[%s3409 + $0x28] sm:$0xf]
      %v3997 = vld [vmem:[%s3409 + $0x2c] sm:$0x1]
      %v3998 = vld [vmem:[%s3409 + $0x30] sm:$0xe]
      %v3999 = vld [vmem:[%s3409 + $0x34] sm:$0xf]
      %v4000 = vld [vmem:[%s3409 + $0x38] sm:$0x1]
      %v4001 = vld [vmem:[%s3409 + $0x3c] sm:$0xe]
      %v4002 = vld [vmem:[%s3409 + $0x40] sm:$0xf]
      %v4003 = vld [vmem:[%s3409 + $0x44] sm:$0x1]
      %v4004 = vld [vmem:[%s3409 + $0x48] sm:$0xe]
      %v4005 = vld [vmem:[%s3409 + $0x4c] sm:$0xf]
      %v4006 = vld [vmem:[%s3409 + $0x50] sm:$0x1]
      %v4007 = vld [vmem:[%s3409 + $0x54] sm:$0xe]
      %v4008 = vld [vmem:[%s3409 + $0x58] sm:$0xf]
      %v4009 = vld [vmem:[%s3409 + $0x5c] sm:$0x1]
      %v4010 = vld [vmem:[%s3409 + $0x60] sm:$0xe]
      %v4011 = vld [vmem:[%s3409 + $0x64] sm:$0xf]
      %v4012 = vld [vmem:[%s3409 + $0x68] sm:$0x1]
      %v4013 = vld [vmem:[%s3409 + $0x6c] sm:$0xe]
      %v4014 = vld [vmem:[%s3409 + $0x70] sm:$0xf]
      %v4015 = vld [vmem:[%s3409 + $0x74] sm:$0x1]
      %v4016 = vld [vmem:[%s3409 + $0x78] sm:$0xe]
      %v4017 = vld [vmem:[%s3409 + $0x7c] sm:$0xf]
      %v4018 = vld [vmem:[%s3409 + $0x80] sm:$0x1]
      %v4019 = vld [vmem:[%s3409 + $0x84] sm:$0xe]
      %v4020 = vld [vmem:[%s3409 + $0x88] sm:$0xf]
      %v4021 = vld [vmem:[%s3409 + $0x8c] sm:$0x1]
      %v4022 = vld [vmem:[%s3409 + $0x90] sm:$0xe]
      %v4023 = vld [vmem:[%s3409 + $0x94] sm:$0xf]
      %v4024 = vld [vmem:[%s3409 + $0x98] sm:$0x1]
      %v4025 = vld [vmem:[%s3409 + $0x9c] sm:$0xe]
      %v4026 = vld [vmem:[%s3409 + $0xa0] sm:$0xf]
      %v4027 = vld [vmem:[%s3409 + $0xa4] sm:$0x1]
      %v4028 = vld [vmem:[%s3409 + $0xa8] sm:$0xe]
      %v4029 = vld [vmem:[%s3409 + $0xac] sm:$0xf]
      %v4030 = vld [vmem:[%s3409 + $0xb0] sm:$0x1]
      %v4031 = vld [vmem:[%s3409 + $0xb4] sm:$0xe]
      %v4032 = vld [vmem:[%s3409 + $0xb8] sm:$0xf]
      %v4033 = vld [vmem:[%s3409 + $0xbc] sm:$0x1]
      %v4082 = vunpack.c.l.b16 %v3986
      %v4083 = vunpack.c.l.b16 %v3987
      %v4084 = vunpack.c.l.b16 %v3988
      %v4085 = vunpack.c.l.b16 %v3989
      %v4086 = vunpack.c.l.b16 %v3990
      %v4087 = vunpack.c.l.b16 %v3991
      %v4088 = vunpack.c.l.b16 %v3992
      %v4089 = vunpack.c.l.b16 %v3993
      %v4090 = vunpack.c.l.b16 %v3994
      %v4091 = vunpack.c.l.b16 %v3995
      %v4092 = vunpack.c.l.b16 %v3996
      %v4093 = vunpack.c.l.b16 %v3997
      %v4094 = vunpack.c.l.b16 %v3998
      %v4095 = vunpack.c.l.b16 %v3999
      %v4096 = vunpack.c.l.b16 %v4000
      %v4097 = vunpack.c.l.b16 %v4001
      %v4098 = vunpack.c.l.b16 %v4002
      %v4099 = vunpack.c.l.b16 %v4003
      %v4100 = vunpack.c.l.b16 %v4004
      %v4101 = vunpack.c.l.b16 %v4005
      %v4102 = vunpack.c.l.b16 %v4006
      %v4103 = vunpack.c.l.b16 %v4007
      %v4104 = vunpack.c.l.b16 %v4008
      %v4105 = vunpack.c.l.b16 %v4009
      %v4106 = vunpack.c.l.b16 %v4010
      %v4107 = vunpack.c.l.b16 %v4011
      %v4108 = vunpack.c.l.b16 %v4012
      %v4109 = vunpack.c.l.b16 %v4013
      %v4110 = vunpack.c.l.b16 %v4014
      %v4111 = vunpack.c.l.b16 %v4015
      %v4112 = vunpack.c.l.b16 %v4016
      %v4113 = vunpack.c.l.b16 %v4017
      %v4114 = vunpack.c.l.b16 %v4018
      %v4115 = vunpack.c.l.b16 %v4019
      %v4116 = vunpack.c.l.b16 %v4020
      %v4117 = vunpack.c.l.b16 %v4021
      %v4118 = vunpack.c.l.b16 %v4022
      %v4119 = vunpack.c.l.b16 %v4023
      %v4120 = vunpack.c.l.b16 %v4024
      %v4121 = vunpack.c.l.b16 %v4025
      %v4122 = vunpack.c.l.b16 %v4026
      %v4123 = vunpack.c.l.b16 %v4027
      %v4124 = vunpack.c.l.b16 %v4028
      %v4125 = vunpack.c.l.b16 %v4029
      %v4126 = vunpack.c.l.b16 %v4030
      %v4127 = vunpack.c.l.b16 %v4031
      %v4128 = vunpack.c.l.b16 %v4032
      %v4129 = vunpack.c.l.b16 %v4033
      %v4130 = vpack.c.b16 %v4083, %v4082
      %v4131 = vpack.c.b16 %v4084, %v4084
      %v4132 = vpack.c.b16 %v4086, %v4085
      %v4133 = vpack.c.b16 %v4087, %v4087
      %v4134 = vpack.c.b16 %v4089, %v4088
      %v4135 = vpack.c.b16 %v4090, %v4090
      %v4136 = vpack.c.b16 %v4092, %v4091
      %v4137 = vpack.c.b16 %v4093, %v4093
      %v4138 = vpack.c.b16 %v4095, %v4094
      %v4139 = vpack.c.b16 %v4096, %v4096
      %v4140 = vpack.c.b16 %v4098, %v4097
      %v4141 = vpack.c.b16 %v4099, %v4099
      %v4142 = vpack.c.b16 %v4101, %v4100
      %v4143 = vpack.c.b16 %v4102, %v4102
      %v4144 = vpack.c.b16 %v4104, %v4103
      %v4145 = vpack.c.b16 %v4105, %v4105
      %v4146 = vpack.c.b16 %v4107, %v4106
      %v4147 = vpack.c.b16 %v4108, %v4108
      %v4148 = vpack.c.b16 %v4110, %v4109
      %v4149 = vpack.c.b16 %v4111, %v4111
      %v4150 = vpack.c.b16 %v4113, %v4112
      %v4151 = vpack.c.b16 %v4114, %v4114
      %v4152 = vpack.c.b16 %v4116, %v4115
      %v4153 = vpack.c.b16 %v4117, %v4117
      %v4154 = vpack.c.b16 %v4119, %v4118
      %v4155 = vpack.c.b16 %v4120, %v4120
      %v4156 = vpack.c.b16 %v4122, %v4121
      %v4157 = vpack.c.b16 %v4123, %v4123
      %v4158 = vpack.c.b16 %v4125, %v4124
      %v4159 = vpack.c.b16 %v4126, %v4126
      %v4160 = vpack.c.b16 %v4128, %v4127
      %v4161 = vpack.c.b16 %v4129, %v4129
      %v4162 = vrot.slane %v4130, 1
      %v4163 = vrot.slane %v4131, 1
      %v4164 = vsel %vm1821, %v4162, %v4163
      %v4165 = vrot.slane %v4132, 1
      %v4166 = vrot.slane %v4133, 1
      %v4167 = vsel %vm1821, %v4165, %v4166
      %v4168 = vrot.slane %v4134, 1
      %v4169 = vrot.slane %v4135, 1
      %v4170 = vsel %vm1821, %v4168, %v4169
      %v4171 = vrot.slane %v4136, 1
      %v4172 = vrot.slane %v4137, 1
      %v4173 = vsel %vm1821, %v4171, %v4172
      %v4174 = vrot.slane %v4138, 1
      %v4175 = vrot.slane %v4139, 1
      %v4176 = vsel %vm1821, %v4174, %v4175
      %v4177 = vrot.slane %v4140, 1
      %v4178 = vrot.slane %v4141, 1
      %v4179 = vsel %vm1821, %v4177, %v4178
      %v4180 = vrot.slane %v4142, 1
      %v4181 = vrot.slane %v4143, 1
      %v4182 = vsel %vm1821, %v4180, %v4181
      %v4183 = vrot.slane %v4144, 1
      %v4184 = vrot.slane %v4145, 1
      %v4185 = vsel %vm1821, %v4183, %v4184
      %v4186 = vrot.slane %v4146, 1
      %v4187 = vrot.slane %v4147, 1
      %v4188 = vsel %vm1821, %v4186, %v4187
      %v4189 = vrot.slane %v4148, 1
      %v4190 = vrot.slane %v4149, 1
      %v4191 = vsel %vm1821, %v4189, %v4190
      %v4192 = vrot.slane %v4150, 1
      %v4193 = vrot.slane %v4151, 1
      %v4194 = vsel %vm1821, %v4192, %v4193
      %v4195 = vrot.slane %v4152, 1
      %v4196 = vrot.slane %v4153, 1
      %v4197 = vsel %vm1821, %v4195, %v4196
      %v4198 = vrot.slane %v4154, 1
      %v4199 = vrot.slane %v4155, 1
      %v4200 = vsel %vm1821, %v4198, %v4199
      %v4201 = vrot.slane %v4156, 1
      %v4202 = vrot.slane %v4157, 1
      %v4203 = vsel %vm1821, %v4201, %v4202
      %v4204 = vrot.slane %v4158, 1
      %v4205 = vrot.slane %v4159, 1
      %v4206 = vsel %vm1821, %v4204, %v4205
      %v4207 = vrot.slane %v4160, 1
      %v4208 = vrot.slane %v4161, 1
      %v4209 = vsel %vm1821, %v4207, %v4208
      %4226 = vst.msk [vmem:[#allocation3 + $0x8] sm:$0xff] %vm1194, %v4164
      %4227 = vst.msk [vmem:[#allocation3 + $0x18] sm:$0xff] %vm1194, %v4167
      %4228 = vst.msk [vmem:[#allocation3 + $0x28] sm:$0xff] %vm1194, %v4170
      %4229 = vst.msk [vmem:[#allocation3 + $0x38] sm:$0xff] %vm1194, %v4173
      %4230 = vst.msk [vmem:[#allocation3 + $0x48] sm:$0xff] %vm1194, %v4176
      %4231 = vst.msk [vmem:[#allocation3 + $0x58] sm:$0xff] %vm1194, %v4179
      %4232 = vst.msk [vmem:[#allocation3 + $0x68] sm:$0xff] %vm1194, %v4182
      %4233 = vst.msk [vmem:[#allocation3 + $0x78] sm:$0xff] %vm1194, %v4185
      %4234 = vst.msk [vmem:[#allocation3 + $0x88] sm:$0xff] %vm1194, %v4188
      %4235 = vst.msk [vmem:[#allocation3 + $0x98] sm:$0xff] %vm1194, %v4191
      %4236 = vst.msk [vmem:[#allocation3 + $0xa8] sm:$0xff] %vm1194, %v4194
      %4237 = vst.msk [vmem:[#allocation3 + $0xb8] sm:$0xff] %vm1194, %v4197
      %4238 = vst.msk [vmem:[#allocation3 + $0xc8] sm:$0xff] %vm1194, %v4200
      %4239 = vst.msk [vmem:[#allocation3 + $0xd8] sm:$0xff] %vm1194, %v4203
      %4240 = vst.msk [vmem:[#allocation3 + $0xe8] sm:$0xff] %vm1194, %v4206
      %4241 = vst.msk [vmem:[#allocation3 + $0xf8] sm:$0xff] %vm1194, %v4209
      %v4242 = vld [vmem:[#allocation3] sm:$0xff]
      %v4243 = vld [vmem:[#allocation3 + $0x8] sm:$0xff]
      %v4244 = vld [vmem:[#allocation3 + $0x10] sm:$0xff]
      %v4245 = vld [vmem:[#allocation3 + $0x18] sm:$0xff]
      %v4246 = vld [vmem:[#allocation3 + $0x20] sm:$0xff]
      %v4247 = vld [vmem:[#allocation3 + $0x28] sm:$0xff]
      %v4248 = vld [vmem:[#allocation3 + $0x30] sm:$0xff]
      %v4249 = vld [vmem:[#allocation3 + $0x38] sm:$0xff]
      %v4250 = vld [vmem:[#allocation3 + $0x40] sm:$0xff]
      %v4251 = vld [vmem:[#allocation3 + $0x48] sm:$0xff]
      %v4252 = vld [vmem:[#allocation3 + $0x50] sm:$0xff]
      %v4253 = vld [vmem:[#allocation3 + $0x58] sm:$0xff]
      %v4254 = vld [vmem:[#allocation3 + $0x60] sm:$0xff]
      %v4255 = vld [vmem:[#allocation3 + $0x68] sm:$0xff]
      %v4256 = vld [vmem:[#allocation3 + $0x70] sm:$0xff]
      %v4257 = vld [vmem:[#allocation3 + $0x78] sm:$0xff]
      %v4258 = vld [vmem:[#allocation3 + $0x80] sm:$0xff]
      %v4259 = vld [vmem:[#allocation3 + $0x88] sm:$0xff]
      %v4260 = vld [vmem:[#allocation3 + $0x90] sm:$0xff]
      %v4261 = vld [vmem:[#allocation3 + $0x98] sm:$0xff]
      %v4262 = vld [vmem:[#allocation3 + $0xa0] sm:$0xff]
      %v4263 = vld [vmem:[#allocation3 + $0xa8] sm:$0xff]
      %v4264 = vld [vmem:[#allocation3 + $0xb0] sm:$0xff]
      %v4265 = vld [vmem:[#allocation3 + $0xb8] sm:$0xff]
      %v4266 = vld [vmem:[#allocation3 + $0xc0] sm:$0xff]
      %v4267 = vld [vmem:[#allocation3 + $0xc8] sm:$0xff]
      %v4268 = vld [vmem:[#allocation3 + $0xd0] sm:$0xff]
      %v4269 = vld [vmem:[#allocation3 + $0xd8] sm:$0xff]
      %v4270 = vld [vmem:[#allocation3 + $0xe0] sm:$0xff]
      %v4271 = vld [vmem:[#allocation3 + $0xe8] sm:$0xff]
      %v4272 = vld [vmem:[#allocation3 + $0xf0] sm:$0xff]
      %v4273 = vld [vmem:[#allocation3 + $0xf8] sm:$0xff]
      %s4274 = scalar_lea.vmem %s3, 192
      %v4275 = vld [vmem:[%s4274] sm:$0xf]
      %v4276 = vld [vmem:[%s4274 + $0x4] sm:$0xf]
      %v4277 = vld [vmem:[%s4274 + $0x8] sm:$0xf]
      %v4278 = vld [vmem:[%s4274 + $0xc] sm:$0xf]
      %v4279 = vld [vmem:[%s4274 + $0x10] sm:$0xf]
      %v4280 = vld [vmem:[%s4274 + $0x14] sm:$0xf]
      %v4281 = vld [vmem:[%s4274 + $0x18] sm:$0xf]
      %v4282 = vld [vmem:[%s4274 + $0x1c] sm:$0xf]
      %v4283 = vld [vmem:[%s4274 + $0x20] sm:$0xf]
      %v4284 = vld [vmem:[%s4274 + $0x24] sm:$0xf]
      %v4285 = vld [vmem:[%s4274 + $0x28] sm:$0xf]
      %v4286 = vld [vmem:[%s4274 + $0x2c] sm:$0xf]
      %v4287 = vld [vmem:[%s4274 + $0x30] sm:$0xf]
      %v4288 = vld [vmem:[%s4274 + $0x34] sm:$0xf]
      %v4289 = vld [vmem:[%s4274 + $0x38] sm:$0xf]
      %v4290 = vld [vmem:[%s4274 + $0x3c] sm:$0xf]
      %v4291 = vld [vmem:[%s4274 + $0x40] sm:$0xf]
      %v4292 = vld [vmem:[%s4274 + $0x44] sm:$0xf]
      %v4293 = vld [vmem:[%s4274 + $0x48] sm:$0xf]
      %v4294 = vld [vmem:[%s4274 + $0x4c] sm:$0xf]
      %v4295 = vld [vmem:[%s4274 + $0x50] sm:$0xf]
      %v4296 = vld [vmem:[%s4274 + $0x54] sm:$0xf]
      %v4297 = vld [vmem:[%s4274 + $0x58] sm:$0xf]
      %v4298 = vld [vmem:[%s4274 + $0x5c] sm:$0xf]
      %v4323 = vunpack.c.l.b16 %v4275
      %v4324 = vunpack.c.l.b16 %v4276
      %v4325 = vunpack.c.l.b16 %v4277
      %v4326 = vunpack.c.l.b16 %v4278
      %v4327 = vunpack.c.l.b16 %v4279
      %v4328 = vunpack.c.l.b16 %v4280
      %v4329 = vunpack.c.l.b16 %v4281
      %v4330 = vunpack.c.l.b16 %v4282
      %v4331 = vunpack.c.l.b16 %v4283
      %v4332 = vunpack.c.l.b16 %v4284
      %v4333 = vunpack.c.l.b16 %v4285
      %v4334 = vunpack.c.l.b16 %v4286
      %v4335 = vunpack.c.l.b16 %v4287
      %v4336 = vunpack.c.l.b16 %v4288
      %v4337 = vunpack.c.l.b16 %v4289
      %v4338 = vunpack.c.l.b16 %v4290
      %v4339 = vunpack.c.l.b16 %v4291
      %v4340 = vunpack.c.l.b16 %v4292
      %v4341 = vunpack.c.l.b16 %v4293
      %v4342 = vunpack.c.l.b16 %v4294
      %v4343 = vunpack.c.l.b16 %v4295
      %v4344 = vunpack.c.l.b16 %v4296
      %v4345 = vunpack.c.l.b16 %v4297
      %v4346 = vunpack.c.l.b16 %v4298
      %v4347 = vpack.c.b16 %v4324, %v4323
      %v4348 = vpack.c.b16 %v4326, %v4325
      %v4349 = vpack.c.b16 %v4328, %v4327
      %v4350 = vpack.c.b16 %v4330, %v4329
      %v4351 = vpack.c.b16 %v4332, %v4331
      %v4352 = vpack.c.b16 %v4334, %v4333
      %v4353 = vpack.c.b16 %v4336, %v4335
      %v4354 = vpack.c.b16 %v4338, %v4337
      %v4355 = vpack.c.b16 %v4340, %v4339
      %v4356 = vpack.c.b16 %v4342, %v4341
      %v4357 = vpack.c.b16 %v4344, %v4343
      %v4358 = vpack.c.b16 %v4346, %v4345
      %v4372 = vsel %vm1194, %v4243, 0
      %v4375 = vsel %vm1194, %v4245, 0
      %v4378 = vsel %vm1194, %v4247, 0
      %v4381 = vsel %vm1194, %v4249, 0
      %v4384 = vsel %vm1194, %v4251, 0
      %v4387 = vsel %vm1194, %v4253, 0
      %v4390 = vsel %vm1194, %v4255, 0
      %v4393 = vsel %vm1194, %v4257, 0
      %v4396 = vsel %vm1194, %v4259, 0
      %v4399 = vsel %vm1194, %v4261, 0
      %v4402 = vsel %vm1194, %v4263, 0
      %v4405 = vsel %vm1194, %v4265, 0
      %v4408 = vsel %vm1194, %v4267, 0
      %v4411 = vsel %vm1194, %v4269, 0
      %v4414 = vsel %vm1194, %v4271, 0
      %v4417 = vsel %vm1194, %v4273, 0
      %4419 = vmatprep.subr.bf16.mxu0 0
      %4420 = vmatpush1.bf16.msra.mxu0 %v4347
      %4421 = vmatprep.subr.bf16.mxu0 0
      %4422 = vmatpush1.bf16.msra.mxu0 %v4348
      %4423 = vmatprep.subr.bf16.mxu0 0
      %4424 = vmatpush1.bf16.msra.mxu0 %v4349
      %4425 = vmatprep.subr.bf16.mxu0 0
      %4426 = vmatpush1.bf16.msra.mxu0 %v4350
      %4427 = vmatprep.subr.bf16.mxu0 0
      %4428 = vmatpush1.bf16.msra.mxu0 %v4351
      %4429 = vmatprep.subr.bf16.mxu0 0
      %4430 = vmatpush1.bf16.msra.mxu0 %v4352
      %4431 = vmatprep.subr.bf16.mxu0 0
      %4432 = vmatpush1.bf16.msra.mxu0 %v4353
      %4433 = vmatprep.subr.bf16.mxu0 0
      %4434 = vmatpush1.bf16.msra.mxu0 %v4354
      %4435 = vmatprep.subr.bf16.mxu0 0
      %4436 = vmatpush1.bf16.msra.mxu0 %v4355
      %4437 = vmatprep.subr.bf16.mxu0 0
      %4438 = vmatpush1.bf16.msra.mxu0 %v4356
      %4439 = vmatprep.subr.bf16.mxu0 0
      %4440 = vmatpush1.bf16.msra.mxu0 %v4357
      %4441 = vmatprep.subr.bf16.mxu0 0
      %4442 = vmatpush1.bf16.msra.mxu0 %v4358
      %4443 = vmatprep.subr.bf16.mxu0 0
      %4444 = vmatpush1.bf16.msra.mxu0 0
      %4445 = vmatprep.subr.bf16.mxu0 0
      %4446 = vmatpush1.bf16.msra.mxu0 0
      %4447 = vmatprep.subr.bf16.mxu0 0
      %4448 = vmatpush1.bf16.msra.mxu0 0
      %4449 = vmatprep.subr.bf16.mxu0 0
      %4450 = vmatpush1.bf16.msra.mxu0 0
      %4451 = vmatprep.mubr.bf16.mxu0 %v4372
      %4452 = vmatmul.mubr.bf16.gmra.mrb[0].mxu0 %v4242
      %v4453 = vpop.f32.mrb[0].mxu0
      %v4454 = vadd.f32 0.0, %v4453
      %v4455 = vpop.f32.mrb[0].mxu0
      %v4456 = vpop.f32.mrb[0].mxu0
      %v4457 = vadd.f32 0.0, %v4456
      %v4458 = vpop.f32.mrb[0].mxu0
      %4459 = vmatprep.mubr.bf16.mxu0 %v4375
      %4460 = vmatmul.mubr.bf16.gmra.mrb[0].mxu0 %v4244
      %v4461 = vpop.f32.mrb[0].mxu0
      %v4462 = vadd.f32 0.0, %v4461
      %v4463 = vpop.f32.mrb[0].mxu0
      %v4464 = vpop.f32.mrb[0].mxu0
      %v4465 = vadd.f32 0.0, %v4464
      %v4466 = vpop.f32.mrb[0].mxu0
      %4467 = vmatprep.mubr.bf16.mxu0 %v4378
      %4468 = vmatmul.mubr.bf16.gmra.mrb[0].mxu0 %v4246
      %v4469 = vpop.f32.mrb[0].mxu0
      %v4470 = vadd.f32 0.0, %v4469
      %v4471 = vpop.f32.mrb[0].mxu0
      %v4472 = vpop.f32.mrb[0].mxu0
      %v4473 = vadd.f32 0.0, %v4472
      %v4474 = vpop.f32.mrb[0].mxu0
      %4475 = vmatprep.mubr.bf16.mxu0 %v4381
      %4476 = vmatmul.mubr.bf16.gmra.mrb[0].mxu0 %v4248
      %v4477 = vpop.f32.mrb[0].mxu0
      %v4478 = vadd.f32 0.0, %v4477
      %v4479 = vpop.f32.mrb[0].mxu0
      %v4480 = vpop.f32.mrb[0].mxu0
      %v4481 = vadd.f32 0.0, %v4480
      %v4482 = vpop.f32.mrb[0].mxu0
      %4483 = vmatprep.mubr.bf16.mxu0 %v4384
      %4484 = vmatmul.mubr.bf16.gmra.mrb[0].mxu0 %v4250
      %v4485 = vpop.f32.mrb[0].mxu0
      %v4486 = vadd.f32 0.0, %v4485
      %v4487 = vpop.f32.mrb[0].mxu0
      %v4488 = vpop.f32.mrb[0].mxu0
      %v4489 = vadd.f32 0.0, %v4488
      %v4490 = vpop.f32.mrb[0].mxu0
      %4491 = vmatprep.mubr.bf16.mxu0 %v4387
      %4492 = vmatmul.mubr.bf16.gmra.mrb[0].mxu0 %v4252
      %v4493 = vpop.f32.mrb[0].mxu0
      %v4494 = vadd.f32 0.0, %v4493
      %v4495 = vpop.f32.mrb[0].mxu0
      %v4496 = vpop.f32.mrb[0].mxu0
      %v4497 = vadd.f32 0.0, %v4496
      %v4498 = vpop.f32.mrb[0].mxu0
      %4499 = vmatprep.mubr.bf16.mxu0 %v4390
      %4500 = vmatmul.mubr.bf16.gmra.mrb[0].mxu0 %v4254
      %v4501 = vpop.f32.mrb[0].mxu0
      %v4502 = vadd.f32 0.0, %v4501
      %v4503 = vpop.f32.mrb[0].mxu0
      %v4504 = vpop.f32.mrb[0].mxu0
      %v4505 = vadd.f32 0.0, %v4504
      %v4506 = vpop.f32.mrb[0].mxu0
      %4507 = vmatprep.mubr.bf16.mxu0 %v4393
      %4508 = vmatmul.mubr.bf16.gmra.mrb[0].mxu0 %v4256
      %v4509 = vpop.f32.mrb[0].mxu0
      %v4510 = vadd.f32 0.0, %v4509
      %v4511 = vpop.f32.mrb[0].mxu0
      %v4512 = vpop.f32.mrb[0].mxu0
      %v4513 = vadd.f32 0.0, %v4512
      %v4514 = vpop.f32.mrb[0].mxu0
      %4515 = vmatprep.mubr.bf16.mxu0 %v4396
      %4516 = vmatmul.mubr.bf16.gmra.mrb[0].mxu0 %v4258
      %v4517 = vpop.f32.mrb[0].mxu0
      %v4518 = vadd.f32 0.0, %v4517
      %v4519 = vpop.f32.mrb[0].mxu0
      %v4520 = vpop.f32.mrb[0].mxu0
      %v4521 = vadd.f32 0.0, %v4520
      %v4522 = vpop.f32.mrb[0].mxu0
      %4523 = vmatprep.mubr.bf16.mxu0 %v4399
      %4524 = vmatmul.mubr.bf16.gmra.mrb[0].mxu0 %v4260
      %v4525 = vpop.f32.mrb[0].mxu0
      %v4526 = vadd.f32 0.0, %v4525
      %v4527 = vpop.f32.mrb[0].mxu0
      %v4528 = vpop.f32.mrb[0].mxu0
      %v4529 = vadd.f32 0.0, %v4528
      %v4530 = vpop.f32.mrb[0].mxu0
      %4531 = vmatprep.mubr.bf16.mxu0 %v4402
      %4532 = vmatmul.mubr.bf16.gmra.mrb[0].mxu0 %v4262
      %v4533 = vpop.f32.mrb[0].mxu0
      %v4534 = vadd.f32 0.0, %v4533
      %v4535 = vpop.f32.mrb[0].mxu0
      %v4536 = vpop.f32.mrb[0].mxu0
      %v4537 = vadd.f32 0.0, %v4536
      %v4538 = vpop.f32.mrb[0].mxu0
      %4539 = vmatprep.mubr.bf16.mxu0 %v4405
      %4540 = vmatmul.mubr.bf16.gmra.mrb[0].mxu0 %v4264
      %v4541 = vpop.f32.mrb[0].mxu0
      %v4542 = vadd.f32 0.0, %v4541
      %v4543 = vpop.f32.mrb[0].mxu0
      %v4544 = vpop.f32.mrb[0].mxu0
      %v4545 = vadd.f32 0.0, %v4544
      %v4546 = vpop.f32.mrb[0].mxu0
      %4547 = vmatprep.mubr.bf16.mxu0 %v4408
      %4548 = vmatmul.mubr.bf16.gmra.mrb[0].mxu0 %v4266
      %v4549 = vpop.f32.mrb[0].mxu0
      %v4550 = vadd.f32 0.0, %v4549
      %v4551 = vpop.f32.mrb[0].mxu0
      %v4552 = vpop.f32.mrb[0].mxu0
      %v4553 = vadd.f32 0.0, %v4552
      %v4554 = vpop.f32.mrb[0].mxu0
      %4555 = vmatprep.mubr.bf16.mxu0 %v4411
      %4556 = vmatmul.mubr.bf16.gmra.mrb[0].mxu0 %v4268
      %v4557 = vpop.f32.mrb[0].mxu0
      %v4558 = vadd.f32 0.0, %v4557
      %v4559 = vpop.f32.mrb[0].mxu0
      %v4560 = vpop.f32.mrb[0].mxu0
      %v4561 = vadd.f32 0.0, %v4560
      %v4562 = vpop.f32.mrb[0].mxu0
      %4563 = vmatprep.mubr.bf16.mxu0 %v4414
      %4564 = vmatmul.mubr.bf16.gmra.mrb[0].mxu0 %v4270
      %v4565 = vpop.f32.mrb[0].mxu0
      %v4566 = vadd.f32 0.0, %v4565
      %v4567 = vpop.f32.mrb[0].mxu0
      %v4568 = vpop.f32.mrb[0].mxu0
      %v4569 = vadd.f32 0.0, %v4568
      %v4570 = vpop.f32.mrb[0].mxu0
      %4571 = vmatprep.mubr.bf16.mxu0 %v4417
      %4572 = vmatmul.mubr.bf16.gmra.mrb[0].mxu0 %v4272
      %v4573 = vpop.f32.mrb[0].mxu0
      %v4574 = vadd.f32 0.0, %v4573
      %v4575 = vpop.f32.mrb[0].mxu0
      %v4576 = vpop.f32.mrb[0].mxu0
      %v4577 = vadd.f32 0.0, %v4576
      %v4578 = vpop.f32.mrb[0].mxu0
      %4579 = vdwg.mxu0
      %v4580 = vadd.f32 %v3283, %v4454
      %v4581 = vadd.f32 %v3286, %v4457
      %v4582 = vadd.f32 %v3291, %v4462
      %v4583 = vadd.f32 %v3294, %v4465
      %v4584 = vadd.f32 %v3299, %v4470
      %v4585 = vadd.f32 %v3302, %v4473
      %v4586 = vadd.f32 %v3307, %v4478
      %v4587 = vadd.f32 %v3310, %v4481
      %v4588 = vadd.f32 %v3315, %v4486
      %v4589 = vadd.f32 %v3318, %v4489
      %v4590 = vadd.f32 %v3323, %v4494
      %v4591 = vadd.f32 %v3326, %v4497
      %v4592 = vadd.f32 %v3331, %v4502
      %v4593 = vadd.f32 %v3334, %v4505
      %v4594 = vadd.f32 %v3339, %v4510
      %v4595 = vadd.f32 %v3342, %v4513
      %v4596 = vadd.f32 %v3347, %v4518
      %v4597 = vadd.f32 %v3350, %v4521
      %v4598 = vadd.f32 %v3355, %v4526
      %v4599 = vadd.f32 %v3358, %v4529
      %v4600 = vadd.f32 %v3363, %v4534
      %v4601 = vadd.f32 %v3366, %v4537
      %v4602 = vadd.f32 %v3371, %v4542
      %v4603 = vadd.f32 %v3374, %v4545
      %v4604 = vadd.f32 %v3379, %v4550
      %v4605 = vadd.f32 %v3382, %v4553
      %v4606 = vadd.f32 %v3387, %v4558
      %v4607 = vadd.f32 %v3390, %v4561
      %v4608 = vadd.f32 %v3395, %v4566
      %v4609 = vadd.f32 %v3398, %v4569
      %v4610 = vadd.f32 %v3403, %v4574
      %v4611 = vadd.f32 %v3406, %v4577
      %v4612 = vpack.c.bf16 %v4581, %v4580
      %v4613 = vpack.c.bf16 %v4583, %v4582
      %v4614 = vpack.c.bf16 %v4585, %v4584
      %v4615 = vpack.c.bf16 %v4587, %v4586
      %v4616 = vpack.c.bf16 %v4589, %v4588
      %v4617 = vpack.c.bf16 %v4591, %v4590
      %v4618 = vpack.c.bf16 %v4593, %v4592
      %v4619 = vpack.c.bf16 %v4595, %v4594
      %v4620 = vpack.c.bf16 %v4597, %v4596
      %v4621 = vpack.c.bf16 %v4599, %v4598
      %v4622 = vpack.c.bf16 %v4601, %v4600
      %v4623 = vpack.c.bf16 %v4603, %v4602
      %v4624 = vpack.c.bf16 %v4605, %v4604
      %v4625 = vpack.c.bf16 %v4607, %v4606
      %v4626 = vpack.c.bf16 %v4609, %v4608
      %v4627 = vpack.c.bf16 %v4611, %v4610
      %v4644 = vunpack.c.l.b16 %v4612
      %v4645 = vunpack.c.h.b16 %v4612
      %v4646 = vunpack.c.l.b16 %v4613
      %v4647 = vunpack.c.h.b16 %v4613
      %v4648 = vunpack.c.l.b16 %v4614
      %v4649 = vunpack.c.h.b16 %v4614
      %v4650 = vunpack.c.l.b16 %v4615
      %v4651 = vunpack.c.h.b16 %v4615
      %v4652 = vunpack.c.l.b16 %v4616
      %v4653 = vunpack.c.h.b16 %v4616
      %v4654 = vunpack.c.l.b16 %v4617
      %v4655 = vunpack.c.h.b16 %v4617
      %v4656 = vunpack.c.l.b16 %v4618
      %v4657 = vunpack.c.h.b16 %v4618
      %v4658 = vunpack.c.l.b16 %v4619
      %v4659 = vunpack.c.h.b16 %v4619
      %v4660 = vunpack.c.l.b16 %v4620
      %v4661 = vunpack.c.h.b16 %v4620
      %v4662 = vunpack.c.l.b16 %v4621
      %v4663 = vunpack.c.h.b16 %v4621
      %v4664 = vunpack.c.l.b16 %v4622
      %v4665 = vunpack.c.h.b16 %v4622
      %v4666 = vunpack.c.l.b16 %v4623
      %v4667 = vunpack.c.h.b16 %v4623
      %v4668 = vunpack.c.l.b16 %v4624
      %v4669 = vunpack.c.h.b16 %v4624
      %v4670 = vunpack.c.l.b16 %v4625
      %v4671 = vunpack.c.h.b16 %v4625
      %v4672 = vunpack.c.l.b16 %v4626
      %v4673 = vunpack.c.h.b16 %v4626
      %v4674 = vunpack.c.l.b16 %v4627
      %v4675 = vunpack.c.h.b16 %v4627
      %v4676 = vpack.c.b16 %v4644, %v4644
      %v4677 = vpack.c.b16 %v4645, %v4645
      %v4678 = vpack.c.b16 %v4646, %v4646
      %v4679 = vpack.c.b16 %v4647, %v4647
      %v4680 = vpack.c.b16 %v4648, %v4648
      %v4681 = vpack.c.b16 %v4649, %v4649
      %v4682 = vpack.c.b16 %v4650, %v4650
      %v4683 = vpack.c.b16 %v4651, %v4651
      %v4684 = vpack.c.b16 %v4652, %v4652
      %v4685 = vpack.c.b16 %v4653, %v4653
      %v4686 = vpack.c.b16 %v4654, %v4654
      %v4687 = vpack.c.b16 %v4655, %v4655
      %v4688 = vpack.c.b16 %v4656, %v4656
      %v4689 = vpack.c.b16 %v4657, %v4657
      %v4690 = vpack.c.b16 %v4658, %v4658
      %v4691 = vpack.c.b16 %v4659, %v4659
      %v4692 = vpack.c.b16 %v4660, %v4660
      %v4693 = vpack.c.b16 %v4661, %v4661
      %v4694 = vpack.c.b16 %v4662, %v4662
      %v4695 = vpack.c.b16 %v4663, %v4663
      %v4696 = vpack.c.b16 %v4664, %v4664
      %v4697 = vpack.c.b16 %v4665, %v4665
      %v4698 = vpack.c.b16 %v4666, %v4666
      %v4699 = vpack.c.b16 %v4667, %v4667
      %v4700 = vpack.c.b16 %v4668, %v4668
      %v4701 = vpack.c.b16 %v4669, %v4669
      %v4702 = vpack.c.b16 %v4670, %v4670
      %v4703 = vpack.c.b16 %v4671, %v4671
      %v4704 = vpack.c.b16 %v4672, %v4672
      %v4705 = vpack.c.b16 %v4673, %v4673
      %v4706 = vpack.c.b16 %v4674, %v4674
      %v4707 = vpack.c.b16 %v4675, %v4675
      %4740 = vst [vmem:[%s231] sm:$0xf] %v4676
      %4741 = vst [vmem:[%s231 + $0x4] sm:$0xf] %v4677
      %4742 = vst [vmem:[%s231 + $0x8] sm:$0xf] %v4678
      %4743 = vst [vmem:[%s231 + $0xc] sm:$0xf] %v4679
      %4744 = vst [vmem:[%s231 + $0x10] sm:$0xf] %v4680
      %4745 = vst [vmem:[%s231 + $0x14] sm:$0xf] %v4681
      %4746 = vst [vmem:[%s231 + $0x18] sm:$0xf] %v4682
      %4747 = vst [vmem:[%s231 + $0x1c] sm:$0xf] %v4683
      %4748 = vst [vmem:[%s231 + $0x20] sm:$0xf] %v4684
      %4749 = vst [vmem:[%s231 + $0x24] sm:$0xf] %v4685
      %4750 = vst [vmem:[%s231 + $0x28] sm:$0xf] %v4686
      %4751 = vst [vmem:[%s231 + $0x2c] sm:$0xf] %v4687
      %4752 = vst [vmem:[%s231 + $0x30] sm:$0xf] %v4688
      %4753 = vst [vmem:[%s231 + $0x34] sm:$0xf] %v4689
      %4754 = vst [vmem:[%s231 + $0x38] sm:$0xf] %v4690
      %4755 = vst [vmem:[%s231 + $0x3c] sm:$0xf] %v4691
      %4756 = vst [vmem:[%s231 + $0x40] sm:$0xf] %v4692
      %4757 = vst [vmem:[%s231 + $0x44] sm:$0xf] %v4693
      %4758 = vst [vmem:[%s231 + $0x48] sm:$0xf] %v4694
      %4759 = vst [vmem:[%s231 + $0x4c] sm:$0xf] %v4695
      %4760 = vst [vmem:[%s231 + $0x50] sm:$0xf] %v4696
      %4761 = vst [vmem:[%s231 + $0x54] sm:$0xf] %v4697
      %4762 = vst [vmem:[%s231 + $0x58] sm:$0xf] %v4698
      %4763 = vst [vmem:[%s231 + $0x5c] sm:$0xf] %v4699
      %4764 = vst [vmem:[%s231 + $0x60] sm:$0xf] %v4700
      %4765 = vst [vmem:[%s231 + $0x64] sm:$0xf] %v4701
      %4766 = vst [vmem:[%s231 + $0x68] sm:$0xf] %v4702
      %4767 = vst [vmem:[%s231 + $0x6c] sm:$0xf] %v4703
      %4768 = vst [vmem:[%s231 + $0x70] sm:$0xf] %v4704
      %4769 = vst [vmem:[%s231 + $0x74] sm:$0xf] %v4705
      %4770 = vst [vmem:[%s231 + $0x78] sm:$0xf] %v4706
      %4771 = vst [vmem:[%s231 + $0x7c] sm:$0xf] %v4707
      %v4772 = vadd.f32 %v4580, %v4582
      %v4773 = vadd.f32 %v4772, %v4584
      %v4774 = vadd.f32 %v4773, %v4586
      %v4775 = vadd.f32 %v4774, %v4588
      %v4776 = vadd.f32 %v4775, %v4590
      %v4777 = vadd.f32 %v4776, %v4592
      %v4778 = vadd.f32 %v4777, %v4594
      %v4779 = vadd.f32 %v4778, %v4596
      %v4780 = vadd.f32 %v4779, %v4598
      %v4781 = vadd.f32 %v4780, %v4600
      %v4782 = vadd.f32 %v4781, %v4602
      %v4783 = vadd.f32 %v4782, %v4604
      %v4784 = vadd.f32 %v4783, %v4606
      %v4785 = vadd.f32 %v4784, %v4608
      %v4786 = vadd.f32 %v4785, %v4610
      %v4787 = vadd.f32 %v4581, %v4583
      %v4788 = vadd.f32 %v4787, %v4585
      %v4789 = vadd.f32 %v4788, %v4587
      %v4790 = vadd.f32 %v4789, %v4589
      %v4791 = vadd.f32 %v4790, %v4591
      %v4792 = vadd.f32 %v4791, %v4593
      %v4793 = vadd.f32 %v4792, %v4595
      %v4794 = vadd.f32 %v4793, %v4597
      %v4795 = vadd.f32 %v4794, %v4599
      %v4796 = vadd.f32 %v4795, %v4601
      %v4797 = vadd.f32 %v4796, %v4603
      %v4798 = vadd.f32 %v4797, %v4605
      %v4799 = vadd.f32 %v4798, %v4607
      %v4800 = vadd.f32 %v4799, %v4609
      %v4801 = vadd.f32 %v4800, %v4611
      %v4802 = vadd.f32 %v4786, %v4801
      %v4803 = vrot.slane %v4802, 4
      %v4804 = vadd.f32 %v4802, %v4803
      %v4805 = vrot.slane %v4804, 2
      %v4806 = vadd.f32 %v4804, %v4805
      %v4807 = vrot.slane %v4806, 1
      %v4808 = vadd.f32 %v4806, %v4807
      %4809 = vst [vmem:[%s235] sm:$0x1] %v4808
      %v4810 = vmul.f32 %v4580, %v4580
      %v4811 = vmul.f32 %v4581, %v4581
      %v4812 = vmul.f32 %v4582, %v4582
      %v4813 = vmul.f32 %v4583, %v4583
      %v4814 = vmul.f32 %v4584, %v4584
      %v4815 = vmul.f32 %v4585, %v4585
      %v4816 = vmul.f32 %v4586, %v4586
      %v4817 = vmul.f32 %v4587, %v4587
      %v4818 = vmul.f32 %v4588, %v4588
      %v4819 = vmul.f32 %v4589, %v4589
      %v4820 = vmul.f32 %v4590, %v4590
      %v4821 = vmul.f32 %v4591, %v4591
      %v4822 = vmul.f32 %v4592, %v4592
      %v4823 = vmul.f32 %v4593, %v4593
      %v4824 = vmul.f32 %v4594, %v4594
      %v4825 = vmul.f32 %v4595, %v4595
      %v4826 = vmul.f32 %v4596, %v4596
      %v4827 = vmul.f32 %v4597, %v4597
      %v4828 = vmul.f32 %v4598, %v4598
      %v4829 = vmul.f32 %v4599, %v4599
      %v4830 = vmul.f32 %v4600, %v4600
      %v4831 = vmul.f32 %v4601, %v4601
      %v4832 = vmul.f32 %v4602, %v4602
      %v4833 = vmul.f32 %v4603, %v4603
      %v4834 = vmul.f32 %v4604, %v4604
      %v4835 = vmul.f32 %v4605, %v4605
      %v4836 = vmul.f32 %v4606, %v4606
      %v4837 = vmul.f32 %v4607, %v4607
      %v4838 = vmul.f32 %v4608, %v4608
      %v4839 = vmul.f32 %v4609, %v4609
      %v4840 = vmul.f32 %v4610, %v4610
      %v4841 = vmul.f32 %v4611, %v4611
      %v4842 = vadd.f32 %v4810, %v4812
      %v4843 = vadd.f32 %v4842, %v4814
      %v4844 = vadd.f32 %v4843, %v4816
      %v4845 = vadd.f32 %v4844, %v4818
      %v4846 = vadd.f32 %v4845, %v4820
      %v4847 = vadd.f32 %v4846, %v4822
      %v4848 = vadd.f32 %v4847, %v4824
      %v4849 = vadd.f32 %v4848, %v4826
      %v4850 = vadd.f32 %v4849, %v4828
      %v4851 = vadd.f32 %v4850, %v4830
      %v4852 = vadd.f32 %v4851, %v4832
      %v4853 = vadd.f32 %v4852, %v4834
      %v4854 = vadd.f32 %v4853, %v4836
      %v4855 = vadd.f32 %v4854, %v4838
      %v4856 = vadd.f32 %v4855, %v4840
      %v4857 = vadd.f32 %v4811, %v4813
      %v4858 = vadd.f32 %v4857, %v4815
      %v4859 = vadd.f32 %v4858, %v4817
      %v4860 = vadd.f32 %v4859, %v4819
      %v4861 = vadd.f32 %v4860, %v4821
      %v4862 = vadd.f32 %v4861, %v4823
      %v4863 = vadd.f32 %v4862, %v4825
      %v4864 = vadd.f32 %v4863, %v4827
      %v4865 = vadd.f32 %v4864, %v4829
      %v4866 = vadd.f32 %v4865, %v4831
      %v4867 = vadd.f32 %v4866, %v4833
      %v4868 = vadd.f32 %v4867, %v4835
      %v4869 = vadd.f32 %v4868, %v4837
      %v4870 = vadd.f32 %v4869, %v4839
      %v4871 = vadd.f32 %v4870, %v4841
      %v4872 = vadd.f32 %v4856, %v4871
      %v4873 = vrot.slane %v4872, 4
      %v4874 = vadd.f32 %v4872, %v4873
      %v4875 = vrot.slane %v4874, 2
      %v4876 = vadd.f32 %v4874, %v4875
      %v4877 = vrot.slane %v4876, 1
      %v4878 = vadd.f32 %v4876, %v4877
      %4879 = vst [vmem:[%s235 + $0x1] sm:$0x1] %v4878
      %p4880 = scmp.lt.s32.totalorder %s17, 1
      %s4881 = scalar_select %p4880, %s17, 1
      %s4882 = smul.addr %s4881, 32
      %s4883 = smul.addr %s4882, 4
      %s4884 = scalar_lea.vmem %s4, %s4883
      %p4885 = scmp.lt.s32.totalorder %s17, 1
      %s4886 = scalar_select %p4885, %s17, 1
      %s4887 = smul.addr %s4886, 2
      %s4888 = scalar_lea.vmem %s5, %s4887
      // Predicated region
      $region37: #{inception_b_forward.6} parent=35 // pred_check
        %p4889 = pneg %p124
      $region38: #{inception_b_forward.6} parent=35 // pred_check_branch
        %4891 = sbr.rel (%p4889) target = $region40
      $region39: #{inception_b_forward.6} parent=35 // pred_region
        _
      $region40: #{inception_b_forward.6} parent=35 // pred_fallthru
        _
      // Predicated region
      $region41: #{inception_b_forward.6} parent=35 // pred_check
        %p4892 = pneg %p150
      $region42: #{inception_b_forward.6} parent=35 // pred_check_branch
        %4894 = sbr.rel (%p4892) target = $region44
      $region43: #{inception_b_forward.6} parent=35 // pred_region
        _
      $region44: #{inception_b_forward.6} parent=35 // pred_fallthru
        _
    $region36: #{inception_b_forward.6} parent=5 // pred_fallthru
      _
    %p4895 = scmp.le.s32.totalorder 2, %s12
    // Predicated region
    $region45: #{inception_b_forward.6} parent=5 // pred_check
      %p4896 = pneg %p4895
    $region46: #{inception_b_forward.6} parent=5 // pred_check_branch
      %4898 = sbr.rel (%p4896) target = $region48
    $region47: #{inception_b_forward.6} parent=5 // pred_region
      %s4899 = ssub.s32 %s12, 2
      // Predicated region
      $region49: #{inception_b_forward.6} parent=47 // pred_check
        %p4900 = pneg %p130
      $region50: #{inception_b_forward.6} parent=47 // pred_check_branch
        %4902 = sbr.rel (%p4900) target = $region52
      $region51: #{inception_b_forward.6} parent=47 // pred_region
        %p4903 = scmp.lt.s32.totalorder %s18, 1
        %s4904 = scalar_select %p4903, %s18, 1
        %s4905 = smul.addr %s4904, 32
        %s4906 = smul.addr %s4905, 4
        %s4907 = scalar_lea.vmem %s4, %s4906
      $region52: #{inception_b_forward.6} parent=47 // pred_fallthru
        _
      // Predicated region
      $region53: #{inception_b_forward.6} parent=47 // pred_check
        %p4908 = pneg %p156
      $region54: #{inception_b_forward.6} parent=47 // pred_check_branch
        %4910 = sbr.rel (%p4908) target = $region56
      $region55: #{inception_b_forward.6} parent=47 // pred_region
        %p4911 = scmp.lt.s32.totalorder %s18, 1
        %s4912 = scalar_select %p4911, %s18, 1
        %s4913 = smul.addr %s4912, 2
        %s4914 = scalar_lea.vmem %s5, %s4913
      $region56: #{inception_b_forward.6} parent=47 // pred_fallthru
        _
    $region48: #{inception_b_forward.6} parent=5 // pred_fallthru
      _
  $region6: #{inception_b_forward.6} parent=0 // loop_footer
    %s16 = sadd.s32 1, %s12
  $region7: #{inception_b_forward.6} parent=0 // loop_footer_branch
    %11 = sbr.rel target = $region3
  $region8: #{inception_b_forward.6} parent=0 // loop_exit
    _

</llo_original>
